<compile_context>
chip_gen: v5e
topology: v5e:2x2
jax: 0.10.0
libtpu: 0.0.40
codegen_flags: <defaults>
</compile_context>

<pallas_src>
import jax
import jax.numpy as jnp
from jax import lax
from jax.experimental import pallas as pl
from jax.experimental.pallas import tpu as pltpu

HIDDEN = 128
LSTM_IN = 162
LSTM_IN_PAD = 256            # 162 padded to a lane multiple (clean K tiles)
X_DIM = 484
X_PAD = 512                  # 484 padded to a lane multiple
MLP = 512
W1_ROWS = HIDDEN + X_PAD     # 640: fused dense1 weight (h rows 0..127, x rows 128..639)


def _gate_sigmoid(x):
    # exp (EUP) + approximate reciprocal (EUP) keeps the gate nonlinearity off
    # the VPU-divide path inside the serial recurrence.
    return pl.reciprocal(1.0 + jnp.exp(-x), approx=True)


def _farmer_kernel(z_ref, x_ref,
                   w_ih_ref, w_hh_ref, b_lstm_ref,
                   w1_hbm, b1_ref,
                   wstack_hbm, b2_ref, b3_ref, b4_ref, b5_ref,
                   w6_ref, b6_ref,
                   out_ref,
                   w1_v, wstack_v, zw_ref, sem):
    B = x_ref.shape[0]              # padded batch (multiple of 16)
    T = z_ref.shape[0] // B         # static timestep count
    H = HIDDEN

    # ---- two fused MLP-weight DMAs, started in consumption order ----------
    cp_w1 = pltpu.make_async_copy(w1_hbm, w1_v, sem.at[0])
    cp_wstack = pltpu.make_async_copy(wstack_hbm, wstack_v, sem.at[1])
    cp_w1.start()
    cp_wstack.start()

    # ---- hoisted LSTM input projection (bias fused), one big MXU pass -----
    zw_ref[...] = (jnp.dot(z_ref[...], w_ih_ref[...],
                           preferred_element_type=jnp.float32)
                   + b_lstm_ref[...])                        # (T*B, 4H) f32

    w_hh = w_hh_ref[...]                                     # (128, 4H) bf16

    def lstm_step(t, carry):
        h, c = carry
        gates = (zw_ref[pl.ds(t * B, B), :]
                 + jnp.dot(h.astype(jnp.bfloat16), w_hh,
                           preferred_element_type=jnp.float32))   # (B, 4H)
        # PyTorch gate order: input, forget, cell(g), output
        i = _gate_sigmoid(gates[:, 0 * H:1 * H])
        f = _gate_sigmoid(gates[:, 1 * H:2 * H])
        g = jnp.tanh(gates[:, 2 * H:3 * H])
        o = _gate_sigmoid(gates[:, 3 * H:4 * H])
        c_new = f * c + i * g
        h_new = o * jnp.tanh(c_new)
        return (h_new, c_new)

    h0 = jnp.zeros((B, H), jnp.float32)
    c0 = jnp.zeros((B, H), jnp.float32)
    h_last, _ = lax.fori_loop(0, T, lstm_step, (h0, c0), unroll=True)

    # ---- staged waits: only dense1's weight must be resident now ----------
    cp_w1.wait()
    # dense1 on concat([h_last, x]) as a split matmul (avoids lane concat).
    a = (jnp.dot(h_last.astype(jnp.bfloat16), w1_v[pl.ds(0, HIDDEN), :],
                 preferred_element_type=jnp.float32)
         + jnp.dot(x_ref[...], w1_v[pl.ds(HIDDEN, X_PAD), :],
                   preferred_element_type=jnp.float32)
         + b1_ref[...])
    a = jnp.maximum(a, 0.0)

    # w2..w5 stack keeps streaming behind dense1 compute; wait just before use.
    cp_wstack.wait()
    for idx, b_ref in enumerate((b2_ref, b3_ref, b4_ref, b5_ref)):
        a = (jnp.dot(a.astype(jnp.bfloat16), wstack_v[idx],
                     preferred_element_type=jnp.float32) + b_ref[...])
        a = jnp.maximum(a, 0.0)

    # Final 512 -> 1 layer: VPU multiply + lane reduce (skip N=1 MXU pass).
    logits = jnp.sum(a * w6_ref[...], axis=-1, keepdims=True) + b6_ref[...]
    out_ref[...] = jax.nn.sigmoid(logits)


@jax.jit
def farmer_lstm_model_npc(z, x, params):
    """z: (B, T, 162), x: (B, 484) -> (B, 1) float32."""
    B, T, _ = z.shape
    B_pad = ((B + 15) // 16) * 16          # bf16 sublane packing friendly

    z_tm = jnp.transpose(z.astype(jnp.float32), (1, 0, 2))          # (T, B, 162)
    z_tm = jnp.pad(z_tm, ((0, 0), (0, B_pad - B), (0, LSTM_IN_PAD - LSTM_IN)))
    z2d = z_tm.reshape(T * B_pad, LSTM_IN_PAD).astype(jnp.bfloat16)  # time-major rows

    x_p = jnp.pad(x.astype(jnp.float32),
                  ((0, B_pad - B), (0, X_PAD - X_DIM))).astype(jnp.bfloat16)

    operands = (
        z2d, x_p,
        params["w_ih"], params["w_hh"], params["b_lstm"],
        params["w1"], params["b1"],
        params["w_stack"], params["b2"], params["b3"], params["b4"], params["b5"],
        params["w6"], params["b6"],
    )

    vmem = pl.BlockSpec(memory_space=pltpu.MemorySpace.VMEM)
    hbm = pl.BlockSpec(memory_space=pl.ANY)
    in_specs = [
        vmem, vmem,            # z2d, x
        vmem, vmem, vmem,      # w_ih, w_hh, b_lstm (needed immediately)
        hbm, vmem,             # w1 (manual DMA), b1
        hbm, vmem, vmem, vmem, vmem,   # w2..w5 stack (manual DMA), b2..b5
        vmem, vmem,            # w6 row, b6
    ]
    scratch_shapes = [
        pltpu.VMEM((W1_ROWS, MLP), jnp.bfloat16),           # fused dense1 weight
        pltpu.VMEM((4, MLP, MLP), jnp.bfloat16),            # dense2..5 stack
        pltpu.VMEM((T * B_pad, 4 * HIDDEN), jnp.float32),   # hoisted z @ W_ih
        pltpu.SemaphoreType.DMA((2,)),
    ]

    out = pl.pallas_call(
        _farmer_kernel,
        out_shape=jax.ShapeDtypeStruct((B_pad, 1), jnp.float32),
        in_specs=in_specs,
        out_specs=vmem,
        scratch_shapes=scratch_shapes,
        compiler_params=pltpu.CompilerParams(vmem_limit_bytes=16 << 20),
    )(*operands)
    return out[:B]


def init_params(key):
    """Deterministic synthetic parameters, shapes matching the nn.Module.

    Big matmul weights are stored transposed (in_features, out_features) in
    bf16; biases (and the fused LSTM bias b_ih+b_hh) stay f32.  w_ih is
    zero-padded to 256 input rows; dense1 is stored as a single (640, 512)
    slab (h-part then zero-padded x-part); dense2..5 are stacked (4,512,512);
    w6 is a (1, 512) row for the VPU reduce.
    """
    ks = jax.random.split(key, 16)

    def u(k, shape, scale):
        return jax.random.uniform(k, shape, jnp.float32, -scale, scale)

    s_lstm = 1.0 / jnp.sqrt(HIDDEN)
    w_ih = u(ks[0], (LSTM_IN, 4 * HIDDEN), s_lstm)
    w_hh = u(ks[1], (HIDDEN, 4 * HIDDEN), s_lstm)
    b_lstm = u(ks[2], (1, 4 * HIDDEN), s_lstm) + u(ks[3], (1, 4 * HIDDEN), s_lstm)

    def linear(kw, kb, fan_in, fan_out):
        s = 1.0 / jnp.sqrt(fan_in)
        return u(kw, (fan_in, fan_out), s), u(kb, (1, fan_out), s)

    w1, b1 = linear(ks[4], ks[5], HIDDEN + X_DIM, MLP)   # dense1: (612, 512)
    w2, b2 = linear(ks[6], ks[7], MLP, MLP)
    w3, b3 = linear(ks[8], ks[9], MLP, MLP)
    w4, b4 = linear(ks[10], ks[11], MLP, MLP)
    w5, b5 = linear(ks[12], ks[13], MLP, MLP)
    w6, b6 = linear(ks[14], ks[15], MLP, 1)

    w_ih_pad = jnp.pad(w_ih, ((0, LSTM_IN_PAD - LSTM_IN), (0, 0)))   # (256, 512)
    w1_full = jnp.concatenate(
        [w1[:HIDDEN, :],
         jnp.pad(w1[HIDDEN:, :], ((0, X_PAD - X_DIM), (0, 0)))], axis=0)  # (640, 512)
    w_stack = jnp.stack([w2, w3, w4, w5], axis=0)                     # (4, 512, 512)

    bf = jnp.bfloat16
    return {
        "w_ih": w_ih_pad.astype(bf), "w_hh": w_hh.astype(bf), "b_lstm": b_lstm,
        "w1": w1_full.astype(bf), "b1": b1,
        "w_stack": w_stack.astype(bf),
        "b2": b2, "b3": b3, "b4": b4, "b5": b5,
        "w6": w6.T,                  # (1, 512) f32 row for the VPU reduce
        "b6": b6,                    # (1, 1) f32
    }


def _mm(a, w):
    return jnp.dot(a.astype(jnp.bfloat16), w.astype(jnp.bfloat16),
                   preferred_element_type=jnp.float32)


def reference_forward(z, x, p):
    """Pure-JAX reference mirroring the kernel numerics (bf16 matmul operands)."""
    B, T, _ = z.shape
    z_p = jnp.pad(z, ((0, 0), (0, 0), (0, LSTM_IN_PAD - LSTM_IN)))
    x_p = jnp.pad(x, ((0, 0), (0, X_PAD - X_DIM)))
    h = jnp.zeros((B, HIDDEN), jnp.float32)
    c = jnp.zeros((B, HIDDEN), jnp.float32)
    for t in range(T):
        gates = _mm(z_p[:, t, :], p["w_ih"]) + _mm(h, p["w_hh"]) + p["b_lstm"]
        i = 1.0 / (1.0 + jnp.exp(-gates[:, 0:HIDDEN]))
        f = 1.0 / (1.0 + jnp.exp(-gates[:, HIDDEN:2 * HIDDEN]))
        g = jnp.tanh(gates[:, 2 * HIDDEN:3 * HIDDEN])
        o = 1.0 / (1.0 + jnp.exp(-gates[:, 3 * HIDDEN:4 * HIDDEN]))
        c = f * c + i * g
        h = o * jnp.tanh(c)
    a = jnp.maximum(_mm(h, p["w1"][:HIDDEN]) + _mm(x_p, p["w1"][HIDDEN:]) + p["b1"], 0.0)
    for idx, bn in enumerate(("b2", "b3", "b4", "b5")):
        a = jnp.maximum(_mm(a, p["w_stack"][idx]) + p[bn], 0.0)
    logits = jnp.sum(a * p["w6"], axis=-1, keepdims=True) + p["b6"]
    return jax.nn.sigmoid(logits)


def reference_forward_f32(z, x, p):
    """Pure-f32 reference (PyTorch-fidelity math; bf16 weights upcast)."""
    q = {k: jnp.asarray(v, jnp.float32) for k, v in p.items()}
    B, T, _ = z.shape
    z_p = jnp.pad(z, ((0, 0), (0, 0), (0, LSTM_IN_PAD - LSTM_IN)))
    x_p = jnp.pad(x, ((0, 0), (0, X_PAD - X_DIM)))
    h = jnp.zeros((B, HIDDEN), jnp.float32)
    c = jnp.zeros((B, HIDDEN), jnp.float32)
    for t in range(T):
        gates = z_p[:, t, :] @ q["w_ih"] + h @ q["w_hh"] + q["b_lstm"]
        i = jax.nn.sigmoid(gates[:, 0:HIDDEN])
        f = jax.nn.sigmoid(gates[:, HIDDEN:2 * HIDDEN])
        g = jnp.tanh(gates[:, 2 * HIDDEN:3 * HIDDEN])
        o = jax.nn.sigmoid(gates[:, 3 * HIDDEN:4 * HIDDEN])
        c = f * c + i * g
        h = o * jnp.tanh(c)
    a = jnp.maximum(h @ q["w1"][:HIDDEN] + x_p @ q["w1"][HIDDEN:] + q["b1"], 0.0)
    for idx, bn in enumerate(("b2", "b3", "b4", "b5")):
        a = jnp.maximum(a @ q["w_stack"][idx] + q[bn], 0.0)
    logits = jnp.sum(a * q["w6"], axis=-1, keepdims=True) + q["b6"]
    return jax.nn.sigmoid(logits)


if __name__ == "__main__":
    key = jax.random.PRNGKey(0)
    kz, kx, kp = jax.random.split(key, 3)

    B, T = 2, 8
    z = jax.random.normal(kz, (B, T, LSTM_IN), jnp.float32)
    x = jax.random.normal(kx, (B, X_DIM), jnp.float32)
    params = init_params(kp)

    out = farmer_lstm_model_npc(z, x, params)
    out = jax.block_until_ready(out)
    assert out.shape == (B, 1), out.shape

    # Check against a reference with matching bf16-operand matmuls (the only
    # extra kernel-side delta is the EUP approximate reciprocal in the gates).
    ref = reference_forward(z, x, params)
    assert jnp.allclose(out, ref, atol=5e-3), (out, ref)

    # Loose check against pure-f32 math (bf16 matmuls + approx gate reciprocal
    # are the only deltas from PyTorch-fidelity numerics).
    ref32 = reference_forward_f32(z, x, params)
    assert jnp.allclose(out, ref32, atol=3e-2), (out, ref32)

    print("KERNEL_OK")
</pallas_src>

<mosaic_0001>
module attributes {stable_mosaic.version = 11 : i64} {
  func.func @_farmer_kernel(%arg0: memref<128x256xbf16, #tpu.memory_space<vmem>>, %arg1: memref<16x512xbf16, #tpu.memory_space<vmem>>, %arg2: memref<256x512xbf16, #tpu.memory_space<vmem>>, %arg3: memref<128x512xbf16, #tpu.memory_space<vmem>>, %arg4: memref<1x512xf32, #tpu.memory_space<vmem>>, %arg5: memref<640x512xbf16, #tpu.memory_space<any>>, %arg6: memref<1x512xf32, #tpu.memory_space<vmem>>, %arg7: memref<4x512x512xbf16, #tpu.memory_space<any>>, %arg8: memref<1x512xf32, #tpu.memory_space<vmem>>, %arg9: memref<1x512xf32, #tpu.memory_space<vmem>>, %arg10: memref<1x512xf32, #tpu.memory_space<vmem>>, %arg11: memref<1x512xf32, #tpu.memory_space<vmem>>, %arg12: memref<1x512xf32, #tpu.memory_space<vmem>>, %arg13: memref<1x1xf32, #tpu.memory_space<vmem>>, %arg14: memref<16x1xf32, #tpu.memory_space<vmem>>, %arg15: memref<640x512xbf16, #tpu.memory_space<vmem>>, %arg16: memref<4x512x512xbf16, #tpu.memory_space<vmem>>, %arg17: memref<128x512xf32, #tpu.memory_space<vmem>>, %arg18: memref<2x!tpu.dma_semaphore, #tpu.memory_space<semaphore_mem>>) attributes {dimension_semantics = [], scalar_prefetch = 0 : i64, scratch_operands = 4 : i64, tpu.core_type = #tpu.core_type<tc>} {
    %c0_i32 = arith.constant 0 : i32
    %0 = tpu.memref_slice %arg18[%c0_i32] : memref<2x!tpu.dma_semaphore, #tpu.memory_space<semaphore_mem>> -> memref<1x!tpu.dma_semaphore, #tpu.memory_space<semaphore_mem>>
    %1 = tpu.memref_squeeze %0 : memref<1x!tpu.dma_semaphore, #tpu.memory_space<semaphore_mem>> -> memref<!tpu.dma_semaphore, #tpu.memory_space<semaphore_mem>>
    tpu.enqueue_dma source(%arg5 : memref<640x512xbf16, #tpu.memory_space<any>>) target(%arg15 : memref<640x512xbf16, #tpu.memory_space<vmem>>) target_semaphore(%1 : memref<!tpu.dma_semaphore, #tpu.memory_space<semaphore_mem>>)
    %c1_i32 = arith.constant 1 : i32
    %2 = tpu.memref_slice %arg18[%c1_i32] : memref<2x!tpu.dma_semaphore, #tpu.memory_space<semaphore_mem>> -> memref<1x!tpu.dma_semaphore, #tpu.memory_space<semaphore_mem>>
    %3 = tpu.memref_squeeze %2 : memref<1x!tpu.dma_semaphore, #tpu.memory_space<semaphore_mem>> -> memref<!tpu.dma_semaphore, #tpu.memory_space<semaphore_mem>>
    tpu.enqueue_dma source(%arg7 : memref<4x512x512xbf16, #tpu.memory_space<any>>) target(%arg16 : memref<4x512x512xbf16, #tpu.memory_space<vmem>>) target_semaphore(%3 : memref<!tpu.dma_semaphore, #tpu.memory_space<semaphore_mem>>)
    %c0 = arith.constant 0 : index
    %c0_0 = arith.constant 0 : index
    %4 = vector.load %arg0[%c0, %c0_0] : memref<128x256xbf16, #tpu.memory_space<vmem>>, vector<128x256xbf16>
    %c0_1 = arith.constant 0 : index
    %c0_2 = arith.constant 0 : index
    %5 = vector.load %arg2[%c0_1, %c0_2] : memref<256x512xbf16, #tpu.memory_space<vmem>>, vector<256x512xbf16>
    %cst = arith.constant dense<0.000000e+00> : vector<128x512xf32>
    %6 = tpu.matmul %4, %5, %cst {dimension_numbers = #tpu.dot_dimension_numbers<[1], [0], [0], [1], [0, 0, 1, 1], [], []>} : vector<128x256xbf16>, vector<256x512xbf16>, vector<128x512xf32> -> vector<128x512xf32>
    %c0_3 = arith.constant 0 : index
    %c0_4 = arith.constant 0 : index
    %7 = vector.load %arg4[%c0_3, %c0_4] : memref<1x512xf32, #tpu.memory_space<vmem>>, vector<1x512xf32>
    %8 = vector.broadcast %7 : vector<1x512xf32> to vector<128x512xf32>
    %9 = arith.addf %6, %8 : vector<128x512xf32>
    %c0_5 = arith.constant 0 : index
    %c0_6 = arith.constant 0 : index
    %10 = vector.load %arg17[%c0_5, %c0_6] : memref<128x512xf32, #tpu.memory_space<vmem>>, vector<128x512xf32>
    tpu.vector_store %arg17[%c0_5, %c0_6], %9 {strides = array<i32>} : memref<128x512xf32, #tpu.memory_space<vmem>>, vector<128x512xf32>,
    %c0_7 = arith.constant 0 : index
    %c0_8 = arith.constant 0 : index
    %11 = vector.load %arg3[%c0_7, %c0_8] : memref<128x512xbf16, #tpu.memory_space<vmem>>, vector<128x512xbf16>
    %cst_9 = arith.constant 0.000000e+00 : f32
    %12 = vector.broadcast %cst_9 : f32 to vector<16x128xf32>
    %cst_10 = arith.constant 0.000000e+00 : f32
    %13 = vector.broadcast %cst_10 : f32 to vector<16x128xf32>
    %c0_i32_11 = arith.constant 0 : i32
    %c16_i32 = arith.constant 16 : i32
    %14 = arith.muli %c0_i32_11, %c16_i32 : i32
    %15 = arith.index_cast %14 : i32 to index
    %c0_12 = arith.constant 0 : index
    %16 = vector.load %arg17[%15, %c0_12] : memref<128x512xf32, #tpu.memory_space<vmem>>, vector<16x512xf32>
    %17 = arith.truncf %12 : vector<16x128xf32> to vector<16x128xbf16>
    %cst_13 = arith.constant dense<0.000000e+00> : vector<16x512xf32>
    %18 = tpu.matmul %17, %11, %cst_13 {dimension_numbers = #tpu.dot_dimension_numbers<[1], [0], [0], [1], [0, 0, 1, 1], [], []>} : vector<16x128xbf16>, vector<128x512xbf16>, vector<16x512xf32> -> vector<16x512xf32>
    %19 = arith.addf %16, %18 : vector<16x512xf32>
    %20 = vector.extract_strided_slice %19 {offsets = [0, 0], sizes = [16, 128], strides = [1, 1]} : vector<16x512xf32> to vector<16x128xf32>
    %cst_14 = arith.constant 0.000000e+00 : f32
    %21 = vector.broadcast %cst_14 : f32 to vector<16x128xf32>
    %22 = arith.subf %21, %20 : vector<16x128xf32>
    %23 = math.exp %22 : vector<16x128xf32>
    %cst_15 = arith.constant 1.000000e+00 : f32
    %24 = vector.broadcast %cst_15 : f32 to vector<16x128xf32>
    %25 = arith.addf %24, %23 : vector<16x128xf32>
    %26 = tpu.reciprocal %25 {approx = true} : vector<16x128xf32> -> vector<16x128xf32>
    %27 = vector.extract_strided_slice %19 {offsets = [0, 128], sizes = [16, 128], strides = [1, 1]} : vector<16x512xf32> to vector<16x128xf32>
    %cst_16 = arith.constant 0.000000e+00 : f32
    %28 = vector.broadcast %cst_16 : f32 to vector<16x128xf32>
    %29 = arith.subf %28, %27 : vector<16x128xf32>
    %30 = math.exp %29 : vector<16x128xf32>
    %cst_17 = arith.constant 1.000000e+00 : f32
    %31 = vector.broadcast %cst_17 : f32 to vector<16x128xf32>
    %32 = arith.addf %31, %30 : vector<16x128xf32>
    %33 = tpu.reciprocal %32 {approx = true} : vector<16x128xf32> -> vector<16x128xf32>
    %34 = vector.extract_strided_slice %19 {offsets = [0, 256], sizes = [16, 128], strides = [1, 1]} : vector<16x512xf32> to vector<16x128xf32>
    %35 = math.tanh %34 : vector<16x128xf32>
    %36 = vector.extract_strided_slice %19 {offsets = [0, 384], sizes = [16, 128], strides = [1, 1]} : vector<16x512xf32> to vector<16x128xf32>
    %cst_18 = arith.constant 0.000000e+00 : f32
    %37 = vector.broadcast %cst_18 : f32 to vector<16x128xf32>
    %38 = arith.subf %37, %36 : vector<16x128xf32>
    %39 = math.exp %38 : vector<16x128xf32>
    %cst_19 = arith.constant 1.000000e+00 : f32
    %40 = vector.broadcast %cst_19 : f32 to vector<16x128xf32>
    %41 = arith.addf %40, %39 : vector<16x128xf32>
    %42 = tpu.reciprocal %41 {approx = true} : vector<16x128xf32> -> vector<16x128xf32>
    %43 = arith.mulf %33, %13 : vector<16x128xf32>
    %44 = arith.mulf %26, %35 : vector<16x128xf32>
    %45 = arith.addf %43, %44 : vector<16x128xf32>
    %46 = math.tanh %45 : vector<16x128xf32>
    %47 = arith.mulf %42, %46 : vector<16x128xf32>
    %c1_i32_20 = arith.constant 1 : i32
    %c16_i32_21 = arith.constant 16 : i32
    %48 = arith.muli %c1_i32_20, %c16_i32_21 : i32
    %49 = arith.index_cast %48 : i32 to index
    %c0_22 = arith.constant 0 : index
    %50 = vector.load %arg17[%49, %c0_22] : memref<128x512xf32, #tpu.memory_space<vmem>>, vector<16x512xf32>
    %51 = arith.truncf %47 : vector<16x128xf32> to vector<16x128xbf16>
    %cst_23 = arith.constant dense<0.000000e+00> : vector<16x512xf32>
    %52 = tpu.matmul %51, %11, %cst_23 {dimension_numbers = #tpu.dot_dimension_numbers<[1], [0], [0], [1], [0, 0, 1, 1], [], []>} : vector<16x128xbf16>, vector<128x512xbf16>, vector<16x512xf32> -> vector<16x512xf32>
    %53 = arith.addf %50, %52 : vector<16x512xf32>
    %54 = vector.extract_strided_slice %53 {offsets = [0, 0], sizes = [16, 128], strides = [1, 1]} : vector<16x512xf32> to vector<16x128xf32>
    %cst_24 = arith.constant 0.000000e+00 : f32
    %55 = vector.broadcast %cst_24 : f32 to vector<16x128xf32>
    %56 = arith.subf %55, %54 : vector<16x128xf32>
    %57 = math.exp %56 : vector<16x128xf32>
    %cst_25 = arith.constant 1.000000e+00 : f32
    %58 = vector.broadcast %cst_25 : f32 to vector<16x128xf32>
    %59 = arith.addf %58, %57 : vector<16x128xf32>
    %60 = tpu.reciprocal %59 {approx = true} : vector<16x128xf32> -> vector<16x128xf32>
    %61 = vector.extract_strided_slice %53 {offsets = [0, 128], sizes = [16, 128], strides = [1, 1]} : vector<16x512xf32> to vector<16x128xf32>
    %cst_26 = arith.constant 0.000000e+00 : f32
    %62 = vector.broadcast %cst_26 : f32 to vector<16x128xf32>
    %63 = arith.subf %62, %61 : vector<16x128xf32>
    %64 = math.exp %63 : vector<16x128xf32>
    %cst_27 = arith.constant 1.000000e+00 : f32
    %65 = vector.broadcast %cst_27 : f32 to vector<16x128xf32>
    %66 = arith.addf %65, %64 : vector<16x128xf32>
    %67 = tpu.reciprocal %66 {approx = true} : vector<16x128xf32> -> vector<16x128xf32>
    %68 = vector.extract_strided_slice %53 {offsets = [0, 256], sizes = [16, 128], strides = [1, 1]} : vector<16x512xf32> to vector<16x128xf32>
    %69 = math.tanh %68 : vector<16x128xf32>
    %70 = vector.extract_strided_slice %53 {offsets = [0, 384], sizes = [16, 128], strides = [1, 1]} : vector<16x512xf32> to vector<16x128xf32>
    %cst_28 = arith.constant 0.000000e+00 : f32
    %71 = vector.broadcast %cst_28 : f32 to vector<16x128xf32>
    %72 = arith.subf %71, %70 : vector<16x128xf32>
    %73 = math.exp %72 : vector<16x128xf32>
    %cst_29 = arith.constant 1.000000e+00 : f32
    %74 = vector.broadcast %cst_29 : f32 to vector<16x128xf32>
    %75 = arith.addf %74, %73 : vector<16x128xf32>
    %76 = tpu.reciprocal %75 {approx = true} : vector<16x128xf32> -> vector<16x128xf32>
    %77 = arith.mulf %67, %45 : vector<16x128xf32>
    %78 = arith.mulf %60, %69 : vector<16x128xf32>
    %79 = arith.addf %77, %78 : vector<16x128xf32>
    %80 = math.tanh %79 : vector<16x128xf32>
    %81 = arith.mulf %76, %80 : vector<16x128xf32>
    %c2_i32 = arith.constant 2 : i32
    %c16_i32_30 = arith.constant 16 : i32
    %82 = arith.muli %c2_i32, %c16_i32_30 : i32
    %83 = arith.index_cast %82 : i32 to index
    %c0_31 = arith.constant 0 : index
    %84 = vector.load %arg17[%83, %c0_31] : memref<128x512xf32, #tpu.memory_space<vmem>>, vector<16x512xf32>
    %85 = arith.truncf %81 : vector<16x128xf32> to vector<16x128xbf16>
    %cst_32 = arith.constant dense<0.000000e+00> : vector<16x512xf32>
    %86 = tpu.matmul %85, %11, %cst_32 {dimension_numbers = #tpu.dot_dimension_numbers<[1], [0], [0], [1], [0, 0, 1, 1], [], []>} : vector<16x128xbf16>, vector<128x512xbf16>, vector<16x512xf32> -> vector<16x512xf32>
    %87 = arith.addf %84, %86 : vector<16x512xf32>
    %88 = vector.extract_strided_slice %87 {offsets = [0, 0], sizes = [16, 128], strides = [1, 1]} : vector<16x512xf32> to vector<16x128xf32>
    %cst_33 = arith.constant 0.000000e+00 : f32
    %89 = vector.broadcast %cst_33 : f32 to vector<16x128xf32>
    %90 = arith.subf %89, %88 : vector<16x128xf32>
    %91 = math.exp %90 : vector<16x128xf32>
    %cst_34 = arith.constant 1.000000e+00 : f32
    %92 = vector.broadcast %cst_34 : f32 to vector<16x128xf32>
    %93 = arith.addf %92, %91 : vector<16x128xf32>
    %94 = tpu.reciprocal %93 {approx = true} : vector<16x128xf32> -> vector<16x128xf32>
    %95 = vector.extract_strided_slice %87 {offsets = [0, 128], sizes = [16, 128], strides = [1, 1]} : vector<16x512xf32> to vector<16x128xf32>
    %cst_35 = arith.constant 0.000000e+00 : f32
    %96 = vector.broadcast %cst_35 : f32 to vector<16x128xf32>
    %97 = arith.subf %96, %95 : vector<16x128xf32>
    %98 = math.exp %97 : vector<16x128xf32>
    %cst_36 = arith.constant 1.000000e+00 : f32
    %99 = vector.broadcast %cst_36 : f32 to vector<16x128xf32>
    %100 = arith.addf %99, %98 : vector<16x128xf32>
    %101 = tpu.reciprocal %100 {approx = true} : vector<16x128xf32> -> vector<16x128xf32>
    %102 = vector.extract_strided_slice %87 {offsets = [0, 256], sizes = [16, 128], strides = [1, 1]} : vector<16x512xf32> to vector<16x128xf32>
    %103 = math.tanh %102 : vector<16x128xf32>
    %104 = vector.extract_strided_slice %87 {offsets = [0, 384], sizes = [16, 128], strides = [1, 1]} : vector<16x512xf32> to vector<16x128xf32>
    %cst_37 = arith.constant 0.000000e+00 : f32
    %105 = vector.broadcast %cst_37 : f32 to vector<16x128xf32>
    %106 = arith.subf %105, %104 : vector<16x128xf32>
    %107 = math.exp %106 : vector<16x128xf32>
    %cst_38 = arith.constant 1.000000e+00 : f32
    %108 = vector.broadcast %cst_38 : f32 to vector<16x128xf32>
    %109 = arith.addf %108, %107 : vector<16x128xf32>
    %110 = tpu.reciprocal %109 {approx = true} : vector<16x128xf32> -> vector<16x128xf32>
    %111 = arith.mulf %101, %79 : vector<16x128xf32>
    %112 = arith.mulf %94, %103 : vector<16x128xf32>
    %113 = arith.addf %111, %112 : vector<16x128xf32>
    %114 = math.tanh %113 : vector<16x128xf32>
    %115 = arith.mulf %110, %114 : vector<16x128xf32>
    %c3_i32 = arith.constant 3 : i32
    %c16_i32_39 = arith.constant 16 : i32
    %116 = arith.muli %c3_i32, %c16_i32_39 : i32
    %117 = arith.index_cast %116 : i32 to index
    %c0_40 = arith.constant 0 : index
    %118 = vector.load %arg17[%117, %c0_40] : memref<128x512xf32, #tpu.memory_space<vmem>>, vector<16x512xf32>
    %119 = arith.truncf %115 : vector<16x128xf32> to vector<16x128xbf16>
    %cst_41 = arith.constant dense<0.000000e+00> : vector<16x512xf32>
    %120 = tpu.matmul %119, %11, %cst_41 {dimension_numbers = #tpu.dot_dimension_numbers<[1], [0], [0], [1], [0, 0, 1, 1], [], []>} : vector<16x128xbf16>, vector<128x512xbf16>, vector<16x512xf32> -> vector<16x512xf32>
    %121 = arith.addf %118, %120 : vector<16x512xf32>
    %122 = vector.extract_strided_slice %121 {offsets = [0, 0], sizes = [16, 128], strides = [1, 1]} : vector<16x512xf32> to vector<16x128xf32>
    %cst_42 = arith.constant 0.000000e+00 : f32
    %123 = vector.broadcast %cst_42 : f32 to vector<16x128xf32>
    %124 = arith.subf %123, %122 : vector<16x128xf32>
    %125 = math.exp %124 : vector<16x128xf32>
    %cst_43 = arith.constant 1.000000e+00 : f32
    %126 = vector.broadcast %cst_43 : f32 to vector<16x128xf32>
    %127 = arith.addf %126, %125 : vector<16x128xf32>
    %128 = tpu.reciprocal %127 {approx = true} : vector<16x128xf32> -> vector<16x128xf32>
    %129 = vector.extract_strided_slice %121 {offsets = [0, 128], sizes = [16, 128], strides = [1, 1]} : vector<16x512xf32> to vector<16x128xf32>
    %cst_44 = arith.constant 0.000000e+00 : f32
    %130 = vector.broadcast %cst_44 : f32 to vector<16x128xf32>
    %131 = arith.subf %130, %129 : vector<16x128xf32>
    %132 = math.exp %131 : vector<16x128xf32>
    %cst_45 = arith.constant 1.000000e+00 : f32
    %133 = vector.broadcast %cst_45 : f32 to vector<16x128xf32>
    %134 = arith.addf %133, %132 : vector<16x128xf32>
    %135 = tpu.reciprocal %134 {approx = true} : vector<16x128xf32> -> vector<16x128xf32>
    %136 = vector.extract_strided_slice %121 {offsets = [0, 256], sizes = [16, 128], strides = [1, 1]} : vector<16x512xf32> to vector<16x128xf32>
    %137 = math.tanh %136 : vector<16x128xf32>
    %138 = vector.extract_strided_slice %121 {offsets = [0, 384], sizes = [16, 128], strides = [1, 1]} : vector<16x512xf32> to vector<16x128xf32>
    %cst_46 = arith.constant 0.000000e+00 : f32
    %139 = vector.broadcast %cst_46 : f32 to vector<16x128xf32>
    %140 = arith.subf %139, %138 : vector<16x128xf32>
    %141 = math.exp %140 : vector<16x128xf32>
    %cst_47 = arith.constant 1.000000e+00 : f32
    %142 = vector.broadcast %cst_47 : f32 to vector<16x128xf32>
    %143 = arith.addf %142, %141 : vector<16x128xf32>
    %144 = tpu.reciprocal %143 {approx = true} : vector<16x128xf32> -> vector<16x128xf32>
    %145 = arith.mulf %135, %113 : vector<16x128xf32>
    %146 = arith.mulf %128, %137 : vector<16x128xf32>
    %147 = arith.addf %145, %146 : vector<16x128xf32>
    %148 = math.tanh %147 : vector<16x128xf32>
    %149 = arith.mulf %144, %148 : vector<16x128xf32>
    %c4_i32 = arith.constant 4 : i32
    %c16_i32_48 = arith.constant 16 : i32
    %150 = arith.muli %c4_i32, %c16_i32_48 : i32
    %151 = arith.index_cast %150 : i32 to index
    %c0_49 = arith.constant 0 : index
    %152 = vector.load %arg17[%151, %c0_49] : memref<128x512xf32, #tpu.memory_space<vmem>>, vector<16x512xf32>
    %153 = arith.truncf %149 : vector<16x128xf32> to vector<16x128xbf16>
    %cst_50 = arith.constant dense<0.000000e+00> : vector<16x512xf32>
    %154 = tpu.matmul %153, %11, %cst_50 {dimension_numbers = #tpu.dot_dimension_numbers<[1], [0], [0], [1], [0, 0, 1, 1], [], []>} : vector<16x128xbf16>, vector<128x512xbf16>, vector<16x512xf32> -> vector<16x512xf32>
    %155 = arith.addf %152, %154 : vector<16x512xf32>
    %156 = vector.extract_strided_slice %155 {offsets = [0, 0], sizes = [16, 128], strides = [1, 1]} : vector<16x512xf32> to vector<16x128xf32>
    %cst_51 = arith.constant 0.000000e+00 : f32
    %157 = vector.broadcast %cst_51 : f32 to vector<16x128xf32>
    %158 = arith.subf %157, %156 : vector<16x128xf32>
    %159 = math.exp %158 : vector<16x128xf32>
    %cst_52 = arith.constant 1.000000e+00 : f32
    %160 = vector.broadcast %cst_52 : f32 to vector<16x128xf32>
    %161 = arith.addf %160, %159 : vector<16x128xf32>
    %162 = tpu.reciprocal %161 {approx = true} : vector<16x128xf32> -> vector<16x128xf32>
    %163 = vector.extract_strided_slice %155 {offsets = [0, 128], sizes = [16, 128], strides = [1, 1]} : vector<16x512xf32> to vector<16x128xf32>
    %cst_53 = arith.constant 0.000000e+00 : f32
    %164 = vector.broadcast %cst_53 : f32 to vector<16x128xf32>
    %165 = arith.subf %164, %163 : vector<16x128xf32>
    %166 = math.exp %165 : vector<16x128xf32>
    %cst_54 = arith.constant 1.000000e+00 : f32
    %167 = vector.broadcast %cst_54 : f32 to vector<16x128xf32>
    %168 = arith.addf %167, %166 : vector<16x128xf32>
    %169 = tpu.reciprocal %168 {approx = true} : vector<16x128xf32> -> vector<16x128xf32>
    %170 = vector.extract_strided_slice %155 {offsets = [0, 256], sizes = [16, 128], strides = [1, 1]} : vector<16x512xf32> to vector<16x128xf32>
    %171 = math.tanh %170 : vector<16x128xf32>
    %172 = vector.extract_strided_slice %155 {offsets = [0, 384], sizes = [16, 128], strides = [1, 1]} : vector<16x512xf32> to vector<16x128xf32>
    %cst_55 = arith.constant 0.000000e+00 : f32
    %173 = vector.broadcast %cst_55 : f32 to vector<16x128xf32>
    %174 = arith.subf %173, %172 : vector<16x128xf32>
    %175 = math.exp %174 : vector<16x128xf32>
    %cst_56 = arith.constant 1.000000e+00 : f32
    %176 = vector.broadcast %cst_56 : f32 to vector<16x128xf32>
    %177 = arith.addf %176, %175 : vector<16x128xf32>
    %178 = tpu.reciprocal %177 {approx = true} : vector<16x128xf32> -> vector<16x128xf32>
    %179 = arith.mulf %169, %147 : vector<16x128xf32>
    %180 = arith.mulf %162, %171 : vector<16x128xf32>
    %181 = arith.addf %179, %180 : vector<16x128xf32>
    %182 = math.tanh %181 : vector<16x128xf32>
    %183 = arith.mulf %178, %182 : vector<16x128xf32>
    %c5_i32 = arith.constant 5 : i32
    %c16_i32_57 = arith.constant 16 : i32
    %184 = arith.muli %c5_i32, %c16_i32_57 : i32
    %185 = arith.index_cast %184 : i32 to index
    %c0_58 = arith.constant 0 : index
    %186 = vector.load %arg17[%185, %c0_58] : memref<128x512xf32, #tpu.memory_space<vmem>>, vector<16x512xf32>
    %187 = arith.truncf %183 : vector<16x128xf32> to vector<16x128xbf16>
    %cst_59 = arith.constant dense<0.000000e+00> : vector<16x512xf32>
    %188 = tpu.matmul %187, %11, %cst_59 {dimension_numbers = #tpu.dot_dimension_numbers<[1], [0], [0], [1], [0, 0, 1, 1], [], []>} : vector<16x128xbf16>, vector<128x512xbf16>, vector<16x512xf32> -> vector<16x512xf32>
    %189 = arith.addf %186, %188 : vector<16x512xf32>
    %190 = vector.extract_strided_slice %189 {offsets = [0, 0], sizes = [16, 128], strides = [1, 1]} : vector<16x512xf32> to vector<16x128xf32>
    %cst_60 = arith.constant 0.000000e+00 : f32
    %191 = vector.broadcast %cst_60 : f32 to vector<16x128xf32>
    %192 = arith.subf %191, %190 : vector<16x128xf32>
    %193 = math.exp %192 : vector<16x128xf32>
    %cst_61 = arith.constant 1.000000e+00 : f32
    %194 = vector.broadcast %cst_61 : f32 to vector<16x128xf32>
    %195 = arith.addf %194, %193 : vector<16x128xf32>
    %196 = tpu.reciprocal %195 {approx = true} : vector<16x128xf32> -> vector<16x128xf32>
    %197 = vector.extract_strided_slice %189 {offsets = [0, 128], sizes = [16, 128], strides = [1, 1]} : vector<16x512xf32> to vector<16x128xf32>
    %cst_62 = arith.constant 0.000000e+00 : f32
    %198 = vector.broadcast %cst_62 : f32 to vector<16x128xf32>
    %199 = arith.subf %198, %197 : vector<16x128xf32>
    %200 = math.exp %199 : vector<16x128xf32>
    %cst_63 = arith.constant 1.000000e+00 : f32
    %201 = vector.broadcast %cst_63 : f32 to vector<16x128xf32>
    %202 = arith.addf %201, %200 : vector<16x128xf32>
    %203 = tpu.reciprocal %202 {approx = true} : vector<16x128xf32> -> vector<16x128xf32>
    %204 = vector.extract_strided_slice %189 {offsets = [0, 256], sizes = [16, 128], strides = [1, 1]} : vector<16x512xf32> to vector<16x128xf32>
    %205 = math.tanh %204 : vector<16x128xf32>
    %206 = vector.extract_strided_slice %189 {offsets = [0, 384], sizes = [16, 128], strides = [1, 1]} : vector<16x512xf32> to vector<16x128xf32>
    %cst_64 = arith.constant 0.000000e+00 : f32
    %207 = vector.broadcast %cst_64 : f32 to vector<16x128xf32>
    %208 = arith.subf %207, %206 : vector<16x128xf32>
    %209 = math.exp %208 : vector<16x128xf32>
    %cst_65 = arith.constant 1.000000e+00 : f32
    %210 = vector.broadcast %cst_65 : f32 to vector<16x128xf32>
    %211 = arith.addf %210, %209 : vector<16x128xf32>
    %212 = tpu.reciprocal %211 {approx = true} : vector<16x128xf32> -> vector<16x128xf32>
    %213 = arith.mulf %203, %181 : vector<16x128xf32>
    %214 = arith.mulf %196, %205 : vector<16x128xf32>
    %215 = arith.addf %213, %214 : vector<16x128xf32>
    %216 = math.tanh %215 : vector<16x128xf32>
    %217 = arith.mulf %212, %216 : vector<16x128xf32>
    %c6_i32 = arith.constant 6 : i32
    %c16_i32_66 = arith.constant 16 : i32
    %218 = arith.muli %c6_i32, %c16_i32_66 : i32
    %219 = arith.index_cast %218 : i32 to index
    %c0_67 = arith.constant 0 : index
    %220 = vector.load %arg17[%219, %c0_67] : memref<128x512xf32, #tpu.memory_space<vmem>>, vector<16x512xf32>
    %221 = arith.truncf %217 : vector<16x128xf32> to vector<16x128xbf16>
    %cst_68 = arith.constant dense<0.000000e+00> : vector<16x512xf32>
    %222 = tpu.matmul %221, %11, %cst_68 {dimension_numbers = #tpu.dot_dimension_numbers<[1], [0], [0], [1], [0, 0, 1, 1], [], []>} : vector<16x128xbf16>, vector<128x512xbf16>, vector<16x512xf32> -> vector<16x512xf32>
    %223 = arith.addf %220, %222 : vector<16x512xf32>
    %224 = vector.extract_strided_slice %223 {offsets = [0, 0], sizes = [16, 128], strides = [1, 1]} : vector<16x512xf32> to vector<16x128xf32>
    %cst_69 = arith.constant 0.000000e+00 : f32
    %225 = vector.broadcast %cst_69 : f32 to vector<16x128xf32>
    %226 = arith.subf %225, %224 : vector<16x128xf32>
    %227 = math.exp %226 : vector<16x128xf32>
    %cst_70 = arith.constant 1.000000e+00 : f32
    %228 = vector.broadcast %cst_70 : f32 to vector<16x128xf32>
    %229 = arith.addf %228, %227 : vector<16x128xf32>
    %230 = tpu.reciprocal %229 {approx = true} : vector<16x128xf32> -> vector<16x128xf32>
    %231 = vector.extract_strided_slice %223 {offsets = [0, 128], sizes = [16, 128], strides = [1, 1]} : vector<16x512xf32> to vector<16x128xf32>
    %cst_71 = arith.constant 0.000000e+00 : f32
    %232 = vector.broadcast %cst_71 : f32 to vector<16x128xf32>
    %233 = arith.subf %232, %231 : vector<16x128xf32>
    %234 = math.exp %233 : vector<16x128xf32>
    %cst_72 = arith.constant 1.000000e+00 : f32
    %235 = vector.broadcast %cst_72 : f32 to vector<16x128xf32>
    %236 = arith.addf %235, %234 : vector<16x128xf32>
    %237 = tpu.reciprocal %236 {approx = true} : vector<16x128xf32> -> vector<16x128xf32>
    %238 = vector.extract_strided_slice %223 {offsets = [0, 256], sizes = [16, 128], strides = [1, 1]} : vector<16x512xf32> to vector<16x128xf32>
    %239 = math.tanh %238 : vector<16x128xf32>
    %240 = vector.extract_strided_slice %223 {offsets = [0, 384], sizes = [16, 128], strides = [1, 1]} : vector<16x512xf32> to vector<16x128xf32>
    %cst_73 = arith.constant 0.000000e+00 : f32
    %241 = vector.broadcast %cst_73 : f32 to vector<16x128xf32>
    %242 = arith.subf %241, %240 : vector<16x128xf32>
    %243 = math.exp %242 : vector<16x128xf32>
    %cst_74 = arith.constant 1.000000e+00 : f32
    %244 = vector.broadcast %cst_74 : f32 to vector<16x128xf32>
    %245 = arith.addf %244, %243 : vector<16x128xf32>
    %246 = tpu.reciprocal %245 {approx = true} : vector<16x128xf32> -> vector<16x128xf32>
    %247 = arith.mulf %237, %215 : vector<16x128xf32>
    %248 = arith.mulf %230, %239 : vector<16x128xf32>
    %249 = arith.addf %247, %248 : vector<16x128xf32>
    %250 = math.tanh %249 : vector<16x128xf32>
    %251 = arith.mulf %246, %250 : vector<16x128xf32>
    %c7_i32 = arith.constant 7 : i32
    %c16_i32_75 = arith.constant 16 : i32
    %252 = arith.muli %c7_i32, %c16_i32_75 : i32
    %253 = arith.index_cast %252 : i32 to index
    %c0_76 = arith.constant 0 : index
    %254 = vector.load %arg17[%253, %c0_76] : memref<128x512xf32, #tpu.memory_space<vmem>>, vector<16x512xf32>
    %255 = arith.truncf %251 : vector<16x128xf32> to vector<16x128xbf16>
    %cst_77 = arith.constant dense<0.000000e+00> : vector<16x512xf32>
    %256 = tpu.matmul %255, %11, %cst_77 {dimension_numbers = #tpu.dot_dimension_numbers<[1], [0], [0], [1], [0, 0, 1, 1], [], []>} : vector<16x128xbf16>, vector<128x512xbf16>, vector<16x512xf32> -> vector<16x512xf32>
    %257 = arith.addf %254, %256 : vector<16x512xf32>
    %258 = vector.extract_strided_slice %257 {offsets = [0, 0], sizes = [16, 128], strides = [1, 1]} : vector<16x512xf32> to vector<16x128xf32>
    %cst_78 = arith.constant 0.000000e+00 : f32
    %259 = vector.broadcast %cst_78 : f32 to vector<16x128xf32>
    %260 = arith.subf %259, %258 : vector<16x128xf32>
    %261 = math.exp %260 : vector<16x128xf32>
    %cst_79 = arith.constant 1.000000e+00 : f32
    %262 = vector.broadcast %cst_79 : f32 to vector<16x128xf32>
    %263 = arith.addf %262, %261 : vector<16x128xf32>
    %264 = tpu.reciprocal %263 {approx = true} : vector<16x128xf32> -> vector<16x128xf32>
    %265 = vector.extract_strided_slice %257 {offsets = [0, 128], sizes = [16, 128], strides = [1, 1]} : vector<16x512xf32> to vector<16x128xf32>
    %cst_80 = arith.constant 0.000000e+00 : f32
    %266 = vector.broadcast %cst_80 : f32 to vector<16x128xf32>
    %267 = arith.subf %266, %265 : vector<16x128xf32>
    %268 = math.exp %267 : vector<16x128xf32>
    %cst_81 = arith.constant 1.000000e+00 : f32
    %269 = vector.broadcast %cst_81 : f32 to vector<16x128xf32>
    %270 = arith.addf %269, %268 : vector<16x128xf32>
    %271 = tpu.reciprocal %270 {approx = true} : vector<16x128xf32> -> vector<16x128xf32>
    %272 = vector.extract_strided_slice %257 {offsets = [0, 256], sizes = [16, 128], strides = [1, 1]} : vector<16x512xf32> to vector<16x128xf32>
    %273 = math.tanh %272 : vector<16x128xf32>
    %274 = vector.extract_strided_slice %257 {offsets = [0, 384], sizes = [16, 128], strides = [1, 1]} : vector<16x512xf32> to vector<16x128xf32>
    %cst_82 = arith.constant 0.000000e+00 : f32
    %275 = vector.broadcast %cst_82 : f32 to vector<16x128xf32>
    %276 = arith.subf %275, %274 : vector<16x128xf32>
    %277 = math.exp %276 : vector<16x128xf32>
    %cst_83 = arith.constant 1.000000e+00 : f32
    %278 = vector.broadcast %cst_83 : f32 to vector<16x128xf32>
    %279 = arith.addf %278, %277 : vector<16x128xf32>
    %280 = tpu.reciprocal %279 {approx = true} : vector<16x128xf32> -> vector<16x128xf32>
    %281 = arith.mulf %271, %249 : vector<16x128xf32>
    %282 = arith.mulf %264, %273 : vector<16x128xf32>
    %283 = arith.addf %281, %282 : vector<16x128xf32>
    %284 = math.tanh %283 : vector<16x128xf32>
    %285 = arith.mulf %280, %284 : vector<16x128xf32>
    %c8_i32 = arith.constant 8 : i32
    %c0_i32_84 = arith.constant 0 : i32
    %286 = tpu.memref_slice %arg18[%c0_i32_84] : memref<2x!tpu.dma_semaphore, #tpu.memory_space<semaphore_mem>> -> memref<1x!tpu.dma_semaphore, #tpu.memory_space<semaphore_mem>>
    %287 = tpu.memref_squeeze %286 : memref<1x!tpu.dma_semaphore, #tpu.memory_space<semaphore_mem>> -> memref<!tpu.dma_semaphore, #tpu.memory_space<semaphore_mem>>
    tpu.wait_dma2 semaphore(%287 : memref<!tpu.dma_semaphore, #tpu.memory_space<semaphore_mem>>) src(%arg5 : memref<640x512xbf16, #tpu.memory_space<any>>) dst(%arg15 : memref<640x512xbf16, #tpu.memory_space<vmem>>)
    %288 = arith.truncf %285 : vector<16x128xf32> to vector<16x128xbf16>
    %c0_85 = arith.constant 0 : index
    %c0_86 = arith.constant 0 : index
    %289 = vector.load %arg15[%c0_85, %c0_86] : memref<640x512xbf16, #tpu.memory_space<vmem>>, vector<128x512xbf16>
    %cst_87 = arith.constant dense<0.000000e+00> : vector<16x512xf32>
    %290 = tpu.matmul %288, %289, %cst_87 {dimension_numbers = #tpu.dot_dimension_numbers<[1], [0], [0], [1], [0, 0, 1, 1], [], []>} : vector<16x128xbf16>, vector<128x512xbf16>, vector<16x512xf32> -> vector<16x512xf32>
    %c0_88 = arith.constant 0 : index
    %c0_89 = arith.constant 0 : index
    %291 = vector.load %arg1[%c0_88, %c0_89] : memref<16x512xbf16, #tpu.memory_space<vmem>>, vector<16x512xbf16>
    %c128 = arith.constant 128 : index
    %c0_90 = arith.constant 0 : index
    %292 = vector.load %arg15[%c128, %c0_90] : memref<640x512xbf16, #tpu.memory_space<vmem>>, vector<512x512xbf16>
    %cst_91 = arith.constant dense<0.000000e+00> : vector<16x512xf32>
    %293 = tpu.matmul %291, %292, %cst_91 {dimension_numbers = #tpu.dot_dimension_numbers<[1], [0], [0], [1], [0, 0, 1, 1], [], []>} : vector<16x512xbf16>, vector<512x512xbf16>, vector<16x512xf32> -> vector<16x512xf32>
    %294 = arith.addf %290, %293 : vector<16x512xf32>
    %c0_92 = arith.constant 0 : index
    %c0_93 = arith.constant 0 : index
    %295 = vector.load %arg6[%c0_92, %c0_93] : memref<1x512xf32, #tpu.memory_space<vmem>>, vector<1x512xf32>
    %296 = vector.broadcast %295 : vector<1x512xf32> to vector<16x512xf32>
    %297 = arith.addf %294, %296 : vector<16x512xf32>
    %cst_94 = arith.constant 0.000000e+00 : f32
    %298 = vector.broadcast %cst_94 : f32 to vector<16x512xf32>
    %299 = arith.maximumf %297, %298 : vector<16x512xf32>
    %c1_i32_95 = arith.constant 1 : i32
    %300 = tpu.memref_slice %arg18[%c1_i32_95] : memref<2x!tpu.dma_semaphore, #tpu.memory_space<semaphore_mem>> -> memref<1x!tpu.dma_semaphore, #tpu.memory_space<semaphore_mem>>
    %301 = tpu.memref_squeeze %300 : memref<1x!tpu.dma_semaphore, #tpu.memory_space<semaphore_mem>> -> memref<!tpu.dma_semaphore, #tpu.memory_space<semaphore_mem>>
    tpu.wait_dma2 semaphore(%301 : memref<!tpu.dma_semaphore, #tpu.memory_space<semaphore_mem>>) src(%arg7 : memref<4x512x512xbf16, #tpu.memory_space<any>>) dst(%arg16 : memref<4x512x512xbf16, #tpu.memory_space<vmem>>)
    %302 = arith.truncf %299 : vector<16x512xf32> to vector<16x512xbf16>
    %c0_96 = arith.constant 0 : index
    %c0_97 = arith.constant 0 : index
    %c0_98 = arith.constant 0 : index
    %303 = vector.load %arg16[%c0_96, %c0_97, %c0_98] : memref<4x512x512xbf16, #tpu.memory_space<vmem>>, vector<1x512x512xbf16>
    %304 = vector.shape_cast %303 : vector<1x512x512xbf16> to vector<512x512xbf16>
    %cst_99 = arith.constant dense<0.000000e+00> : vector<16x512xf32>
    %305 = tpu.matmul %302, %304, %cst_99 {dimension_numbers = #tpu.dot_dimension_numbers<[1], [0], [0], [1], [0, 0, 1, 1], [], []>} : vector<16x512xbf16>, vector<512x512xbf16>, vector<16x512xf32> -> vector<16x512xf32>
    %c0_100 = arith.constant 0 : index
    %c0_101 = arith.constant 0 : index
    %306 = vector.load %arg8[%c0_100, %c0_101] : memref<1x512xf32, #tpu.memory_space<vmem>>, vector<1x512xf32>
    %307 = vector.broadcast %306 : vector<1x512xf32> to vector<16x512xf32>
    %308 = arith.addf %305, %307 : vector<16x512xf32>
    %cst_102 = arith.constant 0.000000e+00 : f32
    %309 = vector.broadcast %cst_102 : f32 to vector<16x512xf32>
    %310 = arith.maximumf %308, %309 : vector<16x512xf32>
    %311 = arith.truncf %310 : vector<16x512xf32> to vector<16x512xbf16>
    %c1 = arith.constant 1 : index
    %c0_103 = arith.constant 0 : index
    %c0_104 = arith.constant 0 : index
    %312 = vector.load %arg16[%c1, %c0_103, %c0_104] : memref<4x512x512xbf16, #tpu.memory_space<vmem>>, vector<1x512x512xbf16>
    %313 = vector.shape_cast %312 : vector<1x512x512xbf16> to vector<512x512xbf16>
    %cst_105 = arith.constant dense<0.000000e+00> : vector<16x512xf32>
    %314 = tpu.matmul %311, %313, %cst_105 {dimension_numbers = #tpu.dot_dimension_numbers<[1], [0], [0], [1], [0, 0, 1, 1], [], []>} : vector<16x512xbf16>, vector<512x512xbf16>, vector<16x512xf32> -> vector<16x512xf32>
    %c0_106 = arith.constant 0 : index
    %c0_107 = arith.constant 0 : index
    %315 = vector.load %arg9[%c0_106, %c0_107] : memref<1x512xf32, #tpu.memory_space<vmem>>, vector<1x512xf32>
    %316 = vector.broadcast %315 : vector<1x512xf32> to vector<16x512xf32>
    %317 = arith.addf %314, %316 : vector<16x512xf32>
    %cst_108 = arith.constant 0.000000e+00 : f32
    %318 = vector.broadcast %cst_108 : f32 to vector<16x512xf32>
    %319 = arith.maximumf %317, %318 : vector<16x512xf32>
    %320 = arith.truncf %319 : vector<16x512xf32> to vector<16x512xbf16>
    %c2 = arith.constant 2 : index
    %c0_109 = arith.constant 0 : index
    %c0_110 = arith.constant 0 : index
    %321 = vector.load %arg16[%c2, %c0_109, %c0_110] : memref<4x512x512xbf16, #tpu.memory_space<vmem>>, vector<1x512x512xbf16>
    %322 = vector.shape_cast %321 : vector<1x512x512xbf16> to vector<512x512xbf16>
    %cst_111 = arith.constant dense<0.000000e+00> : vector<16x512xf32>
    %323 = tpu.matmul %320, %322, %cst_111 {dimension_numbers = #tpu.dot_dimension_numbers<[1], [0], [0], [1], [0, 0, 1, 1], [], []>} : vector<16x512xbf16>, vector<512x512xbf16>, vector<16x512xf32> -> vector<16x512xf32>
    %c0_112 = arith.constant 0 : index
    %c0_113 = arith.constant 0 : index
    %324 = vector.load %arg10[%c0_112, %c0_113] : memref<1x512xf32, #tpu.memory_space<vmem>>, vector<1x512xf32>
    %325 = vector.broadcast %324 : vector<1x512xf32> to vector<16x512xf32>
    %326 = arith.addf %323, %325 : vector<16x512xf32>
    %cst_114 = arith.constant 0.000000e+00 : f32
    %327 = vector.broadcast %cst_114 : f32 to vector<16x512xf32>
    %328 = arith.maximumf %326, %327 : vector<16x512xf32>
    %329 = arith.truncf %328 : vector<16x512xf32> to vector<16x512xbf16>
    %c3 = arith.constant 3 : index
    %c0_115 = arith.constant 0 : index
    %c0_116 = arith.constant 0 : index
    %330 = vector.load %arg16[%c3, %c0_115, %c0_116] : memref<4x512x512xbf16, #tpu.memory_space<vmem>>, vector<1x512x512xbf16>
    %331 = vector.shape_cast %330 : vector<1x512x512xbf16> to vector<512x512xbf16>
    %cst_117 = arith.constant dense<0.000000e+00> : vector<16x512xf32>
    %332 = tpu.matmul %329, %331, %cst_117 {dimension_numbers = #tpu.dot_dimension_numbers<[1], [0], [0], [1], [0, 0, 1, 1], [], []>} : vector<16x512xbf16>, vector<512x512xbf16>, vector<16x512xf32> -> vector<16x512xf32>
    %c0_118 = arith.constant 0 : index
    %c0_119 = arith.constant 0 : index
    %333 = vector.load %arg11[%c0_118, %c0_119] : memref<1x512xf32, #tpu.memory_space<vmem>>, vector<1x512xf32>
    %334 = vector.broadcast %333 : vector<1x512xf32> to vector<16x512xf32>
    %335 = arith.addf %332, %334 : vector<16x512xf32>
    %cst_120 = arith.constant 0.000000e+00 : f32
    %336 = vector.broadcast %cst_120 : f32 to vector<16x512xf32>
    %337 = arith.maximumf %335, %336 : vector<16x512xf32>
    %c0_121 = arith.constant 0 : index
    %c0_122 = arith.constant 0 : index
    %338 = vector.load %arg12[%c0_121, %c0_122] : memref<1x512xf32, #tpu.memory_space<vmem>>, vector<1x512xf32>
    %339 = vector.broadcast %338 : vector<1x512xf32> to vector<16x512xf32>
    %340 = arith.mulf %337, %339 : vector<16x512xf32>
    %cst_123 = arith.constant dense<0.000000e+00> : vector<16xf32>
    %341 = vector.multi_reduction <add>, %340, %cst_123 [1] : vector<16x512xf32> to vector<16xf32>
    %342 = vector.shape_cast %341 : vector<16xf32> to vector<16x1xf32>
    %c0_124 = arith.constant 0 : index
    %c0_125 = arith.constant 0 : index
    %343 = vector.load %arg13[%c0_124, %c0_125] : memref<1x1xf32, #tpu.memory_space<vmem>>, vector<1x1xf32>
    %344 = vector.broadcast %343 : vector<1x1xf32> to vector<16x1xf32>
    %345 = arith.addf %342, %344 : vector<16x1xf32>
    %346 = arith.negf %345 : vector<16x1xf32>
    %347 = math.exp %346 : vector<16x1xf32>
    %cst_126 = arith.constant 1.000000e+00 : f32
    %348 = vector.broadcast %cst_126 : f32 to vector<16x1xf32>
    %349 = arith.addf %348, %347 : vector<16x1xf32>
    %350 = arith.divf %348, %349 : vector<16x1xf32>
    %c0_127 = arith.constant 0 : index
    %c0_128 = arith.constant 0 : index
    %351 = vector.load %arg14[%c0_127, %c0_128] : memref<16x1xf32, #tpu.memory_space<vmem>>, vector<16x1xf32>
    tpu.vector_store %arg14[%c0_127, %c0_128], %350 {strides = array<i32>} : memref<16x1xf32, #tpu.memory_space<vmem>>, vector<16x1xf32>,
    return
  }
}

</mosaic_0001>

<llo_original>
// kernel: farmer_lstm_model_npc.1
$region0: #{farmer_lstm_model_npc.1}
  #allocation0 [shape = 'u32[]', space=smem, size = 0x4, offset = 0x4, fixed_abs, tag = 'smem constant byte address 0x4 - core index']
  #allocation1 [shape = 'u32[72,128]{1,0:T(1,128)}', space=vmem, size = 0x9000, scoped, tag = 'internal scratch']
  #allocation2 [shape = 'bf16[640,512]{1,0:T(8,128)(2,1)}', space=vmem, size = 0xa0000, scoped, tag = 'scratch operand']
  #allocation3 [shape = 'bf16[4,512,512]{2,1,0:T(8,128)(2,1)}', space=vmem, size = 0x200000, scoped, tag = 'scratch operand']
  #allocation4 [shape = 'f32[128,512]{1,0:T(8,128)}', space=vmem, size = 0x40000, scoped, tag = 'scratch operand']
  #allocation5 [shape = 's32[2]{0}', space=sflag, size = 0x8, scoped, tag = 'scratch operand']
  #allocation6 [shape = 'f32[1,1]{1,0:T(1,128)S(1)}', space=vmem, size = 0x200, scoped, tag = 'scoped memory for farmer_lstm_model_npc.1']
  #allocation21 [shape = 's32[]', space=sflag, size = 0x4, offset = 0, fixed_abs, tag = 'sflag constant byte address 0x0 - dummy sync flag']
  #allocation22 [shape = 's32[]', space=sflag, size = 0x4, offset = 0, fixed_abs, tag = 'sflag constant byte address 0x0 - dummy sync flag']
  #allocation23 [shape = 'u32[]', space=smem, size = 0x4, offset = 0x44, fixed_abs, tag = 'smem constant byte address 0x44 - assertion arg 0']
  #allocation24 [shape = 'u32[]', space=smem, size = 0x4, offset = 0x48, fixed_abs, tag = 'smem constant byte address 0x48 - assertion arg 1']
  #allocation25 [shape = 's32[]', space=sflag, size = 0x4, offset = 0, fixed_abs, tag = 'sflag constant byte address 0x0 - dummy sync flag']
  #allocation26 [shape = 's32[]', space=sflag, size = 0x4, offset = 0, fixed_abs, tag = 'sflag constant byte address 0x0 - dummy sync flag']
  %s0 = inlined_call_operand.vmem [shape: bf16[128,256], index: 0, kind: input, shape index: {}]
  %s1 = inlined_call_operand.vmem [shape: bf16[16,512], index: 1, kind: input, shape index: {}]
  %s2 = inlined_call_operand.hbm [shape: bf16[256,512], index: 2, kind: input, shape index: {}]
  %s3 = inlined_call_operand.hbm [shape: bf16[128,512], index: 3, kind: input, shape index: {}]
  %s4 = inlined_call_operand.hbm [shape: f32[1,512], index: 4, kind: input, shape index: {}]
  %s5 = inlined_call_operand.hbm [shape: bf16[640,512], index: 5, kind: input, shape index: {}]
  %s6 = inlined_call_operand.hbm [shape: f32[1,512], index: 6, kind: input, shape index: {}]
  %s7 = inlined_call_operand.hbm [shape: bf16[4,512,512], index: 7, kind: input, shape index: {}]
  %s8 = inlined_call_operand.hbm [shape: f32[1,512], index: 8, kind: input, shape index: {}]
  %s9 = inlined_call_operand.hbm [shape: f32[1,512], index: 9, kind: input, shape index: {}]
  %s10 = inlined_call_operand.hbm [shape: f32[1,512], index: 10, kind: input, shape index: {}]
  %s11 = inlined_call_operand.hbm [shape: f32[1,512], index: 11, kind: input, shape index: {}]
  %s12 = inlined_call_operand.hbm [shape: f32[1,512], index: 12, kind: input, shape index: {}]
  %s13 = inlined_call_operand.<no memory space> [shape: f32[1,1], index: 13, kind: input, shape index: {}]
  %s14 = inlined_call_operand.vmem [shape: f32[16,1], index: 14, kind: output, shape index: {}]
  %s15 = sld [smem:[#allocation0]]
  $region102: #{farmer_lstm_model_npc.1} parent=0
    _
  %s17 = ssub.s32 1, %s15
  %s18 = scalar_select 0, %s17, %s15
  %v19 = vstv %s13
  %20 = vst [vmem:[#allocation6] sm:$0x1] %v19
  $region1: #{farmer_lstm_model_npc.1} parent=0
    #allocation7 [shape = 'u8[262144]{0}', space=vmem, size = 0x40000, scoped, tag = 'input window, operand 2, single buffered']
    #allocation8 [shape = 's32[1]{0}', space=sflag, size = 0x4, scoped, tag = 'scoped memory for farmer_lstm_model_npc.1']
    #allocation9 [shape = 'u8[131072]{0}', space=vmem, size = 0x20000, scoped, tag = 'input window, operand 3, single buffered']
    #allocation10 [shape = 's32[1]{0}', space=sflag, size = 0x4, scoped, tag = 'scoped memory for farmer_lstm_model_npc.1']
    #allocation11 [shape = 'u8[2048]{0}', space=vmem, size = 0x800, scoped, tag = 'input window, operand 4, single buffered']
    #allocation12 [shape = 'u8[2048]{0}', space=vmem, size = 0x800, scoped, tag = 'input window, operand 6, single buffered']
    #allocation13 [shape = 's32[1]{0}', space=sflag, size = 0x4, scoped, tag = 'scoped memory for farmer_lstm_model_npc.1']
    #allocation14 [shape = 'u8[2048]{0}', space=vmem, size = 0x800, scoped, tag = 'input window, operand 8, single buffered']
    #allocation15 [shape = 'u8[2048]{0}', space=vmem, size = 0x800, scoped, tag = 'input window, operand 9, single buffered']
    #allocation16 [shape = 's32[1]{0}', space=sflag, size = 0x4, scoped, tag = 'scoped memory for farmer_lstm_model_npc.1']
    #allocation17 [shape = 'u8[2048]{0}', space=vmem, size = 0x800, scoped, tag = 'input window, operand 10, single buffered']
    #allocation18 [shape = 'u8[2048]{0}', space=vmem, size = 0x800, scoped, tag = 'input window, operand 11, single buffered']
    #allocation19 [shape = 's32[1]{0}', space=sflag, size = 0x4, scoped, tag = 'scoped memory for farmer_lstm_model_npc.1']
    #allocation20 [shape = 'u8[2048]{0}', space=vmem, size = 0x800, scoped, tag = 'input window, operand 12, single buffered']
    %21 = vsyncpa [#allocation8], 0
    %22 = vsyncpa [#allocation10], 0
    %23 = vsyncpa [#allocation13], 0
    %24 = vsyncpa [#allocation16], 0
    %25 = vsyncpa [#allocation19], 0
    // Predicated region
    $region2: #{farmer_lstm_model_npc.1} parent=1 // pred_check
      _
    $region3: #{farmer_lstm_model_npc.1} parent=1 // pred_check_branch
      %27 = sbr.rel (0) target = $region5
    $region4: #{farmer_lstm_model_npc.1} parent=1 // pred_region
      _
    $region5: #{farmer_lstm_model_npc.1} parent=1 // pred_fallthru
      _
    // Predicated region
    $region6: #{farmer_lstm_model_npc.1} parent=1 // pred_check
      _
    $region7: #{farmer_lstm_model_npc.1} parent=1 // pred_check_branch
      %29 = sbr.rel (0) target = $region9
    $region8: #{farmer_lstm_model_npc.1} parent=1 // pred_region
      _
    $region9: #{farmer_lstm_model_npc.1} parent=1 // pred_fallthru
      _
    // Predicated region
    $region10: #{farmer_lstm_model_npc.1} parent=1 // pred_check
      _
    $region11: #{farmer_lstm_model_npc.1} parent=1 // pred_check_branch
      %31 = sbr.rel (0) target = $region13
    $region12: #{farmer_lstm_model_npc.1} parent=1 // pred_region
      %33 = vsyncadd [#allocation8], 0
      %s34 = sshll.u32 %s2, 4
      %s35 = int_to_ptr.hbm [resolvable:$true] %s34
      %s36 = sshll.u32 [#allocation7], 4
      %s37 = int_to_ptr.vmem [resolvable:$true] %s36
      %42 = dma.hbm_to_vmem [thread:$0]  %s35, 8192, %s37, [#allocation8], 256, 256, 16
    $region13: #{farmer_lstm_model_npc.1} parent=1 // pred_fallthru
      _
    // Predicated region
    $region14: #{farmer_lstm_model_npc.1} parent=1 // pred_check
      _
    $region15: #{farmer_lstm_model_npc.1} parent=1 // pred_check_branch
      %44 = sbr.rel (0) target = $region17
    $region16: #{farmer_lstm_model_npc.1} parent=1 // pred_region
      %46 = vsyncadd [#allocation10], 0
      %s47 = sshll.u32 %s3, 4
      %s48 = int_to_ptr.hbm [resolvable:$true] %s47
      %s49 = sshll.u32 [#allocation9], 4
      %s50 = int_to_ptr.vmem [resolvable:$true] %s49
      %55 = dma.hbm_to_vmem [thread:$0]  %s48, 4096, %s50, [#allocation10], 256, 256, 16
    $region17: #{farmer_lstm_model_npc.1} parent=1 // pred_fallthru
      _
    // Predicated region
    $region18: #{farmer_lstm_model_npc.1} parent=1 // pred_check
      _
    $region19: #{farmer_lstm_model_npc.1} parent=1 // pred_check_branch
      %57 = sbr.rel (0) target = $region21
    $region20: #{farmer_lstm_model_npc.1} parent=1 // pred_region
      %59 = vsyncadd [#allocation10], 0
      %s61 = sshll.u32 %s4, 4
      %s62 = int_to_ptr.hbm [resolvable:$true] %s61
      %s63 = sshll.u32 [#allocation11], 4
      %s64 = int_to_ptr.vmem [resolvable:$true] %s63
      %66 = dma.hbm_to_vmem [thread:$0]  %s62, 64, %s64, [#allocation10]
    $region21: #{farmer_lstm_model_npc.1} parent=1 // pred_fallthru
      _
    // Predicated region
    $region22: #{farmer_lstm_model_npc.1} parent=1 // pred_check
      _
    $region23: #{farmer_lstm_model_npc.1} parent=1 // pred_check_branch
      %68 = sbr.rel (0) target = $region25
    $region24: #{farmer_lstm_model_npc.1} parent=1 // pred_region
      %70 = vsyncadd [#allocation13], 0
      %s72 = sshll.u32 %s6, 4
      %s73 = int_to_ptr.hbm [resolvable:$true] %s72
      %s74 = sshll.u32 [#allocation12], 4
      %s75 = int_to_ptr.vmem [resolvable:$true] %s74
      %77 = dma.hbm_to_vmem [thread:$0]  %s73, 64, %s75, [#allocation13]
    $region25: #{farmer_lstm_model_npc.1} parent=1 // pred_fallthru
      _
    // Predicated region
    $region26: #{farmer_lstm_model_npc.1} parent=1 // pred_check
      _
    $region27: #{farmer_lstm_model_npc.1} parent=1 // pred_check_branch
      %79 = sbr.rel (0) target = $region29
    $region28: #{farmer_lstm_model_npc.1} parent=1 // pred_region
      %81 = vsyncadd [#allocation13], 0
      %s83 = sshll.u32 %s8, 4
      %s84 = int_to_ptr.hbm [resolvable:$true] %s83
      %s85 = sshll.u32 [#allocation14], 4
      %s86 = int_to_ptr.vmem [resolvable:$true] %s85
      %88 = dma.hbm_to_vmem [thread:$0]  %s84, 64, %s86, [#allocation13]
    $region29: #{farmer_lstm_model_npc.1} parent=1 // pred_fallthru
      _
    // Predicated region
    $region30: #{farmer_lstm_model_npc.1} parent=1 // pred_check
      _
    $region31: #{farmer_lstm_model_npc.1} parent=1 // pred_check_branch
      %90 = sbr.rel (0) target = $region33
    $region32: #{farmer_lstm_model_npc.1} parent=1 // pred_region
      %92 = vsyncadd [#allocation16], 0
      %s94 = sshll.u32 %s9, 4
      %s95 = int_to_ptr.hbm [resolvable:$true] %s94
      %s96 = sshll.u32 [#allocation15], 4
      %s97 = int_to_ptr.vmem [resolvable:$true] %s96
      %99 = dma.hbm_to_vmem [thread:$0]  %s95, 64, %s97, [#allocation16]
    $region33: #{farmer_lstm_model_npc.1} parent=1 // pred_fallthru
      _
    // Predicated region
    $region34: #{farmer_lstm_model_npc.1} parent=1 // pred_check
      _
    $region35: #{farmer_lstm_model_npc.1} parent=1 // pred_check_branch
      %101 = sbr.rel (0) target = $region37
    $region36: #{farmer_lstm_model_npc.1} parent=1 // pred_region
      %103 = vsyncadd [#allocation16], 0
      %s105 = sshll.u32 %s10, 4
      %s106 = int_to_ptr.hbm [resolvable:$true] %s105
      %s107 = sshll.u32 [#allocation17], 4
      %s108 = int_to_ptr.vmem [resolvable:$true] %s107
      %110 = dma.hbm_to_vmem [thread:$0]  %s106, 64, %s108, [#allocation16]
    $region37: #{farmer_lstm_model_npc.1} parent=1 // pred_fallthru
      _
    // Predicated region
    $region38: #{farmer_lstm_model_npc.1} parent=1 // pred_check
      _
    $region39: #{farmer_lstm_model_npc.1} parent=1 // pred_check_branch
      %112 = sbr.rel (0) target = $region41
    $region40: #{farmer_lstm_model_npc.1} parent=1 // pred_region
      %114 = vsyncadd [#allocation19], 0
      %s116 = sshll.u32 %s11, 4
      %s117 = int_to_ptr.hbm [resolvable:$true] %s116
      %s118 = sshll.u32 [#allocation18], 4
      %s119 = int_to_ptr.vmem [resolvable:$true] %s118
      %121 = dma.hbm_to_vmem [thread:$0]  %s117, 64, %s119, [#allocation19]
    $region41: #{farmer_lstm_model_npc.1} parent=1 // pred_fallthru
      _
    // Predicated region
    $region42: #{farmer_lstm_model_npc.1} parent=1 // pred_check
      _
    $region43: #{farmer_lstm_model_npc.1} parent=1 // pred_check_branch
      %123 = sbr.rel (0) target = $region45
    $region44: #{farmer_lstm_model_npc.1} parent=1 // pred_region
      %125 = vsyncadd [#allocation19], 0
      %s127 = sshll.u32 %s12, 4
      %s128 = int_to_ptr.hbm [resolvable:$true] %s127
      %s129 = sshll.u32 [#allocation20], 4
      %s130 = int_to_ptr.vmem [resolvable:$true] %s129
      %132 = dma.hbm_to_vmem [thread:$0]  %s128, 64, %s130, [#allocation19]
    $region45: #{farmer_lstm_model_npc.1} parent=1 // pred_fallthru
      _
    // Predicated region
    $region46: #{farmer_lstm_model_npc.1} parent=1 // pred_check
      _
    $region47: #{farmer_lstm_model_npc.1} parent=1 // pred_check_branch
      %134 = sbr.rel (0) target = $region49
    $region48: #{farmer_lstm_model_npc.1} parent=1 // pred_region
      _
    $region49: #{farmer_lstm_model_npc.1} parent=1 // pred_fallthru
      _
    // Predicated region
    $region50: #{farmer_lstm_model_npc.1} parent=1 // pred_check
      _
    $region51: #{farmer_lstm_model_npc.1} parent=1 // pred_check_branch
      %136 = sbr.rel (0) target = $region53
    $region52: #{farmer_lstm_model_npc.1} parent=1 // pred_region
      %138 = dma.done [#allocation8], 8192
    $region53: #{farmer_lstm_model_npc.1} parent=1 // pred_fallthru
      _
    // Predicated region
    $region54: #{farmer_lstm_model_npc.1} parent=1 // pred_check
      _
    $region55: #{farmer_lstm_model_npc.1} parent=1 // pred_check_branch
      %140 = sbr.rel (0) target = $region57
    $region56: #{farmer_lstm_model_npc.1} parent=1 // pred_region
      %142 = dma.done [#allocation10], 4096
    $region57: #{farmer_lstm_model_npc.1} parent=1 // pred_fallthru
      _
    // Predicated region
    $region58: #{farmer_lstm_model_npc.1} parent=1 // pred_check
      _
    $region59: #{farmer_lstm_model_npc.1} parent=1 // pred_check_branch
      %144 = sbr.rel (0) target = $region61
    $region60: #{farmer_lstm_model_npc.1} parent=1 // pred_region
      %146 = dma.done [#allocation10], 64
    $region61: #{farmer_lstm_model_npc.1} parent=1 // pred_fallthru
      _
    // Predicated region
    $region62: #{farmer_lstm_model_npc.1} parent=1 // pred_check
      _
    $region63: #{farmer_lstm_model_npc.1} parent=1 // pred_check_branch
      %148 = sbr.rel (0) target = $region65
    $region64: #{farmer_lstm_model_npc.1} parent=1 // pred_region
      %150 = dma.done [#allocation13], 64
    $region65: #{farmer_lstm_model_npc.1} parent=1 // pred_fallthru
      _
    // Predicated region
    $region66: #{farmer_lstm_model_npc.1} parent=1 // pred_check
      _
    $region67: #{farmer_lstm_model_npc.1} parent=1 // pred_check_branch
      %152 = sbr.rel (0) target = $region69
    $region68: #{farmer_lstm_model_npc.1} parent=1 // pred_region
      %154 = dma.done [#allocation13], 64
    $region69: #{farmer_lstm_model_npc.1} parent=1 // pred_fallthru
      _
    // Predicated region
    $region70: #{farmer_lstm_model_npc.1} parent=1 // pred_check
      _
    $region71: #{farmer_lstm_model_npc.1} parent=1 // pred_check_branch
      %156 = sbr.rel (0) target = $region73
    $region72: #{farmer_lstm_model_npc.1} parent=1 // pred_region
      %158 = dma.done [#allocation16], 64
    $region73: #{farmer_lstm_model_npc.1} parent=1 // pred_fallthru
      _
    // Predicated region
    $region74: #{farmer_lstm_model_npc.1} parent=1 // pred_check
      _
    $region75: #{farmer_lstm_model_npc.1} parent=1 // pred_check_branch
      %160 = sbr.rel (0) target = $region77
    $region76: #{farmer_lstm_model_npc.1} parent=1 // pred_region
      %162 = dma.done [#allocation16], 64
    $region77: #{farmer_lstm_model_npc.1} parent=1 // pred_fallthru
      _
    // Predicated region
    $region78: #{farmer_lstm_model_npc.1} parent=1 // pred_check
      _
    $region79: #{farmer_lstm_model_npc.1} parent=1 // pred_check_branch
      %164 = sbr.rel (0) target = $region81
    $region80: #{farmer_lstm_model_npc.1} parent=1 // pred_region
      %166 = dma.done [#allocation19], 64
    $region81: #{farmer_lstm_model_npc.1} parent=1 // pred_fallthru
      _
    // Predicated region
    $region82: #{farmer_lstm_model_npc.1} parent=1 // pred_check
      _
    $region83: #{farmer_lstm_model_npc.1} parent=1 // pred_check_branch
      %168 = sbr.rel (0) target = $region85
    $region84: #{farmer_lstm_model_npc.1} parent=1 // pred_region
      %170 = dma.done [#allocation19], 64
    $region85: #{farmer_lstm_model_npc.1} parent=1 // pred_fallthru
      _
    // Predicated region
    $region86: #{farmer_lstm_model_npc.1} parent=1 // pred_check
      _
    $region87: #{farmer_lstm_model_npc.1} parent=1 // pred_check_branch
      %173 = sbr.rel target = $region89
    $region88: #{farmer_lstm_model_npc.1} parent=1 // pred_region
      %174 = sst [smem:[#allocation23]] [#allocation22]
      %175 = sst [smem:[#allocation24]] [#allocation21]
    $region89: #{farmer_lstm_model_npc.1} parent=1 // pred_fallthru
      _
    %177 = shalt.err (0)
    %s179 = sshll.u32 %s5, 4
    %s180 = int_to_ptr.hbm [resolvable:$true] %s179
    %s181 = sshll.u32 [#allocation2], 4
    %s182 = int_to_ptr.vmem [resolvable:$true] %s181
    %184 = dma.hbm_to_vmem [thread:$0]  %s180, 20480, %s182, [#allocation5]
    %s185 = scalar_lea.sflag [#allocation5], 1
    // Predicated region
    $region90: #{farmer_lstm_model_npc.1} parent=1 // pred_check
      _
    $region91: #{farmer_lstm_model_npc.1} parent=1 // pred_check_branch
      %187 = sbr.rel target = $region93
    $region92: #{farmer_lstm_model_npc.1} parent=1 // pred_region
      %188 = sst [smem:[#allocation23]] [#allocation26]
      %189 = sst [smem:[#allocation24]] [#allocation25]
    $region93: #{farmer_lstm_model_npc.1} parent=1 // pred_fallthru
      _
    %191 = shalt.err (0)
    %s193 = sshll.u32 %s7, 4
    %s194 = int_to_ptr.hbm [resolvable:$true] %s193
    %s195 = sshll.u32 [#allocation3], 4
    %s196 = int_to_ptr.vmem [resolvable:$true] %s195
    %198 = dma.hbm_to_vmem [thread:$0]  %s194, 65536, %s196, %s185
    %v199 = vld [vmem:[%s0] sm:$0xff]
    %v200 = vld [vmem:[%s0 + $0x8] sm:$0xff]
    %v201 = vld [vmem:[%s0 + $0x10] sm:$0xff]
    %v202 = vld [vmem:[%s0 + $0x18] sm:$0xff]
    %v203 = vld [vmem:[%s0 + $0x20] sm:$0xff]
    %v204 = vld [vmem:[%s0 + $0x28] sm:$0xff]
    %v205 = vld [vmem:[%s0 + $0x30] sm:$0xff]
    %v206 = vld [vmem:[%s0 + $0x38] sm:$0xff]
    %v207 = vld [vmem:[%s0 + $0x40] sm:$0xff]
    %v208 = vld [vmem:[%s0 + $0x48] sm:$0xff]
    %v209 = vld [vmem:[%s0 + $0x50] sm:$0xff]
    %v210 = vld [vmem:[%s0 + $0x58] sm:$0xff]
    %v211 = vld [vmem:[%s0 + $0x60] sm:$0xff]
    %v212 = vld [vmem:[%s0 + $0x68] sm:$0xff]
    %v213 = vld [vmem:[%s0 + $0x70] sm:$0xff]
    %v214 = vld [vmem:[%s0 + $0x78] sm:$0xff]
    %v215 = vld [vmem:[#allocation7] sm:$0xff]
    %v216 = vld [vmem:[#allocation7 + $0x8] sm:$0xff]
    %v217 = vld [vmem:[#allocation7 + $0x10] sm:$0xff]
    %v218 = vld [vmem:[#allocation7 + $0x18] sm:$0xff]
    %v219 = vld [vmem:[#allocation7 + $0x20] sm:$0xff]
    %v220 = vld [vmem:[#allocation7 + $0x28] sm:$0xff]
    %v221 = vld [vmem:[#allocation7 + $0x30] sm:$0xff]
    %v222 = vld [vmem:[#allocation7 + $0x38] sm:$0xff]
    %v223 = vld [vmem:[#allocation7 + $0x40] sm:$0xff]
    %v224 = vld [vmem:[#allocation7 + $0x48] sm:$0xff]
    %v225 = vld [vmem:[#allocation7 + $0x50] sm:$0xff]
    %v226 = vld [vmem:[#allocation7 + $0x58] sm:$0xff]
    %v227 = vld [vmem:[#allocation7 + $0x60] sm:$0xff]
    %v228 = vld [vmem:[#allocation7 + $0x68] sm:$0xff]
    %v229 = vld [vmem:[#allocation7 + $0x70] sm:$0xff]
    %v230 = vld [vmem:[#allocation7 + $0x78] sm:$0xff]
    %v231 = vld [vmem:[#allocation7 + $0x80] sm:$0xff]
    %v232 = vld [vmem:[#allocation7 + $0x88] sm:$0xff]
    %v233 = vld [vmem:[#allocation7 + $0x90] sm:$0xff]
    %v234 = vld [vmem:[#allocation7 + $0x98] sm:$0xff]
    %v235 = vld [vmem:[#allocation7 + $0xa0] sm:$0xff]
    %v236 = vld [vmem:[#allocation7 + $0xa8] sm:$0xff]
    %v237 = vld [vmem:[#allocation7 + $0xb0] sm:$0xff]
    %v238 = vld [vmem:[#allocation7 + $0xb8] sm:$0xff]
    %v239 = vld [vmem:[#allocation7 + $0xc0] sm:$0xff]
    %v240 = vld [vmem:[#allocation7 + $0xc8] sm:$0xff]
    %v241 = vld [vmem:[#allocation7 + $0xd0] sm:$0xff]
    %v242 = vld [vmem:[#allocation7 + $0xd8] sm:$0xff]
    %v243 = vld [vmem:[#allocation7 + $0xe0] sm:$0xff]
    %v244 = vld [vmem:[#allocation7 + $0xe8] sm:$0xff]
    %v245 = vld [vmem:[#allocation7 + $0xf0] sm:$0xff]
    %v246 = vld [vmem:[#allocation7 + $0xf8] sm:$0xff]
    %v247 = vld [vmem:[#allocation7 + $0x100] sm:$0xff]
    %v248 = vld [vmem:[#allocation7 + $0x108] sm:$0xff]
    %v249 = vld [vmem:[#allocation7 + $0x110] sm:$0xff]
    %v250 = vld [vmem:[#allocation7 + $0x118] sm:$0xff]
    %v251 = vld [vmem:[#allocation7 + $0x120] sm:$0xff]
    %v252 = vld [vmem:[#allocation7 + $0x128] sm:$0xff]
    %v253 = vld [vmem:[#allocation7 + $0x130] sm:$0xff]
    %v254 = vld [vmem:[#allocation7 + $0x138] sm:$0xff]
    %v255 = vld [vmem:[#allocation7 + $0x140] sm:$0xff]
    %v256 = vld [vmem:[#allocation7 + $0x148] sm:$0xff]
    %v257 = vld [vmem:[#allocation7 + $0x150] sm:$0xff]
    %v258 = vld [vmem:[#allocation7 + $0x158] sm:$0xff]
    %v259 = vld [vmem:[#allocation7 + $0x160] sm:$0xff]
    %v260 = vld [vmem:[#allocation7 + $0x168] sm:$0xff]
    %v261 = vld [vmem:[#allocation7 + $0x170] sm:$0xff]
    %v262 = vld [vmem:[#allocation7 + $0x178] sm:$0xff]
    %v263 = vld [vmem:[#allocation7 + $0x180] sm:$0xff]
    %v264 = vld [vmem:[#allocation7 + $0x188] sm:$0xff]
    %v265 = vld [vmem:[#allocation7 + $0x190] sm:$0xff]
    %v266 = vld [vmem:[#allocation7 + $0x198] sm:$0xff]
    %v267 = vld [vmem:[#allocation7 + $0x1a0] sm:$0xff]
    %v268 = vld [vmem:[#allocation7 + $0x1a8] sm:$0xff]
    %v269 = vld [vmem:[#allocation7 + $0x1b0] sm:$0xff]
    %v270 = vld [vmem:[#allocation7 + $0x1b8] sm:$0xff]
    %v271 = vld [vmem:[#allocation7 + $0x1c0] sm:$0xff]
    %v272 = vld [vmem:[#allocation7 + $0x1c8] sm:$0xff]
    %v273 = vld [vmem:[#allocation7 + $0x1d0] sm:$0xff]
    %v274 = vld [vmem:[#allocation7 + $0x1d8] sm:$0xff]
    %v275 = vld [vmem:[#allocation7 + $0x1e0] sm:$0xff]
    %v276 = vld [vmem:[#allocation7 + $0x1e8] sm:$0xff]
    %v277 = vld [vmem:[#allocation7 + $0x1f0] sm:$0xff]
    %v278 = vld [vmem:[#allocation7 + $0x1f8] sm:$0xff]
    %v279 = vld [vmem:[#allocation11] sm:$0xf]
    %v281 = vperm.slane %v279, 0
    %v282 = vperm.slane %v279, 1
    %v283 = vperm.slane %v279, 2
    %v284 = vperm.slane %v279, 3
    %v305 = vunpack.c.l.b16 %v199
    %v306 = vunpack.c.h.b16 %v199
    %v307 = vunpack.c.l.b16 %v200
    %v308 = vunpack.c.h.b16 %v200
    %v309 = vunpack.c.l.b16 %v201
    %v310 = vunpack.c.h.b16 %v201
    %v311 = vunpack.c.l.b16 %v202
    %v312 = vunpack.c.h.b16 %v202
    %v313 = vunpack.c.l.b16 %v203
    %v314 = vunpack.c.h.b16 %v203
    %v315 = vunpack.c.l.b16 %v204
    %v316 = vunpack.c.h.b16 %v204
    %v317 = vunpack.c.l.b16 %v205
    %v318 = vunpack.c.h.b16 %v205
    %v319 = vunpack.c.l.b16 %v206
    %v320 = vunpack.c.h.b16 %v206
    %v321 = vunpack.c.l.b16 %v207
    %v322 = vunpack.c.h.b16 %v207
    %v323 = vunpack.c.l.b16 %v208
    %v324 = vunpack.c.h.b16 %v208
    %v325 = vunpack.c.l.b16 %v209
    %v326 = vunpack.c.h.b16 %v209
    %v327 = vunpack.c.l.b16 %v210
    %v328 = vunpack.c.h.b16 %v210
    %v329 = vunpack.c.l.b16 %v211
    %v330 = vunpack.c.h.b16 %v211
    %v331 = vunpack.c.l.b16 %v212
    %v332 = vunpack.c.h.b16 %v212
    %v333 = vunpack.c.l.b16 %v213
    %v334 = vunpack.c.h.b16 %v213
    %v335 = vunpack.c.l.b16 %v214
    %v336 = vunpack.c.h.b16 %v214
    %v337 = vpack.c.b16 %v307, %v305
    %v338 = vpack.c.b16 %v308, %v306
    %v339 = vpack.c.b16 %v311, %v309
    %v340 = vpack.c.b16 %v312, %v310
    %v341 = vpack.c.b16 %v315, %v313
    %v342 = vpack.c.b16 %v316, %v314
    %v343 = vpack.c.b16 %v319, %v317
    %v344 = vpack.c.b16 %v320, %v318
    %v345 = vpack.c.b16 %v323, %v321
    %v346 = vpack.c.b16 %v324, %v322
    %v347 = vpack.c.b16 %v327, %v325
    %v348 = vpack.c.b16 %v328, %v326
    %v349 = vpack.c.b16 %v331, %v329
    %v350 = vpack.c.b16 %v332, %v330
    %v351 = vpack.c.b16 %v335, %v333
    %v352 = vpack.c.b16 %v336, %v334
    %v433 = vunpack.c.l.b16 %v215
    %v434 = vunpack.c.h.b16 %v215
    %v435 = vunpack.c.l.b16 %v216
    %v436 = vunpack.c.h.b16 %v216
    %v437 = vunpack.c.l.b16 %v217
    %v438 = vunpack.c.h.b16 %v217
    %v439 = vunpack.c.l.b16 %v218
    %v440 = vunpack.c.h.b16 %v218
    %v441 = vunpack.c.l.b16 %v219
    %v442 = vunpack.c.h.b16 %v219
    %v443 = vunpack.c.l.b16 %v220
    %v444 = vunpack.c.h.b16 %v220
    %v445 = vunpack.c.l.b16 %v221
    %v446 = vunpack.c.h.b16 %v221
    %v447 = vunpack.c.l.b16 %v222
    %v448 = vunpack.c.h.b16 %v222
    %v449 = vunpack.c.l.b16 %v223
    %v450 = vunpack.c.h.b16 %v223
    %v451 = vunpack.c.l.b16 %v224
    %v452 = vunpack.c.h.b16 %v224
    %v453 = vunpack.c.l.b16 %v225
    %v454 = vunpack.c.h.b16 %v225
    %v455 = vunpack.c.l.b16 %v226
    %v456 = vunpack.c.h.b16 %v226
    %v457 = vunpack.c.l.b16 %v227
    %v458 = vunpack.c.h.b16 %v227
    %v459 = vunpack.c.l.b16 %v228
    %v460 = vunpack.c.h.b16 %v228
    %v461 = vunpack.c.l.b16 %v229
    %v462 = vunpack.c.h.b16 %v229
    %v463 = vunpack.c.l.b16 %v230
    %v464 = vunpack.c.h.b16 %v230
    %v465 = vunpack.c.l.b16 %v231
    %v466 = vunpack.c.h.b16 %v231
    %v467 = vunpack.c.l.b16 %v232
    %v468 = vunpack.c.h.b16 %v232
    %v469 = vunpack.c.l.b16 %v233
    %v470 = vunpack.c.h.b16 %v233
    %v471 = vunpack.c.l.b16 %v234
    %v472 = vunpack.c.h.b16 %v234
    %v473 = vunpack.c.l.b16 %v235
    %v474 = vunpack.c.h.b16 %v235
    %v475 = vunpack.c.l.b16 %v236
    %v476 = vunpack.c.h.b16 %v236
    %v477 = vunpack.c.l.b16 %v237
    %v478 = vunpack.c.h.b16 %v237
    %v479 = vunpack.c.l.b16 %v238
    %v480 = vunpack.c.h.b16 %v238
    %v481 = vunpack.c.l.b16 %v239
    %v482 = vunpack.c.h.b16 %v239
    %v483 = vunpack.c.l.b16 %v240
    %v484 = vunpack.c.h.b16 %v240
    %v485 = vunpack.c.l.b16 %v241
    %v486 = vunpack.c.h.b16 %v241
    %v487 = vunpack.c.l.b16 %v242
    %v488 = vunpack.c.h.b16 %v242
    %v489 = vunpack.c.l.b16 %v243
    %v490 = vunpack.c.h.b16 %v243
    %v491 = vunpack.c.l.b16 %v244
    %v492 = vunpack.c.h.b16 %v244
    %v493 = vunpack.c.l.b16 %v245
    %v494 = vunpack.c.h.b16 %v245
    %v495 = vunpack.c.l.b16 %v246
    %v496 = vunpack.c.h.b16 %v246
    %v497 = vunpack.c.l.b16 %v247
    %v498 = vunpack.c.h.b16 %v247
    %v499 = vunpack.c.l.b16 %v248
    %v500 = vunpack.c.h.b16 %v248
    %v501 = vunpack.c.l.b16 %v249
    %v502 = vunpack.c.h.b16 %v249
    %v503 = vunpack.c.l.b16 %v250
    %v504 = vunpack.c.h.b16 %v250
    %v505 = vunpack.c.l.b16 %v251
    %v506 = vunpack.c.h.b16 %v251
    %v507 = vunpack.c.l.b16 %v252
    %v508 = vunpack.c.h.b16 %v252
    %v509 = vunpack.c.l.b16 %v253
    %v510 = vunpack.c.h.b16 %v253
    %v511 = vunpack.c.l.b16 %v254
    %v512 = vunpack.c.h.b16 %v254
    %v513 = vunpack.c.l.b16 %v255
    %v514 = vunpack.c.h.b16 %v255
    %v515 = vunpack.c.l.b16 %v256
    %v516 = vunpack.c.h.b16 %v256
    %v517 = vunpack.c.l.b16 %v257
    %v518 = vunpack.c.h.b16 %v257
    %v519 = vunpack.c.l.b16 %v258
    %v520 = vunpack.c.h.b16 %v258
    %v521 = vunpack.c.l.b16 %v259
    %v522 = vunpack.c.h.b16 %v259
    %v523 = vunpack.c.l.b16 %v260
    %v524 = vunpack.c.h.b16 %v260
    %v525 = vunpack.c.l.b16 %v261
    %v526 = vunpack.c.h.b16 %v261
    %v527 = vunpack.c.l.b16 %v262
    %v528 = vunpack.c.h.b16 %v262
    %v529 = vunpack.c.l.b16 %v263
    %v530 = vunpack.c.h.b16 %v263
    %v531 = vunpack.c.l.b16 %v264
    %v532 = vunpack.c.h.b16 %v264
    %v533 = vunpack.c.l.b16 %v265
    %v534 = vunpack.c.h.b16 %v265
    %v535 = vunpack.c.l.b16 %v266
    %v536 = vunpack.c.h.b16 %v266
    %v537 = vunpack.c.l.b16 %v267
    %v538 = vunpack.c.h.b16 %v267
    %v539 = vunpack.c.l.b16 %v268
    %v540 = vunpack.c.h.b16 %v268
    %v541 = vunpack.c.l.b16 %v269
    %v542 = vunpack.c.h.b16 %v269
    %v543 = vunpack.c.l.b16 %v270
    %v544 = vunpack.c.h.b16 %v270
    %v545 = vunpack.c.l.b16 %v271
    %v546 = vunpack.c.h.b16 %v271
    %v547 = vunpack.c.l.b16 %v272
    %v548 = vunpack.c.h.b16 %v272
    %v549 = vunpack.c.l.b16 %v273
    %v550 = vunpack.c.h.b16 %v273
    %v551 = vunpack.c.l.b16 %v274
    %v552 = vunpack.c.h.b16 %v274
    %v553 = vunpack.c.l.b16 %v275
    %v554 = vunpack.c.h.b16 %v275
    %v555 = vunpack.c.l.b16 %v276
    %v556 = vunpack.c.h.b16 %v276
    %v557 = vunpack.c.l.b16 %v277
    %v558 = vunpack.c.h.b16 %v277
    %v559 = vunpack.c.l.b16 %v278
    %v560 = vunpack.c.h.b16 %v278
    %v561 = vpack.c.b16 %v437, %v433
    %v562 = vpack.c.b16 %v438, %v434
    %v563 = vpack.c.b16 %v439, %v435
    %v564 = vpack.c.b16 %v440, %v436
    %v565 = vpack.c.b16 %v445, %v441
    %v566 = vpack.c.b16 %v446, %v442
    %v567 = vpack.c.b16 %v447, %v443
    %v568 = vpack.c.b16 %v448, %v444
    %v569 = vpack.c.b16 %v453, %v449
    %v570 = vpack.c.b16 %v454, %v450
    %v571 = vpack.c.b16 %v455, %v451
    %v572 = vpack.c.b16 %v456, %v452
    %v573 = vpack.c.b16 %v461, %v457
    %v574 = vpack.c.b16 %v462, %v458
    %v575 = vpack.c.b16 %v463, %v459
    %v576 = vpack.c.b16 %v464, %v460
    %v577 = vpack.c.b16 %v469, %v465
    %v578 = vpack.c.b16 %v470, %v466
    %v579 = vpack.c.b16 %v471, %v467
    %v580 = vpack.c.b16 %v472, %v468
    %v581 = vpack.c.b16 %v477, %v473
    %v582 = vpack.c.b16 %v478, %v474
    %v583 = vpack.c.b16 %v479, %v475
    %v584 = vpack.c.b16 %v480, %v476
    %v585 = vpack.c.b16 %v485, %v481
    %v586 = vpack.c.b16 %v486, %v482
    %v587 = vpack.c.b16 %v487, %v483
    %v588 = vpack.c.b16 %v488, %v484
    %v589 = vpack.c.b16 %v493, %v489
    %v590 = vpack.c.b16 %v494, %v490
    %v591 = vpack.c.b16 %v495, %v491
    %v592 = vpack.c.b16 %v496, %v492
    %v593 = vpack.c.b16 %v501, %v497
    %v594 = vpack.c.b16 %v502, %v498
    %v595 = vpack.c.b16 %v503, %v499
    %v596 = vpack.c.b16 %v504, %v500
    %v597 = vpack.c.b16 %v509, %v505
    %v598 = vpack.c.b16 %v510, %v506
    %v599 = vpack.c.b16 %v511, %v507
    %v600 = vpack.c.b16 %v512, %v508
    %v601 = vpack.c.b16 %v517, %v513
    %v602 = vpack.c.b16 %v518, %v514
    %v603 = vpack.c.b16 %v519, %v515
    %v604 = vpack.c.b16 %v520, %v516
    %v605 = vpack.c.b16 %v525, %v521
    %v606 = vpack.c.b16 %v526, %v522
    %v607 = vpack.c.b16 %v527, %v523
    %v608 = vpack.c.b16 %v528, %v524
    %v609 = vpack.c.b16 %v533, %v529
    %v610 = vpack.c.b16 %v534, %v530
    %v611 = vpack.c.b16 %v535, %v531
    %v612 = vpack.c.b16 %v536, %v532
    %v613 = vpack.c.b16 %v541, %v537
    %v614 = vpack.c.b16 %v542, %v538
    %v615 = vpack.c.b16 %v543, %v539
    %v616 = vpack.c.b16 %v544, %v540
    %v617 = vpack.c.b16 %v549, %v545
    %v618 = vpack.c.b16 %v550, %v546
    %v619 = vpack.c.b16 %v551, %v547
    %v620 = vpack.c.b16 %v552, %v548
    %v621 = vpack.c.b16 %v557, %v553
    %v622 = vpack.c.b16 %v558, %v554
    %v623 = vpack.c.b16 %v559, %v555
    %v624 = vpack.c.b16 %v560, %v556
    %689 = vmatpush.bf16.msra.mxu0 %v589
    %690 = vmatpush.bf16.msra.mxu0 %v585
    %691 = vmatpush.bf16.msra.mxu0 %v581
    %692 = vmatpush.bf16.msra.mxu0 %v577
    %693 = vmatpush.bf16.msra.mxu0 %v573
    %694 = vmatpush.bf16.msra.mxu0 %v569
    %695 = vmatpush.bf16.msra.mxu0 %v565
    %696 = vmatpush.bf16.msra.mxu0 %v561
    %697 = vmatmul.bf16.gmra.mxu0 %v337
    %v698 = vpop.f32.mrf.mxu0
    %v699 = vadd.f32 %v281, %v698
    %v700 = vpop.f32.mrf.mxu0
    %v701 = vadd.f32 %v281, %v700
    %702 = vmatmul.bf16.gmra.mxu0 %v339
    %v703 = vpop.f32.mrf.mxu0
    %v704 = vadd.f32 %v281, %v703
    %v705 = vpop.f32.mrf.mxu0
    %v706 = vadd.f32 %v281, %v705
    %707 = vmatmul.bf16.gmra.mxu0 %v341
    %v708 = vpop.f32.mrf.mxu0
    %v709 = vadd.f32 %v281, %v708
    %v710 = vpop.f32.mrf.mxu0
    %v711 = vadd.f32 %v281, %v710
    %712 = vmatmul.bf16.gmra.mxu0 %v343
    %v713 = vpop.f32.mrf.mxu0
    %v714 = vadd.f32 %v281, %v713
    %v715 = vpop.f32.mrf.mxu0
    %v716 = vadd.f32 %v281, %v715
    %717 = vmatmul.bf16.gmra.mxu0 %v345
    %v718 = vpop.f32.mrf.mxu0
    %v719 = vadd.f32 %v281, %v718
    %v720 = vpop.f32.mrf.mxu0
    %v721 = vadd.f32 %v281, %v720
    %722 = vmatmul.bf16.gmra.mxu0 %v347
    %v723 = vpop.f32.mrf.mxu0
    %v724 = vadd.f32 %v281, %v723
    %v725 = vpop.f32.mrf.mxu0
    %v726 = vadd.f32 %v281, %v725
    %727 = vmatmul.bf16.gmra.mxu0 %v349
    %v728 = vpop.f32.mrf.mxu0
    %v729 = vadd.f32 %v281, %v728
    %v730 = vpop.f32.mrf.mxu0
    %v731 = vadd.f32 %v281, %v730
    %732 = vmatmul.bf16.gmra.mxu0 %v351
    %v733 = vpop.f32.mrf.mxu0
    %v734 = vadd.f32 %v281, %v733
    %v735 = vpop.f32.mrf.mxu0
    %v736 = vadd.f32 %v281, %v735
    %737 = vdwg.mxu0
    %738 = vmatpush.bf16.msra.mxu0 %v621
    %739 = vmatpush.bf16.msra.mxu0 %v617
    %740 = vmatpush.bf16.msra.mxu0 %v613
    %741 = vmatpush.bf16.msra.mxu0 %v609
    %742 = vmatpush.bf16.msra.mxu0 %v605
    %743 = vmatpush.bf16.msra.mxu0 %v601
    %744 = vmatpush.bf16.msra.mxu0 %v597
    %745 = vmatpush.bf16.msra.mxu0 %v593
    %746 = vmatmul.bf16.gmra.mxu0 %v338
    %v747 = vpop.f32.mrf.mxu0
    %v748 = vadd.f32 %v699, %v747
    %v749 = vpop.f32.mrf.mxu0
    %v750 = vadd.f32 %v701, %v749
    %751 = vmatmul.bf16.gmra.mxu0 %v340
    %v752 = vpop.f32.mrf.mxu0
    %v753 = vadd.f32 %v704, %v752
    %v754 = vpop.f32.mrf.mxu0
    %v755 = vadd.f32 %v706, %v754
    %756 = vmatmul.bf16.gmra.mxu0 %v342
    %v757 = vpop.f32.mrf.mxu0
    %v758 = vadd.f32 %v709, %v757
    %v759 = vpop.f32.mrf.mxu0
    %v760 = vadd.f32 %v711, %v759
    %761 = vmatmul.bf16.gmra.mxu0 %v344
    %v762 = vpop.f32.mrf.mxu0
    %v763 = vadd.f32 %v714, %v762
    %v764 = vpop.f32.mrf.mxu0
    %v765 = vadd.f32 %v716, %v764
    %766 = vmatmul.bf16.gmra.mxu0 %v346
    %v767 = vpop.f32.mrf.mxu0
    %v768 = vadd.f32 %v719, %v767
    %v769 = vpop.f32.mrf.mxu0
    %v770 = vadd.f32 %v721, %v769
    %771 = vmatmul.bf16.gmra.mxu0 %v348
    %v772 = vpop.f32.mrf.mxu0
    %v773 = vadd.f32 %v724, %v772
    %v774 = vpop.f32.mrf.mxu0
    %v775 = vadd.f32 %v726, %v774
    %776 = vmatmul.bf16.gmra.mxu0 %v350
    %v777 = vpop.f32.mrf.mxu0
    %v778 = vadd.f32 %v729, %v777
    %v779 = vpop.f32.mrf.mxu0
    %v780 = vadd.f32 %v731, %v779
    %781 = vmatmul.bf16.gmra.mxu0 %v352
    %v782 = vpop.f32.mrf.mxu0
    %v783 = vadd.f32 %v734, %v782
    %v784 = vpop.f32.mrf.mxu0
    %v785 = vadd.f32 %v736, %v784
    %786 = vdwg.mxu0
    %787 = vmatpush.bf16.msra.mxu0 %v590
    %788 = vmatpush.bf16.msra.mxu0 %v586
    %789 = vmatpush.bf16.msra.mxu0 %v582
    %790 = vmatpush.bf16.msra.mxu0 %v578
    %791 = vmatpush.bf16.msra.mxu0 %v574
    %792 = vmatpush.bf16.msra.mxu0 %v570
    %793 = vmatpush.bf16.msra.mxu0 %v566
    %794 = vmatpush.bf16.msra.mxu0 %v562
    %795 = vmatmul.bf16.gmra.mxu0 %v337
    %v796 = vpop.f32.mrf.mxu0
    %v797 = vadd.f32 %v282, %v796
    %v798 = vpop.f32.mrf.mxu0
    %v799 = vadd.f32 %v282, %v798
    %800 = vmatmul.bf16.gmra.mxu0 %v339
    %v801 = vpop.f32.mrf.mxu0
    %v802 = vadd.f32 %v282, %v801
    %v803 = vpop.f32.mrf.mxu0
    %v804 = vadd.f32 %v282, %v803
    %805 = vmatmul.bf16.gmra.mxu0 %v341
    %v806 = vpop.f32.mrf.mxu0
    %v807 = vadd.f32 %v282, %v806
    %v808 = vpop.f32.mrf.mxu0
    %v809 = vadd.f32 %v282, %v808
    %810 = vmatmul.bf16.gmra.mxu0 %v343
    %v811 = vpop.f32.mrf.mxu0
    %v812 = vadd.f32 %v282, %v811
    %v813 = vpop.f32.mrf.mxu0
    %v814 = vadd.f32 %v282, %v813
    %815 = vmatmul.bf16.gmra.mxu0 %v345
    %v816 = vpop.f32.mrf.mxu0
    %v817 = vadd.f32 %v282, %v816
    %v818 = vpop.f32.mrf.mxu0
    %v819 = vadd.f32 %v282, %v818
    %820 = vmatmul.bf16.gmra.mxu0 %v347
    %v821 = vpop.f32.mrf.mxu0
    %v822 = vadd.f32 %v282, %v821
    %v823 = vpop.f32.mrf.mxu0
    %v824 = vadd.f32 %v282, %v823
    %825 = vmatmul.bf16.gmra.mxu0 %v349
    %v826 = vpop.f32.mrf.mxu0
    %v827 = vadd.f32 %v282, %v826
    %v828 = vpop.f32.mrf.mxu0
    %v829 = vadd.f32 %v282, %v828
    %830 = vmatmul.bf16.gmra.mxu0 %v351
    %v831 = vpop.f32.mrf.mxu0
    %v832 = vadd.f32 %v282, %v831
    %v833 = vpop.f32.mrf.mxu0
    %v834 = vadd.f32 %v282, %v833
    %835 = vdwg.mxu0
    %836 = vmatpush.bf16.msra.mxu0 %v622
    %837 = vmatpush.bf16.msra.mxu0 %v618
    %838 = vmatpush.bf16.msra.mxu0 %v614
    %839 = vmatpush.bf16.msra.mxu0 %v610
    %840 = vmatpush.bf16.msra.mxu0 %v606
    %841 = vmatpush.bf16.msra.mxu0 %v602
    %842 = vmatpush.bf16.msra.mxu0 %v598
    %843 = vmatpush.bf16.msra.mxu0 %v594
    %844 = vmatmul.bf16.gmra.mxu0 %v338
    %v845 = vpop.f32.mrf.mxu0
    %v846 = vadd.f32 %v797, %v845
    %v847 = vpop.f32.mrf.mxu0
    %v848 = vadd.f32 %v799, %v847
    %849 = vmatmul.bf16.gmra.mxu0 %v340
    %v850 = vpop.f32.mrf.mxu0
    %v851 = vadd.f32 %v802, %v850
    %v852 = vpop.f32.mrf.mxu0
    %v853 = vadd.f32 %v804, %v852
    %854 = vmatmul.bf16.gmra.mxu0 %v342
    %v855 = vpop.f32.mrf.mxu0
    %v856 = vadd.f32 %v807, %v855
    %v857 = vpop.f32.mrf.mxu0
    %v858 = vadd.f32 %v809, %v857
    %859 = vmatmul.bf16.gmra.mxu0 %v344
    %v860 = vpop.f32.mrf.mxu0
    %v861 = vadd.f32 %v812, %v860
    %v862 = vpop.f32.mrf.mxu0
    %v863 = vadd.f32 %v814, %v862
    %864 = vmatmul.bf16.gmra.mxu0 %v346
    %v865 = vpop.f32.mrf.mxu0
    %v866 = vadd.f32 %v817, %v865
    %v867 = vpop.f32.mrf.mxu0
    %v868 = vadd.f32 %v819, %v867
    %869 = vmatmul.bf16.gmra.mxu0 %v348
    %v870 = vpop.f32.mrf.mxu0
    %v871 = vadd.f32 %v822, %v870
    %v872 = vpop.f32.mrf.mxu0
    %v873 = vadd.f32 %v824, %v872
    %874 = vmatmul.bf16.gmra.mxu0 %v350
    %v875 = vpop.f32.mrf.mxu0
    %v876 = vadd.f32 %v827, %v875
    %v877 = vpop.f32.mrf.mxu0
    %v878 = vadd.f32 %v829, %v877
    %879 = vmatmul.bf16.gmra.mxu0 %v352
    %v880 = vpop.f32.mrf.mxu0
    %v881 = vadd.f32 %v832, %v880
    %v882 = vpop.f32.mrf.mxu0
    %v883 = vadd.f32 %v834, %v882
    %884 = vdwg.mxu0
    %885 = vmatpush.bf16.msra.mxu0 %v591
    %886 = vmatpush.bf16.msra.mxu0 %v587
    %887 = vmatpush.bf16.msra.mxu0 %v583
    %888 = vmatpush.bf16.msra.mxu0 %v579
    %889 = vmatpush.bf16.msra.mxu0 %v575
    %890 = vmatpush.bf16.msra.mxu0 %v571
    %891 = vmatpush.bf16.msra.mxu0 %v567
    %892 = vmatpush.bf16.msra.mxu0 %v563
    %893 = vmatmul.bf16.gmra.mxu0 %v337
    %v894 = vpop.f32.mrf.mxu0
    %v895 = vadd.f32 %v283, %v894
    %v896 = vpop.f32.mrf.mxu0
    %v897 = vadd.f32 %v283, %v896
    %898 = vmatmul.bf16.gmra.mxu0 %v339
    %v899 = vpop.f32.mrf.mxu0
    %v900 = vadd.f32 %v283, %v899
    %v901 = vpop.f32.mrf.mxu0
    %v902 = vadd.f32 %v283, %v901
    %903 = vmatmul.bf16.gmra.mxu0 %v341
    %v904 = vpop.f32.mrf.mxu0
    %v905 = vadd.f32 %v283, %v904
    %v906 = vpop.f32.mrf.mxu0
    %v907 = vadd.f32 %v283, %v906
    %908 = vmatmul.bf16.gmra.mxu0 %v343
    %v909 = vpop.f32.mrf.mxu0
    %v910 = vadd.f32 %v283, %v909
    %v911 = vpop.f32.mrf.mxu0
    %v912 = vadd.f32 %v283, %v911
    %913 = vmatmul.bf16.gmra.mxu0 %v345
    %v914 = vpop.f32.mrf.mxu0
    %v915 = vadd.f32 %v283, %v914
    %v916 = vpop.f32.mrf.mxu0
    %v917 = vadd.f32 %v283, %v916
    %918 = vmatmul.bf16.gmra.mxu0 %v347
    %v919 = vpop.f32.mrf.mxu0
    %v920 = vadd.f32 %v283, %v919
    %v921 = vpop.f32.mrf.mxu0
    %v922 = vadd.f32 %v283, %v921
    %923 = vmatmul.bf16.gmra.mxu0 %v349
    %v924 = vpop.f32.mrf.mxu0
    %v925 = vadd.f32 %v283, %v924
    %v926 = vpop.f32.mrf.mxu0
    %v927 = vadd.f32 %v283, %v926
    %928 = vmatmul.bf16.gmra.mxu0 %v351
    %v929 = vpop.f32.mrf.mxu0
    %v930 = vadd.f32 %v283, %v929
    %v931 = vpop.f32.mrf.mxu0
    %v932 = vadd.f32 %v283, %v931
    %933 = vdwg.mxu0
    %934 = vmatpush.bf16.msra.mxu0 %v623
    %935 = vmatpush.bf16.msra.mxu0 %v619
    %936 = vmatpush.bf16.msra.mxu0 %v615
    %937 = vmatpush.bf16.msra.mxu0 %v611
    %938 = vmatpush.bf16.msra.mxu0 %v607
    %939 = vmatpush.bf16.msra.mxu0 %v603
    %940 = vmatpush.bf16.msra.mxu0 %v599
    %941 = vmatpush.bf16.msra.mxu0 %v595
    %942 = vmatmul.bf16.gmra.mxu0 %v338
    %v943 = vpop.f32.mrf.mxu0
    %v944 = vadd.f32 %v895, %v943
    %v945 = vpop.f32.mrf.mxu0
    %v946 = vadd.f32 %v897, %v945
    %947 = vmatmul.bf16.gmra.mxu0 %v340
    %v948 = vpop.f32.mrf.mxu0
    %v949 = vadd.f32 %v900, %v948
    %v950 = vpop.f32.mrf.mxu0
    %v951 = vadd.f32 %v902, %v950
    %952 = vmatmul.bf16.gmra.mxu0 %v342
    %v953 = vpop.f32.mrf.mxu0
    %v954 = vadd.f32 %v905, %v953
    %v955 = vpop.f32.mrf.mxu0
    %v956 = vadd.f32 %v907, %v955
    %957 = vmatmul.bf16.gmra.mxu0 %v344
    %v958 = vpop.f32.mrf.mxu0
    %v959 = vadd.f32 %v910, %v958
    %v960 = vpop.f32.mrf.mxu0
    %v961 = vadd.f32 %v912, %v960
    %962 = vmatmul.bf16.gmra.mxu0 %v346
    %v963 = vpop.f32.mrf.mxu0
    %v964 = vadd.f32 %v915, %v963
    %v965 = vpop.f32.mrf.mxu0
    %v966 = vadd.f32 %v917, %v965
    %967 = vmatmul.bf16.gmra.mxu0 %v348
    %v968 = vpop.f32.mrf.mxu0
    %v969 = vadd.f32 %v920, %v968
    %v970 = vpop.f32.mrf.mxu0
    %v971 = vadd.f32 %v922, %v970
    %972 = vmatmul.bf16.gmra.mxu0 %v350
    %v973 = vpop.f32.mrf.mxu0
    %v974 = vadd.f32 %v925, %v973
    %v975 = vpop.f32.mrf.mxu0
    %v976 = vadd.f32 %v927, %v975
    %977 = vmatmul.bf16.gmra.mxu0 %v352
    %v978 = vpop.f32.mrf.mxu0
    %v979 = vadd.f32 %v930, %v978
    %v980 = vpop.f32.mrf.mxu0
    %v981 = vadd.f32 %v932, %v980
    %982 = vdwg.mxu0
    %983 = vmatpush.bf16.msra.mxu0 %v592
    %984 = vmatpush.bf16.msra.mxu0 %v588
    %985 = vmatpush.bf16.msra.mxu0 %v584
    %986 = vmatpush.bf16.msra.mxu0 %v580
    %987 = vmatpush.bf16.msra.mxu0 %v576
    %988 = vmatpush.bf16.msra.mxu0 %v572
    %989 = vmatpush.bf16.msra.mxu0 %v568
    %990 = vmatpush.bf16.msra.mxu0 %v564
    %991 = vmatmul.bf16.gmra.mxu0 %v337
    %v992 = vpop.f32.mrf.mxu0
    %v993 = vadd.f32 %v284, %v992
    %v994 = vpop.f32.mrf.mxu0
    %v995 = vadd.f32 %v284, %v994
    %996 = vmatmul.bf16.gmra.mxu0 %v339
    %v997 = vpop.f32.mrf.mxu0
    %v998 = vadd.f32 %v284, %v997
    %v999 = vpop.f32.mrf.mxu0
    %v1000 = vadd.f32 %v284, %v999
    %1001 = vmatmul.bf16.gmra.mxu0 %v341
    %v1002 = vpop.f32.mrf.mxu0
    %v1003 = vadd.f32 %v284, %v1002
    %v1004 = vpop.f32.mrf.mxu0
    %v1005 = vadd.f32 %v284, %v1004
    %1006 = vmatmul.bf16.gmra.mxu0 %v343
    %v1007 = vpop.f32.mrf.mxu0
    %v1008 = vadd.f32 %v284, %v1007
    %v1009 = vpop.f32.mrf.mxu0
    %v1010 = vadd.f32 %v284, %v1009
    %1011 = vmatmul.bf16.gmra.mxu0 %v345
    %v1012 = vpop.f32.mrf.mxu0
    %v1013 = vadd.f32 %v284, %v1012
    %v1014 = vpop.f32.mrf.mxu0
    %v1015 = vadd.f32 %v284, %v1014
    %1016 = vmatmul.bf16.gmra.mxu0 %v347
    %v1017 = vpop.f32.mrf.mxu0
    %v1018 = vadd.f32 %v284, %v1017
    %v1019 = vpop.f32.mrf.mxu0
    %v1020 = vadd.f32 %v284, %v1019
    %1021 = vmatmul.bf16.gmra.mxu0 %v349
    %v1022 = vpop.f32.mrf.mxu0
    %v1023 = vadd.f32 %v284, %v1022
    %v1024 = vpop.f32.mrf.mxu0
    %v1025 = vadd.f32 %v284, %v1024
    %1026 = vmatmul.bf16.gmra.mxu0 %v351
    %v1027 = vpop.f32.mrf.mxu0
    %v1028 = vadd.f32 %v284, %v1027
    %v1029 = vpop.f32.mrf.mxu0
    %v1030 = vadd.f32 %v284, %v1029
    %1031 = vdwg.mxu0
    %1032 = vmatpush.bf16.msra.mxu0 %v624
    %1033 = vmatpush.bf16.msra.mxu0 %v620
    %1034 = vmatpush.bf16.msra.mxu0 %v616
    %1035 = vmatpush.bf16.msra.mxu0 %v612
    %1036 = vmatpush.bf16.msra.mxu0 %v608
    %1037 = vmatpush.bf16.msra.mxu0 %v604
    %1038 = vmatpush.bf16.msra.mxu0 %v600
    %1039 = vmatpush.bf16.msra.mxu0 %v596
    %1040 = vmatmul.bf16.gmra.mxu0 %v338
    %v1041 = vpop.f32.mrf.mxu0
    %v1042 = vadd.f32 %v993, %v1041
    %v1043 = vpop.f32.mrf.mxu0
    %v1044 = vadd.f32 %v995, %v1043
    %1045 = vmatmul.bf16.gmra.mxu0 %v340
    %v1046 = vpop.f32.mrf.mxu0
    %v1047 = vadd.f32 %v998, %v1046
    %v1048 = vpop.f32.mrf.mxu0
    %v1049 = vadd.f32 %v1000, %v1048
    %1050 = vmatmul.bf16.gmra.mxu0 %v342
    %v1051 = vpop.f32.mrf.mxu0
    %v1052 = vadd.f32 %v1003, %v1051
    %v1053 = vpop.f32.mrf.mxu0
    %v1054 = vadd.f32 %v1005, %v1053
    %1055 = vmatmul.bf16.gmra.mxu0 %v344
    %v1056 = vpop.f32.mrf.mxu0
    %v1057 = vadd.f32 %v1008, %v1056
    %v1058 = vpop.f32.mrf.mxu0
    %v1059 = vadd.f32 %v1010, %v1058
    %1060 = vmatmul.bf16.gmra.mxu0 %v346
    %v1061 = vpop.f32.mrf.mxu0
    %v1062 = vadd.f32 %v1013, %v1061
    %v1063 = vpop.f32.mrf.mxu0
    %v1064 = vadd.f32 %v1015, %v1063
    %1065 = vmatmul.bf16.gmra.mxu0 %v348
    %v1066 = vpop.f32.mrf.mxu0
    %v1067 = vadd.f32 %v1018, %v1066
    %v1068 = vpop.f32.mrf.mxu0
    %v1069 = vadd.f32 %v1020, %v1068
    %1070 = vmatmul.bf16.gmra.mxu0 %v350
    %v1071 = vpop.f32.mrf.mxu0
    %v1072 = vadd.f32 %v1023, %v1071
    %v1073 = vpop.f32.mrf.mxu0
    %v1074 = vadd.f32 %v1025, %v1073
    %1075 = vmatmul.bf16.gmra.mxu0 %v352
    %v1076 = vpop.f32.mrf.mxu0
    %v1077 = vadd.f32 %v1028, %v1076
    %v1078 = vpop.f32.mrf.mxu0
    %v1079 = vadd.f32 %v1030, %v1078
    %1080 = vdwg.mxu0
    %1081 = vst [vmem:[#allocation4] sm:$0xff] %v748
    %1082 = vst [vmem:[#allocation4 + $0x8] sm:$0xff] %v846
    %1083 = vst [vmem:[#allocation4 + $0x10] sm:$0xff] %v944
    %1084 = vst [vmem:[#allocation4 + $0x18] sm:$0xff] %v1042
    %1085 = vst [vmem:[#allocation4 + $0x20] sm:$0xff] %v750
    %1086 = vst [vmem:[#allocation4 + $0x28] sm:$0xff] %v848
    %1087 = vst [vmem:[#allocation4 + $0x30] sm:$0xff] %v946
    %1088 = vst [vmem:[#allocation4 + $0x38] sm:$0xff] %v1044
    %1089 = vst [vmem:[#allocation4 + $0x40] sm:$0xff] %v753
    %1090 = vst [vmem:[#allocation4 + $0x48] sm:$0xff] %v851
    %1091 = vst [vmem:[#allocation4 + $0x50] sm:$0xff] %v949
    %1092 = vst [vmem:[#allocation4 + $0x58] sm:$0xff] %v1047
    %1093 = vst [vmem:[#allocation4 + $0x60] sm:$0xff] %v755
    %1094 = vst [vmem:[#allocation4 + $0x68] sm:$0xff] %v853
    %1095 = vst [vmem:[#allocation4 + $0x70] sm:$0xff] %v951
    %1096 = vst [vmem:[#allocation4 + $0x78] sm:$0xff] %v1049
    %1097 = vst [vmem:[#allocation4 + $0x80] sm:$0xff] %v758
    %1098 = vst [vmem:[#allocation4 + $0x88] sm:$0xff] %v856
    %1099 = vst [vmem:[#allocation4 + $0x90] sm:$0xff] %v954
    %1100 = vst [vmem:[#allocation4 + $0x98] sm:$0xff] %v1052
    %1101 = vst [vmem:[#allocation4 + $0xa0] sm:$0xff] %v760
    %1102 = vst [vmem:[#allocation4 + $0xa8] sm:$0xff] %v858
    %1103 = vst [vmem:[#allocation4 + $0xb0] sm:$0xff] %v956
    %1104 = vst [vmem:[#allocation4 + $0xb8] sm:$0xff] %v1054
    %1105 = vst [vmem:[#allocation4 + $0xc0] sm:$0xff] %v763
    %1106 = vst [vmem:[#allocation4 + $0xc8] sm:$0xff] %v861
    %1107 = vst [vmem:[#allocation4 + $0xd0] sm:$0xff] %v959
    %1108 = vst [vmem:[#allocation4 + $0xd8] sm:$0xff] %v1057
    %1109 = vst [vmem:[#allocation4 + $0xe0] sm:$0xff] %v765
    %1110 = vst [vmem:[#allocation4 + $0xe8] sm:$0xff] %v863
    %1111 = vst [vmem:[#allocation4 + $0xf0] sm:$0xff] %v961
    %1112 = vst [vmem:[#allocation4 + $0xf8] sm:$0xff] %v1059
    %1113 = vst [vmem:[#allocation4 + $0x100] sm:$0xff] %v768
    %1114 = vst [vmem:[#allocation4 + $0x108] sm:$0xff] %v866
    %1115 = vst [vmem:[#allocation4 + $0x110] sm:$0xff] %v964
    %1116 = vst [vmem:[#allocation4 + $0x118] sm:$0xff] %v1062
    %1117 = vst [vmem:[#allocation4 + $0x120] sm:$0xff] %v770
    %1118 = vst [vmem:[#allocation4 + $0x128] sm:$0xff] %v868
    %1119 = vst [vmem:[#allocation4 + $0x130] sm:$0xff] %v966
    %1120 = vst [vmem:[#allocation4 + $0x138] sm:$0xff] %v1064
    %1121 = vst [vmem:[#allocation4 + $0x140] sm:$0xff] %v773
    %1122 = vst [vmem:[#allocation4 + $0x148] sm:$0xff] %v871
    %1123 = vst [vmem:[#allocation4 + $0x150] sm:$0xff] %v969
    %1124 = vst [vmem:[#allocation4 + $0x158] sm:$0xff] %v1067
    %1125 = vst [vmem:[#allocation4 + $0x160] sm:$0xff] %v775
    %1126 = vst [vmem:[#allocation4 + $0x168] sm:$0xff] %v873
    %1127 = vst [vmem:[#allocation4 + $0x170] sm:$0xff] %v971
    %1128 = vst [vmem:[#allocation4 + $0x178] sm:$0xff] %v1069
    %1129 = vst [vmem:[#allocation4 + $0x180] sm:$0xff] %v778
    %1130 = vst [vmem:[#allocation4 + $0x188] sm:$0xff] %v876
    %1131 = vst [vmem:[#allocation4 + $0x190] sm:$0xff] %v974
    %1132 = vst [vmem:[#allocation4 + $0x198] sm:$0xff] %v1072
    %1133 = vst [vmem:[#allocation4 + $0x1a0] sm:$0xff] %v780
    %1134 = vst [vmem:[#allocation4 + $0x1a8] sm:$0xff] %v878
    %1135 = vst [vmem:[#allocation4 + $0x1b0] sm:$0xff] %v976
    %1136 = vst [vmem:[#allocation4 + $0x1b8] sm:$0xff] %v1074
    %1137 = vst [vmem:[#allocation4 + $0x1c0] sm:$0xff] %v783
    %1138 = vst [vmem:[#allocation4 + $0x1c8] sm:$0xff] %v881
    %1139 = vst [vmem:[#allocation4 + $0x1d0] sm:$0xff] %v979
    %1140 = vst [vmem:[#allocation4 + $0x1d8] sm:$0xff] %v1077
    %1141 = vst [vmem:[#allocation4 + $0x1e0] sm:$0xff] %v785
    %1142 = vst [vmem:[#allocation4 + $0x1e8] sm:$0xff] %v883
    %1143 = vst [vmem:[#allocation4 + $0x1f0] sm:$0xff] %v981
    %1144 = vst [vmem:[#allocation4 + $0x1f8] sm:$0xff] %v1079
    %v1145 = vld [vmem:[#allocation9] sm:$0xff]
    %v1146 = vld [vmem:[#allocation9 + $0x8] sm:$0xff]
    %v1147 = vld [vmem:[#allocation9 + $0x10] sm:$0xff]
    %v1148 = vld [vmem:[#allocation9 + $0x18] sm:$0xff]
    %v1149 = vld [vmem:[#allocation9 + $0x20] sm:$0xff]
    %v1150 = vld [vmem:[#allocation9 + $0x28] sm:$0xff]
    %v1151 = vld [vmem:[#allocation9 + $0x30] sm:$0xff]
    %v1152 = vld [vmem:[#allocation9 + $0x38] sm:$0xff]
    %v1153 = vld [vmem:[#allocation9 + $0x40] sm:$0xff]
    %v1154 = vld [vmem:[#allocation9 + $0x48] sm:$0xff]
    %v1155 = vld [vmem:[#allocation9 + $0x50] sm:$0xff]
    %v1156 = vld [vmem:[#allocation9 + $0x58] sm:$0xff]
    %v1157 = vld [vmem:[#allocation9 + $0x60] sm:$0xff]
    %v1158 = vld [vmem:[#allocation9 + $0x68] sm:$0xff]
    %v1159 = vld [vmem:[#allocation9 + $0x70] sm:$0xff]
    %v1160 = vld [vmem:[#allocation9 + $0x78] sm:$0xff]
    %v1161 = vld [vmem:[#allocation9 + $0x80] sm:$0xff]
    %v1162 = vld [vmem:[#allocation9 + $0x88] sm:$0xff]
    %v1163 = vld [vmem:[#allocation9 + $0x90] sm:$0xff]
    %v1164 = vld [vmem:[#allocation9 + $0x98] sm:$0xff]
    %v1165 = vld [vmem:[#allocation9 + $0xa0] sm:$0xff]
    %v1166 = vld [vmem:[#allocation9 + $0xa8] sm:$0xff]
    %v1167 = vld [vmem:[#allocation9 + $0xb0] sm:$0xff]
    %v1168 = vld [vmem:[#allocation9 + $0xb8] sm:$0xff]
    %v1169 = vld [vmem:[#allocation9 + $0xc0] sm:$0xff]
    %v1170 = vld [vmem:[#allocation9 + $0xc8] sm:$0xff]
    %v1171 = vld [vmem:[#allocation9 + $0xd0] sm:$0xff]
    %v1172 = vld [vmem:[#allocation9 + $0xd8] sm:$0xff]
    %v1173 = vld [vmem:[#allocation9 + $0xe0] sm:$0xff]
    %v1174 = vld [vmem:[#allocation9 + $0xe8] sm:$0xff]
    %v1175 = vld [vmem:[#allocation9 + $0xf0] sm:$0xff]
    %v1176 = vld [vmem:[#allocation9 + $0xf8] sm:$0xff]
    %v1177 = vld [vmem:[#allocation4] sm:$0xff]
    %v1178 = vld [vmem:[#allocation4 + $0x8] sm:$0xff]
    %v1179 = vld [vmem:[#allocation4 + $0x10] sm:$0xff]
    %v1180 = vld [vmem:[#allocation4 + $0x18] sm:$0xff]
    %v1181 = vld [vmem:[#allocation4 + $0x20] sm:$0xff]
    %v1182 = vld [vmem:[#allocation4 + $0x28] sm:$0xff]
    %v1183 = vld [vmem:[#allocation4 + $0x30] sm:$0xff]
    %v1184 = vld [vmem:[#allocation4 + $0x38] sm:$0xff]
    %v1217 = vunpack.c.l.b16 %v1145
    %v1218 = vunpack.c.h.b16 %v1145
    %v1219 = vunpack.c.l.b16 %v1146
    %v1220 = vunpack.c.h.b16 %v1146
    %v1221 = vunpack.c.l.b16 %v1147
    %v1222 = vunpack.c.h.b16 %v1147
    %v1223 = vunpack.c.l.b16 %v1148
    %v1224 = vunpack.c.h.b16 %v1148
    %v1225 = vunpack.c.l.b16 %v1149
    %v1226 = vunpack.c.h.b16 %v1149
    %v1227 = vunpack.c.l.b16 %v1150
    %v1228 = vunpack.c.h.b16 %v1150
    %v1229 = vunpack.c.l.b16 %v1151
    %v1230 = vunpack.c.h.b16 %v1151
    %v1231 = vunpack.c.l.b16 %v1152
    %v1232 = vunpack.c.h.b16 %v1152
    %v1233 = vunpack.c.l.b16 %v1153
    %v1234 = vunpack.c.h.b16 %v1153
    %v1235 = vunpack.c.l.b16 %v1154
    %v1236 = vunpack.c.h.b16 %v1154
    %v1237 = vunpack.c.l.b16 %v1155
    %v1238 = vunpack.c.h.b16 %v1155
    %v1239 = vunpack.c.l.b16 %v1156
    %v1240 = vunpack.c.h.b16 %v1156
    %v1241 = vunpack.c.l.b16 %v1157
    %v1242 = vunpack.c.h.b16 %v1157
    %v1243 = vunpack.c.l.b16 %v1158
    %v1244 = vunpack.c.h.b16 %v1158
    %v1245 = vunpack.c.l.b16 %v1159
    %v1246 = vunpack.c.h.b16 %v1159
    %v1247 = vunpack.c.l.b16 %v1160
    %v1248 = vunpack.c.h.b16 %v1160
    %v1249 = vunpack.c.l.b16 %v1161
    %v1250 = vunpack.c.h.b16 %v1161
    %v1251 = vunpack.c.l.b16 %v1162
    %v1252 = vunpack.c.h.b16 %v1162
    %v1253 = vunpack.c.l.b16 %v1163
    %v1254 = vunpack.c.h.b16 %v1163
    %v1255 = vunpack.c.l.b16 %v1164
    %v1256 = vunpack.c.h.b16 %v1164
    %v1257 = vunpack.c.l.b16 %v1165
    %v1258 = vunpack.c.h.b16 %v1165
    %v1259 = vunpack.c.l.b16 %v1166
    %v1260 = vunpack.c.h.b16 %v1166
    %v1261 = vunpack.c.l.b16 %v1167
    %v1262 = vunpack.c.h.b16 %v1167
    %v1263 = vunpack.c.l.b16 %v1168
    %v1264 = vunpack.c.h.b16 %v1168
    %v1265 = vunpack.c.l.b16 %v1169
    %v1266 = vunpack.c.h.b16 %v1169
    %v1267 = vunpack.c.l.b16 %v1170
    %v1268 = vunpack.c.h.b16 %v1170
    %v1269 = vunpack.c.l.b16 %v1171
    %v1270 = vunpack.c.h.b16 %v1171
    %v1271 = vunpack.c.l.b16 %v1172
    %v1272 = vunpack.c.h.b16 %v1172
    %v1273 = vunpack.c.l.b16 %v1173
    %v1274 = vunpack.c.h.b16 %v1173
    %v1275 = vunpack.c.l.b16 %v1174
    %v1276 = vunpack.c.h.b16 %v1174
    %v1277 = vunpack.c.l.b16 %v1175
    %v1278 = vunpack.c.h.b16 %v1175
    %v1279 = vunpack.c.l.b16 %v1176
    %v1280 = vunpack.c.h.b16 %v1176
    %v1281 = vpack.c.b16 %v1221, %v1217
    %v1282 = vpack.c.b16 %v1222, %v1218
    %v1283 = vpack.c.b16 %v1223, %v1219
    %v1284 = vpack.c.b16 %v1224, %v1220
    %v1285 = vpack.c.b16 %v1229, %v1225
    %v1286 = vpack.c.b16 %v1230, %v1226
    %v1287 = vpack.c.b16 %v1231, %v1227
    %v1288 = vpack.c.b16 %v1232, %v1228
    %v1289 = vpack.c.b16 %v1237, %v1233
    %v1290 = vpack.c.b16 %v1238, %v1234
    %v1291 = vpack.c.b16 %v1239, %v1235
    %v1292 = vpack.c.b16 %v1240, %v1236
    %v1293 = vpack.c.b16 %v1245, %v1241
    %v1294 = vpack.c.b16 %v1246, %v1242
    %v1295 = vpack.c.b16 %v1247, %v1243
    %v1296 = vpack.c.b16 %v1248, %v1244
    %v1297 = vpack.c.b16 %v1253, %v1249
    %v1298 = vpack.c.b16 %v1254, %v1250
    %v1299 = vpack.c.b16 %v1255, %v1251
    %v1300 = vpack.c.b16 %v1256, %v1252
    %v1301 = vpack.c.b16 %v1261, %v1257
    %v1302 = vpack.c.b16 %v1262, %v1258
    %v1303 = vpack.c.b16 %v1263, %v1259
    %v1304 = vpack.c.b16 %v1264, %v1260
    %v1305 = vpack.c.b16 %v1269, %v1265
    %v1306 = vpack.c.b16 %v1270, %v1266
    %v1307 = vpack.c.b16 %v1271, %v1267
    %v1308 = vpack.c.b16 %v1272, %v1268
    %v1309 = vpack.c.b16 %v1277, %v1273
    %v1310 = vpack.c.b16 %v1278, %v1274
    %v1311 = vpack.c.b16 %v1279, %v1275
    %v1312 = vpack.c.b16 %v1280, %v1276
    %1345 = vmatpush.bf16.msra.mxu0 %v1309
    %1346 = vmatpush.bf16.msra.mxu0 %v1305
    %1347 = vmatpush.bf16.msra.mxu0 %v1301
    %1348 = vmatpush.bf16.msra.mxu0 %v1297
    %1349 = vmatpush.bf16.msra.mxu0 %v1293
    %1350 = vmatpush.bf16.msra.mxu0 %v1289
    %1351 = vmatpush.bf16.msra.mxu0 %v1285
    %1352 = vmatpush.bf16.msra.mxu0 %v1281
    %1353 = vmatmul.bf16.gmra.mxu0 0
    %v1354 = vpop.f32.mrf.mxu0
    %v1355 = vadd.f32 0.0, %v1354
    %v1356 = vpop.f32.mrf.mxu0
    %v1357 = vadd.f32 0.0, %v1356
    %1358 = vdwg.mxu0
    %1359 = vmatpush.bf16.msra.mxu0 %v1310
    %1360 = vmatpush.bf16.msra.mxu0 %v1306
    %1361 = vmatpush.bf16.msra.mxu0 %v1302
    %1362 = vmatpush.bf16.msra.mxu0 %v1298
    %1363 = vmatpush.bf16.msra.mxu0 %v1294
    %1364 = vmatpush.bf16.msra.mxu0 %v1290
    %1365 = vmatpush.bf16.msra.mxu0 %v1286
    %1366 = vmatpush.bf16.msra.mxu0 %v1282
    %1367 = vmatmul.bf16.gmra.mxu0 0
    %v1368 = vpop.f32.mrf.mxu0
    %v1369 = vadd.f32 0.0, %v1368
    %v1370 = vpop.f32.mrf.mxu0
    %v1371 = vadd.f32 0.0, %v1370
    %1372 = vdwg.mxu0
    %1373 = vmatpush.bf16.msra.mxu0 %v1311
    %1374 = vmatpush.bf16.msra.mxu0 %v1307
    %1375 = vmatpush.bf16.msra.mxu0 %v1303
    %1376 = vmatpush.bf16.msra.mxu0 %v1299
    %1377 = vmatpush.bf16.msra.mxu0 %v1295
    %1378 = vmatpush.bf16.msra.mxu0 %v1291
    %1379 = vmatpush.bf16.msra.mxu0 %v1287
    %1380 = vmatpush.bf16.msra.mxu0 %v1283
    %1381 = vmatmul.bf16.gmra.mxu0 0
    %v1382 = vpop.f32.mrf.mxu0
    %v1383 = vadd.f32 0.0, %v1382
    %v1384 = vpop.f32.mrf.mxu0
    %v1385 = vadd.f32 0.0, %v1384
    %1386 = vdwg.mxu0
    %1387 = vmatpush.bf16.msra.mxu0 %v1312
    %1388 = vmatpush.bf16.msra.mxu0 %v1308
    %1389 = vmatpush.bf16.msra.mxu0 %v1304
    %1390 = vmatpush.bf16.msra.mxu0 %v1300
    %1391 = vmatpush.bf16.msra.mxu0 %v1296
    %1392 = vmatpush.bf16.msra.mxu0 %v1292
    %1393 = vmatpush.bf16.msra.mxu0 %v1288
    %1394 = vmatpush.bf16.msra.mxu0 %v1284
    %1395 = vmatmul.bf16.gmra.mxu0 0
    %v1396 = vpop.f32.mrf.mxu0
    %v1397 = vadd.f32 0.0, %v1396
    %v1398 = vpop.f32.mrf.mxu0
    %v1399 = vadd.f32 0.0, %v1398
    %1400 = vdwg.mxu0
    %v1401 = vadd.f32 %v1177, %v1355
    %v1402 = vadd.f32 %v1178, %v1369
    %v1403 = vadd.f32 %v1179, %v1383
    %v1404 = vadd.f32 %v1180, %v1397
    %v1405 = vadd.f32 %v1181, %v1357
    %v1406 = vadd.f32 %v1182, %v1371
    %v1407 = vadd.f32 %v1183, %v1385
    %v1408 = vadd.f32 %v1184, %v1399
    %v1409 = vsub.f32 0.0, %v1401
    %v1410 = vsub.f32 0.0, %v1405
    %v1411 = vmul.f32 %v1409, 1.442695
    %v1412 = vpow.pop %v1411
    %v1413 = vmul.f32 %v1410, 1.442695
    %v1414 = vpow.pop %v1413
    %v1415 = vadd.f32 %v1412, 1.0
    %v1416 = vadd.f32 %v1414, 1.0
    %v1417 = vrcp.pop %v1415
    %v1418 = vrcp.pop %v1416
    %v1419 = vsub.f32 0.0, %v1402
    %v1420 = vsub.f32 0.0, %v1406
    %v1421 = vmul.f32 %v1419, 1.442695
    %v1422 = vpow.pop %v1421
    %v1423 = vmul.f32 %v1420, 1.442695
    %v1424 = vpow.pop %v1423
    %v1425 = vadd.f32 %v1422, 1.0
    %v1426 = vadd.f32 %v1424, 1.0
    %v1427 = vrcp.pop %v1425
    %v1428 = vrcp.pop %v1426
    %v1429 = vtanh.pop %v1403
    %v1430 = vtanh.pop %v1407
    %v1431 = vsub.f32 0.0, %v1404
    %v1432 = vsub.f32 0.0, %v1408
    %v1433 = vmul.f32 %v1431, 1.442695
    %v1434 = vpow.pop %v1433
    %v1435 = vmul.f32 %v1432, 1.442695
    %v1436 = vpow.pop %v1435
    %v1437 = vadd.f32 %v1434, 1.0
    %v1438 = vadd.f32 %v1436, 1.0
    %v1439 = vrcp.pop %v1437
    %v1440 = vrcp.pop %v1438
    %v1441 = vmul.f32 %v1427, 0.0
    %v1442 = vmul.f32 %v1428, 0.0
    %v1443 = vmul.f32 %v1417, %v1429
    %v1444 = vmul.f32 %v1418, %v1430
    %v1445 = vadd.f32 %v1441, %v1443
    %v1446 = vadd.f32 %v1442, %v1444
    %v1447 = vtanh.pop %v1445
    %v1448 = vtanh.pop %v1446
    %v1449 = vmul.f32 %v1439, %v1447
    %v1450 = vmul.f32 %v1440, %v1448
    %v1451 = vld [vmem:[#allocation4 + $0x40] sm:$0xff]
    %v1452 = vld [vmem:[#allocation4 + $0x48] sm:$0xff]
    %v1453 = vld [vmem:[#allocation4 + $0x50] sm:$0xff]
    %v1454 = vld [vmem:[#allocation4 + $0x58] sm:$0xff]
    %v1455 = vld [vmem:[#allocation4 + $0x60] sm:$0xff]
    %v1456 = vld [vmem:[#allocation4 + $0x68] sm:$0xff]
    %v1457 = vld [vmem:[#allocation4 + $0x70] sm:$0xff]
    %v1458 = vld [vmem:[#allocation4 + $0x78] sm:$0xff]
    %v1459 = vpack.c.bf16 %v1450, %v1449
    %1460 = vmatpush.bf16.msra.mxu0 %v1309
    %1461 = vmatpush.bf16.msra.mxu0 %v1305
    %1462 = vmatpush.bf16.msra.mxu0 %v1301
    %1463 = vmatpush.bf16.msra.mxu0 %v1297
    %1464 = vmatpush.bf16.msra.mxu0 %v1293
    %1465 = vmatpush.bf16.msra.mxu0 %v1289
    %1466 = vmatpush.bf16.msra.mxu0 %v1285
    %1467 = vmatpush.bf16.msra.mxu0 %v1281
    %1468 = vmatmul.bf16.gmra.mxu0 %v1459
    %v1469 = vpop.f32.mrf.mxu0
    %v1470 = vadd.f32 0.0, %v1469
    %v1471 = vpop.f32.mrf.mxu0
    %v1472 = vadd.f32 0.0, %v1471
    %1473 = vdwg.mxu0
    %1474 = vmatpush.bf16.msra.mxu0 %v1310
    %1475 = vmatpush.bf16.msra.mxu0 %v1306
    %1476 = vmatpush.bf16.msra.mxu0 %v1302
    %1477 = vmatpush.bf16.msra.mxu0 %v1298
    %1478 = vmatpush.bf16.msra.mxu0 %v1294
    %1479 = vmatpush.bf16.msra.mxu0 %v1290
    %1480 = vmatpush.bf16.msra.mxu0 %v1286
    %1481 = vmatpush.bf16.msra.mxu0 %v1282
    %1482 = vmatmul.bf16.gmra.mxu0 %v1459
    %v1483 = vpop.f32.mrf.mxu0
    %v1484 = vadd.f32 0.0, %v1483
    %v1485 = vpop.f32.mrf.mxu0
    %v1486 = vadd.f32 0.0, %v1485
    %1487 = vdwg.mxu0
    %1488 = vmatpush.bf16.msra.mxu0 %v1311
    %1489 = vmatpush.bf16.msra.mxu0 %v1307
    %1490 = vmatpush.bf16.msra.mxu0 %v1303
    %1491 = vmatpush.bf16.msra.mxu0 %v1299
    %1492 = vmatpush.bf16.msra.mxu0 %v1295
    %1493 = vmatpush.bf16.msra.mxu0 %v1291
    %1494 = vmatpush.bf16.msra.mxu0 %v1287
    %1495 = vmatpush.bf16.msra.mxu0 %v1283
    %1496 = vmatmul.bf16.gmra.mxu0 %v1459
    %v1497 = vpop.f32.mrf.mxu0
    %v1498 = vadd.f32 0.0, %v1497
    %v1499 = vpop.f32.mrf.mxu0
    %v1500 = vadd.f32 0.0, %v1499
    %1501 = vdwg.mxu0
    %1502 = vmatpush.bf16.msra.mxu0 %v1312
    %1503 = vmatpush.bf16.msra.mxu0 %v1308
    %1504 = vmatpush.bf16.msra.mxu0 %v1304
    %1505 = vmatpush.bf16.msra.mxu0 %v1300
    %1506 = vmatpush.bf16.msra.mxu0 %v1296
    %1507 = vmatpush.bf16.msra.mxu0 %v1292
    %1508 = vmatpush.bf16.msra.mxu0 %v1288
    %1509 = vmatpush.bf16.msra.mxu0 %v1284
    %1510 = vmatmul.bf16.gmra.mxu0 %v1459
    %v1511 = vpop.f32.mrf.mxu0
    %v1512 = vadd.f32 0.0, %v1511
    %v1513 = vpop.f32.mrf.mxu0
    %v1514 = vadd.f32 0.0, %v1513
    %1515 = vdwg.mxu0
    %v1516 = vadd.f32 %v1451, %v1470
    %v1517 = vadd.f32 %v1452, %v1484
    %v1518 = vadd.f32 %v1453, %v1498
    %v1519 = vadd.f32 %v1454, %v1512
    %v1520 = vadd.f32 %v1455, %v1472
    %v1521 = vadd.f32 %v1456, %v1486
    %v1522 = vadd.f32 %v1457, %v1500
    %v1523 = vadd.f32 %v1458, %v1514
    %v1524 = vsub.f32 0.0, %v1516
    %v1525 = vsub.f32 0.0, %v1520
    %v1526 = vmul.f32 %v1524, 1.442695
    %v1527 = vpow.pop %v1526
    %v1528 = vmul.f32 %v1525, 1.442695
    %v1529 = vpow.pop %v1528
    %v1530 = vadd.f32 %v1527, 1.0
    %v1531 = vadd.f32 %v1529, 1.0
    %v1532 = vrcp.pop %v1530
    %v1533 = vrcp.pop %v1531
    %v1534 = vsub.f32 0.0, %v1517
    %v1535 = vsub.f32 0.0, %v1521
    %v1536 = vmul.f32 %v1534, 1.442695
    %v1537 = vpow.pop %v1536
    %v1538 = vmul.f32 %v1535, 1.442695
    %v1539 = vpow.pop %v1538
    %v1540 = vadd.f32 %v1537, 1.0
    %v1541 = vadd.f32 %v1539, 1.0
    %v1542 = vrcp.pop %v1540
    %v1543 = vrcp.pop %v1541
    %v1544 = vtanh.pop %v1518
    %v1545 = vtanh.pop %v1522
    %v1546 = vsub.f32 0.0, %v1519
    %v1547 = vsub.f32 0.0, %v1523
    %v1548 = vmul.f32 %v1546, 1.442695
    %v1549 = vpow.pop %v1548
    %v1550 = vmul.f32 %v1547, 1.442695
    %v1551 = vpow.pop %v1550
    %v1552 = vadd.f32 %v1549, 1.0
    %v1553 = vadd.f32 %v1551, 1.0
    %v1554 = vrcp.pop %v1552
    %v1555 = vrcp.pop %v1553
    %v1556 = vmul.f32 %v1542, %v1445
    %v1557 = vmul.f32 %v1543, %v1446
    %v1558 = vmul.f32 %v1532, %v1544
    %v1559 = vmul.f32 %v1533, %v1545
    %v1560 = vadd.f32 %v1556, %v1558
    %v1561 = vadd.f32 %v1557, %v1559
    %v1562 = vtanh.pop %v1560
    %v1563 = vtanh.pop %v1561
    %v1564 = vmul.f32 %v1554, %v1562
    %v1565 = vmul.f32 %v1555, %v1563
    %v1566 = vld [vmem:[#allocation4 + $0x80] sm:$0xff]
    %v1567 = vld [vmem:[#allocation4 + $0x88] sm:$0xff]
    %v1568 = vld [vmem:[#allocation4 + $0x90] sm:$0xff]
    %v1569 = vld [vmem:[#allocation4 + $0x98] sm:$0xff]
    %v1570 = vld [vmem:[#allocation4 + $0xa0] sm:$0xff]
    %v1571 = vld [vmem:[#allocation4 + $0xa8] sm:$0xff]
    %v1572 = vld [vmem:[#allocation4 + $0xb0] sm:$0xff]
    %v1573 = vld [vmem:[#allocation4 + $0xb8] sm:$0xff]
    %v1574 = vpack.c.bf16 %v1565, %v1564
    %1575 = vmatpush.bf16.msra.mxu0 %v1309
    %1576 = vmatpush.bf16.msra.mxu0 %v1305
    %1577 = vmatpush.bf16.msra.mxu0 %v1301
    %1578 = vmatpush.bf16.msra.mxu0 %v1297
    %1579 = vmatpush.bf16.msra.mxu0 %v1293
    %1580 = vmatpush.bf16.msra.mxu0 %v1289
    %1581 = vmatpush.bf16.msra.mxu0 %v1285
    %1582 = vmatpush.bf16.msra.mxu0 %v1281
    %1583 = vmatmul.bf16.gmra.mxu0 %v1574
    %v1584 = vpop.f32.mrf.mxu0
    %v1585 = vadd.f32 0.0, %v1584
    %v1586 = vpop.f32.mrf.mxu0
    %v1587 = vadd.f32 0.0, %v1586
    %1588 = vdwg.mxu0
    %1589 = vmatpush.bf16.msra.mxu0 %v1310
    %1590 = vmatpush.bf16.msra.mxu0 %v1306
    %1591 = vmatpush.bf16.msra.mxu0 %v1302
    %1592 = vmatpush.bf16.msra.mxu0 %v1298
    %1593 = vmatpush.bf16.msra.mxu0 %v1294
    %1594 = vmatpush.bf16.msra.mxu0 %v1290
    %1595 = vmatpush.bf16.msra.mxu0 %v1286
    %1596 = vmatpush.bf16.msra.mxu0 %v1282
    %1597 = vmatmul.bf16.gmra.mxu0 %v1574
    %v1598 = vpop.f32.mrf.mxu0
    %v1599 = vadd.f32 0.0, %v1598
    %v1600 = vpop.f32.mrf.mxu0
    %v1601 = vadd.f32 0.0, %v1600
    %1602 = vdwg.mxu0
    %1603 = vmatpush.bf16.msra.mxu0 %v1311
    %1604 = vmatpush.bf16.msra.mxu0 %v1307
    %1605 = vmatpush.bf16.msra.mxu0 %v1303
    %1606 = vmatpush.bf16.msra.mxu0 %v1299
    %1607 = vmatpush.bf16.msra.mxu0 %v1295
    %1608 = vmatpush.bf16.msra.mxu0 %v1291
    %1609 = vmatpush.bf16.msra.mxu0 %v1287
    %1610 = vmatpush.bf16.msra.mxu0 %v1283
    %1611 = vmatmul.bf16.gmra.mxu0 %v1574
    %v1612 = vpop.f32.mrf.mxu0
    %v1613 = vadd.f32 0.0, %v1612
    %v1614 = vpop.f32.mrf.mxu0
    %v1615 = vadd.f32 0.0, %v1614
    %1616 = vdwg.mxu0
    %1617 = vmatpush.bf16.msra.mxu0 %v1312
    %1618 = vmatpush.bf16.msra.mxu0 %v1308
    %1619 = vmatpush.bf16.msra.mxu0 %v1304
    %1620 = vmatpush.bf16.msra.mxu0 %v1300
    %1621 = vmatpush.bf16.msra.mxu0 %v1296
    %1622 = vmatpush.bf16.msra.mxu0 %v1292
    %1623 = vmatpush.bf16.msra.mxu0 %v1288
    %1624 = vmatpush.bf16.msra.mxu0 %v1284
    %1625 = vmatmul.bf16.gmra.mxu0 %v1574
    %v1626 = vpop.f32.mrf.mxu0
    %v1627 = vadd.f32 0.0, %v1626
    %v1628 = vpop.f32.mrf.mxu0
    %v1629 = vadd.f32 0.0, %v1628
    %1630 = vdwg.mxu0
    %v1631 = vadd.f32 %v1566, %v1585
    %v1632 = vadd.f32 %v1567, %v1599
    %v1633 = vadd.f32 %v1568, %v1613
    %v1634 = vadd.f32 %v1569, %v1627
    %v1635 = vadd.f32 %v1570, %v1587
    %v1636 = vadd.f32 %v1571, %v1601
    %v1637 = vadd.f32 %v1572, %v1615
    %v1638 = vadd.f32 %v1573, %v1629
    %v1639 = vsub.f32 0.0, %v1631
    %v1640 = vsub.f32 0.0, %v1635
    %v1641 = vmul.f32 %v1639, 1.442695
    %v1642 = vpow.pop %v1641
    %v1643 = vmul.f32 %v1640, 1.442695
    %v1644 = vpow.pop %v1643
    %v1645 = vadd.f32 %v1642, 1.0
    %v1646 = vadd.f32 %v1644, 1.0
    %v1647 = vrcp.pop %v1645
    %v1648 = vrcp.pop %v1646
    %v1649 = vsub.f32 0.0, %v1632
    %v1650 = vsub.f32 0.0, %v1636
    %v1651 = vmul.f32 %v1649, 1.442695
    %v1652 = vpow.pop %v1651
    %v1653 = vmul.f32 %v1650, 1.442695
    %v1654 = vpow.pop %v1653
    %v1655 = vadd.f32 %v1652, 1.0
    %v1656 = vadd.f32 %v1654, 1.0
    %v1657 = vrcp.pop %v1655
    %v1658 = vrcp.pop %v1656
    %v1659 = vtanh.pop %v1633
    %v1660 = vtanh.pop %v1637
    %v1661 = vsub.f32 0.0, %v1634
    %v1662 = vsub.f32 0.0, %v1638
    %v1663 = vmul.f32 %v1661, 1.442695
    %v1664 = vpow.pop %v1663
    %v1665 = vmul.f32 %v1662, 1.442695
    %v1666 = vpow.pop %v1665
    %v1667 = vadd.f32 %v1664, 1.0
    %v1668 = vadd.f32 %v1666, 1.0
    %v1669 = vrcp.pop %v1667
    %v1670 = vrcp.pop %v1668
    %v1671 = vmul.f32 %v1657, %v1560
    %v1672 = vmul.f32 %v1658, %v1561
    %v1673 = vmul.f32 %v1647, %v1659
    %v1674 = vmul.f32 %v1648, %v1660
    %v1675 = vadd.f32 %v1671, %v1673
    %v1676 = vadd.f32 %v1672, %v1674
    %v1677 = vtanh.pop %v1675
    %v1678 = vtanh.pop %v1676
    %v1679 = vmul.f32 %v1669, %v1677
    %v1680 = vmul.f32 %v1670, %v1678
    %v1681 = vld [vmem:[#allocation4 + $0xc0] sm:$0xff]
    %v1682 = vld [vmem:[#allocation4 + $0xc8] sm:$0xff]
    %v1683 = vld [vmem:[#allocation4 + $0xd0] sm:$0xff]
    %v1684 = vld [vmem:[#allocation4 + $0xd8] sm:$0xff]
    %v1685 = vld [vmem:[#allocation4 + $0xe0] sm:$0xff]
    %v1686 = vld [vmem:[#allocation4 + $0xe8] sm:$0xff]
    %v1687 = vld [vmem:[#allocation4 + $0xf0] sm:$0xff]
    %v1688 = vld [vmem:[#allocation4 + $0xf8] sm:$0xff]
    %v1689 = vpack.c.bf16 %v1680, %v1679
    %1690 = vmatpush.bf16.msra.mxu0 %v1309
    %1691 = vmatpush.bf16.msra.mxu0 %v1305
    %1692 = vmatpush.bf16.msra.mxu0 %v1301
    %1693 = vmatpush.bf16.msra.mxu0 %v1297
    %1694 = vmatpush.bf16.msra.mxu0 %v1293
    %1695 = vmatpush.bf16.msra.mxu0 %v1289
    %1696 = vmatpush.bf16.msra.mxu0 %v1285
    %1697 = vmatpush.bf16.msra.mxu0 %v1281
    %1698 = vmatmul.bf16.gmra.mxu0 %v1689
    %v1699 = vpop.f32.mrf.mxu0
    %v1700 = vadd.f32 0.0, %v1699
    %v1701 = vpop.f32.mrf.mxu0
    %v1702 = vadd.f32 0.0, %v1701
    %1703 = vdwg.mxu0
    %1704 = vmatpush.bf16.msra.mxu0 %v1310
    %1705 = vmatpush.bf16.msra.mxu0 %v1306
    %1706 = vmatpush.bf16.msra.mxu0 %v1302
    %1707 = vmatpush.bf16.msra.mxu0 %v1298
    %1708 = vmatpush.bf16.msra.mxu0 %v1294
    %1709 = vmatpush.bf16.msra.mxu0 %v1290
    %1710 = vmatpush.bf16.msra.mxu0 %v1286
    %1711 = vmatpush.bf16.msra.mxu0 %v1282
    %1712 = vmatmul.bf16.gmra.mxu0 %v1689
    %v1713 = vpop.f32.mrf.mxu0
    %v1714 = vadd.f32 0.0, %v1713
    %v1715 = vpop.f32.mrf.mxu0
    %v1716 = vadd.f32 0.0, %v1715
    %1717 = vdwg.mxu0
    %1718 = vmatpush.bf16.msra.mxu0 %v1311
    %1719 = vmatpush.bf16.msra.mxu0 %v1307
    %1720 = vmatpush.bf16.msra.mxu0 %v1303
    %1721 = vmatpush.bf16.msra.mxu0 %v1299
    %1722 = vmatpush.bf16.msra.mxu0 %v1295
    %1723 = vmatpush.bf16.msra.mxu0 %v1291
    %1724 = vmatpush.bf16.msra.mxu0 %v1287
    %1725 = vmatpush.bf16.msra.mxu0 %v1283
    %1726 = vmatmul.bf16.gmra.mxu0 %v1689
    %v1727 = vpop.f32.mrf.mxu0
    %v1728 = vadd.f32 0.0, %v1727
    %v1729 = vpop.f32.mrf.mxu0
    %v1730 = vadd.f32 0.0, %v1729
    %1731 = vdwg.mxu0
    %1732 = vmatpush.bf16.msra.mxu0 %v1312
    %1733 = vmatpush.bf16.msra.mxu0 %v1308
    %1734 = vmatpush.bf16.msra.mxu0 %v1304
    %1735 = vmatpush.bf16.msra.mxu0 %v1300
    %1736 = vmatpush.bf16.msra.mxu0 %v1296
    %1737 = vmatpush.bf16.msra.mxu0 %v1292
    %1738 = vmatpush.bf16.msra.mxu0 %v1288
    %1739 = vmatpush.bf16.msra.mxu0 %v1284
    %1740 = vmatmul.bf16.gmra.mxu0 %v1689
    %v1741 = vpop.f32.mrf.mxu0
    %v1742 = vadd.f32 0.0, %v1741
    %v1743 = vpop.f32.mrf.mxu0
    %v1744 = vadd.f32 0.0, %v1743
    %1745 = vdwg.mxu0
    %v1746 = vadd.f32 %v1681, %v1700
    %v1747 = vadd.f32 %v1682, %v1714
    %v1748 = vadd.f32 %v1683, %v1728
    %v1749 = vadd.f32 %v1684, %v1742
    %v1750 = vadd.f32 %v1685, %v1702
    %v1751 = vadd.f32 %v1686, %v1716
    %v1752 = vadd.f32 %v1687, %v1730
    %v1753 = vadd.f32 %v1688, %v1744
    %v1754 = vsub.f32 0.0, %v1746
    %v1755 = vsub.f32 0.0, %v1750
    %v1756 = vmul.f32 %v1754, 1.442695
    %v1757 = vpow.pop %v1756
    %v1758 = vmul.f32 %v1755, 1.442695
    %v1759 = vpow.pop %v1758
    %v1760 = vadd.f32 %v1757, 1.0
    %v1761 = vadd.f32 %v1759, 1.0
    %v1762 = vrcp.pop %v1760
    %v1763 = vrcp.pop %v1761
    %v1764 = vsub.f32 0.0, %v1747
    %v1765 = vsub.f32 0.0, %v1751
    %v1766 = vmul.f32 %v1764, 1.442695
    %v1767 = vpow.pop %v1766
    %v1768 = vmul.f32 %v1765, 1.442695
    %v1769 = vpow.pop %v1768
    %v1770 = vadd.f32 %v1767, 1.0
    %v1771 = vadd.f32 %v1769, 1.0
    %v1772 = vrcp.pop %v1770
    %v1773 = vrcp.pop %v1771
    %v1774 = vtanh.pop %v1748
    %v1775 = vtanh.pop %v1752
    %v1776 = vsub.f32 0.0, %v1749
    %v1777 = vsub.f32 0.0, %v1753
    %v1778 = vmul.f32 %v1776, 1.442695
    %v1779 = vpow.pop %v1778
    %v1780 = vmul.f32 %v1777, 1.442695
    %v1781 = vpow.pop %v1780
    %v1782 = vadd.f32 %v1779, 1.0
    %v1783 = vadd.f32 %v1781, 1.0
    %v1784 = vrcp.pop %v1782
    %v1785 = vrcp.pop %v1783
    %v1786 = vmul.f32 %v1772, %v1675
    %v1787 = vmul.f32 %v1773, %v1676
    %v1788 = vmul.f32 %v1762, %v1774
    %v1789 = vmul.f32 %v1763, %v1775
    %v1790 = vadd.f32 %v1786, %v1788
    %v1791 = vadd.f32 %v1787, %v1789
    %v1792 = vtanh.pop %v1790
    %v1793 = vtanh.pop %v1791
    %v1794 = vmul.f32 %v1784, %v1792
    %v1795 = vmul.f32 %v1785, %v1793
    %v1796 = vld [vmem:[#allocation4 + $0x100] sm:$0xff]
    %v1797 = vld [vmem:[#allocation4 + $0x108] sm:$0xff]
    %v1798 = vld [vmem:[#allocation4 + $0x110] sm:$0xff]
    %v1799 = vld [vmem:[#allocation4 + $0x118] sm:$0xff]
    %v1800 = vld [vmem:[#allocation4 + $0x120] sm:$0xff]
    %v1801 = vld [vmem:[#allocation4 + $0x128] sm:$0xff]
    %v1802 = vld [vmem:[#allocation4 + $0x130] sm:$0xff]
    %v1803 = vld [vmem:[#allocation4 + $0x138] sm:$0xff]
    %v1804 = vpack.c.bf16 %v1795, %v1794
    %1805 = vmatpush.bf16.msra.mxu0 %v1309
    %1806 = vmatpush.bf16.msra.mxu0 %v1305
    %1807 = vmatpush.bf16.msra.mxu0 %v1301
    %1808 = vmatpush.bf16.msra.mxu0 %v1297
    %1809 = vmatpush.bf16.msra.mxu0 %v1293
    %1810 = vmatpush.bf16.msra.mxu0 %v1289
    %1811 = vmatpush.bf16.msra.mxu0 %v1285
    %1812 = vmatpush.bf16.msra.mxu0 %v1281
    %1813 = vmatmul.bf16.gmra.mxu0 %v1804
    %v1814 = vpop.f32.mrf.mxu0
    %v1815 = vadd.f32 0.0, %v1814
    %v1816 = vpop.f32.mrf.mxu0
    %v1817 = vadd.f32 0.0, %v1816
    %1818 = vdwg.mxu0
    %1819 = vmatpush.bf16.msra.mxu0 %v1310
    %1820 = vmatpush.bf16.msra.mxu0 %v1306
    %1821 = vmatpush.bf16.msra.mxu0 %v1302
    %1822 = vmatpush.bf16.msra.mxu0 %v1298
    %1823 = vmatpush.bf16.msra.mxu0 %v1294
    %1824 = vmatpush.bf16.msra.mxu0 %v1290
    %1825 = vmatpush.bf16.msra.mxu0 %v1286
    %1826 = vmatpush.bf16.msra.mxu0 %v1282
    %1827 = vmatmul.bf16.gmra.mxu0 %v1804
    %v1828 = vpop.f32.mrf.mxu0
    %v1829 = vadd.f32 0.0, %v1828
    %v1830 = vpop.f32.mrf.mxu0
    %v1831 = vadd.f32 0.0, %v1830
    %1832 = vdwg.mxu0
    %1833 = vmatpush.bf16.msra.mxu0 %v1311
    %1834 = vmatpush.bf16.msra.mxu0 %v1307
    %1835 = vmatpush.bf16.msra.mxu0 %v1303
    %1836 = vmatpush.bf16.msra.mxu0 %v1299
    %1837 = vmatpush.bf16.msra.mxu0 %v1295
    %1838 = vmatpush.bf16.msra.mxu0 %v1291
    %1839 = vmatpush.bf16.msra.mxu0 %v1287
    %1840 = vmatpush.bf16.msra.mxu0 %v1283
    %1841 = vmatmul.bf16.gmra.mxu0 %v1804
    %v1842 = vpop.f32.mrf.mxu0
    %v1843 = vadd.f32 0.0, %v1842
    %v1844 = vpop.f32.mrf.mxu0
    %v1845 = vadd.f32 0.0, %v1844
    %1846 = vdwg.mxu0
    %1847 = vmatpush.bf16.msra.mxu0 %v1312
    %1848 = vmatpush.bf16.msra.mxu0 %v1308
    %1849 = vmatpush.bf16.msra.mxu0 %v1304
    %1850 = vmatpush.bf16.msra.mxu0 %v1300
    %1851 = vmatpush.bf16.msra.mxu0 %v1296
    %1852 = vmatpush.bf16.msra.mxu0 %v1292
    %1853 = vmatpush.bf16.msra.mxu0 %v1288
    %1854 = vmatpush.bf16.msra.mxu0 %v1284
    %1855 = vmatmul.bf16.gmra.mxu0 %v1804
    %v1856 = vpop.f32.mrf.mxu0
    %v1857 = vadd.f32 0.0, %v1856
    %v1858 = vpop.f32.mrf.mxu0
    %v1859 = vadd.f32 0.0, %v1858
    %1860 = vdwg.mxu0
    %v1861 = vadd.f32 %v1796, %v1815
    %v1862 = vadd.f32 %v1797, %v1829
    %v1863 = vadd.f32 %v1798, %v1843
    %v1864 = vadd.f32 %v1799, %v1857
    %v1865 = vadd.f32 %v1800, %v1817
    %v1866 = vadd.f32 %v1801, %v1831
    %v1867 = vadd.f32 %v1802, %v1845
    %v1868 = vadd.f32 %v1803, %v1859
    %v1869 = vsub.f32 0.0, %v1861
    %v1870 = vsub.f32 0.0, %v1865
    %v1871 = vmul.f32 %v1869, 1.442695
    %v1872 = vpow.pop %v1871
    %v1873 = vmul.f32 %v1870, 1.442695
    %v1874 = vpow.pop %v1873
    %v1875 = vadd.f32 %v1872, 1.0
    %v1876 = vadd.f32 %v1874, 1.0
    %v1877 = vrcp.pop %v1875
    %v1878 = vrcp.pop %v1876
    %v1879 = vsub.f32 0.0, %v1862
    %v1880 = vsub.f32 0.0, %v1866
    %v1881 = vmul.f32 %v1879, 1.442695
    %v1882 = vpow.pop %v1881
    %v1883 = vmul.f32 %v1880, 1.442695
    %v1884 = vpow.pop %v1883
    %v1885 = vadd.f32 %v1882, 1.0
    %v1886 = vadd.f32 %v1884, 1.0
    %v1887 = vrcp.pop %v1885
    %v1888 = vrcp.pop %v1886
    %v1889 = vtanh.pop %v1863
    %v1890 = vtanh.pop %v1867
    %v1891 = vsub.f32 0.0, %v1864
    %v1892 = vsub.f32 0.0, %v1868
    %v1893 = vmul.f32 %v1891, 1.442695
    %v1894 = vpow.pop %v1893
    %v1895 = vmul.f32 %v1892, 1.442695
    %v1896 = vpow.pop %v1895
    %v1897 = vadd.f32 %v1894, 1.0
    %v1898 = vadd.f32 %v1896, 1.0
    %v1899 = vrcp.pop %v1897
    %v1900 = vrcp.pop %v1898
    %v1901 = vmul.f32 %v1887, %v1790
    %v1902 = vmul.f32 %v1888, %v1791
    %v1903 = vmul.f32 %v1877, %v1889
    %v1904 = vmul.f32 %v1878, %v1890
    %v1905 = vadd.f32 %v1901, %v1903
    %v1906 = vadd.f32 %v1902, %v1904
    %v1907 = vtanh.pop %v1905
    %v1908 = vtanh.pop %v1906
    %v1909 = vmul.f32 %v1899, %v1907
    %v1910 = vmul.f32 %v1900, %v1908
    %v1911 = vld [vmem:[#allocation4 + $0x140] sm:$0xff]
    %v1912 = vld [vmem:[#allocation4 + $0x148] sm:$0xff]
    %v1913 = vld [vmem:[#allocation4 + $0x150] sm:$0xff]
    %v1914 = vld [vmem:[#allocation4 + $0x158] sm:$0xff]
    %v1915 = vld [vmem:[#allocation4 + $0x160] sm:$0xff]
    %v1916 = vld [vmem:[#allocation4 + $0x168] sm:$0xff]
    %v1917 = vld [vmem:[#allocation4 + $0x170] sm:$0xff]
    %v1918 = vld [vmem:[#allocation4 + $0x178] sm:$0xff]
    %v1919 = vpack.c.bf16 %v1910, %v1909
    %1920 = vmatpush.bf16.msra.mxu0 %v1309
    %1921 = vmatpush.bf16.msra.mxu0 %v1305
    %1922 = vmatpush.bf16.msra.mxu0 %v1301
    %1923 = vmatpush.bf16.msra.mxu0 %v1297
    %1924 = vmatpush.bf16.msra.mxu0 %v1293
    %1925 = vmatpush.bf16.msra.mxu0 %v1289
    %1926 = vmatpush.bf16.msra.mxu0 %v1285
    %1927 = vmatpush.bf16.msra.mxu0 %v1281
    %1928 = vmatmul.bf16.gmra.mxu0 %v1919
    %v1929 = vpop.f32.mrf.mxu0
    %v1930 = vadd.f32 0.0, %v1929
    %v1931 = vpop.f32.mrf.mxu0
    %v1932 = vadd.f32 0.0, %v1931
    %1933 = vdwg.mxu0
    %1934 = vmatpush.bf16.msra.mxu0 %v1310
    %1935 = vmatpush.bf16.msra.mxu0 %v1306
    %1936 = vmatpush.bf16.msra.mxu0 %v1302
    %1937 = vmatpush.bf16.msra.mxu0 %v1298
    %1938 = vmatpush.bf16.msra.mxu0 %v1294
    %1939 = vmatpush.bf16.msra.mxu0 %v1290
    %1940 = vmatpush.bf16.msra.mxu0 %v1286
    %1941 = vmatpush.bf16.msra.mxu0 %v1282
    %1942 = vmatmul.bf16.gmra.mxu0 %v1919
    %v1943 = vpop.f32.mrf.mxu0
    %v1944 = vadd.f32 0.0, %v1943
    %v1945 = vpop.f32.mrf.mxu0
    %v1946 = vadd.f32 0.0, %v1945
    %1947 = vdwg.mxu0
    %1948 = vmatpush.bf16.msra.mxu0 %v1311
    %1949 = vmatpush.bf16.msra.mxu0 %v1307
    %1950 = vmatpush.bf16.msra.mxu0 %v1303
    %1951 = vmatpush.bf16.msra.mxu0 %v1299
    %1952 = vmatpush.bf16.msra.mxu0 %v1295
    %1953 = vmatpush.bf16.msra.mxu0 %v1291
    %1954 = vmatpush.bf16.msra.mxu0 %v1287
    %1955 = vmatpush.bf16.msra.mxu0 %v1283
    %1956 = vmatmul.bf16.gmra.mxu0 %v1919
    %v1957 = vpop.f32.mrf.mxu0
    %v1958 = vadd.f32 0.0, %v1957
    %v1959 = vpop.f32.mrf.mxu0
    %v1960 = vadd.f32 0.0, %v1959
    %1961 = vdwg.mxu0
    %1962 = vmatpush.bf16.msra.mxu0 %v1312
    %1963 = vmatpush.bf16.msra.mxu0 %v1308
    %1964 = vmatpush.bf16.msra.mxu0 %v1304
    %1965 = vmatpush.bf16.msra.mxu0 %v1300
    %1966 = vmatpush.bf16.msra.mxu0 %v1296
    %1967 = vmatpush.bf16.msra.mxu0 %v1292
    %1968 = vmatpush.bf16.msra.mxu0 %v1288
    %1969 = vmatpush.bf16.msra.mxu0 %v1284
    %1970 = vmatmul.bf16.gmra.mxu0 %v1919
    %v1971 = vpop.f32.mrf.mxu0
    %v1972 = vadd.f32 0.0, %v1971
    %v1973 = vpop.f32.mrf.mxu0
    %v1974 = vadd.f32 0.0, %v1973
    %1975 = vdwg.mxu0
    %v1976 = vadd.f32 %v1911, %v1930
    %v1977 = vadd.f32 %v1912, %v1944
    %v1978 = vadd.f32 %v1913, %v1958
    %v1979 = vadd.f32 %v1914, %v1972
    %v1980 = vadd.f32 %v1915, %v1932
    %v1981 = vadd.f32 %v1916, %v1946
    %v1982 = vadd.f32 %v1917, %v1960
    %v1983 = vadd.f32 %v1918, %v1974
    %v1984 = vsub.f32 0.0, %v1976
    %v1985 = vsub.f32 0.0, %v1980
    %v1986 = vmul.f32 %v1984, 1.442695
    %v1987 = vpow.pop %v1986
    %v1988 = vmul.f32 %v1985, 1.442695
    %v1989 = vpow.pop %v1988
    %v1990 = vadd.f32 %v1987, 1.0
    %v1991 = vadd.f32 %v1989, 1.0
    %v1992 = vrcp.pop %v1990
    %v1993 = vrcp.pop %v1991
    %v1994 = vsub.f32 0.0, %v1977
    %v1995 = vsub.f32 0.0, %v1981
    %v1996 = vmul.f32 %v1994, 1.442695
    %v1997 = vpow.pop %v1996
    %v1998 = vmul.f32 %v1995, 1.442695
    %v1999 = vpow.pop %v1998
    %v2000 = vadd.f32 %v1997, 1.0
    %v2001 = vadd.f32 %v1999, 1.0
    %v2002 = vrcp.pop %v2000
    %v2003 = vrcp.pop %v2001
    %v2004 = vtanh.pop %v1978
    %v2005 = vtanh.pop %v1982
    %v2006 = vsub.f32 0.0, %v1979
    %v2007 = vsub.f32 0.0, %v1983
    %v2008 = vmul.f32 %v2006, 1.442695
    %v2009 = vpow.pop %v2008
    %v2010 = vmul.f32 %v2007, 1.442695
    %v2011 = vpow.pop %v2010
    %v2012 = vadd.f32 %v2009, 1.0
    %v2013 = vadd.f32 %v2011, 1.0
    %v2014 = vrcp.pop %v2012
    %v2015 = vrcp.pop %v2013
    %v2016 = vmul.f32 %v2002, %v1905
    %v2017 = vmul.f32 %v2003, %v1906
    %v2018 = vmul.f32 %v1992, %v2004
    %v2019 = vmul.f32 %v1993, %v2005
    %v2020 = vadd.f32 %v2016, %v2018
    %v2021 = vadd.f32 %v2017, %v2019
    %v2022 = vtanh.pop %v2020
    %v2023 = vtanh.pop %v2021
    %v2024 = vmul.f32 %v2014, %v2022
    %v2025 = vmul.f32 %v2015, %v2023
    %v2026 = vld [vmem:[#allocation4 + $0x180] sm:$0xff]
    %v2027 = vld [vmem:[#allocation4 + $0x188] sm:$0xff]
    %v2028 = vld [vmem:[#allocation4 + $0x190] sm:$0xff]
    %v2029 = vld [vmem:[#allocation4 + $0x198] sm:$0xff]
    %v2030 = vld [vmem:[#allocation4 + $0x1a0] sm:$0xff]
    %v2031 = vld [vmem:[#allocation4 + $0x1a8] sm:$0xff]
    %v2032 = vld [vmem:[#allocation4 + $0x1b0] sm:$0xff]
    %v2033 = vld [vmem:[#allocation4 + $0x1b8] sm:$0xff]
    %v2034 = vpack.c.bf16 %v2025, %v2024
    %2035 = vmatpush.bf16.msra.mxu0 %v1309
    %2036 = vmatpush.bf16.msra.mxu0 %v1305
    %2037 = vmatpush.bf16.msra.mxu0 %v1301
    %2038 = vmatpush.bf16.msra.mxu0 %v1297
    %2039 = vmatpush.bf16.msra.mxu0 %v1293
    %2040 = vmatpush.bf16.msra.mxu0 %v1289
    %2041 = vmatpush.bf16.msra.mxu0 %v1285
    %2042 = vmatpush.bf16.msra.mxu0 %v1281
    %2043 = vmatmul.bf16.gmra.mxu0 %v2034
    %v2044 = vpop.f32.mrf.mxu0
    %v2045 = vadd.f32 0.0, %v2044
    %v2046 = vpop.f32.mrf.mxu0
    %v2047 = vadd.f32 0.0, %v2046
    %2048 = vdwg.mxu0
    %2049 = vmatpush.bf16.msra.mxu0 %v1310
    %2050 = vmatpush.bf16.msra.mxu0 %v1306
    %2051 = vmatpush.bf16.msra.mxu0 %v1302
    %2052 = vmatpush.bf16.msra.mxu0 %v1298
    %2053 = vmatpush.bf16.msra.mxu0 %v1294
    %2054 = vmatpush.bf16.msra.mxu0 %v1290
    %2055 = vmatpush.bf16.msra.mxu0 %v1286
    %2056 = vmatpush.bf16.msra.mxu0 %v1282
    %2057 = vmatmul.bf16.gmra.mxu0 %v2034
    %v2058 = vpop.f32.mrf.mxu0
    %v2059 = vadd.f32 0.0, %v2058
    %v2060 = vpop.f32.mrf.mxu0
    %v2061 = vadd.f32 0.0, %v2060
    %2062 = vdwg.mxu0
    %2063 = vmatpush.bf16.msra.mxu0 %v1311
    %2064 = vmatpush.bf16.msra.mxu0 %v1307
    %2065 = vmatpush.bf16.msra.mxu0 %v1303
    %2066 = vmatpush.bf16.msra.mxu0 %v1299
    %2067 = vmatpush.bf16.msra.mxu0 %v1295
    %2068 = vmatpush.bf16.msra.mxu0 %v1291
    %2069 = vmatpush.bf16.msra.mxu0 %v1287
    %2070 = vmatpush.bf16.msra.mxu0 %v1283
    %2071 = vmatmul.bf16.gmra.mxu0 %v2034
    %v2072 = vpop.f32.mrf.mxu0
    %v2073 = vadd.f32 0.0, %v2072
    %v2074 = vpop.f32.mrf.mxu0
    %v2075 = vadd.f32 0.0, %v2074
    %2076 = vdwg.mxu0
    %2077 = vmatpush.bf16.msra.mxu0 %v1312
    %2078 = vmatpush.bf16.msra.mxu0 %v1308
    %2079 = vmatpush.bf16.msra.mxu0 %v1304
    %2080 = vmatpush.bf16.msra.mxu0 %v1300
    %2081 = vmatpush.bf16.msra.mxu0 %v1296
    %2082 = vmatpush.bf16.msra.mxu0 %v1292
    %2083 = vmatpush.bf16.msra.mxu0 %v1288
    %2084 = vmatpush.bf16.msra.mxu0 %v1284
    %2085 = vmatmul.bf16.gmra.mxu0 %v2034
    %v2086 = vpop.f32.mrf.mxu0
    %v2087 = vadd.f32 0.0, %v2086
    %v2088 = vpop.f32.mrf.mxu0
    %v2089 = vadd.f32 0.0, %v2088
    %2090 = vdwg.mxu0
    %v2091 = vadd.f32 %v2026, %v2045
    %v2092 = vadd.f32 %v2027, %v2059
    %v2093 = vadd.f32 %v2028, %v2073
    %v2094 = vadd.f32 %v2029, %v2087
    %v2095 = vadd.f32 %v2030, %v2047
    %v2096 = vadd.f32 %v2031, %v2061
    %v2097 = vadd.f32 %v2032, %v2075
    %v2098 = vadd.f32 %v2033, %v2089
    %v2099 = vsub.f32 0.0, %v2091
    %v2100 = vsub.f32 0.0, %v2095
    %v2101 = vmul.f32 %v2099, 1.442695
    %v2102 = vpow.pop %v2101
    %v2103 = vmul.f32 %v2100, 1.442695
    %v2104 = vpow.pop %v2103
    %v2105 = vadd.f32 %v2102, 1.0
    %v2106 = vadd.f32 %v2104, 1.0
    %v2107 = vrcp.pop %v2105
    %v2108 = vrcp.pop %v2106
    %v2109 = vsub.f32 0.0, %v2092
    %v2110 = vsub.f32 0.0, %v2096
    %v2111 = vmul.f32 %v2109, 1.442695
    %v2112 = vpow.pop %v2111
    %v2113 = vmul.f32 %v2110, 1.442695
    %v2114 = vpow.pop %v2113
    %v2115 = vadd.f32 %v2112, 1.0
    %v2116 = vadd.f32 %v2114, 1.0
    %v2117 = vrcp.pop %v2115
    %v2118 = vrcp.pop %v2116
    %v2119 = vtanh.pop %v2093
    %v2120 = vtanh.pop %v2097
    %v2121 = vsub.f32 0.0, %v2094
    %v2122 = vsub.f32 0.0, %v2098
    %v2123 = vmul.f32 %v2121, 1.442695
    %v2124 = vpow.pop %v2123
    %v2125 = vmul.f32 %v2122, 1.442695
    %v2126 = vpow.pop %v2125
    %v2127 = vadd.f32 %v2124, 1.0
    %v2128 = vadd.f32 %v2126, 1.0
    %v2129 = vrcp.pop %v2127
    %v2130 = vrcp.pop %v2128
    %v2131 = vmul.f32 %v2117, %v2020
    %v2132 = vmul.f32 %v2118, %v2021
    %v2133 = vmul.f32 %v2107, %v2119
    %v2134 = vmul.f32 %v2108, %v2120
    %v2135 = vadd.f32 %v2131, %v2133
    %v2136 = vadd.f32 %v2132, %v2134
    %v2137 = vtanh.pop %v2135
    %v2138 = vtanh.pop %v2136
    %v2139 = vmul.f32 %v2129, %v2137
    %v2140 = vmul.f32 %v2130, %v2138
    %v2141 = vld [vmem:[#allocation4 + $0x1c0] sm:$0xff]
    %v2142 = vld [vmem:[#allocation4 + $0x1c8] sm:$0xff]
    %v2143 = vld [vmem:[#allocation4 + $0x1d0] sm:$0xff]
    %v2144 = vld [vmem:[#allocation4 + $0x1d8] sm:$0xff]
    %v2145 = vld [vmem:[#allocation4 + $0x1e0] sm:$0xff]
    %v2146 = vld [vmem:[#allocation4 + $0x1e8] sm:$0xff]
    %v2147 = vld [vmem:[#allocation4 + $0x1f0] sm:$0xff]
    %v2148 = vld [vmem:[#allocation4 + $0x1f8] sm:$0xff]
    %v2149 = vpack.c.bf16 %v2140, %v2139
    %2150 = vmatpush.bf16.msra.mxu0 %v1309
    %2151 = vmatpush.bf16.msra.mxu0 %v1305
    %2152 = vmatpush.bf16.msra.mxu0 %v1301
    %2153 = vmatpush.bf16.msra.mxu0 %v1297
    %2154 = vmatpush.bf16.msra.mxu0 %v1293
    %2155 = vmatpush.bf16.msra.mxu0 %v1289
    %2156 = vmatpush.bf16.msra.mxu0 %v1285
    %2157 = vmatpush.bf16.msra.mxu0 %v1281
    %2158 = vmatmul.bf16.gmra.mxu0 %v2149
    %v2159 = vpop.f32.mrf.mxu0
    %v2160 = vadd.f32 0.0, %v2159
    %v2161 = vpop.f32.mrf.mxu0
    %v2162 = vadd.f32 0.0, %v2161
    %2163 = vdwg.mxu0
    %2164 = vmatpush.bf16.msra.mxu0 %v1310
    %2165 = vmatpush.bf16.msra.mxu0 %v1306
    %2166 = vmatpush.bf16.msra.mxu0 %v1302
    %2167 = vmatpush.bf16.msra.mxu0 %v1298
    %2168 = vmatpush.bf16.msra.mxu0 %v1294
    %2169 = vmatpush.bf16.msra.mxu0 %v1290
    %2170 = vmatpush.bf16.msra.mxu0 %v1286
    %2171 = vmatpush.bf16.msra.mxu0 %v1282
    %2172 = vmatmul.bf16.gmra.mxu0 %v2149
    %v2173 = vpop.f32.mrf.mxu0
    %v2174 = vadd.f32 0.0, %v2173
    %v2175 = vpop.f32.mrf.mxu0
    %v2176 = vadd.f32 0.0, %v2175
    %2177 = vdwg.mxu0
    %2178 = vmatpush.bf16.msra.mxu0 %v1311
    %2179 = vmatpush.bf16.msra.mxu0 %v1307
    %2180 = vmatpush.bf16.msra.mxu0 %v1303
    %2181 = vmatpush.bf16.msra.mxu0 %v1299
    %2182 = vmatpush.bf16.msra.mxu0 %v1295
    %2183 = vmatpush.bf16.msra.mxu0 %v1291
    %2184 = vmatpush.bf16.msra.mxu0 %v1287
    %2185 = vmatpush.bf16.msra.mxu0 %v1283
    %2186 = vmatmul.bf16.gmra.mxu0 %v2149
    %v2187 = vpop.f32.mrf.mxu0
    %v2188 = vadd.f32 0.0, %v2187
    %v2189 = vpop.f32.mrf.mxu0
    %v2190 = vadd.f32 0.0, %v2189
    %2191 = vdwg.mxu0
    %2192 = vmatpush.bf16.msra.mxu0 %v1312
    %2193 = vmatpush.bf16.msra.mxu0 %v1308
    %2194 = vmatpush.bf16.msra.mxu0 %v1304
    %2195 = vmatpush.bf16.msra.mxu0 %v1300
    %2196 = vmatpush.bf16.msra.mxu0 %v1296
    %2197 = vmatpush.bf16.msra.mxu0 %v1292
    %2198 = vmatpush.bf16.msra.mxu0 %v1288
    %2199 = vmatpush.bf16.msra.mxu0 %v1284
    %2200 = vmatmul.bf16.gmra.mxu0 %v2149
    %v2201 = vpop.f32.mrf.mxu0
    %v2202 = vadd.f32 0.0, %v2201
    %v2203 = vpop.f32.mrf.mxu0
    %v2204 = vadd.f32 0.0, %v2203
    %2205 = vdwg.mxu0
    %v2206 = vadd.f32 %v2141, %v2160
    %v2207 = vadd.f32 %v2142, %v2174
    %v2208 = vadd.f32 %v2143, %v2188
    %v2209 = vadd.f32 %v2144, %v2202
    %v2210 = vadd.f32 %v2145, %v2162
    %v2211 = vadd.f32 %v2146, %v2176
    %v2212 = vadd.f32 %v2147, %v2190
    %v2213 = vadd.f32 %v2148, %v2204
    %v2214 = vsub.f32 0.0, %v2206
    %v2215 = vsub.f32 0.0, %v2210
    %v2216 = vmul.f32 %v2214, 1.442695
    %v2217 = vpow.pop %v2216
    %v2218 = vmul.f32 %v2215, 1.442695
    %v2219 = vpow.pop %v2218
    %v2220 = vadd.f32 %v2217, 1.0
    %v2221 = vadd.f32 %v2219, 1.0
    %v2222 = vrcp.pop %v2220
    %v2223 = vrcp.pop %v2221
    %v2224 = vsub.f32 0.0, %v2207
    %v2225 = vsub.f32 0.0, %v2211
    %v2226 = vmul.f32 %v2224, 1.442695
    %v2227 = vpow.pop %v2226
    %v2228 = vmul.f32 %v2225, 1.442695
    %v2229 = vpow.pop %v2228
    %v2230 = vadd.f32 %v2227, 1.0
    %v2231 = vadd.f32 %v2229, 1.0
    %v2232 = vrcp.pop %v2230
    %v2233 = vrcp.pop %v2231
    %v2234 = vtanh.pop %v2208
    %v2235 = vtanh.pop %v2212
    %v2236 = vsub.f32 0.0, %v2209
    %v2237 = vsub.f32 0.0, %v2213
    %v2238 = vmul.f32 %v2236, 1.442695
    %v2239 = vpow.pop %v2238
    %v2240 = vmul.f32 %v2237, 1.442695
    %v2241 = vpow.pop %v2240
    %v2242 = vadd.f32 %v2239, 1.0
    %v2243 = vadd.f32 %v2241, 1.0
    %v2244 = vrcp.pop %v2242
    %v2245 = vrcp.pop %v2243
    %v2246 = vmul.f32 %v2232, %v2135
    %v2247 = vmul.f32 %v2233, %v2136
    %v2248 = vmul.f32 %v2222, %v2234
    %v2249 = vmul.f32 %v2223, %v2235
    %v2250 = vadd.f32 %v2246, %v2248
    %v2251 = vadd.f32 %v2247, %v2249
    %v2252 = vtanh.pop %v2250
    %v2253 = vtanh.pop %v2251
    %v2254 = vmul.f32 %v2244, %v2252
    %v2255 = vmul.f32 %v2245, %v2253
    %s2256 = smul.u32 4, 80
    %s2257 = smul.u32 %s2256, 4
    %s2258 = sshll.u32 %s2257, 4
    %2259 = dma.done [#allocation5], %s2258
    %v2260 = vpack.c.bf16 %v2255, %v2254
    %v2261 = vld [vmem:[#allocation2] sm:$0xff]
    %v2262 = vld [vmem:[#allocation2 + $0x8] sm:$0xff]
    %v2263 = vld [vmem:[#allocation2 + $0x10] sm:$0xff]
    %v2264 = vld [vmem:[#allocation2 + $0x18] sm:$0xff]
    %v2265 = vld [vmem:[#allocation2 + $0x20] sm:$0xff]
    %v2266 = vld [vmem:[#allocation2 + $0x28] sm:$0xff]
    %v2267 = vld [vmem:[#allocation2 + $0x30] sm:$0xff]
    %v2268 = vld [vmem:[#allocation2 + $0x38] sm:$0xff]
    %v2269 = vld [vmem:[#allocation2 + $0x40] sm:$0xff]
    %v2270 = vld [vmem:[#allocation2 + $0x48] sm:$0xff]
    %v2271 = vld [vmem:[#allocation2 + $0x50] sm:$0xff]
    %v2272 = vld [vmem:[#allocation2 + $0x58] sm:$0xff]
    %v2273 = vld [vmem:[#allocation2 + $0x60] sm:$0xff]
    %v2274 = vld [vmem:[#allocation2 + $0x68] sm:$0xff]
    %v2275 = vld [vmem:[#allocation2 + $0x70] sm:$0xff]
    %v2276 = vld [vmem:[#allocation2 + $0x78] sm:$0xff]
    %v2277 = vld [vmem:[#allocation2 + $0x80] sm:$0xff]
    %v2278 = vld [vmem:[#allocation2 + $0x88] sm:$0xff]
    %v2279 = vld [vmem:[#allocation2 + $0x90] sm:$0xff]
    %v2280 = vld [vmem:[#allocation2 + $0x98] sm:$0xff]
    %v2281 = vld [vmem:[#allocation2 + $0xa0] sm:$0xff]
    %v2282 = vld [vmem:[#allocation2 + $0xa8] sm:$0xff]
    %v2283 = vld [vmem:[#allocation2 + $0xb0] sm:$0xff]
    %v2284 = vld [vmem:[#allocation2 + $0xb8] sm:$0xff]
    %v2285 = vld [vmem:[#allocation2 + $0xc0] sm:$0xff]
    %v2286 = vld [vmem:[#allocation2 + $0xc8] sm:$0xff]
    %v2287 = vld [vmem:[#allocation2 + $0xd0] sm:$0xff]
    %v2288 = vld [vmem:[#allocation2 + $0xd8] sm:$0xff]
    %v2289 = vld [vmem:[#allocation2 + $0xe0] sm:$0xff]
    %v2290 = vld [vmem:[#allocation2 + $0xe8] sm:$0xff]
    %v2291 = vld [vmem:[#allocation2 + $0xf0] sm:$0xff]
    %v2292 = vld [vmem:[#allocation2 + $0xf8] sm:$0xff]
    %v2293 = vld [vmem:[%s1] sm:$0xff]
    %v2294 = vld [vmem:[%s1 + $0x8] sm:$0xff]
    %v2295 = vld [vmem:[%s1 + $0x10] sm:$0xff]
    %v2296 = vld [vmem:[%s1 + $0x18] sm:$0xff]
    %v2297 = vld [vmem:[#allocation2 + $0x100] sm:$0xff]
    %v2298 = vld [vmem:[#allocation2 + $0x108] sm:$0xff]
    %v2299 = vld [vmem:[#allocation2 + $0x110] sm:$0xff]
    %v2300 = vld [vmem:[#allocation2 + $0x118] sm:$0xff]
    %v2301 = vld [vmem:[#allocation2 + $0x120] sm:$0xff]
    %v2302 = vld [vmem:[#allocation2 + $0x128] sm:$0xff]
    %v2303 = vld [vmem:[#allocation2 + $0x130] sm:$0xff]
    %v2304 = vld [vmem:[#allocation2 + $0x138] sm:$0xff]
    %v2305 = vld [vmem:[#allocation2 + $0x140] sm:$0xff]
    %v2306 = vld [vmem:[#allocation2 + $0x148] sm:$0xff]
    %v2307 = vld [vmem:[#allocation2 + $0x150] sm:$0xff]
    %v2308 = vld [vmem:[#allocation2 + $0x158] sm:$0xff]
    %v2309 = vld [vmem:[#allocation2 + $0x160] sm:$0xff]
    %v2310 = vld [vmem:[#allocation2 + $0x168] sm:$0xff]
    %v2311 = vld [vmem:[#allocation2 + $0x170] sm:$0xff]
    %v2312 = vld [vmem:[#allocation2 + $0x178] sm:$0xff]
    %v2313 = vld [vmem:[#allocation2 + $0x180] sm:$0xff]
    %v2314 = vld [vmem:[#allocation2 + $0x188] sm:$0xff]
    %v2315 = vld [vmem:[#allocation2 + $0x190] sm:$0xff]
    %v2316 = vld [vmem:[#allocation2 + $0x198] sm:$0xff]
    %v2317 = vld [vmem:[#allocation2 + $0x1a0] sm:$0xff]
    %v2318 = vld [vmem:[#allocation2 + $0x1a8] sm:$0xff]
    %v2319 = vld [vmem:[#allocation2 + $0x1b0] sm:$0xff]
    %v2320 = vld [vmem:[#allocation2 + $0x1b8] sm:$0xff]
    %v2321 = vld [vmem:[#allocation2 + $0x1c0] sm:$0xff]
    %v2322 = vld [vmem:[#allocation2 + $0x1c8] sm:$0xff]
    %v2323 = vld [vmem:[#allocation2 + $0x1d0] sm:$0xff]
    %v2324 = vld [vmem:[#allocation2 + $0x1d8] sm:$0xff]
    %v2325 = vld [vmem:[#allocation2 + $0x1e0] sm:$0xff]
    %v2326 = vld [vmem:[#allocation2 + $0x1e8] sm:$0xff]
    %v2327 = vld [vmem:[#allocation2 + $0x1f0] sm:$0xff]
    %v2328 = vld [vmem:[#allocation2 + $0x1f8] sm:$0xff]
    %v2329 = vld [vmem:[#allocation2 + $0x200] sm:$0xff]
    %v2330 = vld [vmem:[#allocation2 + $0x208] sm:$0xff]
    %v2331 = vld [vmem:[#allocation2 + $0x210] sm:$0xff]
    %v2332 = vld [vmem:[#allocation2 + $0x218] sm:$0xff]
    %v2333 = vld [vmem:[#allocation2 + $0x220] sm:$0xff]
    %v2334 = vld [vmem:[#allocation2 + $0x228] sm:$0xff]
    %v2335 = vld [vmem:[#allocation2 + $0x230] sm:$0xff]
    %v2336 = vld [vmem:[#allocation2 + $0x238] sm:$0xff]
    %v2337 = vld [vmem:[#allocation2 + $0x240] sm:$0xff]
    %v2338 = vld [vmem:[#allocation2 + $0x248] sm:$0xff]
    %v2339 = vld [vmem:[#allocation2 + $0x250] sm:$0xff]
    %v2340 = vld [vmem:[#allocation2 + $0x258] sm:$0xff]
    %v2341 = vld [vmem:[#allocation2 + $0x260] sm:$0xff]
    %v2342 = vld [vmem:[#allocation2 + $0x268] sm:$0xff]
    %v2343 = vld [vmem:[#allocation2 + $0x270] sm:$0xff]
    %v2344 = vld [vmem:[#allocation2 + $0x278] sm:$0xff]
    %v2345 = vld [vmem:[#allocation2 + $0x280] sm:$0xff]
    %v2346 = vld [vmem:[#allocation2 + $0x288] sm:$0xff]
    %v2347 = vld [vmem:[#allocation2 + $0x290] sm:$0xff]
    %v2348 = vld [vmem:[#allocation2 + $0x298] sm:$0xff]
    %v2349 = vld [vmem:[#allocation2 + $0x2a0] sm:$0xff]
    %v2350 = vld [vmem:[#allocation2 + $0x2a8] sm:$0xff]
    %v2351 = vld [vmem:[#allocation2 + $0x2b0] sm:$0xff]
    %v2352 = vld [vmem:[#allocation2 + $0x2b8] sm:$0xff]
    %v2353 = vld [vmem:[#allocation2 + $0x2c0] sm:$0xff]
    %v2354 = vld [vmem:[#allocation2 + $0x2c8] sm:$0xff]
    %v2355 = vld [vmem:[#allocation2 + $0x2d0] sm:$0xff]
    %v2356 = vld [vmem:[#allocation2 + $0x2d8] sm:$0xff]
    %v2357 = vld [vmem:[#allocation2 + $0x2e0] sm:$0xff]
    %v2358 = vld [vmem:[#allocation2 + $0x2e8] sm:$0xff]
    %v2359 = vld [vmem:[#allocation2 + $0x2f0] sm:$0xff]
    %v2360 = vld [vmem:[#allocation2 + $0x2f8] sm:$0xff]
    %v2361 = vld [vmem:[#allocation2 + $0x300] sm:$0xff]
    %v2362 = vld [vmem:[#allocation2 + $0x308] sm:$0xff]
    %v2363 = vld [vmem:[#allocation2 + $0x310] sm:$0xff]
    %v2364 = vld [vmem:[#allocation2 + $0x318] sm:$0xff]
    %v2365 = vld [vmem:[#allocation2 + $0x320] sm:$0xff]
    %v2366 = vld [vmem:[#allocation2 + $0x328] sm:$0xff]
    %v2367 = vld [vmem:[#allocation2 + $0x330] sm:$0xff]
    %v2368 = vld [vmem:[#allocation2 + $0x338] sm:$0xff]
    %v2369 = vld [vmem:[#allocation2 + $0x340] sm:$0xff]
    %v2370 = vld [vmem:[#allocation2 + $0x348] sm:$0xff]
    %v2371 = vld [vmem:[#allocation2 + $0x350] sm:$0xff]
    %v2372 = vld [vmem:[#allocation2 + $0x358] sm:$0xff]
    %v2373 = vld [vmem:[#allocation2 + $0x360] sm:$0xff]
    %v2374 = vld [vmem:[#allocation2 + $0x368] sm:$0xff]
    %v2375 = vld [vmem:[#allocation2 + $0x370] sm:$0xff]
    %v2376 = vld [vmem:[#allocation2 + $0x378] sm:$0xff]
    %v2377 = vld [vmem:[#allocation2 + $0x380] sm:$0xff]
    %v2378 = vld [vmem:[#allocation2 + $0x388] sm:$0xff]
    %v2379 = vld [vmem:[#allocation2 + $0x390] sm:$0xff]
    %v2380 = vld [vmem:[#allocation2 + $0x398] sm:$0xff]
    %v2381 = vld [vmem:[#allocation2 + $0x3a0] sm:$0xff]
    %v2382 = vld [vmem:[#allocation2 + $0x3a8] sm:$0xff]
    %v2383 = vld [vmem:[#allocation2 + $0x3b0] sm:$0xff]
    %v2384 = vld [vmem:[#allocation2 + $0x3b8] sm:$0xff]
    %v2385 = vld [vmem:[#allocation2 + $0x3c0] sm:$0xff]
    %v2386 = vld [vmem:[#allocation2 + $0x3c8] sm:$0xff]
    %v2387 = vld [vmem:[#allocation2 + $0x3d0] sm:$0xff]
    %v2388 = vld [vmem:[#allocation2 + $0x3d8] sm:$0xff]
    %v2389 = vld [vmem:[#allocation2 + $0x3e0] sm:$0xff]
    %v2390 = vld [vmem:[#allocation2 + $0x3e8] sm:$0xff]
    %v2391 = vld [vmem:[#allocation2 + $0x3f0] sm:$0xff]
    %v2392 = vld [vmem:[#allocation2 + $0x3f8] sm:$0xff]
    %v2393 = vld [vmem:[#allocation2 + $0x400] sm:$0xff]
    %v2394 = vld [vmem:[#allocation2 + $0x408] sm:$0xff]
    %v2395 = vld [vmem:[#allocation2 + $0x410] sm:$0xff]
    %v2396 = vld [vmem:[#allocation2 + $0x418] sm:$0xff]
    %v2397 = vld [vmem:[#allocation2 + $0x420] sm:$0xff]
    %v2398 = vld [vmem:[#allocation2 + $0x428] sm:$0xff]
    %v2399 = vld [vmem:[#allocation2 + $0x430] sm:$0xff]
    %v2400 = vld [vmem:[#allocation2 + $0x438] sm:$0xff]
    %v2401 = vld [vmem:[#allocation2 + $0x440] sm:$0xff]
    %v2402 = vld [vmem:[#allocation2 + $0x448] sm:$0xff]
    %v2403 = vld [vmem:[#allocation2 + $0x450] sm:$0xff]
    %v2404 = vld [vmem:[#allocation2 + $0x458] sm:$0xff]
    %v2405 = vld [vmem:[#allocation2 + $0x460] sm:$0xff]
    %v2406 = vld [vmem:[#allocation2 + $0x468] sm:$0xff]
    %v2407 = vld [vmem:[#allocation2 + $0x470] sm:$0xff]
    %v2408 = vld [vmem:[#allocation2 + $0x478] sm:$0xff]
    %v2409 = vld [vmem:[#allocation2 + $0x480] sm:$0xff]
    %v2410 = vld [vmem:[#allocation2 + $0x488] sm:$0xff]
    %v2411 = vld [vmem:[#allocation2 + $0x490] sm:$0xff]
    %v2412 = vld [vmem:[#allocation2 + $0x498] sm:$0xff]
    %v2413 = vld [vmem:[#allocation2 + $0x4a0] sm:$0xff]
    %v2414 = vld [vmem:[#allocation2 + $0x4a8] sm:$0xff]
    %v2415 = vld [vmem:[#allocation2 + $0x4b0] sm:$0xff]
    %v2416 = vld [vmem:[#allocation2 + $0x4b8] sm:$0xff]
    %v2417 = vld [vmem:[#allocation2 + $0x4c0] sm:$0xff]
    %v2418 = vld [vmem:[#allocation2 + $0x4c8] sm:$0xff]
    %v2419 = vld [vmem:[#allocation2 + $0x4d0] sm:$0xff]
    %v2420 = vld [vmem:[#allocation2 + $0x4d8] sm:$0xff]
    %v2421 = vld [vmem:[#allocation2 + $0x4e0] sm:$0xff]
    %v2422 = vld [vmem:[#allocation2 + $0x4e8] sm:$0xff]
    %v2423 = vld [vmem:[#allocation2 + $0x4f0] sm:$0xff]
    %v2424 = vld [vmem:[#allocation2 + $0x4f8] sm:$0xff]
    %v2429 = vunpack.c.l.b16 %v2293
    %v2430 = vunpack.c.h.b16 %v2293
    %v2431 = vunpack.c.l.b16 %v2294
    %v2432 = vunpack.c.h.b16 %v2294
    %v2433 = vunpack.c.l.b16 %v2295
    %v2434 = vunpack.c.h.b16 %v2295
    %v2435 = vunpack.c.l.b16 %v2296
    %v2436 = vunpack.c.h.b16 %v2296
    %v2437 = vpack.c.b16 %v2433, %v2429
    %v2438 = vpack.c.b16 %v2434, %v2430
    %v2439 = vpack.c.b16 %v2435, %v2431
    %v2440 = vpack.c.b16 %v2436, %v2432
    %v2573 = vunpack.c.l.b16 %v2297
    %v2574 = vunpack.c.h.b16 %v2297
    %v2575 = vunpack.c.l.b16 %v2298
    %v2576 = vunpack.c.h.b16 %v2298
    %v2577 = vunpack.c.l.b16 %v2299
    %v2578 = vunpack.c.h.b16 %v2299
    %v2579 = vunpack.c.l.b16 %v2300
    %v2580 = vunpack.c.h.b16 %v2300
    %v2581 = vunpack.c.l.b16 %v2301
    %v2582 = vunpack.c.h.b16 %v2301
    %v2583 = vunpack.c.l.b16 %v2302
    %v2584 = vunpack.c.h.b16 %v2302
    %v2585 = vunpack.c.l.b16 %v2303
    %v2586 = vunpack.c.h.b16 %v2303
    %v2587 = vunpack.c.l.b16 %v2304
    %v2588 = vunpack.c.h.b16 %v2304
    %v2589 = vunpack.c.l.b16 %v2305
    %v2590 = vunpack.c.h.b16 %v2305
    %v2591 = vunpack.c.l.b16 %v2306
    %v2592 = vunpack.c.h.b16 %v2306
    %v2593 = vunpack.c.l.b16 %v2307
    %v2594 = vunpack.c.h.b16 %v2307
    %v2595 = vunpack.c.l.b16 %v2308
    %v2596 = vunpack.c.h.b16 %v2308
    %v2597 = vunpack.c.l.b16 %v2309
    %v2598 = vunpack.c.h.b16 %v2309
    %v2599 = vunpack.c.l.b16 %v2310
    %v2600 = vunpack.c.h.b16 %v2310
    %v2601 = vunpack.c.l.b16 %v2311
    %v2602 = vunpack.c.h.b16 %v2311
    %v2603 = vunpack.c.l.b16 %v2312
    %v2604 = vunpack.c.h.b16 %v2312
    %v2605 = vunpack.c.l.b16 %v2313
    %v2606 = vunpack.c.h.b16 %v2313
    %v2607 = vunpack.c.l.b16 %v2314
    %v2608 = vunpack.c.h.b16 %v2314
    %v2609 = vunpack.c.l.b16 %v2315
    %v2610 = vunpack.c.h.b16 %v2315
    %v2611 = vunpack.c.l.b16 %v2316
    %v2612 = vunpack.c.h.b16 %v2316
    %v2613 = vunpack.c.l.b16 %v2317
    %v2614 = vunpack.c.h.b16 %v2317
    %v2615 = vunpack.c.l.b16 %v2318
    %v2616 = vunpack.c.h.b16 %v2318
    %v2617 = vunpack.c.l.b16 %v2319
    %v2618 = vunpack.c.h.b16 %v2319
    %v2619 = vunpack.c.l.b16 %v2320
    %v2620 = vunpack.c.h.b16 %v2320
    %v2621 = vunpack.c.l.b16 %v2321
    %v2622 = vunpack.c.h.b16 %v2321
    %v2623 = vunpack.c.l.b16 %v2322
    %v2624 = vunpack.c.h.b16 %v2322
    %v2625 = vunpack.c.l.b16 %v2323
    %v2626 = vunpack.c.h.b16 %v2323
    %v2627 = vunpack.c.l.b16 %v2324
    %v2628 = vunpack.c.h.b16 %v2324
    %v2629 = vunpack.c.l.b16 %v2325
    %v2630 = vunpack.c.h.b16 %v2325
    %v2631 = vunpack.c.l.b16 %v2326
    %v2632 = vunpack.c.h.b16 %v2326
    %v2633 = vunpack.c.l.b16 %v2327
    %v2634 = vunpack.c.h.b16 %v2327
    %v2635 = vunpack.c.l.b16 %v2328
    %v2636 = vunpack.c.h.b16 %v2328
    %v2637 = vunpack.c.l.b16 %v2329
    %v2638 = vunpack.c.h.b16 %v2329
    %v2639 = vunpack.c.l.b16 %v2330
    %v2640 = vunpack.c.h.b16 %v2330
    %v2641 = vunpack.c.l.b16 %v2331
    %v2642 = vunpack.c.h.b16 %v2331
    %v2643 = vunpack.c.l.b16 %v2332
    %v2644 = vunpack.c.h.b16 %v2332
    %v2645 = vunpack.c.l.b16 %v2333
    %v2646 = vunpack.c.h.b16 %v2333
    %v2647 = vunpack.c.l.b16 %v2334
    %v2648 = vunpack.c.h.b16 %v2334
    %v2649 = vunpack.c.l.b16 %v2335
    %v2650 = vunpack.c.h.b16 %v2335
    %v2651 = vunpack.c.l.b16 %v2336
    %v2652 = vunpack.c.h.b16 %v2336
    %v2653 = vunpack.c.l.b16 %v2337
    %v2654 = vunpack.c.h.b16 %v2337
    %v2655 = vunpack.c.l.b16 %v2338
    %v2656 = vunpack.c.h.b16 %v2338
    %v2657 = vunpack.c.l.b16 %v2339
    %v2658 = vunpack.c.h.b16 %v2339
    %v2659 = vunpack.c.l.b16 %v2340
    %v2660 = vunpack.c.h.b16 %v2340
    %v2661 = vunpack.c.l.b16 %v2341
    %v2662 = vunpack.c.h.b16 %v2341
    %v2663 = vunpack.c.l.b16 %v2342
    %v2664 = vunpack.c.h.b16 %v2342
    %v2665 = vunpack.c.l.b16 %v2343
    %v2666 = vunpack.c.h.b16 %v2343
    %v2667 = vunpack.c.l.b16 %v2344
    %v2668 = vunpack.c.h.b16 %v2344
    %v2669 = vunpack.c.l.b16 %v2345
    %v2670 = vunpack.c.h.b16 %v2345
    %v2671 = vunpack.c.l.b16 %v2346
    %v2672 = vunpack.c.h.b16 %v2346
    %v2673 = vunpack.c.l.b16 %v2347
    %v2674 = vunpack.c.h.b16 %v2347
    %v2675 = vunpack.c.l.b16 %v2348
    %v2676 = vunpack.c.h.b16 %v2348
    %v2677 = vunpack.c.l.b16 %v2349
    %v2678 = vunpack.c.h.b16 %v2349
    %v2679 = vunpack.c.l.b16 %v2350
    %v2680 = vunpack.c.h.b16 %v2350
    %v2681 = vunpack.c.l.b16 %v2351
    %v2682 = vunpack.c.h.b16 %v2351
    %v2683 = vunpack.c.l.b16 %v2352
    %v2684 = vunpack.c.h.b16 %v2352
    %v2685 = vunpack.c.l.b16 %v2353
    %v2686 = vunpack.c.h.b16 %v2353
    %v2687 = vunpack.c.l.b16 %v2354
    %v2688 = vunpack.c.h.b16 %v2354
    %v2689 = vunpack.c.l.b16 %v2355
    %v2690 = vunpack.c.h.b16 %v2355
    %v2691 = vunpack.c.l.b16 %v2356
    %v2692 = vunpack.c.h.b16 %v2356
    %v2693 = vunpack.c.l.b16 %v2357
    %v2694 = vunpack.c.h.b16 %v2357
    %v2695 = vunpack.c.l.b16 %v2358
    %v2696 = vunpack.c.h.b16 %v2358
    %v2697 = vunpack.c.l.b16 %v2359
    %v2698 = vunpack.c.h.b16 %v2359
    %v2699 = vunpack.c.l.b16 %v2360
    %v2700 = vunpack.c.h.b16 %v2360
    %v2701 = vunpack.c.l.b16 %v2361
    %v2702 = vunpack.c.h.b16 %v2361
    %v2703 = vunpack.c.l.b16 %v2362
    %v2704 = vunpack.c.h.b16 %v2362
    %v2705 = vunpack.c.l.b16 %v2363
    %v2706 = vunpack.c.h.b16 %v2363
    %v2707 = vunpack.c.l.b16 %v2364
    %v2708 = vunpack.c.h.b16 %v2364
    %v2709 = vunpack.c.l.b16 %v2365
    %v2710 = vunpack.c.h.b16 %v2365
    %v2711 = vunpack.c.l.b16 %v2366
    %v2712 = vunpack.c.h.b16 %v2366
    %v2713 = vunpack.c.l.b16 %v2367
    %v2714 = vunpack.c.h.b16 %v2367
    %v2715 = vunpack.c.l.b16 %v2368
    %v2716 = vunpack.c.h.b16 %v2368
    %v2717 = vunpack.c.l.b16 %v2369
    %v2718 = vunpack.c.h.b16 %v2369
    %v2719 = vunpack.c.l.b16 %v2370
    %v2720 = vunpack.c.h.b16 %v2370
    %v2721 = vunpack.c.l.b16 %v2371
    %v2722 = vunpack.c.h.b16 %v2371
    %v2723 = vunpack.c.l.b16 %v2372
    %v2724 = vunpack.c.h.b16 %v2372
    %v2725 = vunpack.c.l.b16 %v2373
    %v2726 = vunpack.c.h.b16 %v2373
    %v2727 = vunpack.c.l.b16 %v2374
    %v2728 = vunpack.c.h.b16 %v2374
    %v2729 = vunpack.c.l.b16 %v2375
    %v2730 = vunpack.c.h.b16 %v2375
    %v2731 = vunpack.c.l.b16 %v2376
    %v2732 = vunpack.c.h.b16 %v2376
    %v2733 = vunpack.c.l.b16 %v2377
    %v2734 = vunpack.c.h.b16 %v2377
    %v2735 = vunpack.c.l.b16 %v2378
    %v2736 = vunpack.c.h.b16 %v2378
    %v2737 = vunpack.c.l.b16 %v2379
    %v2738 = vunpack.c.h.b16 %v2379
    %v2739 = vunpack.c.l.b16 %v2380
    %v2740 = vunpack.c.h.b16 %v2380
    %v2741 = vunpack.c.l.b16 %v2381
    %v2742 = vunpack.c.h.b16 %v2381
    %v2743 = vunpack.c.l.b16 %v2382
    %v2744 = vunpack.c.h.b16 %v2382
    %v2745 = vunpack.c.l.b16 %v2383
    %v2746 = vunpack.c.h.b16 %v2383
    %v2747 = vunpack.c.l.b16 %v2384
    %v2748 = vunpack.c.h.b16 %v2384
    %v2749 = vunpack.c.l.b16 %v2385
    %v2750 = vunpack.c.h.b16 %v2385
    %v2751 = vunpack.c.l.b16 %v2386
    %v2752 = vunpack.c.h.b16 %v2386
    %v2753 = vunpack.c.l.b16 %v2387
    %v2754 = vunpack.c.h.b16 %v2387
    %v2755 = vunpack.c.l.b16 %v2388
    %v2756 = vunpack.c.h.b16 %v2388
    %v2757 = vunpack.c.l.b16 %v2389
    %v2758 = vunpack.c.h.b16 %v2389
    %v2759 = vunpack.c.l.b16 %v2390
    %v2760 = vunpack.c.h.b16 %v2390
    %v2761 = vunpack.c.l.b16 %v2391
    %v2762 = vunpack.c.h.b16 %v2391
    %v2763 = vunpack.c.l.b16 %v2392
    %v2764 = vunpack.c.h.b16 %v2392
    %v2765 = vunpack.c.l.b16 %v2393
    %v2766 = vunpack.c.h.b16 %v2393
    %v2767 = vunpack.c.l.b16 %v2394
    %v2768 = vunpack.c.h.b16 %v2394
    %v2769 = vunpack.c.l.b16 %v2395
    %v2770 = vunpack.c.h.b16 %v2395
    %v2771 = vunpack.c.l.b16 %v2396
    %v2772 = vunpack.c.h.b16 %v2396
    %v2773 = vunpack.c.l.b16 %v2397
    %v2774 = vunpack.c.h.b16 %v2397
    %v2775 = vunpack.c.l.b16 %v2398
    %v2776 = vunpack.c.h.b16 %v2398
    %v2777 = vunpack.c.l.b16 %v2399
    %v2778 = vunpack.c.h.b16 %v2399
    %v2779 = vunpack.c.l.b16 %v2400
    %v2780 = vunpack.c.h.b16 %v2400
    %v2781 = vunpack.c.l.b16 %v2401
    %v2782 = vunpack.c.h.b16 %v2401
    %v2783 = vunpack.c.l.b16 %v2402
    %v2784 = vunpack.c.h.b16 %v2402
    %v2785 = vunpack.c.l.b16 %v2403
    %v2786 = vunpack.c.h.b16 %v2403
    %v2787 = vunpack.c.l.b16 %v2404
    %v2788 = vunpack.c.h.b16 %v2404
    %v2789 = vunpack.c.l.b16 %v2405
    %v2790 = vunpack.c.h.b16 %v2405
    %v2791 = vunpack.c.l.b16 %v2406
    %v2792 = vunpack.c.h.b16 %v2406
    %v2793 = vunpack.c.l.b16 %v2407
    %v2794 = vunpack.c.h.b16 %v2407
    %v2795 = vunpack.c.l.b16 %v2408
    %v2796 = vunpack.c.h.b16 %v2408
    %v2797 = vunpack.c.l.b16 %v2409
    %v2798 = vunpack.c.h.b16 %v2409
    %v2799 = vunpack.c.l.b16 %v2410
    %v2800 = vunpack.c.h.b16 %v2410
    %v2801 = vunpack.c.l.b16 %v2411
    %v2802 = vunpack.c.h.b16 %v2411
    %v2803 = vunpack.c.l.b16 %v2412
    %v2804 = vunpack.c.h.b16 %v2412
    %v2805 = vunpack.c.l.b16 %v2413
    %v2806 = vunpack.c.h.b16 %v2413
    %v2807 = vunpack.c.l.b16 %v2414
    %v2808 = vunpack.c.h.b16 %v2414
    %v2809 = vunpack.c.l.b16 %v2415
    %v2810 = vunpack.c.h.b16 %v2415
    %v2811 = vunpack.c.l.b16 %v2416
    %v2812 = vunpack.c.h.b16 %v2416
    %v2813 = vunpack.c.l.b16 %v2417
    %v2814 = vunpack.c.h.b16 %v2417
    %v2815 = vunpack.c.l.b16 %v2418
    %v2816 = vunpack.c.h.b16 %v2418
    %v2817 = vunpack.c.l.b16 %v2419
    %v2818 = vunpack.c.h.b16 %v2419
    %v2819 = vunpack.c.l.b16 %v2420
    %v2820 = vunpack.c.h.b16 %v2420
    %v2821 = vunpack.c.l.b16 %v2421
    %v2822 = vunpack.c.h.b16 %v2421
    %v2823 = vunpack.c.l.b16 %v2422
    %v2824 = vunpack.c.h.b16 %v2422
    %v2825 = vunpack.c.l.b16 %v2423
    %v2826 = vunpack.c.h.b16 %v2423
    %v2827 = vunpack.c.l.b16 %v2424
    %v2828 = vunpack.c.h.b16 %v2424
    %v2829 = vpack.c.b16 %v2577, %v2573
    %v2830 = vpack.c.b16 %v2578, %v2574
    %v2831 = vpack.c.b16 %v2579, %v2575
    %v2832 = vpack.c.b16 %v2580, %v2576
    %v2833 = vpack.c.b16 %v2585, %v2581
    %v2834 = vpack.c.b16 %v2586, %v2582
    %v2835 = vpack.c.b16 %v2587, %v2583
    %v2836 = vpack.c.b16 %v2588, %v2584
    %v2837 = vpack.c.b16 %v2593, %v2589
    %v2838 = vpack.c.b16 %v2594, %v2590
    %v2839 = vpack.c.b16 %v2595, %v2591
    %v2840 = vpack.c.b16 %v2596, %v2592
    %v2841 = vpack.c.b16 %v2601, %v2597
    %v2842 = vpack.c.b16 %v2602, %v2598
    %v2843 = vpack.c.b16 %v2603, %v2599
    %v2844 = vpack.c.b16 %v2604, %v2600
    %v2845 = vpack.c.b16 %v2609, %v2605
    %v2846 = vpack.c.b16 %v2610, %v2606
    %v2847 = vpack.c.b16 %v2611, %v2607
    %v2848 = vpack.c.b16 %v2612, %v2608
    %v2849 = vpack.c.b16 %v2617, %v2613
    %v2850 = vpack.c.b16 %v2618, %v2614
    %v2851 = vpack.c.b16 %v2619, %v2615
    %v2852 = vpack.c.b16 %v2620, %v2616
    %v2853 = vpack.c.b16 %v2625, %v2621
    %v2854 = vpack.c.b16 %v2626, %v2622
    %v2855 = vpack.c.b16 %v2627, %v2623
    %v2856 = vpack.c.b16 %v2628, %v2624
    %v2857 = vpack.c.b16 %v2633, %v2629
    %v2858 = vpack.c.b16 %v2634, %v2630
    %v2859 = vpack.c.b16 %v2635, %v2631
    %v2860 = vpack.c.b16 %v2636, %v2632
    %v2861 = vpack.c.b16 %v2641, %v2637
    %v2862 = vpack.c.b16 %v2642, %v2638
    %v2863 = vpack.c.b16 %v2643, %v2639
    %v2864 = vpack.c.b16 %v2644, %v2640
    %v2865 = vpack.c.b16 %v2649, %v2645
    %v2866 = vpack.c.b16 %v2650, %v2646
    %v2867 = vpack.c.b16 %v2651, %v2647
    %v2868 = vpack.c.b16 %v2652, %v2648
    %v2869 = vpack.c.b16 %v2657, %v2653
    %v2870 = vpack.c.b16 %v2658, %v2654
    %v2871 = vpack.c.b16 %v2659, %v2655
    %v2872 = vpack.c.b16 %v2660, %v2656
    %v2873 = vpack.c.b16 %v2665, %v2661
    %v2874 = vpack.c.b16 %v2666, %v2662
    %v2875 = vpack.c.b16 %v2667, %v2663
    %v2876 = vpack.c.b16 %v2668, %v2664
    %v2877 = vpack.c.b16 %v2673, %v2669
    %v2878 = vpack.c.b16 %v2674, %v2670
    %v2879 = vpack.c.b16 %v2675, %v2671
    %v2880 = vpack.c.b16 %v2676, %v2672
    %v2881 = vpack.c.b16 %v2681, %v2677
    %v2882 = vpack.c.b16 %v2682, %v2678
    %v2883 = vpack.c.b16 %v2683, %v2679
    %v2884 = vpack.c.b16 %v2684, %v2680
    %v2885 = vpack.c.b16 %v2689, %v2685
    %v2886 = vpack.c.b16 %v2690, %v2686
    %v2887 = vpack.c.b16 %v2691, %v2687
    %v2888 = vpack.c.b16 %v2692, %v2688
    %v2889 = vpack.c.b16 %v2697, %v2693
    %v2890 = vpack.c.b16 %v2698, %v2694
    %v2891 = vpack.c.b16 %v2699, %v2695
    %v2892 = vpack.c.b16 %v2700, %v2696
    %v2893 = vpack.c.b16 %v2705, %v2701
    %v2894 = vpack.c.b16 %v2706, %v2702
    %v2895 = vpack.c.b16 %v2707, %v2703
    %v2896 = vpack.c.b16 %v2708, %v2704
    %v2897 = vpack.c.b16 %v2713, %v2709
    %v2898 = vpack.c.b16 %v2714, %v2710
    %v2899 = vpack.c.b16 %v2715, %v2711
    %v2900 = vpack.c.b16 %v2716, %v2712
    %v2901 = vpack.c.b16 %v2721, %v2717
    %v2902 = vpack.c.b16 %v2722, %v2718
    %v2903 = vpack.c.b16 %v2723, %v2719
    %v2904 = vpack.c.b16 %v2724, %v2720
    %v2905 = vpack.c.b16 %v2729, %v2725
    %v2906 = vpack.c.b16 %v2730, %v2726
    %v2907 = vpack.c.b16 %v2731, %v2727
    %v2908 = vpack.c.b16 %v2732, %v2728
    %v2909 = vpack.c.b16 %v2737, %v2733
    %v2910 = vpack.c.b16 %v2738, %v2734
    %v2911 = vpack.c.b16 %v2739, %v2735
    %v2912 = vpack.c.b16 %v2740, %v2736
    %v2913 = vpack.c.b16 %v2745, %v2741
    %v2914 = vpack.c.b16 %v2746, %v2742
    %v2915 = vpack.c.b16 %v2747, %v2743
    %v2916 = vpack.c.b16 %v2748, %v2744
    %v2917 = vpack.c.b16 %v2753, %v2749
    %v2918 = vpack.c.b16 %v2754, %v2750
    %v2919 = vpack.c.b16 %v2755, %v2751
    %v2920 = vpack.c.b16 %v2756, %v2752
    %v2921 = vpack.c.b16 %v2761, %v2757
    %v2922 = vpack.c.b16 %v2762, %v2758
    %v2923 = vpack.c.b16 %v2763, %v2759
    %v2924 = vpack.c.b16 %v2764, %v2760
    %v2925 = vpack.c.b16 %v2769, %v2765
    %v2926 = vpack.c.b16 %v2770, %v2766
    %v2927 = vpack.c.b16 %v2771, %v2767
    %v2928 = vpack.c.b16 %v2772, %v2768
    %v2929 = vpack.c.b16 %v2777, %v2773
    %v2930 = vpack.c.b16 %v2778, %v2774
    %v2931 = vpack.c.b16 %v2779, %v2775
    %v2932 = vpack.c.b16 %v2780, %v2776
    %v2933 = vpack.c.b16 %v2785, %v2781
    %v2934 = vpack.c.b16 %v2786, %v2782
    %v2935 = vpack.c.b16 %v2787, %v2783
    %v2936 = vpack.c.b16 %v2788, %v2784
    %v2937 = vpack.c.b16 %v2793, %v2789
    %v2938 = vpack.c.b16 %v2794, %v2790
    %v2939 = vpack.c.b16 %v2795, %v2791
    %v2940 = vpack.c.b16 %v2796, %v2792
    %v2941 = vpack.c.b16 %v2801, %v2797
    %v2942 = vpack.c.b16 %v2802, %v2798
    %v2943 = vpack.c.b16 %v2803, %v2799
    %v2944 = vpack.c.b16 %v2804, %v2800
    %v2945 = vpack.c.b16 %v2809, %v2805
    %v2946 = vpack.c.b16 %v2810, %v2806
    %v2947 = vpack.c.b16 %v2811, %v2807
    %v2948 = vpack.c.b16 %v2812, %v2808
    %v2949 = vpack.c.b16 %v2817, %v2813
    %v2950 = vpack.c.b16 %v2818, %v2814
    %v2951 = vpack.c.b16 %v2819, %v2815
    %v2952 = vpack.c.b16 %v2820, %v2816
    %v2953 = vpack.c.b16 %v2825, %v2821
    %v2954 = vpack.c.b16 %v2826, %v2822
    %v2955 = vpack.c.b16 %v2827, %v2823
    %v2956 = vpack.c.b16 %v2828, %v2824
    %3085 = vmatpush.bf16.msra.mxu0 %v2857
    %3086 = vmatpush.bf16.msra.mxu0 %v2853
    %3087 = vmatpush.bf16.msra.mxu0 %v2849
    %3088 = vmatpush.bf16.msra.mxu0 %v2845
    %3089 = vmatpush.bf16.msra.mxu0 %v2841
    %3090 = vmatpush.bf16.msra.mxu0 %v2837
    %3091 = vmatpush.bf16.msra.mxu0 %v2833
    %3092 = vmatpush.bf16.msra.mxu0 %v2829
    %3093 = vmatmul.bf16.gmra.mxu0 %v2437
    %v3094 = vpop.f32.mrf.mxu0
    %v3095 = vadd.f32 0.0, %v3094
    %v3096 = vpop.f32.mrf.mxu0
    %v3097 = vadd.f32 0.0, %v3096
    %3098 = vdwg.mxu0
    %3099 = vmatpush.bf16.msra.mxu0 %v2889
    %3100 = vmatpush.bf16.msra.mxu0 %v2885
    %3101 = vmatpush.bf16.msra.mxu0 %v2881
    %3102 = vmatpush.bf16.msra.mxu0 %v2877
    %3103 = vmatpush.bf16.msra.mxu0 %v2873
    %3104 = vmatpush.bf16.msra.mxu0 %v2869
    %3105 = vmatpush.bf16.msra.mxu0 %v2865
    %3106 = vmatpush.bf16.msra.mxu0 %v2861
    %3107 = vmatmul.bf16.gmra.mxu0 %v2438
    %v3108 = vpop.f32.mrf.mxu0
    %v3109 = vadd.f32 %v3095, %v3108
    %v3110 = vpop.f32.mrf.mxu0
    %v3111 = vadd.f32 %v3097, %v3110
    %3112 = vdwg.mxu0
    %3113 = vmatpush.bf16.msra.mxu0 %v2921
    %3114 = vmatpush.bf16.msra.mxu0 %v2917
    %3115 = vmatpush.bf16.msra.mxu0 %v2913
    %3116 = vmatpush.bf16.msra.mxu0 %v2909
    %3117 = vmatpush.bf16.msra.mxu0 %v2905
    %3118 = vmatpush.bf16.msra.mxu0 %v2901
    %3119 = vmatpush.bf16.msra.mxu0 %v2897
    %3120 = vmatpush.bf16.msra.mxu0 %v2893
    %3121 = vmatmul.bf16.gmra.mxu0 %v2439
    %v3122 = vpop.f32.mrf.mxu0
    %v3123 = vadd.f32 %v3109, %v3122
    %v3124 = vpop.f32.mrf.mxu0
    %v3125 = vadd.f32 %v3111, %v3124
    %3126 = vdwg.mxu0
    %3127 = vmatpush.bf16.msra.mxu0 %v2953
    %3128 = vmatpush.bf16.msra.mxu0 %v2949
    %3129 = vmatpush.bf16.msra.mxu0 %v2945
    %3130 = vmatpush.bf16.msra.mxu0 %v2941
    %3131 = vmatpush.bf16.msra.mxu0 %v2937
    %3132 = vmatpush.bf16.msra.mxu0 %v2933
    %3133 = vmatpush.bf16.msra.mxu0 %v2929
    %3134 = vmatpush.bf16.msra.mxu0 %v2925
    %3135 = vmatmul.bf16.gmra.mxu0 %v2440
    %v3136 = vpop.f32.mrf.mxu0
    %v3137 = vadd.f32 %v3123, %v3136
    %v3138 = vpop.f32.mrf.mxu0
    %v3139 = vadd.f32 %v3125, %v3138
    %3140 = vdwg.mxu0
    %3141 = vmatpush.bf16.msra.mxu0 %v2858
    %3142 = vmatpush.bf16.msra.mxu0 %v2854
    %3143 = vmatpush.bf16.msra.mxu0 %v2850
    %3144 = vmatpush.bf16.msra.mxu0 %v2846
    %3145 = vmatpush.bf16.msra.mxu0 %v2842
    %3146 = vmatpush.bf16.msra.mxu0 %v2838
    %3147 = vmatpush.bf16.msra.mxu0 %v2834
    %3148 = vmatpush.bf16.msra.mxu0 %v2830
    %3149 = vmatmul.bf16.gmra.mxu0 %v2437
    %v3150 = vpop.f32.mrf.mxu0
    %v3151 = vadd.f32 0.0, %v3150
    %v3152 = vpop.f32.mrf.mxu0
    %v3153 = vadd.f32 0.0, %v3152
    %3154 = vdwg.mxu0
    %3155 = vmatpush.bf16.msra.mxu0 %v2890
    %3156 = vmatpush.bf16.msra.mxu0 %v2886
    %3157 = vmatpush.bf16.msra.mxu0 %v2882
    %3158 = vmatpush.bf16.msra.mxu0 %v2878
    %3159 = vmatpush.bf16.msra.mxu0 %v2874
    %3160 = vmatpush.bf16.msra.mxu0 %v2870
    %3161 = vmatpush.bf16.msra.mxu0 %v2866
    %3162 = vmatpush.bf16.msra.mxu0 %v2862
    %3163 = vmatmul.bf16.gmra.mxu0 %v2438
    %v3164 = vpop.f32.mrf.mxu0
    %v3165 = vadd.f32 %v3151, %v3164
    %v3166 = vpop.f32.mrf.mxu0
    %v3167 = vadd.f32 %v3153, %v3166
    %3168 = vdwg.mxu0
    %3169 = vmatpush.bf16.msra.mxu0 %v2922
    %3170 = vmatpush.bf16.msra.mxu0 %v2918
    %3171 = vmatpush.bf16.msra.mxu0 %v2914
    %3172 = vmatpush.bf16.msra.mxu0 %v2910
    %3173 = vmatpush.bf16.msra.mxu0 %v2906
    %3174 = vmatpush.bf16.msra.mxu0 %v2902
    %3175 = vmatpush.bf16.msra.mxu0 %v2898
    %3176 = vmatpush.bf16.msra.mxu0 %v2894
    %3177 = vmatmul.bf16.gmra.mxu0 %v2439
    %v3178 = vpop.f32.mrf.mxu0
    %v3179 = vadd.f32 %v3165, %v3178
    %v3180 = vpop.f32.mrf.mxu0
    %v3181 = vadd.f32 %v3167, %v3180
    %3182 = vdwg.mxu0
    %3183 = vmatpush.bf16.msra.mxu0 %v2954
    %3184 = vmatpush.bf16.msra.mxu0 %v2950
    %3185 = vmatpush.bf16.msra.mxu0 %v2946
    %3186 = vmatpush.bf16.msra.mxu0 %v2942
    %3187 = vmatpush.bf16.msra.mxu0 %v2938
    %3188 = vmatpush.bf16.msra.mxu0 %v2934
    %3189 = vmatpush.bf16.msra.mxu0 %v2930
    %3190 = vmatpush.bf16.msra.mxu0 %v2926
    %3191 = vmatmul.bf16.gmra.mxu0 %v2440
    %v3192 = vpop.f32.mrf.mxu0
    %v3193 = vadd.f32 %v3179, %v3192
    %v3194 = vpop.f32.mrf.mxu0
    %v3195 = vadd.f32 %v3181, %v3194
    %3196 = vdwg.mxu0
    %3197 = vmatpush.bf16.msra.mxu0 %v2859
    %3198 = vmatpush.bf16.msra.mxu0 %v2855
    %3199 = vmatpush.bf16.msra.mxu0 %v2851
    %3200 = vmatpush.bf16.msra.mxu0 %v2847
    %3201 = vmatpush.bf16.msra.mxu0 %v2843
    %3202 = vmatpush.bf16.msra.mxu0 %v2839
    %3203 = vmatpush.bf16.msra.mxu0 %v2835
    %3204 = vmatpush.bf16.msra.mxu0 %v2831
    %3205 = vmatmul.bf16.gmra.mxu0 %v2437
    %v3206 = vpop.f32.mrf.mxu0
    %v3207 = vadd.f32 0.0, %v3206
    %v3208 = vpop.f32.mrf.mxu0
    %v3209 = vadd.f32 0.0, %v3208
    %3210 = vdwg.mxu0
    %3211 = vmatpush.bf16.msra.mxu0 %v2891
    %3212 = vmatpush.bf16.msra.mxu0 %v2887
    %3213 = vmatpush.bf16.msra.mxu0 %v2883
    %3214 = vmatpush.bf16.msra.mxu0 %v2879
    %3215 = vmatpush.bf16.msra.mxu0 %v2875
    %3216 = vmatpush.bf16.msra.mxu0 %v2871
    %3217 = vmatpush.bf16.msra.mxu0 %v2867
    %3218 = vmatpush.bf16.msra.mxu0 %v2863
    %3219 = vmatmul.bf16.gmra.mxu0 %v2438
    %v3220 = vpop.f32.mrf.mxu0
    %v3221 = vadd.f32 %v3207, %v3220
    %v3222 = vpop.f32.mrf.mxu0
    %v3223 = vadd.f32 %v3209, %v3222
    %3224 = vdwg.mxu0
    %3225 = vmatpush.bf16.msra.mxu0 %v2923
    %3226 = vmatpush.bf16.msra.mxu0 %v2919
    %3227 = vmatpush.bf16.msra.mxu0 %v2915
    %3228 = vmatpush.bf16.msra.mxu0 %v2911
    %3229 = vmatpush.bf16.msra.mxu0 %v2907
    %3230 = vmatpush.bf16.msra.mxu0 %v2903
    %3231 = vmatpush.bf16.msra.mxu0 %v2899
    %3232 = vmatpush.bf16.msra.mxu0 %v2895
    %3233 = vmatmul.bf16.gmra.mxu0 %v2439
    %v3234 = vpop.f32.mrf.mxu0
    %v3235 = vadd.f32 %v3221, %v3234
    %v3236 = vpop.f32.mrf.mxu0
    %v3237 = vadd.f32 %v3223, %v3236
    %3238 = vdwg.mxu0
    %3239 = vmatpush.bf16.msra.mxu0 %v2955
    %3240 = vmatpush.bf16.msra.mxu0 %v2951
    %3241 = vmatpush.bf16.msra.mxu0 %v2947
    %3242 = vmatpush.bf16.msra.mxu0 %v2943
    %3243 = vmatpush.bf16.msra.mxu0 %v2939
    %3244 = vmatpush.bf16.msra.mxu0 %v2935
    %3245 = vmatpush.bf16.msra.mxu0 %v2931
    %3246 = vmatpush.bf16.msra.mxu0 %v2927
    %3247 = vmatmul.bf16.gmra.mxu0 %v2440
    %v3248 = vpop.f32.mrf.mxu0
    %v3249 = vadd.f32 %v3235, %v3248
    %v3250 = vpop.f32.mrf.mxu0
    %v3251 = vadd.f32 %v3237, %v3250
    %3252 = vdwg.mxu0
    %3253 = vmatpush.bf16.msra.mxu0 %v2860
    %3254 = vmatpush.bf16.msra.mxu0 %v2856
    %3255 = vmatpush.bf16.msra.mxu0 %v2852
    %3256 = vmatpush.bf16.msra.mxu0 %v2848
    %3257 = vmatpush.bf16.msra.mxu0 %v2844
    %3258 = vmatpush.bf16.msra.mxu0 %v2840
    %3259 = vmatpush.bf16.msra.mxu0 %v2836
    %3260 = vmatpush.bf16.msra.mxu0 %v2832
    %3261 = vmatmul.bf16.gmra.mxu0 %v2437
    %v3262 = vpop.f32.mrf.mxu0
    %v3263 = vadd.f32 0.0, %v3262
    %v3264 = vpop.f32.mrf.mxu0
    %v3265 = vadd.f32 0.0, %v3264
    %3266 = vdwg.mxu0
    %3267 = vmatpush.bf16.msra.mxu0 %v2892
    %3268 = vmatpush.bf16.msra.mxu0 %v2888
    %3269 = vmatpush.bf16.msra.mxu0 %v2884
    %3270 = vmatpush.bf16.msra.mxu0 %v2880
    %3271 = vmatpush.bf16.msra.mxu0 %v2876
    %3272 = vmatpush.bf16.msra.mxu0 %v2872
    %3273 = vmatpush.bf16.msra.mxu0 %v2868
    %3274 = vmatpush.bf16.msra.mxu0 %v2864
    %3275 = vmatmul.bf16.gmra.mxu0 %v2438
    %v3276 = vpop.f32.mrf.mxu0
    %v3277 = vadd.f32 %v3263, %v3276
    %v3278 = vpop.f32.mrf.mxu0
    %v3279 = vadd.f32 %v3265, %v3278
    %3280 = vdwg.mxu0
    %3281 = vmatpush.bf16.msra.mxu0 %v2924
    %3282 = vmatpush.bf16.msra.mxu0 %v2920
    %3283 = vmatpush.bf16.msra.mxu0 %v2916
    %3284 = vmatpush.bf16.msra.mxu0 %v2912
    %3285 = vmatpush.bf16.msra.mxu0 %v2908
    %3286 = vmatpush.bf16.msra.mxu0 %v2904
    %3287 = vmatpush.bf16.msra.mxu0 %v2900
    %3288 = vmatpush.bf16.msra.mxu0 %v2896
    %3289 = vmatmul.bf16.gmra.mxu0 %v2439
    %v3290 = vpop.f32.mrf.mxu0
    %v3291 = vadd.f32 %v3277, %v3290
    %v3292 = vpop.f32.mrf.mxu0
    %v3293 = vadd.f32 %v3279, %v3292
    %3294 = vdwg.mxu0
    %3295 = vmatpush.bf16.msra.mxu0 %v2956
    %3296 = vmatpush.bf16.msra.mxu0 %v2952
    %3297 = vmatpush.bf16.msra.mxu0 %v2948
    %3298 = vmatpush.bf16.msra.mxu0 %v2944
    %3299 = vmatpush.bf16.msra.mxu0 %v2940
    %3300 = vmatpush.bf16.msra.mxu0 %v2936
    %3301 = vmatpush.bf16.msra.mxu0 %v2932
    %3302 = vmatpush.bf16.msra.mxu0 %v2928
    %3303 = vmatmul.bf16.gmra.mxu0 %v2440
    %v3304 = vpop.f32.mrf.mxu0
    %v3305 = vadd.f32 %v3291, %v3304
    %v3306 = vpop.f32.mrf.mxu0
    %v3307 = vadd.f32 %v3293, %v3306
    %3308 = vdwg.mxu0
    %v3341 = vunpack.c.l.b16 %v2261
    %v3342 = vunpack.c.h.b16 %v2261
    %v3343 = vunpack.c.l.b16 %v2262
    %v3344 = vunpack.c.h.b16 %v2262
    %v3345 = vunpack.c.l.b16 %v2263
    %v3346 = vunpack.c.h.b16 %v2263
    %v3347 = vunpack.c.l.b16 %v2264
    %v3348 = vunpack.c.h.b16 %v2264
    %v3349 = vunpack.c.l.b16 %v2265
    %v3350 = vunpack.c.h.b16 %v2265
    %v3351 = vunpack.c.l.b16 %v2266
    %v3352 = vunpack.c.h.b16 %v2266
    %v3353 = vunpack.c.l.b16 %v2267
    %v3354 = vunpack.c.h.b16 %v2267
    %v3355 = vunpack.c.l.b16 %v2268
    %v3356 = vunpack.c.h.b16 %v2268
    %v3357 = vunpack.c.l.b16 %v2269
    %v3358 = vunpack.c.h.b16 %v2269
    %v3359 = vunpack.c.l.b16 %v2270
    %v3360 = vunpack.c.h.b16 %v2270
    %v3361 = vunpack.c.l.b16 %v2271
    %v3362 = vunpack.c.h.b16 %v2271
    %v3363 = vunpack.c.l.b16 %v2272
    %v3364 = vunpack.c.h.b16 %v2272
    %v3365 = vunpack.c.l.b16 %v2273
    %v3366 = vunpack.c.h.b16 %v2273
    %v3367 = vunpack.c.l.b16 %v2274
    %v3368 = vunpack.c.h.b16 %v2274
    %v3369 = vunpack.c.l.b16 %v2275
    %v3370 = vunpack.c.h.b16 %v2275
    %v3371 = vunpack.c.l.b16 %v2276
    %v3372 = vunpack.c.h.b16 %v2276
    %v3373 = vunpack.c.l.b16 %v2277
    %v3374 = vunpack.c.h.b16 %v2277
    %v3375 = vunpack.c.l.b16 %v2278
    %v3376 = vunpack.c.h.b16 %v2278
    %v3377 = vunpack.c.l.b16 %v2279
    %v3378 = vunpack.c.h.b16 %v2279
    %v3379 = vunpack.c.l.b16 %v2280
    %v3380 = vunpack.c.h.b16 %v2280
    %v3381 = vunpack.c.l.b16 %v2281
    %v3382 = vunpack.c.h.b16 %v2281
    %v3383 = vunpack.c.l.b16 %v2282
    %v3384 = vunpack.c.h.b16 %v2282
    %v3385 = vunpack.c.l.b16 %v2283
    %v3386 = vunpack.c.h.b16 %v2283
    %v3387 = vunpack.c.l.b16 %v2284
    %v3388 = vunpack.c.h.b16 %v2284
    %v3389 = vunpack.c.l.b16 %v2285
    %v3390 = vunpack.c.h.b16 %v2285
    %v3391 = vunpack.c.l.b16 %v2286
    %v3392 = vunpack.c.h.b16 %v2286
    %v3393 = vunpack.c.l.b16 %v2287
    %v3394 = vunpack.c.h.b16 %v2287
    %v3395 = vunpack.c.l.b16 %v2288
    %v3396 = vunpack.c.h.b16 %v2288
    %v3397 = vunpack.c.l.b16 %v2289
    %v3398 = vunpack.c.h.b16 %v2289
    %v3399 = vunpack.c.l.b16 %v2290
    %v3400 = vunpack.c.h.b16 %v2290
    %v3401 = vunpack.c.l.b16 %v2291
    %v3402 = vunpack.c.h.b16 %v2291
    %v3403 = vunpack.c.l.b16 %v2292
    %v3404 = vunpack.c.h.b16 %v2292
    %v3405 = vpack.c.b16 %v3345, %v3341
    %v3406 = vpack.c.b16 %v3346, %v3342
    %v3407 = vpack.c.b16 %v3347, %v3343
    %v3408 = vpack.c.b16 %v3348, %v3344
    %v3409 = vpack.c.b16 %v3353, %v3349
    %v3410 = vpack.c.b16 %v3354, %v3350
    %v3411 = vpack.c.b16 %v3355, %v3351
    %v3412 = vpack.c.b16 %v3356, %v3352
    %v3413 = vpack.c.b16 %v3361, %v3357
    %v3414 = vpack.c.b16 %v3362, %v3358
    %v3415 = vpack.c.b16 %v3363, %v3359
    %v3416 = vpack.c.b16 %v3364, %v3360
    %v3417 = vpack.c.b16 %v3369, %v3365
    %v3418 = vpack.c.b16 %v3370, %v3366
    %v3419 = vpack.c.b16 %v3371, %v3367
    %v3420 = vpack.c.b16 %v3372, %v3368
    %v3421 = vpack.c.b16 %v3377, %v3373
    %v3422 = vpack.c.b16 %v3378, %v3374
    %v3423 = vpack.c.b16 %v3379, %v3375
    %v3424 = vpack.c.b16 %v3380, %v3376
    %v3425 = vpack.c.b16 %v3385, %v3381
    %v3426 = vpack.c.b16 %v3386, %v3382
    %v3427 = vpack.c.b16 %v3387, %v3383
    %v3428 = vpack.c.b16 %v3388, %v3384
    %v3429 = vpack.c.b16 %v3393, %v3389
    %v3430 = vpack.c.b16 %v3394, %v3390
    %v3431 = vpack.c.b16 %v3395, %v3391
    %v3432 = vpack.c.b16 %v3396, %v3392
    %v3433 = vpack.c.b16 %v3401, %v3397
    %v3434 = vpack.c.b16 %v3402, %v3398
    %v3435 = vpack.c.b16 %v3403, %v3399
    %v3436 = vpack.c.b16 %v3404, %v3400
    %3469 = vmatpush.bf16.msra.mxu0 %v3433
    %3470 = vmatpush.bf16.msra.mxu0 %v3429
    %3471 = vmatpush.bf16.msra.mxu0 %v3425
    %3472 = vmatpush.bf16.msra.mxu0 %v3421
    %3473 = vmatpush.bf16.msra.mxu0 %v3417
    %3474 = vmatpush.bf16.msra.mxu0 %v3413
    %3475 = vmatpush.bf16.msra.mxu0 %v3409
    %3476 = vmatpush.bf16.msra.mxu0 %v3405
    %3477 = vmatmul.bf16.gmra.mxu0 %v2260
    %v3478 = vpop.f32.mrf.mxu0
    %v3479 = vadd.f32 %v3137, %v3478
    %v3480 = vpop.f32.mrf.mxu0
    %v3481 = vadd.f32 %v3139, %v3480
    %3482 = vdwg.mxu0
    %3483 = vmatpush.bf16.msra.mxu0 %v3434
    %3484 = vmatpush.bf16.msra.mxu0 %v3430
    %3485 = vmatpush.bf16.msra.mxu0 %v3426
    %3486 = vmatpush.bf16.msra.mxu0 %v3422
    %3487 = vmatpush.bf16.msra.mxu0 %v3418
    %3488 = vmatpush.bf16.msra.mxu0 %v3414
    %3489 = vmatpush.bf16.msra.mxu0 %v3410
    %3490 = vmatpush.bf16.msra.mxu0 %v3406
    %3491 = vmatmul.bf16.gmra.mxu0 %v2260
    %v3492 = vpop.f32.mrf.mxu0
    %v3493 = vadd.f32 %v3193, %v3492
    %v3494 = vpop.f32.mrf.mxu0
    %v3495 = vadd.f32 %v3195, %v3494
    %3496 = vdwg.mxu0
    %3497 = vmatpush.bf16.msra.mxu0 %v3435
    %3498 = vmatpush.bf16.msra.mxu0 %v3431
    %3499 = vmatpush.bf16.msra.mxu0 %v3427
    %3500 = vmatpush.bf16.msra.mxu0 %v3423
    %3501 = vmatpush.bf16.msra.mxu0 %v3419
    %3502 = vmatpush.bf16.msra.mxu0 %v3415
    %3503 = vmatpush.bf16.msra.mxu0 %v3411
    %3504 = vmatpush.bf16.msra.mxu0 %v3407
    %3505 = vmatmul.bf16.gmra.mxu0 %v2260
    %v3506 = vpop.f32.mrf.mxu0
    %v3507 = vadd.f32 %v3249, %v3506
    %v3508 = vpop.f32.mrf.mxu0
    %v3509 = vadd.f32 %v3251, %v3508
    %3510 = vdwg.mxu0
    %3511 = vmatpush.bf16.msra.mxu0 %v3436
    %3512 = vmatpush.bf16.msra.mxu0 %v3432
    %3513 = vmatpush.bf16.msra.mxu0 %v3428
    %3514 = vmatpush.bf16.msra.mxu0 %v3424
    %3515 = vmatpush.bf16.msra.mxu0 %v3420
    %3516 = vmatpush.bf16.msra.mxu0 %v3416
    %3517 = vmatpush.bf16.msra.mxu0 %v3412
    %3518 = vmatpush.bf16.msra.mxu0 %v3408
    %3519 = vmatmul.bf16.gmra.mxu0 %v2260
    %v3520 = vpop.f32.mrf.mxu0
    %v3521 = vadd.f32 %v3305, %v3520
    %v3522 = vpop.f32.mrf.mxu0
    %v3523 = vadd.f32 %v3307, %v3522
    %3524 = vdwg.mxu0
    %v3525 = vld [vmem:[#allocation12] sm:$0xf]
    %v3527 = vperm.slane %v3525, 0
    %v3528 = vperm.slane %v3525, 1
    %v3529 = vperm.slane %v3525, 2
    %v3530 = vperm.slane %v3525, 3
    %v3535 = vadd.f32 %v3479, %v3527
    %v3536 = vadd.f32 %v3493, %v3528
    %v3537 = vadd.f32 %v3507, %v3529
    %v3538 = vadd.f32 %v3521, %v3530
    %v3539 = vadd.f32 %v3481, %v3527
    %v3540 = vadd.f32 %v3495, %v3528
    %v3541 = vadd.f32 %v3509, %v3529
    %v3542 = vadd.f32 %v3523, %v3530
    %v3543 = vmax.f32 %v3535, 0.0
    %v3544 = vmax.f32 %v3536, 0.0
    %v3545 = vmax.f32 %v3537, 0.0
    %v3546 = vmax.f32 %v3538, 0.0
    %v3547 = vmax.f32 %v3539, 0.0
    %v3548 = vmax.f32 %v3540, 0.0
    %v3549 = vmax.f32 %v3541, 0.0
    %v3550 = vmax.f32 %v3542, 0.0
    %s3551 = smul.u32 4, 4
    %s3552 = smul.u32 %s3551, 64
    %s3553 = smul.u32 %s3552, 4
    %s3554 = sshll.u32 %s3553, 4
    %3555 = dma.done %s185, %s3554
    %v3556 = vpack.c.bf16 %v3547, %v3543
    %v3557 = vpack.c.bf16 %v3548, %v3544
    %v3558 = vpack.c.bf16 %v3549, %v3545
    %v3559 = vpack.c.bf16 %v3550, %v3546
    %v3560 = vld [vmem:[#allocation3] sm:$0xff]
    %v3561 = vld [vmem:[#allocation3 + $0x8] sm:$0xff]
    %v3562 = vld [vmem:[#allocation3 + $0x10] sm:$0xff]
    %v3563 = vld [vmem:[#allocation3 + $0x18] sm:$0xff]
    %v3564 = vld [vmem:[#allocation3 + $0x20] sm:$0xff]
    %v3565 = vld [vmem:[#allocation3 + $0x28] sm:$0xff]
    %v3566 = vld [vmem:[#allocation3 + $0x30] sm:$0xff]
    %v3567 = vld [vmem:[#allocation3 + $0x38] sm:$0xff]
    %v3568 = vld [vmem:[#allocation3 + $0x40] sm:$0xff]
    %v3569 = vld [vmem:[#allocation3 + $0x48] sm:$0xff]
    %v3570 = vld [vmem:[#allocation3 + $0x50] sm:$0xff]
    %v3571 = vld [vmem:[#allocation3 + $0x58] sm:$0xff]
    %v3572 = vld [vmem:[#allocation3 + $0x60] sm:$0xff]
    %v3573 = vld [vmem:[#allocation3 + $0x68] sm:$0xff]
    %v3574 = vld [vmem:[#allocation3 + $0x70] sm:$0xff]
    %v3575 = vld [vmem:[#allocation3 + $0x78] sm:$0xff]
    %v3576 = vld [vmem:[#allocation3 + $0x80] sm:$0xff]
    %v3577 = vld [vmem:[#allocation3 + $0x88] sm:$0xff]
    %v3578 = vld [vmem:[#allocation3 + $0x90] sm:$0xff]
    %v3579 = vld [vmem:[#allocation3 + $0x98] sm:$0xff]
    %v3580 = vld [vmem:[#allocation3 + $0xa0] sm:$0xff]
    %v3581 = vld [vmem:[#allocation3 + $0xa8] sm:$0xff]
    %v3582 = vld [vmem:[#allocation3 + $0xb0] sm:$0xff]
    %v3583 = vld [vmem:[#allocation3 + $0xb8] sm:$0xff]
    %v3584 = vld [vmem:[#allocation3 + $0xc0] sm:$0xff]
    %v3585 = vld [vmem:[#allocation3 + $0xc8] sm:$0xff]
    %v3586 = vld [vmem:[#allocation3 + $0xd0] sm:$0xff]
    %v3587 = vld [vmem:[#allocation3 + $0xd8] sm:$0xff]
    %v3588 = vld [vmem:[#allocation3 + $0xe0] sm:$0xff]
    %v3589 = vld [vmem:[#allocation3 + $0xe8] sm:$0xff]
    %v3590 = vld [vmem:[#allocation3 + $0xf0] sm:$0xff]
    %v3591 = vld [vmem:[#allocation3 + $0xf8] sm:$0xff]
    %v3592 = vld [vmem:[#allocation3 + $0x100] sm:$0xff]
    %v3593 = vld [vmem:[#allocation3 + $0x108] sm:$0xff]
    %v3594 = vld [vmem:[#allocation3 + $0x110] sm:$0xff]
    %v3595 = vld [vmem:[#allocation3 + $0x118] sm:$0xff]
    %v3596 = vld [vmem:[#allocation3 + $0x120] sm:$0xff]
    %v3597 = vld [vmem:[#allocation3 + $0x128] sm:$0xff]
    %v3598 = vld [vmem:[#allocation3 + $0x130] sm:$0xff]
    %v3599 = vld [vmem:[#allocation3 + $0x138] sm:$0xff]
    %v3600 = vld [vmem:[#allocation3 + $0x140] sm:$0xff]
    %v3601 = vld [vmem:[#allocation3 + $0x148] sm:$0xff]
    %v3602 = vld [vmem:[#allocation3 + $0x150] sm:$0xff]
    %v3603 = vld [vmem:[#allocation3 + $0x158] sm:$0xff]
    %v3604 = vld [vmem:[#allocation3 + $0x160] sm:$0xff]
    %v3605 = vld [vmem:[#allocation3 + $0x168] sm:$0xff]
    %v3606 = vld [vmem:[#allocation3 + $0x170] sm:$0xff]
    %v3607 = vld [vmem:[#allocation3 + $0x178] sm:$0xff]
    %v3608 = vld [vmem:[#allocation3 + $0x180] sm:$0xff]
    %v3609 = vld [vmem:[#allocation3 + $0x188] sm:$0xff]
    %v3610 = vld [vmem:[#allocation3 + $0x190] sm:$0xff]
    %v3611 = vld [vmem:[#allocation3 + $0x198] sm:$0xff]
    %v3612 = vld [vmem:[#allocation3 + $0x1a0] sm:$0xff]
    %v3613 = vld [vmem:[#allocation3 + $0x1a8] sm:$0xff]
    %v3614 = vld [vmem:[#allocation3 + $0x1b0] sm:$0xff]
    %v3615 = vld [vmem:[#allocation3 + $0x1b8] sm:$0xff]
    %v3616 = vld [vmem:[#allocation3 + $0x1c0] sm:$0xff]
    %v3617 = vld [vmem:[#allocation3 + $0x1c8] sm:$0xff]
    %v3618 = vld [vmem:[#allocation3 + $0x1d0] sm:$0xff]
    %v3619 = vld [vmem:[#allocation3 + $0x1d8] sm:$0xff]
    %v3620 = vld [vmem:[#allocation3 + $0x1e0] sm:$0xff]
    %v3621 = vld [vmem:[#allocation3 + $0x1e8] sm:$0xff]
    %v3622 = vld [vmem:[#allocation3 + $0x1f0] sm:$0xff]
    %v3623 = vld [vmem:[#allocation3 + $0x1f8] sm:$0xff]
    %v3624 = vld [vmem:[#allocation3 + $0x200] sm:$0xff]
    %v3625 = vld [vmem:[#allocation3 + $0x208] sm:$0xff]
    %v3626 = vld [vmem:[#allocation3 + $0x210] sm:$0xff]
    %v3627 = vld [vmem:[#allocation3 + $0x218] sm:$0xff]
    %v3628 = vld [vmem:[#allocation3 + $0x220] sm:$0xff]
    %v3629 = vld [vmem:[#allocation3 + $0x228] sm:$0xff]
    %v3630 = vld [vmem:[#allocation3 + $0x230] sm:$0xff]
    %v3631 = vld [vmem:[#allocation3 + $0x238] sm:$0xff]
    %v3632 = vld [vmem:[#allocation3 + $0x240] sm:$0xff]
    %v3633 = vld [vmem:[#allocation3 + $0x248] sm:$0xff]
    %v3634 = vld [vmem:[#allocation3 + $0x250] sm:$0xff]
    %v3635 = vld [vmem:[#allocation3 + $0x258] sm:$0xff]
    %v3636 = vld [vmem:[#allocation3 + $0x260] sm:$0xff]
    %v3637 = vld [vmem:[#allocation3 + $0x268] sm:$0xff]
    %v3638 = vld [vmem:[#allocation3 + $0x270] sm:$0xff]
    %v3639 = vld [vmem:[#allocation3 + $0x278] sm:$0xff]
    %v3640 = vld [vmem:[#allocation3 + $0x280] sm:$0xff]
    %v3641 = vld [vmem:[#allocation3 + $0x288] sm:$0xff]
    %v3642 = vld [vmem:[#allocation3 + $0x290] sm:$0xff]
    %v3643 = vld [vmem:[#allocation3 + $0x298] sm:$0xff]
    %v3644 = vld [vmem:[#allocation3 + $0x2a0] sm:$0xff]
    %v3645 = vld [vmem:[#allocation3 + $0x2a8] sm:$0xff]
    %v3646 = vld [vmem:[#allocation3 + $0x2b0] sm:$0xff]
    %v3647 = vld [vmem:[#allocation3 + $0x2b8] sm:$0xff]
    %v3648 = vld [vmem:[#allocation3 + $0x2c0] sm:$0xff]
    %v3649 = vld [vmem:[#allocation3 + $0x2c8] sm:$0xff]
    %v3650 = vld [vmem:[#allocation3 + $0x2d0] sm:$0xff]
    %v3651 = vld [vmem:[#allocation3 + $0x2d8] sm:$0xff]
    %v3652 = vld [vmem:[#allocation3 + $0x2e0] sm:$0xff]
    %v3653 = vld [vmem:[#allocation3 + $0x2e8] sm:$0xff]
    %v3654 = vld [vmem:[#allocation3 + $0x2f0] sm:$0xff]
    %v3655 = vld [vmem:[#allocation3 + $0x2f8] sm:$0xff]
    %v3656 = vld [vmem:[#allocation3 + $0x300] sm:$0xff]
    %v3657 = vld [vmem:[#allocation3 + $0x308] sm:$0xff]
    %v3658 = vld [vmem:[#allocation3 + $0x310] sm:$0xff]
    %v3659 = vld [vmem:[#allocation3 + $0x318] sm:$0xff]
    %v3660 = vld [vmem:[#allocation3 + $0x320] sm:$0xff]
    %v3661 = vld [vmem:[#allocation3 + $0x328] sm:$0xff]
    %v3662 = vld [vmem:[#allocation3 + $0x330] sm:$0xff]
    %v3663 = vld [vmem:[#allocation3 + $0x338] sm:$0xff]
    %v3664 = vld [vmem:[#allocation3 + $0x340] sm:$0xff]
    %v3665 = vld [vmem:[#allocation3 + $0x348] sm:$0xff]
    %v3666 = vld [vmem:[#allocation3 + $0x350] sm:$0xff]
    %v3667 = vld [vmem:[#allocation3 + $0x358] sm:$0xff]
    %v3668 = vld [vmem:[#allocation3 + $0x360] sm:$0xff]
    %v3669 = vld [vmem:[#allocation3 + $0x368] sm:$0xff]
    %v3670 = vld [vmem:[#allocation3 + $0x370] sm:$0xff]
    %v3671 = vld [vmem:[#allocation3 + $0x378] sm:$0xff]
    %v3672 = vld [vmem:[#allocation3 + $0x380] sm:$0xff]
    %v3673 = vld [vmem:[#allocation3 + $0x388] sm:$0xff]
    %v3674 = vld [vmem:[#allocation3 + $0x390] sm:$0xff]
    %v3675 = vld [vmem:[#allocation3 + $0x398] sm:$0xff]
    %v3676 = vld [vmem:[#allocation3 + $0x3a0] sm:$0xff]
    %v3677 = vld [vmem:[#allocation3 + $0x3a8] sm:$0xff]
    %v3678 = vld [vmem:[#allocation3 + $0x3b0] sm:$0xff]
    %v3679 = vld [vmem:[#allocation3 + $0x3b8] sm:$0xff]
    %v3680 = vld [vmem:[#allocation3 + $0x3c0] sm:$0xff]
    %v3681 = vld [vmem:[#allocation3 + $0x3c8] sm:$0xff]
    %v3682 = vld [vmem:[#allocation3 + $0x3d0] sm:$0xff]
    %v3683 = vld [vmem:[#allocation3 + $0x3d8] sm:$0xff]
    %v3684 = vld [vmem:[#allocation3 + $0x3e0] sm:$0xff]
    %v3685 = vld [vmem:[#allocation3 + $0x3e8] sm:$0xff]
    %v3686 = vld [vmem:[#allocation3 + $0x3f0] sm:$0xff]
    %v3687 = vld [vmem:[#allocation3 + $0x3f8] sm:$0xff]
    %v3688 = vld [vmem:[#allocation14] sm:$0xf]
    %v3690 = vperm.slane %v3688, 0
    %v3691 = vperm.slane %v3688, 1
    %v3692 = vperm.slane %v3688, 2
    %v3693 = vperm.slane %v3688, 3
    %v3826 = vunpack.c.l.b16 %v3560
    %v3827 = vunpack.c.h.b16 %v3560
    %v3828 = vunpack.c.l.b16 %v3561
    %v3829 = vunpack.c.h.b16 %v3561
    %v3830 = vunpack.c.l.b16 %v3562
    %v3831 = vunpack.c.h.b16 %v3562
    %v3832 = vunpack.c.l.b16 %v3563
    %v3833 = vunpack.c.h.b16 %v3563
    %v3834 = vunpack.c.l.b16 %v3564
    %v3835 = vunpack.c.h.b16 %v3564
    %v3836 = vunpack.c.l.b16 %v3565
    %v3837 = vunpack.c.h.b16 %v3565
    %v3838 = vunpack.c.l.b16 %v3566
    %v3839 = vunpack.c.h.b16 %v3566
    %v3840 = vunpack.c.l.b16 %v3567
    %v3841 = vunpack.c.h.b16 %v3567
    %v3842 = vunpack.c.l.b16 %v3568
    %v3843 = vunpack.c.h.b16 %v3568
    %v3844 = vunpack.c.l.b16 %v3569
    %v3845 = vunpack.c.h.b16 %v3569
    %v3846 = vunpack.c.l.b16 %v3570
    %v3847 = vunpack.c.h.b16 %v3570
    %v3848 = vunpack.c.l.b16 %v3571
    %v3849 = vunpack.c.h.b16 %v3571
    %v3850 = vunpack.c.l.b16 %v3572
    %v3851 = vunpack.c.h.b16 %v3572
    %v3852 = vunpack.c.l.b16 %v3573
    %v3853 = vunpack.c.h.b16 %v3573
    %v3854 = vunpack.c.l.b16 %v3574
    %v3855 = vunpack.c.h.b16 %v3574
    %v3856 = vunpack.c.l.b16 %v3575
    %v3857 = vunpack.c.h.b16 %v3575
    %v3858 = vunpack.c.l.b16 %v3576
    %v3859 = vunpack.c.h.b16 %v3576
    %v3860 = vunpack.c.l.b16 %v3577
    %v3861 = vunpack.c.h.b16 %v3577
    %v3862 = vunpack.c.l.b16 %v3578
    %v3863 = vunpack.c.h.b16 %v3578
    %v3864 = vunpack.c.l.b16 %v3579
    %v3865 = vunpack.c.h.b16 %v3579
    %v3866 = vunpack.c.l.b16 %v3580
    %v3867 = vunpack.c.h.b16 %v3580
    %v3868 = vunpack.c.l.b16 %v3581
    %v3869 = vunpack.c.h.b16 %v3581
    %v3870 = vunpack.c.l.b16 %v3582
    %v3871 = vunpack.c.h.b16 %v3582
    %v3872 = vunpack.c.l.b16 %v3583
    %v3873 = vunpack.c.h.b16 %v3583
    %v3874 = vunpack.c.l.b16 %v3584
    %v3875 = vunpack.c.h.b16 %v3584
    %v3876 = vunpack.c.l.b16 %v3585
    %v3877 = vunpack.c.h.b16 %v3585
    %v3878 = vunpack.c.l.b16 %v3586
    %v3879 = vunpack.c.h.b16 %v3586
    %v3880 = vunpack.c.l.b16 %v3587
    %v3881 = vunpack.c.h.b16 %v3587
    %v3882 = vunpack.c.l.b16 %v3588
    %v3883 = vunpack.c.h.b16 %v3588
    %v3884 = vunpack.c.l.b16 %v3589
    %v3885 = vunpack.c.h.b16 %v3589
    %v3886 = vunpack.c.l.b16 %v3590
    %v3887 = vunpack.c.h.b16 %v3590
    %v3888 = vunpack.c.l.b16 %v3591
    %v3889 = vunpack.c.h.b16 %v3591
    %v3890 = vunpack.c.l.b16 %v3592
    %v3891 = vunpack.c.h.b16 %v3592
    %v3892 = vunpack.c.l.b16 %v3593
    %v3893 = vunpack.c.h.b16 %v3593
    %v3894 = vunpack.c.l.b16 %v3594
    %v3895 = vunpack.c.h.b16 %v3594
    %v3896 = vunpack.c.l.b16 %v3595
    %v3897 = vunpack.c.h.b16 %v3595
    %v3898 = vunpack.c.l.b16 %v3596
    %v3899 = vunpack.c.h.b16 %v3596
    %v3900 = vunpack.c.l.b16 %v3597
    %v3901 = vunpack.c.h.b16 %v3597
    %v3902 = vunpack.c.l.b16 %v3598
    %v3903 = vunpack.c.h.b16 %v3598
    %v3904 = vunpack.c.l.b16 %v3599
    %v3905 = vunpack.c.h.b16 %v3599
    %v3906 = vunpack.c.l.b16 %v3600
    %v3907 = vunpack.c.h.b16 %v3600
    %v3908 = vunpack.c.l.b16 %v3601
    %v3909 = vunpack.c.h.b16 %v3601
    %v3910 = vunpack.c.l.b16 %v3602
    %v3911 = vunpack.c.h.b16 %v3602
    %v3912 = vunpack.c.l.b16 %v3603
    %v3913 = vunpack.c.h.b16 %v3603
    %v3914 = vunpack.c.l.b16 %v3604
    %v3915 = vunpack.c.h.b16 %v3604
    %v3916 = vunpack.c.l.b16 %v3605
    %v3917 = vunpack.c.h.b16 %v3605
    %v3918 = vunpack.c.l.b16 %v3606
    %v3919 = vunpack.c.h.b16 %v3606
    %v3920 = vunpack.c.l.b16 %v3607
    %v3921 = vunpack.c.h.b16 %v3607
    %v3922 = vunpack.c.l.b16 %v3608
    %v3923 = vunpack.c.h.b16 %v3608
    %v3924 = vunpack.c.l.b16 %v3609
    %v3925 = vunpack.c.h.b16 %v3609
    %v3926 = vunpack.c.l.b16 %v3610
    %v3927 = vunpack.c.h.b16 %v3610
    %v3928 = vunpack.c.l.b16 %v3611
    %v3929 = vunpack.c.h.b16 %v3611
    %v3930 = vunpack.c.l.b16 %v3612
    %v3931 = vunpack.c.h.b16 %v3612
    %v3932 = vunpack.c.l.b16 %v3613
    %v3933 = vunpack.c.h.b16 %v3613
    %v3934 = vunpack.c.l.b16 %v3614
    %v3935 = vunpack.c.h.b16 %v3614
    %v3936 = vunpack.c.l.b16 %v3615
    %v3937 = vunpack.c.h.b16 %v3615
    %v3938 = vunpack.c.l.b16 %v3616
    %v3939 = vunpack.c.h.b16 %v3616
    %v3940 = vunpack.c.l.b16 %v3617
    %v3941 = vunpack.c.h.b16 %v3617
    %v3942 = vunpack.c.l.b16 %v3618
    %v3943 = vunpack.c.h.b16 %v3618
    %v3944 = vunpack.c.l.b16 %v3619
    %v3945 = vunpack.c.h.b16 %v3619
    %v3946 = vunpack.c.l.b16 %v3620
    %v3947 = vunpack.c.h.b16 %v3620
    %v3948 = vunpack.c.l.b16 %v3621
    %v3949 = vunpack.c.h.b16 %v3621
    %v3950 = vunpack.c.l.b16 %v3622
    %v3951 = vunpack.c.h.b16 %v3622
    %v3952 = vunpack.c.l.b16 %v3623
    %v3953 = vunpack.c.h.b16 %v3623
    %v3954 = vunpack.c.l.b16 %v3624
    %v3955 = vunpack.c.h.b16 %v3624
    %v3956 = vunpack.c.l.b16 %v3625
    %v3957 = vunpack.c.h.b16 %v3625
    %v3958 = vunpack.c.l.b16 %v3626
    %v3959 = vunpack.c.h.b16 %v3626
    %v3960 = vunpack.c.l.b16 %v3627
    %v3961 = vunpack.c.h.b16 %v3627
    %v3962 = vunpack.c.l.b16 %v3628
    %v3963 = vunpack.c.h.b16 %v3628
    %v3964 = vunpack.c.l.b16 %v3629
    %v3965 = vunpack.c.h.b16 %v3629
    %v3966 = vunpack.c.l.b16 %v3630
    %v3967 = vunpack.c.h.b16 %v3630
    %v3968 = vunpack.c.l.b16 %v3631
    %v3969 = vunpack.c.h.b16 %v3631
    %v3970 = vunpack.c.l.b16 %v3632
    %v3971 = vunpack.c.h.b16 %v3632
    %v3972 = vunpack.c.l.b16 %v3633
    %v3973 = vunpack.c.h.b16 %v3633
    %v3974 = vunpack.c.l.b16 %v3634
    %v3975 = vunpack.c.h.b16 %v3634
    %v3976 = vunpack.c.l.b16 %v3635
    %v3977 = vunpack.c.h.b16 %v3635
    %v3978 = vunpack.c.l.b16 %v3636
    %v3979 = vunpack.c.h.b16 %v3636
    %v3980 = vunpack.c.l.b16 %v3637
    %v3981 = vunpack.c.h.b16 %v3637
    %v3982 = vunpack.c.l.b16 %v3638
    %v3983 = vunpack.c.h.b16 %v3638
    %v3984 = vunpack.c.l.b16 %v3639
    %v3985 = vunpack.c.h.b16 %v3639
    %v3986 = vunpack.c.l.b16 %v3640
    %v3987 = vunpack.c.h.b16 %v3640
    %v3988 = vunpack.c.l.b16 %v3641
    %v3989 = vunpack.c.h.b16 %v3641
    %v3990 = vunpack.c.l.b16 %v3642
    %v3991 = vunpack.c.h.b16 %v3642
    %v3992 = vunpack.c.l.b16 %v3643
    %v3993 = vunpack.c.h.b16 %v3643
    %v3994 = vunpack.c.l.b16 %v3644
    %v3995 = vunpack.c.h.b16 %v3644
    %v3996 = vunpack.c.l.b16 %v3645
    %v3997 = vunpack.c.h.b16 %v3645
    %v3998 = vunpack.c.l.b16 %v3646
    %v3999 = vunpack.c.h.b16 %v3646
    %v4000 = vunpack.c.l.b16 %v3647
    %v4001 = vunpack.c.h.b16 %v3647
    %v4002 = vunpack.c.l.b16 %v3648
    %v4003 = vunpack.c.h.b16 %v3648
    %v4004 = vunpack.c.l.b16 %v3649
    %v4005 = vunpack.c.h.b16 %v3649
    %v4006 = vunpack.c.l.b16 %v3650
    %v4007 = vunpack.c.h.b16 %v3650
    %v4008 = vunpack.c.l.b16 %v3651
    %v4009 = vunpack.c.h.b16 %v3651
    %v4010 = vunpack.c.l.b16 %v3652
    %v4011 = vunpack.c.h.b16 %v3652
    %v4012 = vunpack.c.l.b16 %v3653
    %v4013 = vunpack.c.h.b16 %v3653
    %v4014 = vunpack.c.l.b16 %v3654
    %v4015 = vunpack.c.h.b16 %v3654
    %v4016 = vunpack.c.l.b16 %v3655
    %v4017 = vunpack.c.h.b16 %v3655
    %v4018 = vunpack.c.l.b16 %v3656
    %v4019 = vunpack.c.h.b16 %v3656
    %v4020 = vunpack.c.l.b16 %v3657
    %v4021 = vunpack.c.h.b16 %v3657
    %v4022 = vunpack.c.l.b16 %v3658
    %v4023 = vunpack.c.h.b16 %v3658
    %v4024 = vunpack.c.l.b16 %v3659
    %v4025 = vunpack.c.h.b16 %v3659
    %v4026 = vunpack.c.l.b16 %v3660
    %v4027 = vunpack.c.h.b16 %v3660
    %v4028 = vunpack.c.l.b16 %v3661
    %v4029 = vunpack.c.h.b16 %v3661
    %v4030 = vunpack.c.l.b16 %v3662
    %v4031 = vunpack.c.h.b16 %v3662
    %v4032 = vunpack.c.l.b16 %v3663
    %v4033 = vunpack.c.h.b16 %v3663
    %v4034 = vunpack.c.l.b16 %v3664
    %v4035 = vunpack.c.h.b16 %v3664
    %v4036 = vunpack.c.l.b16 %v3665
    %v4037 = vunpack.c.h.b16 %v3665
    %v4038 = vunpack.c.l.b16 %v3666
    %v4039 = vunpack.c.h.b16 %v3666
    %v4040 = vunpack.c.l.b16 %v3667
    %v4041 = vunpack.c.h.b16 %v3667
    %v4042 = vunpack.c.l.b16 %v3668
    %v4043 = vunpack.c.h.b16 %v3668
    %v4044 = vunpack.c.l.b16 %v3669
    %v4045 = vunpack.c.h.b16 %v3669
    %v4046 = vunpack.c.l.b16 %v3670
    %v4047 = vunpack.c.h.b16 %v3670
    %v4048 = vunpack.c.l.b16 %v3671
    %v4049 = vunpack.c.h.b16 %v3671
    %v4050 = vunpack.c.l.b16 %v3672
    %v4051 = vunpack.c.h.b16 %v3672
    %v4052 = vunpack.c.l.b16 %v3673
    %v4053 = vunpack.c.h.b16 %v3673
    %v4054 = vunpack.c.l.b16 %v3674
    %v4055 = vunpack.c.h.b16 %v3674
    %v4056 = vunpack.c.l.b16 %v3675
    %v4057 = vunpack.c.h.b16 %v3675
    %v4058 = vunpack.c.l.b16 %v3676
    %v4059 = vunpack.c.h.b16 %v3676
    %v4060 = vunpack.c.l.b16 %v3677
    %v4061 = vunpack.c.h.b16 %v3677
    %v4062 = vunpack.c.l.b16 %v3678
    %v4063 = vunpack.c.h.b16 %v3678
    %v4064 = vunpack.c.l.b16 %v3679
    %v4065 = vunpack.c.h.b16 %v3679
    %v4066 = vunpack.c.l.b16 %v3680
    %v4067 = vunpack.c.h.b16 %v3680
    %v4068 = vunpack.c.l.b16 %v3681
    %v4069 = vunpack.c.h.b16 %v3681
    %v4070 = vunpack.c.l.b16 %v3682
    %v4071 = vunpack.c.h.b16 %v3682
    %v4072 = vunpack.c.l.b16 %v3683
    %v4073 = vunpack.c.h.b16 %v3683
    %v4074 = vunpack.c.l.b16 %v3684
    %v4075 = vunpack.c.h.b16 %v3684
    %v4076 = vunpack.c.l.b16 %v3685
    %v4077 = vunpack.c.h.b16 %v3685
    %v4078 = vunpack.c.l.b16 %v3686
    %v4079 = vunpack.c.h.b16 %v3686
    %v4080 = vunpack.c.l.b16 %v3687
    %v4081 = vunpack.c.h.b16 %v3687
    %v4082 = vpack.c.b16 %v3830, %v3826
    %v4083 = vpack.c.b16 %v3831, %v3827
    %v4084 = vpack.c.b16 %v3832, %v3828
    %v4085 = vpack.c.b16 %v3833, %v3829
    %v4086 = vpack.c.b16 %v3838, %v3834
    %v4087 = vpack.c.b16 %v3839, %v3835
    %v4088 = vpack.c.b16 %v3840, %v3836
    %v4089 = vpack.c.b16 %v3841, %v3837
    %v4090 = vpack.c.b16 %v3846, %v3842
    %v4091 = vpack.c.b16 %v3847, %v3843
    %v4092 = vpack.c.b16 %v3848, %v3844
    %v4093 = vpack.c.b16 %v3849, %v3845
    %v4094 = vpack.c.b16 %v3854, %v3850
    %v4095 = vpack.c.b16 %v3855, %v3851
    %v4096 = vpack.c.b16 %v3856, %v3852
    %v4097 = vpack.c.b16 %v3857, %v3853
    %v4098 = vpack.c.b16 %v3862, %v3858
    %v4099 = vpack.c.b16 %v3863, %v3859
    %v4100 = vpack.c.b16 %v3864, %v3860
    %v4101 = vpack.c.b16 %v3865, %v3861
    %v4102 = vpack.c.b16 %v3870, %v3866
    %v4103 = vpack.c.b16 %v3871, %v3867
    %v4104 = vpack.c.b16 %v3872, %v3868
    %v4105 = vpack.c.b16 %v3873, %v3869
    %v4106 = vpack.c.b16 %v3878, %v3874
    %v4107 = vpack.c.b16 %v3879, %v3875
    %v4108 = vpack.c.b16 %v3880, %v3876
    %v4109 = vpack.c.b16 %v3881, %v3877
    %v4110 = vpack.c.b16 %v3886, %v3882
    %v4111 = vpack.c.b16 %v3887, %v3883
    %v4112 = vpack.c.b16 %v3888, %v3884
    %v4113 = vpack.c.b16 %v3889, %v3885
    %v4114 = vpack.c.b16 %v3894, %v3890
    %v4115 = vpack.c.b16 %v3895, %v3891
    %v4116 = vpack.c.b16 %v3896, %v3892
    %v4117 = vpack.c.b16 %v3897, %v3893
    %v4118 = vpack.c.b16 %v3902, %v3898
    %v4119 = vpack.c.b16 %v3903, %v3899
    %v4120 = vpack.c.b16 %v3904, %v3900
    %v4121 = vpack.c.b16 %v3905, %v3901
    %v4122 = vpack.c.b16 %v3910, %v3906
    %v4123 = vpack.c.b16 %v3911, %v3907
    %v4124 = vpack.c.b16 %v3912, %v3908
    %v4125 = vpack.c.b16 %v3913, %v3909
    %v4126 = vpack.c.b16 %v3918, %v3914
    %v4127 = vpack.c.b16 %v3919, %v3915
    %v4128 = vpack.c.b16 %v3920, %v3916
    %v4129 = vpack.c.b16 %v3921, %v3917
    %v4130 = vpack.c.b16 %v3926, %v3922
    %v4131 = vpack.c.b16 %v3927, %v3923
    %v4132 = vpack.c.b16 %v3928, %v3924
    %v4133 = vpack.c.b16 %v3929, %v3925
    %v4134 = vpack.c.b16 %v3934, %v3930
    %v4135 = vpack.c.b16 %v3935, %v3931
    %v4136 = vpack.c.b16 %v3936, %v3932
    %v4137 = vpack.c.b16 %v3937, %v3933
    %v4138 = vpack.c.b16 %v3942, %v3938
    %v4139 = vpack.c.b16 %v3943, %v3939
    %v4140 = vpack.c.b16 %v3944, %v3940
    %v4141 = vpack.c.b16 %v3945, %v3941
    %v4142 = vpack.c.b16 %v3950, %v3946
    %v4143 = vpack.c.b16 %v3951, %v3947
    %v4144 = vpack.c.b16 %v3952, %v3948
    %v4145 = vpack.c.b16 %v3953, %v3949
    %v4146 = vpack.c.b16 %v3958, %v3954
    %v4147 = vpack.c.b16 %v3959, %v3955
    %v4148 = vpack.c.b16 %v3960, %v3956
    %v4149 = vpack.c.b16 %v3961, %v3957
    %v4150 = vpack.c.b16 %v3966, %v3962
    %v4151 = vpack.c.b16 %v3967, %v3963
    %v4152 = vpack.c.b16 %v3968, %v3964
    %v4153 = vpack.c.b16 %v3969, %v3965
    %v4154 = vpack.c.b16 %v3974, %v3970
    %v4155 = vpack.c.b16 %v3975, %v3971
    %v4156 = vpack.c.b16 %v3976, %v3972
    %v4157 = vpack.c.b16 %v3977, %v3973
    %v4158 = vpack.c.b16 %v3982, %v3978
    %v4159 = vpack.c.b16 %v3983, %v3979
    %v4160 = vpack.c.b16 %v3984, %v3980
    %v4161 = vpack.c.b16 %v3985, %v3981
    %v4162 = vpack.c.b16 %v3990, %v3986
    %v4163 = vpack.c.b16 %v3991, %v3987
    %v4164 = vpack.c.b16 %v3992, %v3988
    %v4165 = vpack.c.b16 %v3993, %v3989
    %v4166 = vpack.c.b16 %v3998, %v3994
    %v4167 = vpack.c.b16 %v3999, %v3995
    %v4168 = vpack.c.b16 %v4000, %v3996
    %v4169 = vpack.c.b16 %v4001, %v3997
    %v4170 = vpack.c.b16 %v4006, %v4002
    %v4171 = vpack.c.b16 %v4007, %v4003
    %v4172 = vpack.c.b16 %v4008, %v4004
    %v4173 = vpack.c.b16 %v4009, %v4005
    %v4174 = vpack.c.b16 %v4014, %v4010
    %v4175 = vpack.c.b16 %v4015, %v4011
    %v4176 = vpack.c.b16 %v4016, %v4012
    %v4177 = vpack.c.b16 %v4017, %v4013
    %v4178 = vpack.c.b16 %v4022, %v4018
    %v4179 = vpack.c.b16 %v4023, %v4019
    %v4180 = vpack.c.b16 %v4024, %v4020
    %v4181 = vpack.c.b16 %v4025, %v4021
    %v4182 = vpack.c.b16 %v4030, %v4026
    %v4183 = vpack.c.b16 %v4031, %v4027
    %v4184 = vpack.c.b16 %v4032, %v4028
    %v4185 = vpack.c.b16 %v4033, %v4029
    %v4186 = vpack.c.b16 %v4038, %v4034
    %v4187 = vpack.c.b16 %v4039, %v4035
    %v4188 = vpack.c.b16 %v4040, %v4036
    %v4189 = vpack.c.b16 %v4041, %v4037
    %v4190 = vpack.c.b16 %v4046, %v4042
    %v4191 = vpack.c.b16 %v4047, %v4043
    %v4192 = vpack.c.b16 %v4048, %v4044
    %v4193 = vpack.c.b16 %v4049, %v4045
    %v4194 = vpack.c.b16 %v4054, %v4050
    %v4195 = vpack.c.b16 %v4055, %v4051
    %v4196 = vpack.c.b16 %v4056, %v4052
    %v4197 = vpack.c.b16 %v4057, %v4053
    %v4198 = vpack.c.b16 %v4062, %v4058
    %v4199 = vpack.c.b16 %v4063, %v4059
    %v4200 = vpack.c.b16 %v4064, %v4060
    %v4201 = vpack.c.b16 %v4065, %v4061
    %v4202 = vpack.c.b16 %v4070, %v4066
    %v4203 = vpack.c.b16 %v4071, %v4067
    %v4204 = vpack.c.b16 %v4072, %v4068
    %v4205 = vpack.c.b16 %v4073, %v4069
    %v4206 = vpack.c.b16 %v4078, %v4074
    %v4207 = vpack.c.b16 %v4079, %v4075
    %v4208 = vpack.c.b16 %v4080, %v4076
    %v4209 = vpack.c.b16 %v4081, %v4077
    %4338 = vmatpush.bf16.msra.mxu0 %v4110
    %4339 = vmatpush.bf16.msra.mxu0 %v4106
    %4340 = vmatpush.bf16.msra.mxu0 %v4102
    %4341 = vmatpush.bf16.msra.mxu0 %v4098
    %4342 = vmatpush.bf16.msra.mxu0 %v4094
    %4343 = vmatpush.bf16.msra.mxu0 %v4090
    %4344 = vmatpush.bf16.msra.mxu0 %v4086
    %4345 = vmatpush.bf16.msra.mxu0 %v4082
    %4346 = vmatmul.bf16.gmra.mxu0 %v3556
    %v4347 = vpop.f32.mrf.mxu0
    %v4348 = vadd.f32 %v3690, %v4347
    %v4349 = vpop.f32.mrf.mxu0
    %v4350 = vadd.f32 %v3690, %v4349
    %4351 = vdwg.mxu0
    %4352 = vmatpush.bf16.msra.mxu0 %v4142
    %4353 = vmatpush.bf16.msra.mxu0 %v4138
    %4354 = vmatpush.bf16.msra.mxu0 %v4134
    %4355 = vmatpush.bf16.msra.mxu0 %v4130
    %4356 = vmatpush.bf16.msra.mxu0 %v4126
    %4357 = vmatpush.bf16.msra.mxu0 %v4122
    %4358 = vmatpush.bf16.msra.mxu0 %v4118
    %4359 = vmatpush.bf16.msra.mxu0 %v4114
    %4360 = vmatmul.bf16.gmra.mxu0 %v3557
    %v4361 = vpop.f32.mrf.mxu0
    %v4362 = vadd.f32 %v4348, %v4361
    %v4363 = vpop.f32.mrf.mxu0
    %v4364 = vadd.f32 %v4350, %v4363
    %4365 = vdwg.mxu0
    %4366 = vmatpush.bf16.msra.mxu0 %v4174
    %4367 = vmatpush.bf16.msra.mxu0 %v4170
    %4368 = vmatpush.bf16.msra.mxu0 %v4166
    %4369 = vmatpush.bf16.msra.mxu0 %v4162
    %4370 = vmatpush.bf16.msra.mxu0 %v4158
    %4371 = vmatpush.bf16.msra.mxu0 %v4154
    %4372 = vmatpush.bf16.msra.mxu0 %v4150
    %4373 = vmatpush.bf16.msra.mxu0 %v4146
    %4374 = vmatmul.bf16.gmra.mxu0 %v3558
    %v4375 = vpop.f32.mrf.mxu0
    %v4376 = vadd.f32 %v4362, %v4375
    %v4377 = vpop.f32.mrf.mxu0
    %v4378 = vadd.f32 %v4364, %v4377
    %4379 = vdwg.mxu0
    %4380 = vmatpush.bf16.msra.mxu0 %v4206
    %4381 = vmatpush.bf16.msra.mxu0 %v4202
    %4382 = vmatpush.bf16.msra.mxu0 %v4198
    %4383 = vmatpush.bf16.msra.mxu0 %v4194
    %4384 = vmatpush.bf16.msra.mxu0 %v4190
    %4385 = vmatpush.bf16.msra.mxu0 %v4186
    %4386 = vmatpush.bf16.msra.mxu0 %v4182
    %4387 = vmatpush.bf16.msra.mxu0 %v4178
    %4388 = vmatmul.bf16.gmra.mxu0 %v3559
    %v4389 = vpop.f32.mrf.mxu0
    %v4390 = vadd.f32 %v4376, %v4389
    %v4391 = vpop.f32.mrf.mxu0
    %v4392 = vadd.f32 %v4378, %v4391
    %4393 = vdwg.mxu0
    %4394 = vmatpush.bf16.msra.mxu0 %v4111
    %4395 = vmatpush.bf16.msra.mxu0 %v4107
    %4396 = vmatpush.bf16.msra.mxu0 %v4103
    %4397 = vmatpush.bf16.msra.mxu0 %v4099
    %4398 = vmatpush.bf16.msra.mxu0 %v4095
    %4399 = vmatpush.bf16.msra.mxu0 %v4091
    %4400 = vmatpush.bf16.msra.mxu0 %v4087
    %4401 = vmatpush.bf16.msra.mxu0 %v4083
    %4402 = vmatmul.bf16.gmra.mxu0 %v3556
    %v4403 = vpop.f32.mrf.mxu0
    %v4404 = vadd.f32 %v3691, %v4403
    %v4405 = vpop.f32.mrf.mxu0
    %v4406 = vadd.f32 %v3691, %v4405
    %4407 = vdwg.mxu0
    %4408 = vmatpush.bf16.msra.mxu0 %v4143
    %4409 = vmatpush.bf16.msra.mxu0 %v4139
    %4410 = vmatpush.bf16.msra.mxu0 %v4135
    %4411 = vmatpush.bf16.msra.mxu0 %v4131
    %4412 = vmatpush.bf16.msra.mxu0 %v4127
    %4413 = vmatpush.bf16.msra.mxu0 %v4123
    %4414 = vmatpush.bf16.msra.mxu0 %v4119
    %4415 = vmatpush.bf16.msra.mxu0 %v4115
    %4416 = vmatmul.bf16.gmra.mxu0 %v3557
    %v4417 = vpop.f32.mrf.mxu0
    %v4418 = vadd.f32 %v4404, %v4417
    %v4419 = vpop.f32.mrf.mxu0
    %v4420 = vadd.f32 %v4406, %v4419
    %4421 = vdwg.mxu0
    %4422 = vmatpush.bf16.msra.mxu0 %v4175
    %4423 = vmatpush.bf16.msra.mxu0 %v4171
    %4424 = vmatpush.bf16.msra.mxu0 %v4167
    %4425 = vmatpush.bf16.msra.mxu0 %v4163
    %4426 = vmatpush.bf16.msra.mxu0 %v4159
    %4427 = vmatpush.bf16.msra.mxu0 %v4155
    %4428 = vmatpush.bf16.msra.mxu0 %v4151
    %4429 = vmatpush.bf16.msra.mxu0 %v4147
    %4430 = vmatmul.bf16.gmra.mxu0 %v3558
    %v4431 = vpop.f32.mrf.mxu0
    %v4432 = vadd.f32 %v4418, %v4431
    %v4433 = vpop.f32.mrf.mxu0
    %v4434 = vadd.f32 %v4420, %v4433
    %4435 = vdwg.mxu0
    %4436 = vmatpush.bf16.msra.mxu0 %v4207
    %4437 = vmatpush.bf16.msra.mxu0 %v4203
    %4438 = vmatpush.bf16.msra.mxu0 %v4199
    %4439 = vmatpush.bf16.msra.mxu0 %v4195
    %4440 = vmatpush.bf16.msra.mxu0 %v4191
    %4441 = vmatpush.bf16.msra.mxu0 %v4187
    %4442 = vmatpush.bf16.msra.mxu0 %v4183
    %4443 = vmatpush.bf16.msra.mxu0 %v4179
    %4444 = vmatmul.bf16.gmra.mxu0 %v3559
    %v4445 = vpop.f32.mrf.mxu0
    %v4446 = vadd.f32 %v4432, %v4445
    %v4447 = vpop.f32.mrf.mxu0
    %v4448 = vadd.f32 %v4434, %v4447
    %4449 = vdwg.mxu0
    %4450 = vmatpush.bf16.msra.mxu0 %v4112
    %4451 = vmatpush.bf16.msra.mxu0 %v4108
    %4452 = vmatpush.bf16.msra.mxu0 %v4104
    %4453 = vmatpush.bf16.msra.mxu0 %v4100
    %4454 = vmatpush.bf16.msra.mxu0 %v4096
    %4455 = vmatpush.bf16.msra.mxu0 %v4092
    %4456 = vmatpush.bf16.msra.mxu0 %v4088
    %4457 = vmatpush.bf16.msra.mxu0 %v4084
    %4458 = vmatmul.bf16.gmra.mxu0 %v3556
    %v4459 = vpop.f32.mrf.mxu0
    %v4460 = vadd.f32 %v3692, %v4459
    %v4461 = vpop.f32.mrf.mxu0
    %v4462 = vadd.f32 %v3692, %v4461
    %4463 = vdwg.mxu0
    %4464 = vmatpush.bf16.msra.mxu0 %v4144
    %4465 = vmatpush.bf16.msra.mxu0 %v4140
    %4466 = vmatpush.bf16.msra.mxu0 %v4136
    %4467 = vmatpush.bf16.msra.mxu0 %v4132
    %4468 = vmatpush.bf16.msra.mxu0 %v4128
    %4469 = vmatpush.bf16.msra.mxu0 %v4124
    %4470 = vmatpush.bf16.msra.mxu0 %v4120
    %4471 = vmatpush.bf16.msra.mxu0 %v4116
    %4472 = vmatmul.bf16.gmra.mxu0 %v3557
    %v4473 = vpop.f32.mrf.mxu0
    %v4474 = vadd.f32 %v4460, %v4473
    %v4475 = vpop.f32.mrf.mxu0
    %v4476 = vadd.f32 %v4462, %v4475
    %4477 = vdwg.mxu0
    %4478 = vmatpush.bf16.msra.mxu0 %v4176
    %4479 = vmatpush.bf16.msra.mxu0 %v4172
    %4480 = vmatpush.bf16.msra.mxu0 %v4168
    %4481 = vmatpush.bf16.msra.mxu0 %v4164
    %4482 = vmatpush.bf16.msra.mxu0 %v4160
    %4483 = vmatpush.bf16.msra.mxu0 %v4156
    %4484 = vmatpush.bf16.msra.mxu0 %v4152
    %4485 = vmatpush.bf16.msra.mxu0 %v4148
    %4486 = vmatmul.bf16.gmra.mxu0 %v3558
    %v4487 = vpop.f32.mrf.mxu0
    %v4488 = vadd.f32 %v4474, %v4487
    %v4489 = vpop.f32.mrf.mxu0
    %v4490 = vadd.f32 %v4476, %v4489
    %4491 = vdwg.mxu0
    %4492 = vmatpush.bf16.msra.mxu0 %v4208
    %4493 = vmatpush.bf16.msra.mxu0 %v4204
    %4494 = vmatpush.bf16.msra.mxu0 %v4200
    %4495 = vmatpush.bf16.msra.mxu0 %v4196
    %4496 = vmatpush.bf16.msra.mxu0 %v4192
    %4497 = vmatpush.bf16.msra.mxu0 %v4188
    %4498 = vmatpush.bf16.msra.mxu0 %v4184
    %4499 = vmatpush.bf16.msra.mxu0 %v4180
    %4500 = vmatmul.bf16.gmra.mxu0 %v3559
    %v4501 = vpop.f32.mrf.mxu0
    %v4502 = vadd.f32 %v4488, %v4501
    %v4503 = vpop.f32.mrf.mxu0
    %v4504 = vadd.f32 %v4490, %v4503
    %4505 = vdwg.mxu0
    %4506 = vmatpush.bf16.msra.mxu0 %v4113
    %4507 = vmatpush.bf16.msra.mxu0 %v4109
    %4508 = vmatpush.bf16.msra.mxu0 %v4105
    %4509 = vmatpush.bf16.msra.mxu0 %v4101
    %4510 = vmatpush.bf16.msra.mxu0 %v4097
    %4511 = vmatpush.bf16.msra.mxu0 %v4093
    %4512 = vmatpush.bf16.msra.mxu0 %v4089
    %4513 = vmatpush.bf16.msra.mxu0 %v4085
    %4514 = vmatmul.bf16.gmra.mxu0 %v3556
    %v4515 = vpop.f32.mrf.mxu0
    %v4516 = vadd.f32 %v3693, %v4515
    %v4517 = vpop.f32.mrf.mxu0
    %v4518 = vadd.f32 %v3693, %v4517
    %4519 = vdwg.mxu0
    %4520 = vmatpush.bf16.msra.mxu0 %v4145
    %4521 = vmatpush.bf16.msra.mxu0 %v4141
    %4522 = vmatpush.bf16.msra.mxu0 %v4137
    %4523 = vmatpush.bf16.msra.mxu0 %v4133
    %4524 = vmatpush.bf16.msra.mxu0 %v4129
    %4525 = vmatpush.bf16.msra.mxu0 %v4125
    %4526 = vmatpush.bf16.msra.mxu0 %v4121
    %4527 = vmatpush.bf16.msra.mxu0 %v4117
    %4528 = vmatmul.bf16.gmra.mxu0 %v3557
    %v4529 = vpop.f32.mrf.mxu0
    %v4530 = vadd.f32 %v4516, %v4529
    %v4531 = vpop.f32.mrf.mxu0
    %v4532 = vadd.f32 %v4518, %v4531
    %4533 = vdwg.mxu0
    %4534 = vmatpush.bf16.msra.mxu0 %v4177
    %4535 = vmatpush.bf16.msra.mxu0 %v4173
    %4536 = vmatpush.bf16.msra.mxu0 %v4169
    %4537 = vmatpush.bf16.msra.mxu0 %v4165
    %4538 = vmatpush.bf16.msra.mxu0 %v4161
    %4539 = vmatpush.bf16.msra.mxu0 %v4157
    %4540 = vmatpush.bf16.msra.mxu0 %v4153
    %4541 = vmatpush.bf16.msra.mxu0 %v4149
    %4542 = vmatmul.bf16.gmra.mxu0 %v3558
    %v4543 = vpop.f32.mrf.mxu0
    %v4544 = vadd.f32 %v4530, %v4543
    %v4545 = vpop.f32.mrf.mxu0
    %v4546 = vadd.f32 %v4532, %v4545
    %4547 = vdwg.mxu0
    %4548 = vmatpush.bf16.msra.mxu0 %v4209
    %4549 = vmatpush.bf16.msra.mxu0 %v4205
    %4550 = vmatpush.bf16.msra.mxu0 %v4201
    %4551 = vmatpush.bf16.msra.mxu0 %v4197
    %4552 = vmatpush.bf16.msra.mxu0 %v4193
    %4553 = vmatpush.bf16.msra.mxu0 %v4189
    %4554 = vmatpush.bf16.msra.mxu0 %v4185
    %4555 = vmatpush.bf16.msra.mxu0 %v4181
    %4556 = vmatmul.bf16.gmra.mxu0 %v3559
    %v4557 = vpop.f32.mrf.mxu0
    %v4558 = vadd.f32 %v4544, %v4557
    %v4559 = vpop.f32.mrf.mxu0
    %v4560 = vadd.f32 %v4546, %v4559
    %4561 = vdwg.mxu0
    %v4562 = vmax.f32 %v4390, 0.0
    %v4563 = vmax.f32 %v4446, 0.0
    %v4564 = vmax.f32 %v4502, 0.0
    %v4565 = vmax.f32 %v4558, 0.0
    %v4566 = vmax.f32 %v4392, 0.0
    %v4567 = vmax.f32 %v4448, 0.0
    %v4568 = vmax.f32 %v4504, 0.0
    %v4569 = vmax.f32 %v4560, 0.0
    %v4570 = vpack.c.bf16 %v4566, %v4562
    %v4571 = vpack.c.bf16 %v4567, %v4563
    %v4572 = vpack.c.bf16 %v4568, %v4564
    %v4573 = vpack.c.bf16 %v4569, %v4565
    %s4574 = scalar_lea.vmem [#allocation3], 1024
    %v4575 = vld [vmem:[%s4574] sm:$0xff]
    %v4576 = vld [vmem:[%s4574 + $0x8] sm:$0xff]
    %v4577 = vld [vmem:[%s4574 + $0x10] sm:$0xff]
    %v4578 = vld [vmem:[%s4574 + $0x18] sm:$0xff]
    %v4579 = vld [vmem:[%s4574 + $0x20] sm:$0xff]
    %v4580 = vld [vmem:[%s4574 + $0x28] sm:$0xff]
    %v4581 = vld [vmem:[%s4574 + $0x30] sm:$0xff]
    %v4582 = vld [vmem:[%s4574 + $0x38] sm:$0xff]
    %v4583 = vld [vmem:[%s4574 + $0x40] sm:$0xff]
    %v4584 = vld [vmem:[%s4574 + $0x48] sm:$0xff]
    %v4585 = vld [vmem:[%s4574 + $0x50] sm:$0xff]
    %v4586 = vld [vmem:[%s4574 + $0x58] sm:$0xff]
    %v4587 = vld [vmem:[%s4574 + $0x60] sm:$0xff]
    %v4588 = vld [vmem:[%s4574 + $0x68] sm:$0xff]
    %v4589 = vld [vmem:[%s4574 + $0x70] sm:$0xff]
    %v4590 = vld [vmem:[%s4574 + $0x78] sm:$0xff]
    %v4591 = vld [vmem:[%s4574 + $0x80] sm:$0xff]
    %v4592 = vld [vmem:[%s4574 + $0x88] sm:$0xff]
    %v4593 = vld [vmem:[%s4574 + $0x90] sm:$0xff]
    %v4594 = vld [vmem:[%s4574 + $0x98] sm:$0xff]
    %v4595 = vld [vmem:[%s4574 + $0xa0] sm:$0xff]
    %v4596 = vld [vmem:[%s4574 + $0xa8] sm:$0xff]
    %v4597 = vld [vmem:[%s4574 + $0xb0] sm:$0xff]
    %v4598 = vld [vmem:[%s4574 + $0xb8] sm:$0xff]
    %v4599 = vld [vmem:[%s4574 + $0xc0] sm:$0xff]
    %v4600 = vld [vmem:[%s4574 + $0xc8] sm:$0xff]
    %v4601 = vld [vmem:[%s4574 + $0xd0] sm:$0xff]
    %v4602 = vld [vmem:[%s4574 + $0xd8] sm:$0xff]
    %v4603 = vld [vmem:[%s4574 + $0xe0] sm:$0xff]
    %v4604 = vld [vmem:[%s4574 + $0xe8] sm:$0xff]
    %v4605 = vld [vmem:[%s4574 + $0xf0] sm:$0xff]
    %v4606 = vld [vmem:[%s4574 + $0xf8] sm:$0xff]
    %v4607 = vld [vmem:[%s4574 + $0x100] sm:$0xff]
    %v4608 = vld [vmem:[%s4574 + $0x108] sm:$0xff]
    %v4609 = vld [vmem:[%s4574 + $0x110] sm:$0xff]
    %v4610 = vld [vmem:[%s4574 + $0x118] sm:$0xff]
    %v4611 = vld [vmem:[%s4574 + $0x120] sm:$0xff]
    %v4612 = vld [vmem:[%s4574 + $0x128] sm:$0xff]
    %v4613 = vld [vmem:[%s4574 + $0x130] sm:$0xff]
    %v4614 = vld [vmem:[%s4574 + $0x138] sm:$0xff]
    %v4615 = vld [vmem:[%s4574 + $0x140] sm:$0xff]
    %v4616 = vld [vmem:[%s4574 + $0x148] sm:$0xff]
    %v4617 = vld [vmem:[%s4574 + $0x150] sm:$0xff]
    %v4618 = vld [vmem:[%s4574 + $0x158] sm:$0xff]
    %v4619 = vld [vmem:[%s4574 + $0x160] sm:$0xff]
    %v4620 = vld [vmem:[%s4574 + $0x168] sm:$0xff]
    %v4621 = vld [vmem:[%s4574 + $0x170] sm:$0xff]
    %v4622 = vld [vmem:[%s4574 + $0x178] sm:$0xff]
    %v4623 = vld [vmem:[%s4574 + $0x180] sm:$0xff]
    %v4624 = vld [vmem:[%s4574 + $0x188] sm:$0xff]
    %v4625 = vld [vmem:[%s4574 + $0x190] sm:$0xff]
    %v4626 = vld [vmem:[%s4574 + $0x198] sm:$0xff]
    %v4627 = vld [vmem:[%s4574 + $0x1a0] sm:$0xff]
    %v4628 = vld [vmem:[%s4574 + $0x1a8] sm:$0xff]
    %v4629 = vld [vmem:[%s4574 + $0x1b0] sm:$0xff]
    %v4630 = vld [vmem:[%s4574 + $0x1b8] sm:$0xff]
    %v4631 = vld [vmem:[%s4574 + $0x1c0] sm:$0xff]
    %v4632 = vld [vmem:[%s4574 + $0x1c8] sm:$0xff]
    %v4633 = vld [vmem:[%s4574 + $0x1d0] sm:$0xff]
    %v4634 = vld [vmem:[%s4574 + $0x1d8] sm:$0xff]
    %v4635 = vld [vmem:[%s4574 + $0x1e0] sm:$0xff]
    %v4636 = vld [vmem:[%s4574 + $0x1e8] sm:$0xff]
    %v4637 = vld [vmem:[%s4574 + $0x1f0] sm:$0xff]
    %v4638 = vld [vmem:[%s4574 + $0x1f8] sm:$0xff]
    %v4639 = vld [vmem:[%s4574 + $0x200] sm:$0xff]
    %v4640 = vld [vmem:[%s4574 + $0x208] sm:$0xff]
    %v4641 = vld [vmem:[%s4574 + $0x210] sm:$0xff]
    %v4642 = vld [vmem:[%s4574 + $0x218] sm:$0xff]
    %v4643 = vld [vmem:[%s4574 + $0x220] sm:$0xff]
    %v4644 = vld [vmem:[%s4574 + $0x228] sm:$0xff]
    %v4645 = vld [vmem:[%s4574 + $0x230] sm:$0xff]
    %v4646 = vld [vmem:[%s4574 + $0x238] sm:$0xff]
    %v4647 = vld [vmem:[%s4574 + $0x240] sm:$0xff]
    %v4648 = vld [vmem:[%s4574 + $0x248] sm:$0xff]
    %v4649 = vld [vmem:[%s4574 + $0x250] sm:$0xff]
    %v4650 = vld [vmem:[%s4574 + $0x258] sm:$0xff]
    %v4651 = vld [vmem:[%s4574 + $0x260] sm:$0xff]
    %v4652 = vld [vmem:[%s4574 + $0x268] sm:$0xff]
    %v4653 = vld [vmem:[%s4574 + $0x270] sm:$0xff]
    %v4654 = vld [vmem:[%s4574 + $0x278] sm:$0xff]
    %v4655 = vld [vmem:[%s4574 + $0x280] sm:$0xff]
    %v4656 = vld [vmem:[%s4574 + $0x288] sm:$0xff]
    %v4657 = vld [vmem:[%s4574 + $0x290] sm:$0xff]
    %v4658 = vld [vmem:[%s4574 + $0x298] sm:$0xff]
    %v4659 = vld [vmem:[%s4574 + $0x2a0] sm:$0xff]
    %v4660 = vld [vmem:[%s4574 + $0x2a8] sm:$0xff]
    %v4661 = vld [vmem:[%s4574 + $0x2b0] sm:$0xff]
    %v4662 = vld [vmem:[%s4574 + $0x2b8] sm:$0xff]
    %v4663 = vld [vmem:[%s4574 + $0x2c0] sm:$0xff]
    %v4664 = vld [vmem:[%s4574 + $0x2c8] sm:$0xff]
    %v4665 = vld [vmem:[%s4574 + $0x2d0] sm:$0xff]
    %v4666 = vld [vmem:[%s4574 + $0x2d8] sm:$0xff]
    %v4667 = vld [vmem:[%s4574 + $0x2e0] sm:$0xff]
    %v4668 = vld [vmem:[%s4574 + $0x2e8] sm:$0xff]
    %v4669 = vld [vmem:[%s4574 + $0x2f0] sm:$0xff]
    %v4670 = vld [vmem:[%s4574 + $0x2f8] sm:$0xff]
    %v4671 = vld [vmem:[%s4574 + $0x300] sm:$0xff]
    %v4672 = vld [vmem:[%s4574 + $0x308] sm:$0xff]
    %v4673 = vld [vmem:[%s4574 + $0x310] sm:$0xff]
    %v4674 = vld [vmem:[%s4574 + $0x318] sm:$0xff]
    %v4675 = vld [vmem:[%s4574 + $0x320] sm:$0xff]
    %v4676 = vld [vmem:[%s4574 + $0x328] sm:$0xff]
    %v4677 = vld [vmem:[%s4574 + $0x330] sm:$0xff]
    %v4678 = vld [vmem:[%s4574 + $0x338] sm:$0xff]
    %v4679 = vld [vmem:[%s4574 + $0x340] sm:$0xff]
    %v4680 = vld [vmem:[%s4574 + $0x348] sm:$0xff]
    %v4681 = vld [vmem:[%s4574 + $0x350] sm:$0xff]
    %v4682 = vld [vmem:[%s4574 + $0x358] sm:$0xff]
    %v4683 = vld [vmem:[%s4574 + $0x360] sm:$0xff]
    %v4684 = vld [vmem:[%s4574 + $0x368] sm:$0xff]
    %v4685 = vld [vmem:[%s4574 + $0x370] sm:$0xff]
    %v4686 = vld [vmem:[%s4574 + $0x378] sm:$0xff]
    %v4687 = vld [vmem:[%s4574 + $0x380] sm:$0xff]
    %v4688 = vld [vmem:[%s4574 + $0x388] sm:$0xff]
    %v4689 = vld [vmem:[%s4574 + $0x390] sm:$0xff]
    %v4690 = vld [vmem:[%s4574 + $0x398] sm:$0xff]
    %v4691 = vld [vmem:[%s4574 + $0x3a0] sm:$0xff]
    %v4692 = vld [vmem:[%s4574 + $0x3a8] sm:$0xff]
    %v4693 = vld [vmem:[%s4574 + $0x3b0] sm:$0xff]
    %v4694 = vld [vmem:[%s4574 + $0x3b8] sm:$0xff]
    %v4695 = vld [vmem:[%s4574 + $0x3c0] sm:$0xff]
    %v4696 = vld [vmem:[%s4574 + $0x3c8] sm:$0xff]
    %v4697 = vld [vmem:[%s4574 + $0x3d0] sm:$0xff]
    %v4698 = vld [vmem:[%s4574 + $0x3d8] sm:$0xff]
    %v4699 = vld [vmem:[%s4574 + $0x3e0] sm:$0xff]
    %v4700 = vld [vmem:[%s4574 + $0x3e8] sm:$0xff]
    %v4701 = vld [vmem:[%s4574 + $0x3f0] sm:$0xff]
    %v4702 = vld [vmem:[%s4574 + $0x3f8] sm:$0xff]
    %v4703 = vld [vmem:[#allocation15] sm:$0xf]
    %v4705 = vperm.slane %v4703, 0
    %v4706 = vperm.slane %v4703, 1
    %v4707 = vperm.slane %v4703, 2
    %v4708 = vperm.slane %v4703, 3
    %v4841 = vunpack.c.l.b16 %v4575
    %v4842 = vunpack.c.h.b16 %v4575
    %v4843 = vunpack.c.l.b16 %v4576
    %v4844 = vunpack.c.h.b16 %v4576
    %v4845 = vunpack.c.l.b16 %v4577
    %v4846 = vunpack.c.h.b16 %v4577
    %v4847 = vunpack.c.l.b16 %v4578
    %v4848 = vunpack.c.h.b16 %v4578
    %v4849 = vunpack.c.l.b16 %v4579
    %v4850 = vunpack.c.h.b16 %v4579
    %v4851 = vunpack.c.l.b16 %v4580
    %v4852 = vunpack.c.h.b16 %v4580
    %v4853 = vunpack.c.l.b16 %v4581
    %v4854 = vunpack.c.h.b16 %v4581
    %v4855 = vunpack.c.l.b16 %v4582
    %v4856 = vunpack.c.h.b16 %v4582
    %v4857 = vunpack.c.l.b16 %v4583
    %v4858 = vunpack.c.h.b16 %v4583
    %v4859 = vunpack.c.l.b16 %v4584
    %v4860 = vunpack.c.h.b16 %v4584
    %v4861 = vunpack.c.l.b16 %v4585
    %v4862 = vunpack.c.h.b16 %v4585
    %v4863 = vunpack.c.l.b16 %v4586
    %v4864 = vunpack.c.h.b16 %v4586
    %v4865 = vunpack.c.l.b16 %v4587
    %v4866 = vunpack.c.h.b16 %v4587
    %v4867 = vunpack.c.l.b16 %v4588
    %v4868 = vunpack.c.h.b16 %v4588
    %v4869 = vunpack.c.l.b16 %v4589
    %v4870 = vunpack.c.h.b16 %v4589
    %v4871 = vunpack.c.l.b16 %v4590
    %v4872 = vunpack.c.h.b16 %v4590
    %v4873 = vunpack.c.l.b16 %v4591
    %v4874 = vunpack.c.h.b16 %v4591
    %v4875 = vunpack.c.l.b16 %v4592
    %v4876 = vunpack.c.h.b16 %v4592
    %v4877 = vunpack.c.l.b16 %v4593
    %v4878 = vunpack.c.h.b16 %v4593
    %v4879 = vunpack.c.l.b16 %v4594
    %v4880 = vunpack.c.h.b16 %v4594
    %v4881 = vunpack.c.l.b16 %v4595
    %v4882 = vunpack.c.h.b16 %v4595
    %v4883 = vunpack.c.l.b16 %v4596
    %v4884 = vunpack.c.h.b16 %v4596
    %v4885 = vunpack.c.l.b16 %v4597
    %v4886 = vunpack.c.h.b16 %v4597
    %v4887 = vunpack.c.l.b16 %v4598
    %v4888 = vunpack.c.h.b16 %v4598
    %v4889 = vunpack.c.l.b16 %v4599
    %v4890 = vunpack.c.h.b16 %v4599
    %v4891 = vunpack.c.l.b16 %v4600
    %v4892 = vunpack.c.h.b16 %v4600
    %v4893 = vunpack.c.l.b16 %v4601
    %v4894 = vunpack.c.h.b16 %v4601
    %v4895 = vunpack.c.l.b16 %v4602
    %v4896 = vunpack.c.h.b16 %v4602
    %v4897 = vunpack.c.l.b16 %v4603
    %v4898 = vunpack.c.h.b16 %v4603
    %v4899 = vunpack.c.l.b16 %v4604
    %v4900 = vunpack.c.h.b16 %v4604
    %v4901 = vunpack.c.l.b16 %v4605
    %v4902 = vunpack.c.h.b16 %v4605
    %v4903 = vunpack.c.l.b16 %v4606
    %v4904 = vunpack.c.h.b16 %v4606
    %v4905 = vunpack.c.l.b16 %v4607
    %v4906 = vunpack.c.h.b16 %v4607
    %v4907 = vunpack.c.l.b16 %v4608
    %v4908 = vunpack.c.h.b16 %v4608
    %v4909 = vunpack.c.l.b16 %v4609
    %v4910 = vunpack.c.h.b16 %v4609
    %v4911 = vunpack.c.l.b16 %v4610
    %v4912 = vunpack.c.h.b16 %v4610
    %v4913 = vunpack.c.l.b16 %v4611
    %v4914 = vunpack.c.h.b16 %v4611
    %v4915 = vunpack.c.l.b16 %v4612
    %v4916 = vunpack.c.h.b16 %v4612
    %v4917 = vunpack.c.l.b16 %v4613
    %v4918 = vunpack.c.h.b16 %v4613
    %v4919 = vunpack.c.l.b16 %v4614
    %v4920 = vunpack.c.h.b16 %v4614
    %v4921 = vunpack.c.l.b16 %v4615
    %v4922 = vunpack.c.h.b16 %v4615
    %v4923 = vunpack.c.l.b16 %v4616
    %v4924 = vunpack.c.h.b16 %v4616
    %v4925 = vunpack.c.l.b16 %v4617
    %v4926 = vunpack.c.h.b16 %v4617
    %v4927 = vunpack.c.l.b16 %v4618
    %v4928 = vunpack.c.h.b16 %v4618
    %v4929 = vunpack.c.l.b16 %v4619
    %v4930 = vunpack.c.h.b16 %v4619
    %v4931 = vunpack.c.l.b16 %v4620
    %v4932 = vunpack.c.h.b16 %v4620
    %v4933 = vunpack.c.l.b16 %v4621
    %v4934 = vunpack.c.h.b16 %v4621
    %v4935 = vunpack.c.l.b16 %v4622
    %v4936 = vunpack.c.h.b16 %v4622
    %v4937 = vunpack.c.l.b16 %v4623
    %v4938 = vunpack.c.h.b16 %v4623
    %v4939 = vunpack.c.l.b16 %v4624
    %v4940 = vunpack.c.h.b16 %v4624
    %v4941 = vunpack.c.l.b16 %v4625
    %v4942 = vunpack.c.h.b16 %v4625
    %v4943 = vunpack.c.l.b16 %v4626
    %v4944 = vunpack.c.h.b16 %v4626
    %v4945 = vunpack.c.l.b16 %v4627
    %v4946 = vunpack.c.h.b16 %v4627
    %v4947 = vunpack.c.l.b16 %v4628
    %v4948 = vunpack.c.h.b16 %v4628
    %v4949 = vunpack.c.l.b16 %v4629
    %v4950 = vunpack.c.h.b16 %v4629
    %v4951 = vunpack.c.l.b16 %v4630
    %v4952 = vunpack.c.h.b16 %v4630
    %v4953 = vunpack.c.l.b16 %v4631
    %v4954 = vunpack.c.h.b16 %v4631
    %v4955 = vunpack.c.l.b16 %v4632
    %v4956 = vunpack.c.h.b16 %v4632
    %v4957 = vunpack.c.l.b16 %v4633
    %v4958 = vunpack.c.h.b16 %v4633
    %v4959 = vunpack.c.l.b16 %v4634
    %v4960 = vunpack.c.h.b16 %v4634
    %v4961 = vunpack.c.l.b16 %v4635
    %v4962 = vunpack.c.h.b16 %v4635
    %v4963 = vunpack.c.l.b16 %v4636
    %v4964 = vunpack.c.h.b16 %v4636
    %v4965 = vunpack.c.l.b16 %v4637
    %v4966 = vunpack.c.h.b16 %v4637
    %v4967 = vunpack.c.l.b16 %v4638
    %v4968 = vunpack.c.h.b16 %v4638
    %v4969 = vunpack.c.l.b16 %v4639
    %v4970 = vunpack.c.h.b16 %v4639
    %v4971 = vunpack.c.l.b16 %v4640
    %v4972 = vunpack.c.h.b16 %v4640
    %v4973 = vunpack.c.l.b16 %v4641
    %v4974 = vunpack.c.h.b16 %v4641
    %v4975 = vunpack.c.l.b16 %v4642
    %v4976 = vunpack.c.h.b16 %v4642
    %v4977 = vunpack.c.l.b16 %v4643
    %v4978 = vunpack.c.h.b16 %v4643
    %v4979 = vunpack.c.l.b16 %v4644
    %v4980 = vunpack.c.h.b16 %v4644
    %v4981 = vunpack.c.l.b16 %v4645
    %v4982 = vunpack.c.h.b16 %v4645
    %v4983 = vunpack.c.l.b16 %v4646
    %v4984 = vunpack.c.h.b16 %v4646
    %v4985 = vunpack.c.l.b16 %v4647
    %v4986 = vunpack.c.h.b16 %v4647
    %v4987 = vunpack.c.l.b16 %v4648
    %v4988 = vunpack.c.h.b16 %v4648
    %v4989 = vunpack.c.l.b16 %v4649
    %v4990 = vunpack.c.h.b16 %v4649
    %v4991 = vunpack.c.l.b16 %v4650
    %v4992 = vunpack.c.h.b16 %v4650
    %v4993 = vunpack.c.l.b16 %v4651
    %v4994 = vunpack.c.h.b16 %v4651
    %v4995 = vunpack.c.l.b16 %v4652
    %v4996 = vunpack.c.h.b16 %v4652
    %v4997 = vunpack.c.l.b16 %v4653
    %v4998 = vunpack.c.h.b16 %v4653
    %v4999 = vunpack.c.l.b16 %v4654
    %v5000 = vunpack.c.h.b16 %v4654
    %v5001 = vunpack.c.l.b16 %v4655
    %v5002 = vunpack.c.h.b16 %v4655
    %v5003 = vunpack.c.l.b16 %v4656
    %v5004 = vunpack.c.h.b16 %v4656
    %v5005 = vunpack.c.l.b16 %v4657
    %v5006 = vunpack.c.h.b16 %v4657
    %v5007 = vunpack.c.l.b16 %v4658
    %v5008 = vunpack.c.h.b16 %v4658
    %v5009 = vunpack.c.l.b16 %v4659
    %v5010 = vunpack.c.h.b16 %v4659
    %v5011 = vunpack.c.l.b16 %v4660
    %v5012 = vunpack.c.h.b16 %v4660
    %v5013 = vunpack.c.l.b16 %v4661
    %v5014 = vunpack.c.h.b16 %v4661
    %v5015 = vunpack.c.l.b16 %v4662
    %v5016 = vunpack.c.h.b16 %v4662
    %v5017 = vunpack.c.l.b16 %v4663
    %v5018 = vunpack.c.h.b16 %v4663
    %v5019 = vunpack.c.l.b16 %v4664
    %v5020 = vunpack.c.h.b16 %v4664
    %v5021 = vunpack.c.l.b16 %v4665
    %v5022 = vunpack.c.h.b16 %v4665
    %v5023 = vunpack.c.l.b16 %v4666
    %v5024 = vunpack.c.h.b16 %v4666
    %v5025 = vunpack.c.l.b16 %v4667
    %v5026 = vunpack.c.h.b16 %v4667
    %v5027 = vunpack.c.l.b16 %v4668
    %v5028 = vunpack.c.h.b16 %v4668
    %v5029 = vunpack.c.l.b16 %v4669
    %v5030 = vunpack.c.h.b16 %v4669
    %v5031 = vunpack.c.l.b16 %v4670
    %v5032 = vunpack.c.h.b16 %v4670
    %v5033 = vunpack.c.l.b16 %v4671
    %v5034 = vunpack.c.h.b16 %v4671
    %v5035 = vunpack.c.l.b16 %v4672
    %v5036 = vunpack.c.h.b16 %v4672
    %v5037 = vunpack.c.l.b16 %v4673
    %v5038 = vunpack.c.h.b16 %v4673
    %v5039 = vunpack.c.l.b16 %v4674
    %v5040 = vunpack.c.h.b16 %v4674
    %v5041 = vunpack.c.l.b16 %v4675
    %v5042 = vunpack.c.h.b16 %v4675
    %v5043 = vunpack.c.l.b16 %v4676
    %v5044 = vunpack.c.h.b16 %v4676
    %v5045 = vunpack.c.l.b16 %v4677
    %v5046 = vunpack.c.h.b16 %v4677
    %v5047 = vunpack.c.l.b16 %v4678
    %v5048 = vunpack.c.h.b16 %v4678
    %v5049 = vunpack.c.l.b16 %v4679
    %v5050 = vunpack.c.h.b16 %v4679
    %v5051 = vunpack.c.l.b16 %v4680
    %v5052 = vunpack.c.h.b16 %v4680
    %v5053 = vunpack.c.l.b16 %v4681
    %v5054 = vunpack.c.h.b16 %v4681
    %v5055 = vunpack.c.l.b16 %v4682
    %v5056 = vunpack.c.h.b16 %v4682
    %v5057 = vunpack.c.l.b16 %v4683
    %v5058 = vunpack.c.h.b16 %v4683
    %v5059 = vunpack.c.l.b16 %v4684
    %v5060 = vunpack.c.h.b16 %v4684
    %v5061 = vunpack.c.l.b16 %v4685
    %v5062 = vunpack.c.h.b16 %v4685
    %v5063 = vunpack.c.l.b16 %v4686
    %v5064 = vunpack.c.h.b16 %v4686
    %v5065 = vunpack.c.l.b16 %v4687
    %v5066 = vunpack.c.h.b16 %v4687
    %v5067 = vunpack.c.l.b16 %v4688
    %v5068 = vunpack.c.h.b16 %v4688
    %v5069 = vunpack.c.l.b16 %v4689
    %v5070 = vunpack.c.h.b16 %v4689
    %v5071 = vunpack.c.l.b16 %v4690
    %v5072 = vunpack.c.h.b16 %v4690
    %v5073 = vunpack.c.l.b16 %v4691
    %v5074 = vunpack.c.h.b16 %v4691
    %v5075 = vunpack.c.l.b16 %v4692
    %v5076 = vunpack.c.h.b16 %v4692
    %v5077 = vunpack.c.l.b16 %v4693
    %v5078 = vunpack.c.h.b16 %v4693
    %v5079 = vunpack.c.l.b16 %v4694
    %v5080 = vunpack.c.h.b16 %v4694
    %v5081 = vunpack.c.l.b16 %v4695
    %v5082 = vunpack.c.h.b16 %v4695
    %v5083 = vunpack.c.l.b16 %v4696
    %v5084 = vunpack.c.h.b16 %v4696
    %v5085 = vunpack.c.l.b16 %v4697
    %v5086 = vunpack.c.h.b16 %v4697
    %v5087 = vunpack.c.l.b16 %v4698
    %v5088 = vunpack.c.h.b16 %v4698
    %v5089 = vunpack.c.l.b16 %v4699
    %v5090 = vunpack.c.h.b16 %v4699
    %v5091 = vunpack.c.l.b16 %v4700
    %v5092 = vunpack.c.h.b16 %v4700
    %v5093 = vunpack.c.l.b16 %v4701
    %v5094 = vunpack.c.h.b16 %v4701
    %v5095 = vunpack.c.l.b16 %v4702
    %v5096 = vunpack.c.h.b16 %v4702
    %v5097 = vpack.c.b16 %v4845, %v4841
    %v5098 = vpack.c.b16 %v4846, %v4842
    %v5099 = vpack.c.b16 %v4847, %v4843
    %v5100 = vpack.c.b16 %v4848, %v4844
    %v5101 = vpack.c.b16 %v4853, %v4849
    %v5102 = vpack.c.b16 %v4854, %v4850
    %v5103 = vpack.c.b16 %v4855, %v4851
    %v5104 = vpack.c.b16 %v4856, %v4852
    %v5105 = vpack.c.b16 %v4861, %v4857
    %v5106 = vpack.c.b16 %v4862, %v4858
    %v5107 = vpack.c.b16 %v4863, %v4859
    %v5108 = vpack.c.b16 %v4864, %v4860
    %v5109 = vpack.c.b16 %v4869, %v4865
    %v5110 = vpack.c.b16 %v4870, %v4866
    %v5111 = vpack.c.b16 %v4871, %v4867
    %v5112 = vpack.c.b16 %v4872, %v4868
    %v5113 = vpack.c.b16 %v4877, %v4873
    %v5114 = vpack.c.b16 %v4878, %v4874
    %v5115 = vpack.c.b16 %v4879, %v4875
    %v5116 = vpack.c.b16 %v4880, %v4876
    %v5117 = vpack.c.b16 %v4885, %v4881
    %v5118 = vpack.c.b16 %v4886, %v4882
    %v5119 = vpack.c.b16 %v4887, %v4883
    %v5120 = vpack.c.b16 %v4888, %v4884
    %v5121 = vpack.c.b16 %v4893, %v4889
    %v5122 = vpack.c.b16 %v4894, %v4890
    %v5123 = vpack.c.b16 %v4895, %v4891
    %v5124 = vpack.c.b16 %v4896, %v4892
    %v5125 = vpack.c.b16 %v4901, %v4897
    %v5126 = vpack.c.b16 %v4902, %v4898
    %v5127 = vpack.c.b16 %v4903, %v4899
    %v5128 = vpack.c.b16 %v4904, %v4900
    %v5129 = vpack.c.b16 %v4909, %v4905
    %v5130 = vpack.c.b16 %v4910, %v4906
    %v5131 = vpack.c.b16 %v4911, %v4907
    %v5132 = vpack.c.b16 %v4912, %v4908
    %v5133 = vpack.c.b16 %v4917, %v4913
    %v5134 = vpack.c.b16 %v4918, %v4914
    %v5135 = vpack.c.b16 %v4919, %v4915
    %v5136 = vpack.c.b16 %v4920, %v4916
    %v5137 = vpack.c.b16 %v4925, %v4921
    %v5138 = vpack.c.b16 %v4926, %v4922
    %v5139 = vpack.c.b16 %v4927, %v4923
    %v5140 = vpack.c.b16 %v4928, %v4924
    %v5141 = vpack.c.b16 %v4933, %v4929
    %v5142 = vpack.c.b16 %v4934, %v4930
    %v5143 = vpack.c.b16 %v4935, %v4931
    %v5144 = vpack.c.b16 %v4936, %v4932
    %v5145 = vpack.c.b16 %v4941, %v4937
    %v5146 = vpack.c.b16 %v4942, %v4938
    %v5147 = vpack.c.b16 %v4943, %v4939
    %v5148 = vpack.c.b16 %v4944, %v4940
    %v5149 = vpack.c.b16 %v4949, %v4945
    %v5150 = vpack.c.b16 %v4950, %v4946
    %v5151 = vpack.c.b16 %v4951, %v4947
    %v5152 = vpack.c.b16 %v4952, %v4948
    %v5153 = vpack.c.b16 %v4957, %v4953
    %v5154 = vpack.c.b16 %v4958, %v4954
    %v5155 = vpack.c.b16 %v4959, %v4955
    %v5156 = vpack.c.b16 %v4960, %v4956
    %v5157 = vpack.c.b16 %v4965, %v4961
    %v5158 = vpack.c.b16 %v4966, %v4962
    %v5159 = vpack.c.b16 %v4967, %v4963
    %v5160 = vpack.c.b16 %v4968, %v4964
    %v5161 = vpack.c.b16 %v4973, %v4969
    %v5162 = vpack.c.b16 %v4974, %v4970
    %v5163 = vpack.c.b16 %v4975, %v4971
    %v5164 = vpack.c.b16 %v4976, %v4972
    %v5165 = vpack.c.b16 %v4981, %v4977
    %v5166 = vpack.c.b16 %v4982, %v4978
    %v5167 = vpack.c.b16 %v4983, %v4979
    %v5168 = vpack.c.b16 %v4984, %v4980
    %v5169 = vpack.c.b16 %v4989, %v4985
    %v5170 = vpack.c.b16 %v4990, %v4986
    %v5171 = vpack.c.b16 %v4991, %v4987
    %v5172 = vpack.c.b16 %v4992, %v4988
    %v5173 = vpack.c.b16 %v4997, %v4993
    %v5174 = vpack.c.b16 %v4998, %v4994
    %v5175 = vpack.c.b16 %v4999, %v4995
    %v5176 = vpack.c.b16 %v5000, %v4996
    %v5177 = vpack.c.b16 %v5005, %v5001
    %v5178 = vpack.c.b16 %v5006, %v5002
    %v5179 = vpack.c.b16 %v5007, %v5003
    %v5180 = vpack.c.b16 %v5008, %v5004
    %v5181 = vpack.c.b16 %v5013, %v5009
    %v5182 = vpack.c.b16 %v5014, %v5010
    %v5183 = vpack.c.b16 %v5015, %v5011
    %v5184 = vpack.c.b16 %v5016, %v5012
    %v5185 = vpack.c.b16 %v5021, %v5017
    %v5186 = vpack.c.b16 %v5022, %v5018
    %v5187 = vpack.c.b16 %v5023, %v5019
    %v5188 = vpack.c.b16 %v5024, %v5020
    %v5189 = vpack.c.b16 %v5029, %v5025
    %v5190 = vpack.c.b16 %v5030, %v5026
    %v5191 = vpack.c.b16 %v5031, %v5027
    %v5192 = vpack.c.b16 %v5032, %v5028
    %v5193 = vpack.c.b16 %v5037, %v5033
    %v5194 = vpack.c.b16 %v5038, %v5034
    %v5195 = vpack.c.b16 %v5039, %v5035
    %v5196 = vpack.c.b16 %v5040, %v5036
    %v5197 = vpack.c.b16 %v5045, %v5041
    %v5198 = vpack.c.b16 %v5046, %v5042
    %v5199 = vpack.c.b16 %v5047, %v5043
    %v5200 = vpack.c.b16 %v5048, %v5044
    %v5201 = vpack.c.b16 %v5053, %v5049
    %v5202 = vpack.c.b16 %v5054, %v5050
    %v5203 = vpack.c.b16 %v5055, %v5051
    %v5204 = vpack.c.b16 %v5056, %v5052
    %v5205 = vpack.c.b16 %v5061, %v5057
    %v5206 = vpack.c.b16 %v5062, %v5058
    %v5207 = vpack.c.b16 %v5063, %v5059
    %v5208 = vpack.c.b16 %v5064, %v5060
    %v5209 = vpack.c.b16 %v5069, %v5065
    %v5210 = vpack.c.b16 %v5070, %v5066
    %v5211 = vpack.c.b16 %v5071, %v5067
    %v5212 = vpack.c.b16 %v5072, %v5068
    %v5213 = vpack.c.b16 %v5077, %v5073
    %v5214 = vpack.c.b16 %v5078, %v5074
    %v5215 = vpack.c.b16 %v5079, %v5075
    %v5216 = vpack.c.b16 %v5080, %v5076
    %v5217 = vpack.c.b16 %v5085, %v5081
    %v5218 = vpack.c.b16 %v5086, %v5082
    %v5219 = vpack.c.b16 %v5087, %v5083
    %v5220 = vpack.c.b16 %v5088, %v5084
    %v5221 = vpack.c.b16 %v5093, %v5089
    %v5222 = vpack.c.b16 %v5094, %v5090
    %v5223 = vpack.c.b16 %v5095, %v5091
    %v5224 = vpack.c.b16 %v5096, %v5092
    %5353 = vmatpush.bf16.msra.mxu0 %v5125
    %5354 = vmatpush.bf16.msra.mxu0 %v5121
    %5355 = vmatpush.bf16.msra.mxu0 %v5117
    %5356 = vmatpush.bf16.msra.mxu0 %v5113
    %5357 = vmatpush.bf16.msra.mxu0 %v5109
    %5358 = vmatpush.bf16.msra.mxu0 %v5105
    %5359 = vmatpush.bf16.msra.mxu0 %v5101
    %5360 = vmatpush.bf16.msra.mxu0 %v5097
    %5361 = vmatmul.bf16.gmra.mxu0 %v4570
    %v5362 = vpop.f32.mrf.mxu0
    %v5363 = vadd.f32 %v4705, %v5362
    %v5364 = vpop.f32.mrf.mxu0
    %v5365 = vadd.f32 %v4705, %v5364
    %5366 = vdwg.mxu0
    %5367 = vmatpush.bf16.msra.mxu0 %v5157
    %5368 = vmatpush.bf16.msra.mxu0 %v5153
    %5369 = vmatpush.bf16.msra.mxu0 %v5149
    %5370 = vmatpush.bf16.msra.mxu0 %v5145
    %5371 = vmatpush.bf16.msra.mxu0 %v5141
    %5372 = vmatpush.bf16.msra.mxu0 %v5137
    %5373 = vmatpush.bf16.msra.mxu0 %v5133
    %5374 = vmatpush.bf16.msra.mxu0 %v5129
    %5375 = vmatmul.bf16.gmra.mxu0 %v4571
    %v5376 = vpop.f32.mrf.mxu0
    %v5377 = vadd.f32 %v5363, %v5376
    %v5378 = vpop.f32.mrf.mxu0
    %v5379 = vadd.f32 %v5365, %v5378
    %5380 = vdwg.mxu0
    %5381 = vmatpush.bf16.msra.mxu0 %v5189
    %5382 = vmatpush.bf16.msra.mxu0 %v5185
    %5383 = vmatpush.bf16.msra.mxu0 %v5181
    %5384 = vmatpush.bf16.msra.mxu0 %v5177
    %5385 = vmatpush.bf16.msra.mxu0 %v5173
    %5386 = vmatpush.bf16.msra.mxu0 %v5169
    %5387 = vmatpush.bf16.msra.mxu0 %v5165
    %5388 = vmatpush.bf16.msra.mxu0 %v5161
    %5389 = vmatmul.bf16.gmra.mxu0 %v4572
    %v5390 = vpop.f32.mrf.mxu0
    %v5391 = vadd.f32 %v5377, %v5390
    %v5392 = vpop.f32.mrf.mxu0
    %v5393 = vadd.f32 %v5379, %v5392
    %5394 = vdwg.mxu0
    %5395 = vmatpush.bf16.msra.mxu0 %v5221
    %5396 = vmatpush.bf16.msra.mxu0 %v5217
    %5397 = vmatpush.bf16.msra.mxu0 %v5213
    %5398 = vmatpush.bf16.msra.mxu0 %v5209
    %5399 = vmatpush.bf16.msra.mxu0 %v5205
    %5400 = vmatpush.bf16.msra.mxu0 %v5201
    %5401 = vmatpush.bf16.msra.mxu0 %v5197
    %5402 = vmatpush.bf16.msra.mxu0 %v5193
    %5403 = vmatmul.bf16.gmra.mxu0 %v4573
    %v5404 = vpop.f32.mrf.mxu0
    %v5405 = vadd.f32 %v5391, %v5404
    %v5406 = vpop.f32.mrf.mxu0
    %v5407 = vadd.f32 %v5393, %v5406
    %5408 = vdwg.mxu0
    %5409 = vmatpush.bf16.msra.mxu0 %v5126
    %5410 = vmatpush.bf16.msra.mxu0 %v5122
    %5411 = vmatpush.bf16.msra.mxu0 %v5118
    %5412 = vmatpush.bf16.msra.mxu0 %v5114
    %5413 = vmatpush.bf16.msra.mxu0 %v5110
    %5414 = vmatpush.bf16.msra.mxu0 %v5106
    %5415 = vmatpush.bf16.msra.mxu0 %v5102
    %5416 = vmatpush.bf16.msra.mxu0 %v5098
    %5417 = vmatmul.bf16.gmra.mxu0 %v4570
    %v5418 = vpop.f32.mrf.mxu0
    %v5419 = vadd.f32 %v4706, %v5418
    %v5420 = vpop.f32.mrf.mxu0
    %v5421 = vadd.f32 %v4706, %v5420
    %5422 = vdwg.mxu0
    %5423 = vmatpush.bf16.msra.mxu0 %v5158
    %5424 = vmatpush.bf16.msra.mxu0 %v5154
    %5425 = vmatpush.bf16.msra.mxu0 %v5150
    %5426 = vmatpush.bf16.msra.mxu0 %v5146
    %5427 = vmatpush.bf16.msra.mxu0 %v5142
    %5428 = vmatpush.bf16.msra.mxu0 %v5138
    %5429 = vmatpush.bf16.msra.mxu0 %v5134
    %5430 = vmatpush.bf16.msra.mxu0 %v5130
    %5431 = vmatmul.bf16.gmra.mxu0 %v4571
    %v5432 = vpop.f32.mrf.mxu0
    %v5433 = vadd.f32 %v5419, %v5432
    %v5434 = vpop.f32.mrf.mxu0
    %v5435 = vadd.f32 %v5421, %v5434
    %5436 = vdwg.mxu0
    %5437 = vmatpush.bf16.msra.mxu0 %v5190
    %5438 = vmatpush.bf16.msra.mxu0 %v5186
    %5439 = vmatpush.bf16.msra.mxu0 %v5182
    %5440 = vmatpush.bf16.msra.mxu0 %v5178
    %5441 = vmatpush.bf16.msra.mxu0 %v5174
    %5442 = vmatpush.bf16.msra.mxu0 %v5170
    %5443 = vmatpush.bf16.msra.mxu0 %v5166
    %5444 = vmatpush.bf16.msra.mxu0 %v5162
    %5445 = vmatmul.bf16.gmra.mxu0 %v4572
    %v5446 = vpop.f32.mrf.mxu0
    %v5447 = vadd.f32 %v5433, %v5446
    %v5448 = vpop.f32.mrf.mxu0
    %v5449 = vadd.f32 %v5435, %v5448
    %5450 = vdwg.mxu0
    %5451 = vmatpush.bf16.msra.mxu0 %v5222
    %5452 = vmatpush.bf16.msra.mxu0 %v5218
    %5453 = vmatpush.bf16.msra.mxu0 %v5214
    %5454 = vmatpush.bf16.msra.mxu0 %v5210
    %5455 = vmatpush.bf16.msra.mxu0 %v5206
    %5456 = vmatpush.bf16.msra.mxu0 %v5202
    %5457 = vmatpush.bf16.msra.mxu0 %v5198
    %5458 = vmatpush.bf16.msra.mxu0 %v5194
    %5459 = vmatmul.bf16.gmra.mxu0 %v4573
    %v5460 = vpop.f32.mrf.mxu0
    %v5461 = vadd.f32 %v5447, %v5460
    %v5462 = vpop.f32.mrf.mxu0
    %v5463 = vadd.f32 %v5449, %v5462
    %5464 = vdwg.mxu0
    %5465 = vmatpush.bf16.msra.mxu0 %v5127
    %5466 = vmatpush.bf16.msra.mxu0 %v5123
    %5467 = vmatpush.bf16.msra.mxu0 %v5119
    %5468 = vmatpush.bf16.msra.mxu0 %v5115
    %5469 = vmatpush.bf16.msra.mxu0 %v5111
    %5470 = vmatpush.bf16.msra.mxu0 %v5107
    %5471 = vmatpush.bf16.msra.mxu0 %v5103
    %5472 = vmatpush.bf16.msra.mxu0 %v5099
    %5473 = vmatmul.bf16.gmra.mxu0 %v4570
    %v5474 = vpop.f32.mrf.mxu0
    %v5475 = vadd.f32 %v4707, %v5474
    %v5476 = vpop.f32.mrf.mxu0
    %v5477 = vadd.f32 %v4707, %v5476
    %5478 = vdwg.mxu0
    %5479 = vmatpush.bf16.msra.mxu0 %v5159
    %5480 = vmatpush.bf16.msra.mxu0 %v5155
    %5481 = vmatpush.bf16.msra.mxu0 %v5151
    %5482 = vmatpush.bf16.msra.mxu0 %v5147
    %5483 = vmatpush.bf16.msra.mxu0 %v5143
    %5484 = vmatpush.bf16.msra.mxu0 %v5139
    %5485 = vmatpush.bf16.msra.mxu0 %v5135
    %5486 = vmatpush.bf16.msra.mxu0 %v5131
    %5487 = vmatmul.bf16.gmra.mxu0 %v4571
    %v5488 = vpop.f32.mrf.mxu0
    %v5489 = vadd.f32 %v5475, %v5488
    %v5490 = vpop.f32.mrf.mxu0
    %v5491 = vadd.f32 %v5477, %v5490
    %5492 = vdwg.mxu0
    %5493 = vmatpush.bf16.msra.mxu0 %v5191
    %5494 = vmatpush.bf16.msra.mxu0 %v5187
    %5495 = vmatpush.bf16.msra.mxu0 %v5183
    %5496 = vmatpush.bf16.msra.mxu0 %v5179
    %5497 = vmatpush.bf16.msra.mxu0 %v5175
    %5498 = vmatpush.bf16.msra.mxu0 %v5171
    %5499 = vmatpush.bf16.msra.mxu0 %v5167
    %5500 = vmatpush.bf16.msra.mxu0 %v5163
    %5501 = vmatmul.bf16.gmra.mxu0 %v4572
    %v5502 = vpop.f32.mrf.mxu0
    %v5503 = vadd.f32 %v5489, %v5502
    %v5504 = vpop.f32.mrf.mxu0
    %v5505 = vadd.f32 %v5491, %v5504
    %5506 = vdwg.mxu0
    %5507 = vmatpush.bf16.msra.mxu0 %v5223
    %5508 = vmatpush.bf16.msra.mxu0 %v5219
    %5509 = vmatpush.bf16.msra.mxu0 %v5215
    %5510 = vmatpush.bf16.msra.mxu0 %v5211
    %5511 = vmatpush.bf16.msra.mxu0 %v5207
    %5512 = vmatpush.bf16.msra.mxu0 %v5203
    %5513 = vmatpush.bf16.msra.mxu0 %v5199
    %5514 = vmatpush.bf16.msra.mxu0 %v5195
    %5515 = vmatmul.bf16.gmra.mxu0 %v4573
    %v5516 = vpop.f32.mrf.mxu0
    %v5517 = vadd.f32 %v5503, %v5516
    %v5518 = vpop.f32.mrf.mxu0
    %v5519 = vadd.f32 %v5505, %v5518
    %5520 = vdwg.mxu0
    %5521 = vmatpush.bf16.msra.mxu0 %v5128
    %5522 = vmatpush.bf16.msra.mxu0 %v5124
    %5523 = vmatpush.bf16.msra.mxu0 %v5120
    %5524 = vmatpush.bf16.msra.mxu0 %v5116
    %5525 = vmatpush.bf16.msra.mxu0 %v5112
    %5526 = vmatpush.bf16.msra.mxu0 %v5108
    %5527 = vmatpush.bf16.msra.mxu0 %v5104
    %5528 = vmatpush.bf16.msra.mxu0 %v5100
    %5529 = vmatmul.bf16.gmra.mxu0 %v4570
    %v5530 = vpop.f32.mrf.mxu0
    %v5531 = vadd.f32 %v4708, %v5530
    %v5532 = vpop.f32.mrf.mxu0
    %v5533 = vadd.f32 %v4708, %v5532
    %5534 = vdwg.mxu0
    %5535 = vmatpush.bf16.msra.mxu0 %v5160
    %5536 = vmatpush.bf16.msra.mxu0 %v5156
    %5537 = vmatpush.bf16.msra.mxu0 %v5152
    %5538 = vmatpush.bf16.msra.mxu0 %v5148
    %5539 = vmatpush.bf16.msra.mxu0 %v5144
    %5540 = vmatpush.bf16.msra.mxu0 %v5140
    %5541 = vmatpush.bf16.msra.mxu0 %v5136
    %5542 = vmatpush.bf16.msra.mxu0 %v5132
    %5543 = vmatmul.bf16.gmra.mxu0 %v4571
    %v5544 = vpop.f32.mrf.mxu0
    %v5545 = vadd.f32 %v5531, %v5544
    %v5546 = vpop.f32.mrf.mxu0
    %v5547 = vadd.f32 %v5533, %v5546
    %5548 = vdwg.mxu0
    %5549 = vmatpush.bf16.msra.mxu0 %v5192
    %5550 = vmatpush.bf16.msra.mxu0 %v5188
    %5551 = vmatpush.bf16.msra.mxu0 %v5184
    %5552 = vmatpush.bf16.msra.mxu0 %v5180
    %5553 = vmatpush.bf16.msra.mxu0 %v5176
    %5554 = vmatpush.bf16.msra.mxu0 %v5172
    %5555 = vmatpush.bf16.msra.mxu0 %v5168
    %5556 = vmatpush.bf16.msra.mxu0 %v5164
    %5557 = vmatmul.bf16.gmra.mxu0 %v4572
    %v5558 = vpop.f32.mrf.mxu0
    %v5559 = vadd.f32 %v5545, %v5558
    %v5560 = vpop.f32.mrf.mxu0
    %v5561 = vadd.f32 %v5547, %v5560
    %5562 = vdwg.mxu0
    %5563 = vmatpush.bf16.msra.mxu0 %v5224
    %5564 = vmatpush.bf16.msra.mxu0 %v5220
    %5565 = vmatpush.bf16.msra.mxu0 %v5216
    %5566 = vmatpush.bf16.msra.mxu0 %v5212
    %5567 = vmatpush.bf16.msra.mxu0 %v5208
    %5568 = vmatpush.bf16.msra.mxu0 %v5204
    %5569 = vmatpush.bf16.msra.mxu0 %v5200
    %5570 = vmatpush.bf16.msra.mxu0 %v5196
    %5571 = vmatmul.bf16.gmra.mxu0 %v4573
    %v5572 = vpop.f32.mrf.mxu0
    %v5573 = vadd.f32 %v5559, %v5572
    %v5574 = vpop.f32.mrf.mxu0
    %v5575 = vadd.f32 %v5561, %v5574
    %5576 = vdwg.mxu0
    %v5577 = vmax.f32 %v5405, 0.0
    %v5578 = vmax.f32 %v5461, 0.0
    %v5579 = vmax.f32 %v5517, 0.0
    %v5580 = vmax.f32 %v5573, 0.0
    %v5581 = vmax.f32 %v5407, 0.0
    %v5582 = vmax.f32 %v5463, 0.0
    %v5583 = vmax.f32 %v5519, 0.0
    %v5584 = vmax.f32 %v5575, 0.0
    %v5585 = vpack.c.bf16 %v5581, %v5577
    %v5586 = vpack.c.bf16 %v5582, %v5578
    %v5587 = vpack.c.bf16 %v5583, %v5579
    %v5588 = vpack.c.bf16 %v5584, %v5580
    %s5589 = scalar_lea.vmem [#allocation3], 2048
    %v5590 = vld [vmem:[%s5589] sm:$0xff]
    %v5591 = vld [vmem:[%s5589 + $0x8] sm:$0xff]
    %v5592 = vld [vmem:[%s5589 + $0x10] sm:$0xff]
    %v5593 = vld [vmem:[%s5589 + $0x18] sm:$0xff]
    %v5594 = vld [vmem:[%s5589 + $0x20] sm:$0xff]
    %v5595 = vld [vmem:[%s5589 + $0x28] sm:$0xff]
    %v5596 = vld [vmem:[%s5589 + $0x30] sm:$0xff]
    %v5597 = vld [vmem:[%s5589 + $0x38] sm:$0xff]
    %v5598 = vld [vmem:[%s5589 + $0x40] sm:$0xff]
    %v5599 = vld [vmem:[%s5589 + $0x48] sm:$0xff]
    %v5600 = vld [vmem:[%s5589 + $0x50] sm:$0xff]
    %v5601 = vld [vmem:[%s5589 + $0x58] sm:$0xff]
    %v5602 = vld [vmem:[%s5589 + $0x60] sm:$0xff]
    %v5603 = vld [vmem:[%s5589 + $0x68] sm:$0xff]
    %v5604 = vld [vmem:[%s5589 + $0x70] sm:$0xff]
    %v5605 = vld [vmem:[%s5589 + $0x78] sm:$0xff]
    %v5606 = vld [vmem:[%s5589 + $0x80] sm:$0xff]
    %v5607 = vld [vmem:[%s5589 + $0x88] sm:$0xff]
    %v5608 = vld [vmem:[%s5589 + $0x90] sm:$0xff]
    %v5609 = vld [vmem:[%s5589 + $0x98] sm:$0xff]
    %v5610 = vld [vmem:[%s5589 + $0xa0] sm:$0xff]
    %v5611 = vld [vmem:[%s5589 + $0xa8] sm:$0xff]
    %v5612 = vld [vmem:[%s5589 + $0xb0] sm:$0xff]
    %v5613 = vld [vmem:[%s5589 + $0xb8] sm:$0xff]
    %v5614 = vld [vmem:[%s5589 + $0xc0] sm:$0xff]
    %v5615 = vld [vmem:[%s5589 + $0xc8] sm:$0xff]
    %v5616 = vld [vmem:[%s5589 + $0xd0] sm:$0xff]
    %v5617 = vld [vmem:[%s5589 + $0xd8] sm:$0xff]
    %v5618 = vld [vmem:[%s5589 + $0xe0] sm:$0xff]
    %v5619 = vld [vmem:[%s5589 + $0xe8] sm:$0xff]
    %v5620 = vld [vmem:[%s5589 + $0xf0] sm:$0xff]
    %v5621 = vld [vmem:[%s5589 + $0xf8] sm:$0xff]
    %v5622 = vld [vmem:[%s5589 + $0x100] sm:$0xff]
    %v5623 = vld [vmem:[%s5589 + $0x108] sm:$0xff]
    %v5624 = vld [vmem:[%s5589 + $0x110] sm:$0xff]
    %v5625 = vld [vmem:[%s5589 + $0x118] sm:$0xff]
    %v5626 = vld [vmem:[%s5589 + $0x120] sm:$0xff]
    %v5627 = vld [vmem:[%s5589 + $0x128] sm:$0xff]
    %v5628 = vld [vmem:[%s5589 + $0x130] sm:$0xff]
    %v5629 = vld [vmem:[%s5589 + $0x138] sm:$0xff]
    %v5630 = vld [vmem:[%s5589 + $0x140] sm:$0xff]
    %v5631 = vld [vmem:[%s5589 + $0x148] sm:$0xff]
    %v5632 = vld [vmem:[%s5589 + $0x150] sm:$0xff]
    %v5633 = vld [vmem:[%s5589 + $0x158] sm:$0xff]
    %v5634 = vld [vmem:[%s5589 + $0x160] sm:$0xff]
    %v5635 = vld [vmem:[%s5589 + $0x168] sm:$0xff]
    %v5636 = vld [vmem:[%s5589 + $0x170] sm:$0xff]
    %v5637 = vld [vmem:[%s5589 + $0x178] sm:$0xff]
    %v5638 = vld [vmem:[%s5589 + $0x180] sm:$0xff]
    %v5639 = vld [vmem:[%s5589 + $0x188] sm:$0xff]
    %v5640 = vld [vmem:[%s5589 + $0x190] sm:$0xff]
    %v5641 = vld [vmem:[%s5589 + $0x198] sm:$0xff]
    %v5642 = vld [vmem:[%s5589 + $0x1a0] sm:$0xff]
    %v5643 = vld [vmem:[%s5589 + $0x1a8] sm:$0xff]
    %v5644 = vld [vmem:[%s5589 + $0x1b0] sm:$0xff]
    %v5645 = vld [vmem:[%s5589 + $0x1b8] sm:$0xff]
    %v5646 = vld [vmem:[%s5589 + $0x1c0] sm:$0xff]
    %v5647 = vld [vmem:[%s5589 + $0x1c8] sm:$0xff]
    %v5648 = vld [vmem:[%s5589 + $0x1d0] sm:$0xff]
    %v5649 = vld [vmem:[%s5589 + $0x1d8] sm:$0xff]
    %v5650 = vld [vmem:[%s5589 + $0x1e0] sm:$0xff]
    %v5651 = vld [vmem:[%s5589 + $0x1e8] sm:$0xff]
    %v5652 = vld [vmem:[%s5589 + $0x1f0] sm:$0xff]
    %v5653 = vld [vmem:[%s5589 + $0x1f8] sm:$0xff]
    %v5654 = vld [vmem:[%s5589 + $0x200] sm:$0xff]
    %v5655 = vld [vmem:[%s5589 + $0x208] sm:$0xff]
    %v5656 = vld [vmem:[%s5589 + $0x210] sm:$0xff]
    %v5657 = vld [vmem:[%s5589 + $0x218] sm:$0xff]
    %v5658 = vld [vmem:[%s5589 + $0x220] sm:$0xff]
    %v5659 = vld [vmem:[%s5589 + $0x228] sm:$0xff]
    %v5660 = vld [vmem:[%s5589 + $0x230] sm:$0xff]
    %v5661 = vld [vmem:[%s5589 + $0x238] sm:$0xff]
    %v5662 = vld [vmem:[%s5589 + $0x240] sm:$0xff]
    %v5663 = vld [vmem:[%s5589 + $0x248] sm:$0xff]
    %v5664 = vld [vmem:[%s5589 + $0x250] sm:$0xff]
    %v5665 = vld [vmem:[%s5589 + $0x258] sm:$0xff]
    %v5666 = vld [vmem:[%s5589 + $0x260] sm:$0xff]
    %v5667 = vld [vmem:[%s5589 + $0x268] sm:$0xff]
    %v5668 = vld [vmem:[%s5589 + $0x270] sm:$0xff]
    %v5669 = vld [vmem:[%s5589 + $0x278] sm:$0xff]
    %v5670 = vld [vmem:[%s5589 + $0x280] sm:$0xff]
    %v5671 = vld [vmem:[%s5589 + $0x288] sm:$0xff]
    %v5672 = vld [vmem:[%s5589 + $0x290] sm:$0xff]
    %v5673 = vld [vmem:[%s5589 + $0x298] sm:$0xff]
    %v5674 = vld [vmem:[%s5589 + $0x2a0] sm:$0xff]
    %v5675 = vld [vmem:[%s5589 + $0x2a8] sm:$0xff]
    %v5676 = vld [vmem:[%s5589 + $0x2b0] sm:$0xff]
    %v5677 = vld [vmem:[%s5589 + $0x2b8] sm:$0xff]
    %v5678 = vld [vmem:[%s5589 + $0x2c0] sm:$0xff]
    %v5679 = vld [vmem:[%s5589 + $0x2c8] sm:$0xff]
    %v5680 = vld [vmem:[%s5589 + $0x2d0] sm:$0xff]
    %v5681 = vld [vmem:[%s5589 + $0x2d8] sm:$0xff]
    %v5682 = vld [vmem:[%s5589 + $0x2e0] sm:$0xff]
    %v5683 = vld [vmem:[%s5589 + $0x2e8] sm:$0xff]
    %v5684 = vld [vmem:[%s5589 + $0x2f0] sm:$0xff]
    %v5685 = vld [vmem:[%s5589 + $0x2f8] sm:$0xff]
    %v5686 = vld [vmem:[%s5589 + $0x300] sm:$0xff]
    %v5687 = vld [vmem:[%s5589 + $0x308] sm:$0xff]
    %v5688 = vld [vmem:[%s5589 + $0x310] sm:$0xff]
    %v5689 = vld [vmem:[%s5589 + $0x318] sm:$0xff]
    %v5690 = vld [vmem:[%s5589 + $0x320] sm:$0xff]
    %v5691 = vld [vmem:[%s5589 + $0x328] sm:$0xff]
    %v5692 = vld [vmem:[%s5589 + $0x330] sm:$0xff]
    %v5693 = vld [vmem:[%s5589 + $0x338] sm:$0xff]
    %v5694 = vld [vmem:[%s5589 + $0x340] sm:$0xff]
    %v5695 = vld [vmem:[%s5589 + $0x348] sm:$0xff]
    %v5696 = vld [vmem:[%s5589 + $0x350] sm:$0xff]
    %v5697 = vld [vmem:[%s5589 + $0x358] sm:$0xff]
    %v5698 = vld [vmem:[%s5589 + $0x360] sm:$0xff]
    %v5699 = vld [vmem:[%s5589 + $0x368] sm:$0xff]
    %v5700 = vld [vmem:[%s5589 + $0x370] sm:$0xff]
    %v5701 = vld [vmem:[%s5589 + $0x378] sm:$0xff]
    %v5702 = vld [vmem:[%s5589 + $0x380] sm:$0xff]
    %v5703 = vld [vmem:[%s5589 + $0x388] sm:$0xff]
    %v5704 = vld [vmem:[%s5589 + $0x390] sm:$0xff]
    %v5705 = vld [vmem:[%s5589 + $0x398] sm:$0xff]
    %v5706 = vld [vmem:[%s5589 + $0x3a0] sm:$0xff]
    %v5707 = vld [vmem:[%s5589 + $0x3a8] sm:$0xff]
    %v5708 = vld [vmem:[%s5589 + $0x3b0] sm:$0xff]
    %v5709 = vld [vmem:[%s5589 + $0x3b8] sm:$0xff]
    %v5710 = vld [vmem:[%s5589 + $0x3c0] sm:$0xff]
    %v5711 = vld [vmem:[%s5589 + $0x3c8] sm:$0xff]
    %v5712 = vld [vmem:[%s5589 + $0x3d0] sm:$0xff]
    %v5713 = vld [vmem:[%s5589 + $0x3d8] sm:$0xff]
    %v5714 = vld [vmem:[%s5589 + $0x3e0] sm:$0xff]
    %v5715 = vld [vmem:[%s5589 + $0x3e8] sm:$0xff]
    %v5716 = vld [vmem:[%s5589 + $0x3f0] sm:$0xff]
    %v5717 = vld [vmem:[%s5589 + $0x3f8] sm:$0xff]
    %v5718 = vld [vmem:[#allocation17] sm:$0xf]
    %v5720 = vperm.slane %v5718, 0
    %v5721 = vperm.slane %v5718, 1
    %v5722 = vperm.slane %v5718, 2
    %v5723 = vperm.slane %v5718, 3
    %v5856 = vunpack.c.l.b16 %v5590
    %v5857 = vunpack.c.h.b16 %v5590
    %v5858 = vunpack.c.l.b16 %v5591
    %v5859 = vunpack.c.h.b16 %v5591
    %v5860 = vunpack.c.l.b16 %v5592
    %v5861 = vunpack.c.h.b16 %v5592
    %v5862 = vunpack.c.l.b16 %v5593
    %v5863 = vunpack.c.h.b16 %v5593
    %v5864 = vunpack.c.l.b16 %v5594
    %v5865 = vunpack.c.h.b16 %v5594
    %v5866 = vunpack.c.l.b16 %v5595
    %v5867 = vunpack.c.h.b16 %v5595
    %v5868 = vunpack.c.l.b16 %v5596
    %v5869 = vunpack.c.h.b16 %v5596
    %v5870 = vunpack.c.l.b16 %v5597
    %v5871 = vunpack.c.h.b16 %v5597
    %v5872 = vunpack.c.l.b16 %v5598
    %v5873 = vunpack.c.h.b16 %v5598
    %v5874 = vunpack.c.l.b16 %v5599
    %v5875 = vunpack.c.h.b16 %v5599
    %v5876 = vunpack.c.l.b16 %v5600
    %v5877 = vunpack.c.h.b16 %v5600
    %v5878 = vunpack.c.l.b16 %v5601
    %v5879 = vunpack.c.h.b16 %v5601
    %v5880 = vunpack.c.l.b16 %v5602
    %v5881 = vunpack.c.h.b16 %v5602
    %v5882 = vunpack.c.l.b16 %v5603
    %v5883 = vunpack.c.h.b16 %v5603
    %v5884 = vunpack.c.l.b16 %v5604
    %v5885 = vunpack.c.h.b16 %v5604
    %v5886 = vunpack.c.l.b16 %v5605
    %v5887 = vunpack.c.h.b16 %v5605
    %v5888 = vunpack.c.l.b16 %v5606
    %v5889 = vunpack.c.h.b16 %v5606
    %v5890 = vunpack.c.l.b16 %v5607
    %v5891 = vunpack.c.h.b16 %v5607
    %v5892 = vunpack.c.l.b16 %v5608
    %v5893 = vunpack.c.h.b16 %v5608
    %v5894 = vunpack.c.l.b16 %v5609
    %v5895 = vunpack.c.h.b16 %v5609
    %v5896 = vunpack.c.l.b16 %v5610
    %v5897 = vunpack.c.h.b16 %v5610
    %v5898 = vunpack.c.l.b16 %v5611
    %v5899 = vunpack.c.h.b16 %v5611
    %v5900 = vunpack.c.l.b16 %v5612
    %v5901 = vunpack.c.h.b16 %v5612
    %v5902 = vunpack.c.l.b16 %v5613
    %v5903 = vunpack.c.h.b16 %v5613
    %v5904 = vunpack.c.l.b16 %v5614
    %v5905 = vunpack.c.h.b16 %v5614
    %v5906 = vunpack.c.l.b16 %v5615
    %v5907 = vunpack.c.h.b16 %v5615
    %v5908 = vunpack.c.l.b16 %v5616
    %v5909 = vunpack.c.h.b16 %v5616
    %v5910 = vunpack.c.l.b16 %v5617
    %v5911 = vunpack.c.h.b16 %v5617
    %v5912 = vunpack.c.l.b16 %v5618
    %v5913 = vunpack.c.h.b16 %v5618
    %v5914 = vunpack.c.l.b16 %v5619
    %v5915 = vunpack.c.h.b16 %v5619
    %v5916 = vunpack.c.l.b16 %v5620
    %v5917 = vunpack.c.h.b16 %v5620
    %v5918 = vunpack.c.l.b16 %v5621
    %v5919 = vunpack.c.h.b16 %v5621
    %v5920 = vunpack.c.l.b16 %v5622
    %v5921 = vunpack.c.h.b16 %v5622
    %v5922 = vunpack.c.l.b16 %v5623
    %v5923 = vunpack.c.h.b16 %v5623
    %v5924 = vunpack.c.l.b16 %v5624
    %v5925 = vunpack.c.h.b16 %v5624
    %v5926 = vunpack.c.l.b16 %v5625
    %v5927 = vunpack.c.h.b16 %v5625
    %v5928 = vunpack.c.l.b16 %v5626
    %v5929 = vunpack.c.h.b16 %v5626
    %v5930 = vunpack.c.l.b16 %v5627
    %v5931 = vunpack.c.h.b16 %v5627
    %v5932 = vunpack.c.l.b16 %v5628
    %v5933 = vunpack.c.h.b16 %v5628
    %v5934 = vunpack.c.l.b16 %v5629
    %v5935 = vunpack.c.h.b16 %v5629
    %v5936 = vunpack.c.l.b16 %v5630
    %v5937 = vunpack.c.h.b16 %v5630
    %v5938 = vunpack.c.l.b16 %v5631
    %v5939 = vunpack.c.h.b16 %v5631
    %v5940 = vunpack.c.l.b16 %v5632
    %v5941 = vunpack.c.h.b16 %v5632
    %v5942 = vunpack.c.l.b16 %v5633
    %v5943 = vunpack.c.h.b16 %v5633
    %v5944 = vunpack.c.l.b16 %v5634
    %v5945 = vunpack.c.h.b16 %v5634
    %v5946 = vunpack.c.l.b16 %v5635
    %v5947 = vunpack.c.h.b16 %v5635
    %v5948 = vunpack.c.l.b16 %v5636
    %v5949 = vunpack.c.h.b16 %v5636
    %v5950 = vunpack.c.l.b16 %v5637
    %v5951 = vunpack.c.h.b16 %v5637
    %v5952 = vunpack.c.l.b16 %v5638
    %v5953 = vunpack.c.h.b16 %v5638
    %v5954 = vunpack.c.l.b16 %v5639
    %v5955 = vunpack.c.h.b16 %v5639
    %v5956 = vunpack.c.l.b16 %v5640
    %v5957 = vunpack.c.h.b16 %v5640
    %v5958 = vunpack.c.l.b16 %v5641
    %v5959 = vunpack.c.h.b16 %v5641
    %v5960 = vunpack.c.l.b16 %v5642
    %v5961 = vunpack.c.h.b16 %v5642
    %v5962 = vunpack.c.l.b16 %v5643
    %v5963 = vunpack.c.h.b16 %v5643
    %v5964 = vunpack.c.l.b16 %v5644
    %v5965 = vunpack.c.h.b16 %v5644
    %v5966 = vunpack.c.l.b16 %v5645
    %v5967 = vunpack.c.h.b16 %v5645
    %v5968 = vunpack.c.l.b16 %v5646
    %v5969 = vunpack.c.h.b16 %v5646
    %v5970 = vunpack.c.l.b16 %v5647
    %v5971 = vunpack.c.h.b16 %v5647
    %v5972 = vunpack.c.l.b16 %v5648
    %v5973 = vunpack.c.h.b16 %v5648
    %v5974 = vunpack.c.l.b16 %v5649
    %v5975 = vunpack.c.h.b16 %v5649
    %v5976 = vunpack.c.l.b16 %v5650
    %v5977 = vunpack.c.h.b16 %v5650
    %v5978 = vunpack.c.l.b16 %v5651
    %v5979 = vunpack.c.h.b16 %v5651
    %v5980 = vunpack.c.l.b16 %v5652
    %v5981 = vunpack.c.h.b16 %v5652
    %v5982 = vunpack.c.l.b16 %v5653
    %v5983 = vunpack.c.h.b16 %v5653
    %v5984 = vunpack.c.l.b16 %v5654
    %v5985 = vunpack.c.h.b16 %v5654
    %v5986 = vunpack.c.l.b16 %v5655
    %v5987 = vunpack.c.h.b16 %v5655
    %v5988 = vunpack.c.l.b16 %v5656
    %v5989 = vunpack.c.h.b16 %v5656
    %v5990 = vunpack.c.l.b16 %v5657
    %v5991 = vunpack.c.h.b16 %v5657
    %v5992 = vunpack.c.l.b16 %v5658
    %v5993 = vunpack.c.h.b16 %v5658
    %v5994 = vunpack.c.l.b16 %v5659
    %v5995 = vunpack.c.h.b16 %v5659
    %v5996 = vunpack.c.l.b16 %v5660
    %v5997 = vunpack.c.h.b16 %v5660
    %v5998 = vunpack.c.l.b16 %v5661
    %v5999 = vunpack.c.h.b16 %v5661
    %v6000 = vunpack.c.l.b16 %v5662
    %v6001 = vunpack.c.h.b16 %v5662
    %v6002 = vunpack.c.l.b16 %v5663
    %v6003 = vunpack.c.h.b16 %v5663
    %v6004 = vunpack.c.l.b16 %v5664
    %v6005 = vunpack.c.h.b16 %v5664
    %v6006 = vunpack.c.l.b16 %v5665
    %v6007 = vunpack.c.h.b16 %v5665
    %v6008 = vunpack.c.l.b16 %v5666
    %v6009 = vunpack.c.h.b16 %v5666
    %v6010 = vunpack.c.l.b16 %v5667
    %v6011 = vunpack.c.h.b16 %v5667
    %v6012 = vunpack.c.l.b16 %v5668
    %v6013 = vunpack.c.h.b16 %v5668
    %v6014 = vunpack.c.l.b16 %v5669
    %v6015 = vunpack.c.h.b16 %v5669
    %v6016 = vunpack.c.l.b16 %v5670
    %v6017 = vunpack.c.h.b16 %v5670
    %v6018 = vunpack.c.l.b16 %v5671
    %v6019 = vunpack.c.h.b16 %v5671
    %v6020 = vunpack.c.l.b16 %v5672
    %v6021 = vunpack.c.h.b16 %v5672
    %v6022 = vunpack.c.l.b16 %v5673
    %v6023 = vunpack.c.h.b16 %v5673
    %v6024 = vunpack.c.l.b16 %v5674
    %v6025 = vunpack.c.h.b16 %v5674
    %v6026 = vunpack.c.l.b16 %v5675
    %v6027 = vunpack.c.h.b16 %v5675
    %v6028 = vunpack.c.l.b16 %v5676
    %v6029 = vunpack.c.h.b16 %v5676
    %v6030 = vunpack.c.l.b16 %v5677
    %v6031 = vunpack.c.h.b16 %v5677
    %v6032 = vunpack.c.l.b16 %v5678
    %v6033 = vunpack.c.h.b16 %v5678
    %v6034 = vunpack.c.l.b16 %v5679
    %v6035 = vunpack.c.h.b16 %v5679
    %v6036 = vunpack.c.l.b16 %v5680
    %v6037 = vunpack.c.h.b16 %v5680
    %v6038 = vunpack.c.l.b16 %v5681
    %v6039 = vunpack.c.h.b16 %v5681
    %v6040 = vunpack.c.l.b16 %v5682
    %v6041 = vunpack.c.h.b16 %v5682
    %v6042 = vunpack.c.l.b16 %v5683
    %v6043 = vunpack.c.h.b16 %v5683
    %v6044 = vunpack.c.l.b16 %v5684
    %v6045 = vunpack.c.h.b16 %v5684
    %v6046 = vunpack.c.l.b16 %v5685
    %v6047 = vunpack.c.h.b16 %v5685
    %v6048 = vunpack.c.l.b16 %v5686
    %v6049 = vunpack.c.h.b16 %v5686
    %v6050 = vunpack.c.l.b16 %v5687
    %v6051 = vunpack.c.h.b16 %v5687
    %v6052 = vunpack.c.l.b16 %v5688
    %v6053 = vunpack.c.h.b16 %v5688
    %v6054 = vunpack.c.l.b16 %v5689
    %v6055 = vunpack.c.h.b16 %v5689
    %v6056 = vunpack.c.l.b16 %v5690
    %v6057 = vunpack.c.h.b16 %v5690
    %v6058 = vunpack.c.l.b16 %v5691
    %v6059 = vunpack.c.h.b16 %v5691
    %v6060 = vunpack.c.l.b16 %v5692
    %v6061 = vunpack.c.h.b16 %v5692
    %v6062 = vunpack.c.l.b16 %v5693
    %v6063 = vunpack.c.h.b16 %v5693
    %v6064 = vunpack.c.l.b16 %v5694
    %v6065 = vunpack.c.h.b16 %v5694
    %v6066 = vunpack.c.l.b16 %v5695
    %v6067 = vunpack.c.h.b16 %v5695
    %v6068 = vunpack.c.l.b16 %v5696
    %v6069 = vunpack.c.h.b16 %v5696
    %v6070 = vunpack.c.l.b16 %v5697
    %v6071 = vunpack.c.h.b16 %v5697
    %v6072 = vunpack.c.l.b16 %v5698
    %v6073 = vunpack.c.h.b16 %v5698
    %v6074 = vunpack.c.l.b16 %v5699
    %v6075 = vunpack.c.h.b16 %v5699
    %v6076 = vunpack.c.l.b16 %v5700
    %v6077 = vunpack.c.h.b16 %v5700
    %v6078 = vunpack.c.l.b16 %v5701
    %v6079 = vunpack.c.h.b16 %v5701
    %v6080 = vunpack.c.l.b16 %v5702
    %v6081 = vunpack.c.h.b16 %v5702
    %v6082 = vunpack.c.l.b16 %v5703
    %v6083 = vunpack.c.h.b16 %v5703
    %v6084 = vunpack.c.l.b16 %v5704
    %v6085 = vunpack.c.h.b16 %v5704
    %v6086 = vunpack.c.l.b16 %v5705
    %v6087 = vunpack.c.h.b16 %v5705
    %v6088 = vunpack.c.l.b16 %v5706
    %v6089 = vunpack.c.h.b16 %v5706
    %v6090 = vunpack.c.l.b16 %v5707
    %v6091 = vunpack.c.h.b16 %v5707
    %v6092 = vunpack.c.l.b16 %v5708
    %v6093 = vunpack.c.h.b16 %v5708
    %v6094 = vunpack.c.l.b16 %v5709
    %v6095 = vunpack.c.h.b16 %v5709
    %v6096 = vunpack.c.l.b16 %v5710
    %v6097 = vunpack.c.h.b16 %v5710
    %v6098 = vunpack.c.l.b16 %v5711
    %v6099 = vunpack.c.h.b16 %v5711
    %v6100 = vunpack.c.l.b16 %v5712
    %v6101 = vunpack.c.h.b16 %v5712
    %v6102 = vunpack.c.l.b16 %v5713
    %v6103 = vunpack.c.h.b16 %v5713
    %v6104 = vunpack.c.l.b16 %v5714
    %v6105 = vunpack.c.h.b16 %v5714
    %v6106 = vunpack.c.l.b16 %v5715
    %v6107 = vunpack.c.h.b16 %v5715
    %v6108 = vunpack.c.l.b16 %v5716
    %v6109 = vunpack.c.h.b16 %v5716
    %v6110 = vunpack.c.l.b16 %v5717
    %v6111 = vunpack.c.h.b16 %v5717
    %v6112 = vpack.c.b16 %v5860, %v5856
    %v6113 = vpack.c.b16 %v5861, %v5857
    %v6114 = vpack.c.b16 %v5862, %v5858
    %v6115 = vpack.c.b16 %v5863, %v5859
    %v6116 = vpack.c.b16 %v5868, %v5864
    %v6117 = vpack.c.b16 %v5869, %v5865
    %v6118 = vpack.c.b16 %v5870, %v5866
    %v6119 = vpack.c.b16 %v5871, %v5867
    %v6120 = vpack.c.b16 %v5876, %v5872
    %v6121 = vpack.c.b16 %v5877, %v5873
    %v6122 = vpack.c.b16 %v5878, %v5874
    %v6123 = vpack.c.b16 %v5879, %v5875
    %v6124 = vpack.c.b16 %v5884, %v5880
    %v6125 = vpack.c.b16 %v5885, %v5881
    %v6126 = vpack.c.b16 %v5886, %v5882
    %v6127 = vpack.c.b16 %v5887, %v5883
    %v6128 = vpack.c.b16 %v5892, %v5888
    %v6129 = vpack.c.b16 %v5893, %v5889
    %v6130 = vpack.c.b16 %v5894, %v5890
    %v6131 = vpack.c.b16 %v5895, %v5891
    %v6132 = vpack.c.b16 %v5900, %v5896
    %v6133 = vpack.c.b16 %v5901, %v5897
    %v6134 = vpack.c.b16 %v5902, %v5898
    %v6135 = vpack.c.b16 %v5903, %v5899
    %v6136 = vpack.c.b16 %v5908, %v5904
    %v6137 = vpack.c.b16 %v5909, %v5905
    %v6138 = vpack.c.b16 %v5910, %v5906
    %v6139 = vpack.c.b16 %v5911, %v5907
    %v6140 = vpack.c.b16 %v5916, %v5912
    %v6141 = vpack.c.b16 %v5917, %v5913
    %v6142 = vpack.c.b16 %v5918, %v5914
    %v6143 = vpack.c.b16 %v5919, %v5915
    %v6144 = vpack.c.b16 %v5924, %v5920
    %v6145 = vpack.c.b16 %v5925, %v5921
    %v6146 = vpack.c.b16 %v5926, %v5922
    %v6147 = vpack.c.b16 %v5927, %v5923
    %v6148 = vpack.c.b16 %v5932, %v5928
    %v6149 = vpack.c.b16 %v5933, %v5929
    %v6150 = vpack.c.b16 %v5934, %v5930
    %v6151 = vpack.c.b16 %v5935, %v5931
    %v6152 = vpack.c.b16 %v5940, %v5936
    %v6153 = vpack.c.b16 %v5941, %v5937
    %v6154 = vpack.c.b16 %v5942, %v5938
    %v6155 = vpack.c.b16 %v5943, %v5939
    %v6156 = vpack.c.b16 %v5948, %v5944
    %v6157 = vpack.c.b16 %v5949, %v5945
    %v6158 = vpack.c.b16 %v5950, %v5946
    %v6159 = vpack.c.b16 %v5951, %v5947
    %v6160 = vpack.c.b16 %v5956, %v5952
    %v6161 = vpack.c.b16 %v5957, %v5953
    %v6162 = vpack.c.b16 %v5958, %v5954
    %v6163 = vpack.c.b16 %v5959, %v5955
    %v6164 = vpack.c.b16 %v5964, %v5960
    %v6165 = vpack.c.b16 %v5965, %v5961
    %v6166 = vpack.c.b16 %v5966, %v5962
    %v6167 = vpack.c.b16 %v5967, %v5963
    %v6168 = vpack.c.b16 %v5972, %v5968
    %v6169 = vpack.c.b16 %v5973, %v5969
    %v6170 = vpack.c.b16 %v5974, %v5970
    %v6171 = vpack.c.b16 %v5975, %v5971
    %v6172 = vpack.c.b16 %v5980, %v5976
    %v6173 = vpack.c.b16 %v5981, %v5977
    %v6174 = vpack.c.b16 %v5982, %v5978
    %v6175 = vpack.c.b16 %v5983, %v5979
    %v6176 = vpack.c.b16 %v5988, %v5984
    %v6177 = vpack.c.b16 %v5989, %v5985
    %v6178 = vpack.c.b16 %v5990, %v5986
    %v6179 = vpack.c.b16 %v5991, %v5987
    %v6180 = vpack.c.b16 %v5996, %v5992
    %v6181 = vpack.c.b16 %v5997, %v5993
    %v6182 = vpack.c.b16 %v5998, %v5994
    %v6183 = vpack.c.b16 %v5999, %v5995
    %v6184 = vpack.c.b16 %v6004, %v6000
    %v6185 = vpack.c.b16 %v6005, %v6001
    %v6186 = vpack.c.b16 %v6006, %v6002
    %v6187 = vpack.c.b16 %v6007, %v6003
    %v6188 = vpack.c.b16 %v6012, %v6008
    %v6189 = vpack.c.b16 %v6013, %v6009
    %v6190 = vpack.c.b16 %v6014, %v6010
    %v6191 = vpack.c.b16 %v6015, %v6011
    %v6192 = vpack.c.b16 %v6020, %v6016
    %v6193 = vpack.c.b16 %v6021, %v6017
    %v6194 = vpack.c.b16 %v6022, %v6018
    %v6195 = vpack.c.b16 %v6023, %v6019
    %v6196 = vpack.c.b16 %v6028, %v6024
    %v6197 = vpack.c.b16 %v6029, %v6025
    %v6198 = vpack.c.b16 %v6030, %v6026
    %v6199 = vpack.c.b16 %v6031, %v6027
    %v6200 = vpack.c.b16 %v6036, %v6032
    %v6201 = vpack.c.b16 %v6037, %v6033
    %v6202 = vpack.c.b16 %v6038, %v6034
    %v6203 = vpack.c.b16 %v6039, %v6035
    %v6204 = vpack.c.b16 %v6044, %v6040
    %v6205 = vpack.c.b16 %v6045, %v6041
    %v6206 = vpack.c.b16 %v6046, %v6042
    %v6207 = vpack.c.b16 %v6047, %v6043
    %v6208 = vpack.c.b16 %v6052, %v6048
    %v6209 = vpack.c.b16 %v6053, %v6049
    %v6210 = vpack.c.b16 %v6054, %v6050
    %v6211 = vpack.c.b16 %v6055, %v6051
    %v6212 = vpack.c.b16 %v6060, %v6056
    %v6213 = vpack.c.b16 %v6061, %v6057
    %v6214 = vpack.c.b16 %v6062, %v6058
    %v6215 = vpack.c.b16 %v6063, %v6059
    %v6216 = vpack.c.b16 %v6068, %v6064
    %v6217 = vpack.c.b16 %v6069, %v6065
    %v6218 = vpack.c.b16 %v6070, %v6066
    %v6219 = vpack.c.b16 %v6071, %v6067
    %v6220 = vpack.c.b16 %v6076, %v6072
    %v6221 = vpack.c.b16 %v6077, %v6073
    %v6222 = vpack.c.b16 %v6078, %v6074
    %v6223 = vpack.c.b16 %v6079, %v6075
    %v6224 = vpack.c.b16 %v6084, %v6080
    %v6225 = vpack.c.b16 %v6085, %v6081
    %v6226 = vpack.c.b16 %v6086, %v6082
    %v6227 = vpack.c.b16 %v6087, %v6083
    %v6228 = vpack.c.b16 %v6092, %v6088
    %v6229 = vpack.c.b16 %v6093, %v6089
    %v6230 = vpack.c.b16 %v6094, %v6090
    %v6231 = vpack.c.b16 %v6095, %v6091
    %v6232 = vpack.c.b16 %v6100, %v6096
    %v6233 = vpack.c.b16 %v6101, %v6097
    %v6234 = vpack.c.b16 %v6102, %v6098
    %v6235 = vpack.c.b16 %v6103, %v6099
    %v6236 = vpack.c.b16 %v6108, %v6104
    %v6237 = vpack.c.b16 %v6109, %v6105
    %v6238 = vpack.c.b16 %v6110, %v6106
    %v6239 = vpack.c.b16 %v6111, %v6107
    %6368 = vmatpush.bf16.msra.mxu0 %v6140
    %6369 = vmatpush.bf16.msra.mxu0 %v6136
    %6370 = vmatpush.bf16.msra.mxu0 %v6132
    %6371 = vmatpush.bf16.msra.mxu0 %v6128
    %6372 = vmatpush.bf16.msra.mxu0 %v6124
    %6373 = vmatpush.bf16.msra.mxu0 %v6120
    %6374 = vmatpush.bf16.msra.mxu0 %v6116
    %6375 = vmatpush.bf16.msra.mxu0 %v6112
    %6376 = vmatmul.bf16.gmra.mxu0 %v5585
    %v6377 = vpop.f32.mrf.mxu0
    %v6378 = vadd.f32 %v5720, %v6377
    %v6379 = vpop.f32.mrf.mxu0
    %v6380 = vadd.f32 %v5720, %v6379
    %6381 = vdwg.mxu0
    %6382 = vmatpush.bf16.msra.mxu0 %v6172
    %6383 = vmatpush.bf16.msra.mxu0 %v6168
    %6384 = vmatpush.bf16.msra.mxu0 %v6164
    %6385 = vmatpush.bf16.msra.mxu0 %v6160
    %6386 = vmatpush.bf16.msra.mxu0 %v6156
    %6387 = vmatpush.bf16.msra.mxu0 %v6152
    %6388 = vmatpush.bf16.msra.mxu0 %v6148
    %6389 = vmatpush.bf16.msra.mxu0 %v6144
    %6390 = vmatmul.bf16.gmra.mxu0 %v5586
    %v6391 = vpop.f32.mrf.mxu0
    %v6392 = vadd.f32 %v6378, %v6391
    %v6393 = vpop.f32.mrf.mxu0
    %v6394 = vadd.f32 %v6380, %v6393
    %6395 = vdwg.mxu0
    %6396 = vmatpush.bf16.msra.mxu0 %v6204
    %6397 = vmatpush.bf16.msra.mxu0 %v6200
    %6398 = vmatpush.bf16.msra.mxu0 %v6196
    %6399 = vmatpush.bf16.msra.mxu0 %v6192
    %6400 = vmatpush.bf16.msra.mxu0 %v6188
    %6401 = vmatpush.bf16.msra.mxu0 %v6184
    %6402 = vmatpush.bf16.msra.mxu0 %v6180
    %6403 = vmatpush.bf16.msra.mxu0 %v6176
    %6404 = vmatmul.bf16.gmra.mxu0 %v5587
    %v6405 = vpop.f32.mrf.mxu0
    %v6406 = vadd.f32 %v6392, %v6405
    %v6407 = vpop.f32.mrf.mxu0
    %v6408 = vadd.f32 %v6394, %v6407
    %6409 = vdwg.mxu0
    %6410 = vmatpush.bf16.msra.mxu0 %v6236
    %6411 = vmatpush.bf16.msra.mxu0 %v6232
    %6412 = vmatpush.bf16.msra.mxu0 %v6228
    %6413 = vmatpush.bf16.msra.mxu0 %v6224
    %6414 = vmatpush.bf16.msra.mxu0 %v6220
    %6415 = vmatpush.bf16.msra.mxu0 %v6216
    %6416 = vmatpush.bf16.msra.mxu0 %v6212
    %6417 = vmatpush.bf16.msra.mxu0 %v6208
    %6418 = vmatmul.bf16.gmra.mxu0 %v5588
    %v6419 = vpop.f32.mrf.mxu0
    %v6420 = vadd.f32 %v6406, %v6419
    %v6421 = vpop.f32.mrf.mxu0
    %v6422 = vadd.f32 %v6408, %v6421
    %6423 = vdwg.mxu0
    %6424 = vmatpush.bf16.msra.mxu0 %v6141
    %6425 = vmatpush.bf16.msra.mxu0 %v6137
    %6426 = vmatpush.bf16.msra.mxu0 %v6133
    %6427 = vmatpush.bf16.msra.mxu0 %v6129
    %6428 = vmatpush.bf16.msra.mxu0 %v6125
    %6429 = vmatpush.bf16.msra.mxu0 %v6121
    %6430 = vmatpush.bf16.msra.mxu0 %v6117
    %6431 = vmatpush.bf16.msra.mxu0 %v6113
    %6432 = vmatmul.bf16.gmra.mxu0 %v5585
    %v6433 = vpop.f32.mrf.mxu0
    %v6434 = vadd.f32 %v5721, %v6433
    %v6435 = vpop.f32.mrf.mxu0
    %v6436 = vadd.f32 %v5721, %v6435
    %6437 = vdwg.mxu0
    %6438 = vmatpush.bf16.msra.mxu0 %v6173
    %6439 = vmatpush.bf16.msra.mxu0 %v6169
    %6440 = vmatpush.bf16.msra.mxu0 %v6165
    %6441 = vmatpush.bf16.msra.mxu0 %v6161
    %6442 = vmatpush.bf16.msra.mxu0 %v6157
    %6443 = vmatpush.bf16.msra.mxu0 %v6153
    %6444 = vmatpush.bf16.msra.mxu0 %v6149
    %6445 = vmatpush.bf16.msra.mxu0 %v6145
    %6446 = vmatmul.bf16.gmra.mxu0 %v5586
    %v6447 = vpop.f32.mrf.mxu0
    %v6448 = vadd.f32 %v6434, %v6447
    %v6449 = vpop.f32.mrf.mxu0
    %v6450 = vadd.f32 %v6436, %v6449
    %6451 = vdwg.mxu0
    %6452 = vmatpush.bf16.msra.mxu0 %v6205
    %6453 = vmatpush.bf16.msra.mxu0 %v6201
    %6454 = vmatpush.bf16.msra.mxu0 %v6197
    %6455 = vmatpush.bf16.msra.mxu0 %v6193
    %6456 = vmatpush.bf16.msra.mxu0 %v6189
    %6457 = vmatpush.bf16.msra.mxu0 %v6185
    %6458 = vmatpush.bf16.msra.mxu0 %v6181
    %6459 = vmatpush.bf16.msra.mxu0 %v6177
    %6460 = vmatmul.bf16.gmra.mxu0 %v5587
    %v6461 = vpop.f32.mrf.mxu0
    %v6462 = vadd.f32 %v6448, %v6461
    %v6463 = vpop.f32.mrf.mxu0
    %v6464 = vadd.f32 %v6450, %v6463
    %6465 = vdwg.mxu0
    %6466 = vmatpush.bf16.msra.mxu0 %v6237
    %6467 = vmatpush.bf16.msra.mxu0 %v6233
    %6468 = vmatpush.bf16.msra.mxu0 %v6229
    %6469 = vmatpush.bf16.msra.mxu0 %v6225
    %6470 = vmatpush.bf16.msra.mxu0 %v6221
    %6471 = vmatpush.bf16.msra.mxu0 %v6217
    %6472 = vmatpush.bf16.msra.mxu0 %v6213
    %6473 = vmatpush.bf16.msra.mxu0 %v6209
    %6474 = vmatmul.bf16.gmra.mxu0 %v5588
    %v6475 = vpop.f32.mrf.mxu0
    %v6476 = vadd.f32 %v6462, %v6475
    %v6477 = vpop.f32.mrf.mxu0
    %v6478 = vadd.f32 %v6464, %v6477
    %6479 = vdwg.mxu0
    %6480 = vmatpush.bf16.msra.mxu0 %v6142
    %6481 = vmatpush.bf16.msra.mxu0 %v6138
    %6482 = vmatpush.bf16.msra.mxu0 %v6134
    %6483 = vmatpush.bf16.msra.mxu0 %v6130
    %6484 = vmatpush.bf16.msra.mxu0 %v6126
    %6485 = vmatpush.bf16.msra.mxu0 %v6122
    %6486 = vmatpush.bf16.msra.mxu0 %v6118
    %6487 = vmatpush.bf16.msra.mxu0 %v6114
    %6488 = vmatmul.bf16.gmra.mxu0 %v5585
    %v6489 = vpop.f32.mrf.mxu0
    %v6490 = vadd.f32 %v5722, %v6489
    %v6491 = vpop.f32.mrf.mxu0
    %v6492 = vadd.f32 %v5722, %v6491
    %6493 = vdwg.mxu0
    %6494 = vmatpush.bf16.msra.mxu0 %v6174
    %6495 = vmatpush.bf16.msra.mxu0 %v6170
    %6496 = vmatpush.bf16.msra.mxu0 %v6166
    %6497 = vmatpush.bf16.msra.mxu0 %v6162
    %6498 = vmatpush.bf16.msra.mxu0 %v6158
    %6499 = vmatpush.bf16.msra.mxu0 %v6154
    %6500 = vmatpush.bf16.msra.mxu0 %v6150
    %6501 = vmatpush.bf16.msra.mxu0 %v6146
    %6502 = vmatmul.bf16.gmra.mxu0 %v5586
    %v6503 = vpop.f32.mrf.mxu0
    %v6504 = vadd.f32 %v6490, %v6503
    %v6505 = vpop.f32.mrf.mxu0
    %v6506 = vadd.f32 %v6492, %v6505
    %6507 = vdwg.mxu0
    %6508 = vmatpush.bf16.msra.mxu0 %v6206
    %6509 = vmatpush.bf16.msra.mxu0 %v6202
    %6510 = vmatpush.bf16.msra.mxu0 %v6198
    %6511 = vmatpush.bf16.msra.mxu0 %v6194
    %6512 = vmatpush.bf16.msra.mxu0 %v6190
    %6513 = vmatpush.bf16.msra.mxu0 %v6186
    %6514 = vmatpush.bf16.msra.mxu0 %v6182
    %6515 = vmatpush.bf16.msra.mxu0 %v6178
    %6516 = vmatmul.bf16.gmra.mxu0 %v5587
    %v6517 = vpop.f32.mrf.mxu0
    %v6518 = vadd.f32 %v6504, %v6517
    %v6519 = vpop.f32.mrf.mxu0
    %v6520 = vadd.f32 %v6506, %v6519
    %6521 = vdwg.mxu0
    %6522 = vmatpush.bf16.msra.mxu0 %v6238
    %6523 = vmatpush.bf16.msra.mxu0 %v6234
    %6524 = vmatpush.bf16.msra.mxu0 %v6230
    %6525 = vmatpush.bf16.msra.mxu0 %v6226
    %6526 = vmatpush.bf16.msra.mxu0 %v6222
    %6527 = vmatpush.bf16.msra.mxu0 %v6218
    %6528 = vmatpush.bf16.msra.mxu0 %v6214
    %6529 = vmatpush.bf16.msra.mxu0 %v6210
    %6530 = vmatmul.bf16.gmra.mxu0 %v5588
    %v6531 = vpop.f32.mrf.mxu0
    %v6532 = vadd.f32 %v6518, %v6531
    %v6533 = vpop.f32.mrf.mxu0
    %v6534 = vadd.f32 %v6520, %v6533
    %6535 = vdwg.mxu0
    %6536 = vmatpush.bf16.msra.mxu0 %v6143
    %6537 = vmatpush.bf16.msra.mxu0 %v6139
    %6538 = vmatpush.bf16.msra.mxu0 %v6135
    %6539 = vmatpush.bf16.msra.mxu0 %v6131
    %6540 = vmatpush.bf16.msra.mxu0 %v6127
    %6541 = vmatpush.bf16.msra.mxu0 %v6123
    %6542 = vmatpush.bf16.msra.mxu0 %v6119
    %6543 = vmatpush.bf16.msra.mxu0 %v6115
    %6544 = vmatmul.bf16.gmra.mxu0 %v5585
    %v6545 = vpop.f32.mrf.mxu0
    %v6546 = vadd.f32 %v5723, %v6545
    %v6547 = vpop.f32.mrf.mxu0
    %v6548 = vadd.f32 %v5723, %v6547
    %6549 = vdwg.mxu0
    %6550 = vmatpush.bf16.msra.mxu0 %v6175
    %6551 = vmatpush.bf16.msra.mxu0 %v6171
    %6552 = vmatpush.bf16.msra.mxu0 %v6167
    %6553 = vmatpush.bf16.msra.mxu0 %v6163
    %6554 = vmatpush.bf16.msra.mxu0 %v6159
    %6555 = vmatpush.bf16.msra.mxu0 %v6155
    %6556 = vmatpush.bf16.msra.mxu0 %v6151
    %6557 = vmatpush.bf16.msra.mxu0 %v6147
    %6558 = vmatmul.bf16.gmra.mxu0 %v5586
    %v6559 = vpop.f32.mrf.mxu0
    %v6560 = vadd.f32 %v6546, %v6559
    %v6561 = vpop.f32.mrf.mxu0
    %v6562 = vadd.f32 %v6548, %v6561
    %6563 = vdwg.mxu0
    %6564 = vmatpush.bf16.msra.mxu0 %v6207
    %6565 = vmatpush.bf16.msra.mxu0 %v6203
    %6566 = vmatpush.bf16.msra.mxu0 %v6199
    %6567 = vmatpush.bf16.msra.mxu0 %v6195
    %6568 = vmatpush.bf16.msra.mxu0 %v6191
    %6569 = vmatpush.bf16.msra.mxu0 %v6187
    %6570 = vmatpush.bf16.msra.mxu0 %v6183
    %6571 = vmatpush.bf16.msra.mxu0 %v6179
    %6572 = vmatmul.bf16.gmra.mxu0 %v5587
    %v6573 = vpop.f32.mrf.mxu0
    %v6574 = vadd.f32 %v6560, %v6573
    %v6575 = vpop.f32.mrf.mxu0
    %v6576 = vadd.f32 %v6562, %v6575
    %6577 = vdwg.mxu0
    %6578 = vmatpush.bf16.msra.mxu0 %v6239
    %6579 = vmatpush.bf16.msra.mxu0 %v6235
    %6580 = vmatpush.bf16.msra.mxu0 %v6231
    %6581 = vmatpush.bf16.msra.mxu0 %v6227
    %6582 = vmatpush.bf16.msra.mxu0 %v6223
    %6583 = vmatpush.bf16.msra.mxu0 %v6219
    %6584 = vmatpush.bf16.msra.mxu0 %v6215
    %6585 = vmatpush.bf16.msra.mxu0 %v6211
    %6586 = vmatmul.bf16.gmra.mxu0 %v5588
    %v6587 = vpop.f32.mrf.mxu0
    %v6588 = vadd.f32 %v6574, %v6587
    %v6589 = vpop.f32.mrf.mxu0
    %v6590 = vadd.f32 %v6576, %v6589
    %6591 = vdwg.mxu0
    %v6592 = vmax.f32 %v6420, 0.0
    %v6593 = vmax.f32 %v6476, 0.0
    %v6594 = vmax.f32 %v6532, 0.0
    %v6595 = vmax.f32 %v6588, 0.0
    %v6596 = vmax.f32 %v6422, 0.0
    %v6597 = vmax.f32 %v6478, 0.0
    %v6598 = vmax.f32 %v6534, 0.0
    %v6599 = vmax.f32 %v6590, 0.0
    %v6600 = vpack.c.bf16 %v6596, %v6592
    %v6601 = vpack.c.bf16 %v6597, %v6593
    %v6602 = vpack.c.bf16 %v6598, %v6594
    %v6603 = vpack.c.bf16 %v6599, %v6595
    %s6604 = scalar_lea.vmem [#allocation3], 3072
    %v6605 = vld [vmem:[%s6604] sm:$0xff]
    %v6606 = vld [vmem:[%s6604 + $0x8] sm:$0xff]
    %v6607 = vld [vmem:[%s6604 + $0x10] sm:$0xff]
    %v6608 = vld [vmem:[%s6604 + $0x18] sm:$0xff]
    %v6609 = vld [vmem:[%s6604 + $0x20] sm:$0xff]
    %v6610 = vld [vmem:[%s6604 + $0x28] sm:$0xff]
    %v6611 = vld [vmem:[%s6604 + $0x30] sm:$0xff]
    %v6612 = vld [vmem:[%s6604 + $0x38] sm:$0xff]
    %v6613 = vld [vmem:[%s6604 + $0x40] sm:$0xff]
    %v6614 = vld [vmem:[%s6604 + $0x48] sm:$0xff]
    %v6615 = vld [vmem:[%s6604 + $0x50] sm:$0xff]
    %v6616 = vld [vmem:[%s6604 + $0x58] sm:$0xff]
    %v6617 = vld [vmem:[%s6604 + $0x60] sm:$0xff]
    %v6618 = vld [vmem:[%s6604 + $0x68] sm:$0xff]
    %v6619 = vld [vmem:[%s6604 + $0x70] sm:$0xff]
    %v6620 = vld [vmem:[%s6604 + $0x78] sm:$0xff]
    %v6621 = vld [vmem:[%s6604 + $0x80] sm:$0xff]
    %v6622 = vld [vmem:[%s6604 + $0x88] sm:$0xff]
    %v6623 = vld [vmem:[%s6604 + $0x90] sm:$0xff]
    %v6624 = vld [vmem:[%s6604 + $0x98] sm:$0xff]
    %v6625 = vld [vmem:[%s6604 + $0xa0] sm:$0xff]
    %v6626 = vld [vmem:[%s6604 + $0xa8] sm:$0xff]
    %v6627 = vld [vmem:[%s6604 + $0xb0] sm:$0xff]
    %v6628 = vld [vmem:[%s6604 + $0xb8] sm:$0xff]
    %v6629 = vld [vmem:[%s6604 + $0xc0] sm:$0xff]
    %v6630 = vld [vmem:[%s6604 + $0xc8] sm:$0xff]
    %v6631 = vld [vmem:[%s6604 + $0xd0] sm:$0xff]
    %v6632 = vld [vmem:[%s6604 + $0xd8] sm:$0xff]
    %v6633 = vld [vmem:[%s6604 + $0xe0] sm:$0xff]
    %v6634 = vld [vmem:[%s6604 + $0xe8] sm:$0xff]
    %v6635 = vld [vmem:[%s6604 + $0xf0] sm:$0xff]
    %v6636 = vld [vmem:[%s6604 + $0xf8] sm:$0xff]
    %v6637 = vld [vmem:[%s6604 + $0x100] sm:$0xff]
    %v6638 = vld [vmem:[%s6604 + $0x108] sm:$0xff]
    %v6639 = vld [vmem:[%s6604 + $0x110] sm:$0xff]
    %v6640 = vld [vmem:[%s6604 + $0x118] sm:$0xff]
    %v6641 = vld [vmem:[%s6604 + $0x120] sm:$0xff]
    %v6642 = vld [vmem:[%s6604 + $0x128] sm:$0xff]
    %v6643 = vld [vmem:[%s6604 + $0x130] sm:$0xff]
    %v6644 = vld [vmem:[%s6604 + $0x138] sm:$0xff]
    %v6645 = vld [vmem:[%s6604 + $0x140] sm:$0xff]
    %v6646 = vld [vmem:[%s6604 + $0x148] sm:$0xff]
    %v6647 = vld [vmem:[%s6604 + $0x150] sm:$0xff]
    %v6648 = vld [vmem:[%s6604 + $0x158] sm:$0xff]
    %v6649 = vld [vmem:[%s6604 + $0x160] sm:$0xff]
    %v6650 = vld [vmem:[%s6604 + $0x168] sm:$0xff]
    %v6651 = vld [vmem:[%s6604 + $0x170] sm:$0xff]
    %v6652 = vld [vmem:[%s6604 + $0x178] sm:$0xff]
    %v6653 = vld [vmem:[%s6604 + $0x180] sm:$0xff]
    %v6654 = vld [vmem:[%s6604 + $0x188] sm:$0xff]
    %v6655 = vld [vmem:[%s6604 + $0x190] sm:$0xff]
    %v6656 = vld [vmem:[%s6604 + $0x198] sm:$0xff]
    %v6657 = vld [vmem:[%s6604 + $0x1a0] sm:$0xff]
    %v6658 = vld [vmem:[%s6604 + $0x1a8] sm:$0xff]
    %v6659 = vld [vmem:[%s6604 + $0x1b0] sm:$0xff]
    %v6660 = vld [vmem:[%s6604 + $0x1b8] sm:$0xff]
    %v6661 = vld [vmem:[%s6604 + $0x1c0] sm:$0xff]
    %v6662 = vld [vmem:[%s6604 + $0x1c8] sm:$0xff]
    %v6663 = vld [vmem:[%s6604 + $0x1d0] sm:$0xff]
    %v6664 = vld [vmem:[%s6604 + $0x1d8] sm:$0xff]
    %v6665 = vld [vmem:[%s6604 + $0x1e0] sm:$0xff]
    %v6666 = vld [vmem:[%s6604 + $0x1e8] sm:$0xff]
    %v6667 = vld [vmem:[%s6604 + $0x1f0] sm:$0xff]
    %v6668 = vld [vmem:[%s6604 + $0x1f8] sm:$0xff]
    %v6669 = vld [vmem:[%s6604 + $0x200] sm:$0xff]
    %v6670 = vld [vmem:[%s6604 + $0x208] sm:$0xff]
    %v6671 = vld [vmem:[%s6604 + $0x210] sm:$0xff]
    %v6672 = vld [vmem:[%s6604 + $0x218] sm:$0xff]
    %v6673 = vld [vmem:[%s6604 + $0x220] sm:$0xff]
    %v6674 = vld [vmem:[%s6604 + $0x228] sm:$0xff]
    %v6675 = vld [vmem:[%s6604 + $0x230] sm:$0xff]
    %v6676 = vld [vmem:[%s6604 + $0x238] sm:$0xff]
    %v6677 = vld [vmem:[%s6604 + $0x240] sm:$0xff]
    %v6678 = vld [vmem:[%s6604 + $0x248] sm:$0xff]
    %v6679 = vld [vmem:[%s6604 + $0x250] sm:$0xff]
    %v6680 = vld [vmem:[%s6604 + $0x258] sm:$0xff]
    %v6681 = vld [vmem:[%s6604 + $0x260] sm:$0xff]
    %v6682 = vld [vmem:[%s6604 + $0x268] sm:$0xff]
    %v6683 = vld [vmem:[%s6604 + $0x270] sm:$0xff]
    %v6684 = vld [vmem:[%s6604 + $0x278] sm:$0xff]
    %v6685 = vld [vmem:[%s6604 + $0x280] sm:$0xff]
    %v6686 = vld [vmem:[%s6604 + $0x288] sm:$0xff]
    %v6687 = vld [vmem:[%s6604 + $0x290] sm:$0xff]
    %v6688 = vld [vmem:[%s6604 + $0x298] sm:$0xff]
    %v6689 = vld [vmem:[%s6604 + $0x2a0] sm:$0xff]
    %v6690 = vld [vmem:[%s6604 + $0x2a8] sm:$0xff]
    %v6691 = vld [vmem:[%s6604 + $0x2b0] sm:$0xff]
    %v6692 = vld [vmem:[%s6604 + $0x2b8] sm:$0xff]
    %v6693 = vld [vmem:[%s6604 + $0x2c0] sm:$0xff]
    %v6694 = vld [vmem:[%s6604 + $0x2c8] sm:$0xff]
    %v6695 = vld [vmem:[%s6604 + $0x2d0] sm:$0xff]
    %v6696 = vld [vmem:[%s6604 + $0x2d8] sm:$0xff]
    %v6697 = vld [vmem:[%s6604 + $0x2e0] sm:$0xff]
    %v6698 = vld [vmem:[%s6604 + $0x2e8] sm:$0xff]
    %v6699 = vld [vmem:[%s6604 + $0x2f0] sm:$0xff]
    %v6700 = vld [vmem:[%s6604 + $0x2f8] sm:$0xff]
    %v6701 = vld [vmem:[%s6604 + $0x300] sm:$0xff]
    %v6702 = vld [vmem:[%s6604 + $0x308] sm:$0xff]
    %v6703 = vld [vmem:[%s6604 + $0x310] sm:$0xff]
    %v6704 = vld [vmem:[%s6604 + $0x318] sm:$0xff]
    %v6705 = vld [vmem:[%s6604 + $0x320] sm:$0xff]
    %v6706 = vld [vmem:[%s6604 + $0x328] sm:$0xff]
    %v6707 = vld [vmem:[%s6604 + $0x330] sm:$0xff]
    %v6708 = vld [vmem:[%s6604 + $0x338] sm:$0xff]
    %v6709 = vld [vmem:[%s6604 + $0x340] sm:$0xff]
    %v6710 = vld [vmem:[%s6604 + $0x348] sm:$0xff]
    %v6711 = vld [vmem:[%s6604 + $0x350] sm:$0xff]
    %v6712 = vld [vmem:[%s6604 + $0x358] sm:$0xff]
    %v6713 = vld [vmem:[%s6604 + $0x360] sm:$0xff]
    %v6714 = vld [vmem:[%s6604 + $0x368] sm:$0xff]
    %v6715 = vld [vmem:[%s6604 + $0x370] sm:$0xff]
    %v6716 = vld [vmem:[%s6604 + $0x378] sm:$0xff]
    %v6717 = vld [vmem:[%s6604 + $0x380] sm:$0xff]
    %v6718 = vld [vmem:[%s6604 + $0x388] sm:$0xff]
    %v6719 = vld [vmem:[%s6604 + $0x390] sm:$0xff]
    %v6720 = vld [vmem:[%s6604 + $0x398] sm:$0xff]
    %v6721 = vld [vmem:[%s6604 + $0x3a0] sm:$0xff]
    %v6722 = vld [vmem:[%s6604 + $0x3a8] sm:$0xff]
    %v6723 = vld [vmem:[%s6604 + $0x3b0] sm:$0xff]
    %v6724 = vld [vmem:[%s6604 + $0x3b8] sm:$0xff]
    %v6725 = vld [vmem:[%s6604 + $0x3c0] sm:$0xff]
    %v6726 = vld [vmem:[%s6604 + $0x3c8] sm:$0xff]
    %v6727 = vld [vmem:[%s6604 + $0x3d0] sm:$0xff]
    %v6728 = vld [vmem:[%s6604 + $0x3d8] sm:$0xff]
    %v6729 = vld [vmem:[%s6604 + $0x3e0] sm:$0xff]
    %v6730 = vld [vmem:[%s6604 + $0x3e8] sm:$0xff]
    %v6731 = vld [vmem:[%s6604 + $0x3f0] sm:$0xff]
    %v6732 = vld [vmem:[%s6604 + $0x3f8] sm:$0xff]
    %v6733 = vld [vmem:[#allocation18] sm:$0xf]
    %v6735 = vperm.slane %v6733, 0
    %v6736 = vperm.slane %v6733, 1
    %v6737 = vperm.slane %v6733, 2
    %v6738 = vperm.slane %v6733, 3
    %v6871 = vunpack.c.l.b16 %v6605
    %v6872 = vunpack.c.h.b16 %v6605
    %v6873 = vunpack.c.l.b16 %v6606
    %v6874 = vunpack.c.h.b16 %v6606
    %v6875 = vunpack.c.l.b16 %v6607
    %v6876 = vunpack.c.h.b16 %v6607
    %v6877 = vunpack.c.l.b16 %v6608
    %v6878 = vunpack.c.h.b16 %v6608
    %v6879 = vunpack.c.l.b16 %v6609
    %v6880 = vunpack.c.h.b16 %v6609
    %v6881 = vunpack.c.l.b16 %v6610
    %v6882 = vunpack.c.h.b16 %v6610
    %v6883 = vunpack.c.l.b16 %v6611
    %v6884 = vunpack.c.h.b16 %v6611
    %v6885 = vunpack.c.l.b16 %v6612
    %v6886 = vunpack.c.h.b16 %v6612
    %v6887 = vunpack.c.l.b16 %v6613
    %v6888 = vunpack.c.h.b16 %v6613
    %v6889 = vunpack.c.l.b16 %v6614
    %v6890 = vunpack.c.h.b16 %v6614
    %v6891 = vunpack.c.l.b16 %v6615
    %v6892 = vunpack.c.h.b16 %v6615
    %v6893 = vunpack.c.l.b16 %v6616
    %v6894 = vunpack.c.h.b16 %v6616
    %v6895 = vunpack.c.l.b16 %v6617
    %v6896 = vunpack.c.h.b16 %v6617
    %v6897 = vunpack.c.l.b16 %v6618
    %v6898 = vunpack.c.h.b16 %v6618
    %v6899 = vunpack.c.l.b16 %v6619
    %v6900 = vunpack.c.h.b16 %v6619
    %v6901 = vunpack.c.l.b16 %v6620
    %v6902 = vunpack.c.h.b16 %v6620
    %v6903 = vunpack.c.l.b16 %v6621
    %v6904 = vunpack.c.h.b16 %v6621
    %v6905 = vunpack.c.l.b16 %v6622
    %v6906 = vunpack.c.h.b16 %v6622
    %v6907 = vunpack.c.l.b16 %v6623
    %v6908 = vunpack.c.h.b16 %v6623
    %v6909 = vunpack.c.l.b16 %v6624
    %v6910 = vunpack.c.h.b16 %v6624
    %v6911 = vunpack.c.l.b16 %v6625
    %v6912 = vunpack.c.h.b16 %v6625
    %v6913 = vunpack.c.l.b16 %v6626
    %v6914 = vunpack.c.h.b16 %v6626
    %v6915 = vunpack.c.l.b16 %v6627
    %v6916 = vunpack.c.h.b16 %v6627
    %v6917 = vunpack.c.l.b16 %v6628
    %v6918 = vunpack.c.h.b16 %v6628
    %v6919 = vunpack.c.l.b16 %v6629
    %v6920 = vunpack.c.h.b16 %v6629
    %v6921 = vunpack.c.l.b16 %v6630
    %v6922 = vunpack.c.h.b16 %v6630
    %v6923 = vunpack.c.l.b16 %v6631
    %v6924 = vunpack.c.h.b16 %v6631
    %v6925 = vunpack.c.l.b16 %v6632
    %v6926 = vunpack.c.h.b16 %v6632
    %v6927 = vunpack.c.l.b16 %v6633
    %v6928 = vunpack.c.h.b16 %v6633
    %v6929 = vunpack.c.l.b16 %v6634
    %v6930 = vunpack.c.h.b16 %v6634
    %v6931 = vunpack.c.l.b16 %v6635
    %v6932 = vunpack.c.h.b16 %v6635
    %v6933 = vunpack.c.l.b16 %v6636
    %v6934 = vunpack.c.h.b16 %v6636
    %v6935 = vunpack.c.l.b16 %v6637
    %v6936 = vunpack.c.h.b16 %v6637
    %v6937 = vunpack.c.l.b16 %v6638
    %v6938 = vunpack.c.h.b16 %v6638
    %v6939 = vunpack.c.l.b16 %v6639
    %v6940 = vunpack.c.h.b16 %v6639
    %v6941 = vunpack.c.l.b16 %v6640
    %v6942 = vunpack.c.h.b16 %v6640
    %v6943 = vunpack.c.l.b16 %v6641
    %v6944 = vunpack.c.h.b16 %v6641
    %v6945 = vunpack.c.l.b16 %v6642
    %v6946 = vunpack.c.h.b16 %v6642
    %v6947 = vunpack.c.l.b16 %v6643
    %v6948 = vunpack.c.h.b16 %v6643
    %v6949 = vunpack.c.l.b16 %v6644
    %v6950 = vunpack.c.h.b16 %v6644
    %v6951 = vunpack.c.l.b16 %v6645
    %v6952 = vunpack.c.h.b16 %v6645
    %v6953 = vunpack.c.l.b16 %v6646
    %v6954 = vunpack.c.h.b16 %v6646
    %v6955 = vunpack.c.l.b16 %v6647
    %v6956 = vunpack.c.h.b16 %v6647
    %v6957 = vunpack.c.l.b16 %v6648
    %v6958 = vunpack.c.h.b16 %v6648
    %v6959 = vunpack.c.l.b16 %v6649
    %v6960 = vunpack.c.h.b16 %v6649
    %v6961 = vunpack.c.l.b16 %v6650
    %v6962 = vunpack.c.h.b16 %v6650
    %v6963 = vunpack.c.l.b16 %v6651
    %v6964 = vunpack.c.h.b16 %v6651
    %v6965 = vunpack.c.l.b16 %v6652
    %v6966 = vunpack.c.h.b16 %v6652
    %v6967 = vunpack.c.l.b16 %v6653
    %v6968 = vunpack.c.h.b16 %v6653
    %v6969 = vunpack.c.l.b16 %v6654
    %v6970 = vunpack.c.h.b16 %v6654
    %v6971 = vunpack.c.l.b16 %v6655
    %v6972 = vunpack.c.h.b16 %v6655
    %v6973 = vunpack.c.l.b16 %v6656
    %v6974 = vunpack.c.h.b16 %v6656
    %v6975 = vunpack.c.l.b16 %v6657
    %v6976 = vunpack.c.h.b16 %v6657
    %v6977 = vunpack.c.l.b16 %v6658
    %v6978 = vunpack.c.h.b16 %v6658
    %v6979 = vunpack.c.l.b16 %v6659
    %v6980 = vunpack.c.h.b16 %v6659
    %v6981 = vunpack.c.l.b16 %v6660
    %v6982 = vunpack.c.h.b16 %v6660
    %v6983 = vunpack.c.l.b16 %v6661
    %v6984 = vunpack.c.h.b16 %v6661
    %v6985 = vunpack.c.l.b16 %v6662
    %v6986 = vunpack.c.h.b16 %v6662
    %v6987 = vunpack.c.l.b16 %v6663
    %v6988 = vunpack.c.h.b16 %v6663
    %v6989 = vunpack.c.l.b16 %v6664
    %v6990 = vunpack.c.h.b16 %v6664
    %v6991 = vunpack.c.l.b16 %v6665
    %v6992 = vunpack.c.h.b16 %v6665
    %v6993 = vunpack.c.l.b16 %v6666
    %v6994 = vunpack.c.h.b16 %v6666
    %v6995 = vunpack.c.l.b16 %v6667
    %v6996 = vunpack.c.h.b16 %v6667
    %v6997 = vunpack.c.l.b16 %v6668
    %v6998 = vunpack.c.h.b16 %v6668
    %v6999 = vunpack.c.l.b16 %v6669
    %v7000 = vunpack.c.h.b16 %v6669
    %v7001 = vunpack.c.l.b16 %v6670
    %v7002 = vunpack.c.h.b16 %v6670
    %v7003 = vunpack.c.l.b16 %v6671
    %v7004 = vunpack.c.h.b16 %v6671
    %v7005 = vunpack.c.l.b16 %v6672
    %v7006 = vunpack.c.h.b16 %v6672
    %v7007 = vunpack.c.l.b16 %v6673
    %v7008 = vunpack.c.h.b16 %v6673
    %v7009 = vunpack.c.l.b16 %v6674
    %v7010 = vunpack.c.h.b16 %v6674
    %v7011 = vunpack.c.l.b16 %v6675
    %v7012 = vunpack.c.h.b16 %v6675
    %v7013 = vunpack.c.l.b16 %v6676
    %v7014 = vunpack.c.h.b16 %v6676
    %v7015 = vunpack.c.l.b16 %v6677
    %v7016 = vunpack.c.h.b16 %v6677
    %v7017 = vunpack.c.l.b16 %v6678
    %v7018 = vunpack.c.h.b16 %v6678
    %v7019 = vunpack.c.l.b16 %v6679
    %v7020 = vunpack.c.h.b16 %v6679
    %v7021 = vunpack.c.l.b16 %v6680
    %v7022 = vunpack.c.h.b16 %v6680
    %v7023 = vunpack.c.l.b16 %v6681
    %v7024 = vunpack.c.h.b16 %v6681
    %v7025 = vunpack.c.l.b16 %v6682
    %v7026 = vunpack.c.h.b16 %v6682
    %v7027 = vunpack.c.l.b16 %v6683
    %v7028 = vunpack.c.h.b16 %v6683
    %v7029 = vunpack.c.l.b16 %v6684
    %v7030 = vunpack.c.h.b16 %v6684
    %v7031 = vunpack.c.l.b16 %v6685
    %v7032 = vunpack.c.h.b16 %v6685
    %v7033 = vunpack.c.l.b16 %v6686
    %v7034 = vunpack.c.h.b16 %v6686
    %v7035 = vunpack.c.l.b16 %v6687
    %v7036 = vunpack.c.h.b16 %v6687
    %v7037 = vunpack.c.l.b16 %v6688
    %v7038 = vunpack.c.h.b16 %v6688
    %v7039 = vunpack.c.l.b16 %v6689
    %v7040 = vunpack.c.h.b16 %v6689
    %v7041 = vunpack.c.l.b16 %v6690
    %v7042 = vunpack.c.h.b16 %v6690
    %v7043 = vunpack.c.l.b16 %v6691
    %v7044 = vunpack.c.h.b16 %v6691
    %v7045 = vunpack.c.l.b16 %v6692
    %v7046 = vunpack.c.h.b16 %v6692
    %v7047 = vunpack.c.l.b16 %v6693
    %v7048 = vunpack.c.h.b16 %v6693
    %v7049 = vunpack.c.l.b16 %v6694
    %v7050 = vunpack.c.h.b16 %v6694
    %v7051 = vunpack.c.l.b16 %v6695
    %v7052 = vunpack.c.h.b16 %v6695
    %v7053 = vunpack.c.l.b16 %v6696
    %v7054 = vunpack.c.h.b16 %v6696
    %v7055 = vunpack.c.l.b16 %v6697
    %v7056 = vunpack.c.h.b16 %v6697
    %v7057 = vunpack.c.l.b16 %v6698
    %v7058 = vunpack.c.h.b16 %v6698
    %v7059 = vunpack.c.l.b16 %v6699
    %v7060 = vunpack.c.h.b16 %v6699
    %v7061 = vunpack.c.l.b16 %v6700
    %v7062 = vunpack.c.h.b16 %v6700
    %v7063 = vunpack.c.l.b16 %v6701
    %v7064 = vunpack.c.h.b16 %v6701
    %v7065 = vunpack.c.l.b16 %v6702
    %v7066 = vunpack.c.h.b16 %v6702
    %v7067 = vunpack.c.l.b16 %v6703
    %v7068 = vunpack.c.h.b16 %v6703
    %v7069 = vunpack.c.l.b16 %v6704
    %v7070 = vunpack.c.h.b16 %v6704
    %v7071 = vunpack.c.l.b16 %v6705
    %v7072 = vunpack.c.h.b16 %v6705
    %v7073 = vunpack.c.l.b16 %v6706
    %v7074 = vunpack.c.h.b16 %v6706
    %v7075 = vunpack.c.l.b16 %v6707
    %v7076 = vunpack.c.h.b16 %v6707
    %v7077 = vunpack.c.l.b16 %v6708
    %v7078 = vunpack.c.h.b16 %v6708
    %v7079 = vunpack.c.l.b16 %v6709
    %v7080 = vunpack.c.h.b16 %v6709
    %v7081 = vunpack.c.l.b16 %v6710
    %v7082 = vunpack.c.h.b16 %v6710
    %v7083 = vunpack.c.l.b16 %v6711
    %v7084 = vunpack.c.h.b16 %v6711
    %v7085 = vunpack.c.l.b16 %v6712
    %v7086 = vunpack.c.h.b16 %v6712
    %v7087 = vunpack.c.l.b16 %v6713
    %v7088 = vunpack.c.h.b16 %v6713
    %v7089 = vunpack.c.l.b16 %v6714
    %v7090 = vunpack.c.h.b16 %v6714
    %v7091 = vunpack.c.l.b16 %v6715
    %v7092 = vunpack.c.h.b16 %v6715
    %v7093 = vunpack.c.l.b16 %v6716
    %v7094 = vunpack.c.h.b16 %v6716
    %v7095 = vunpack.c.l.b16 %v6717
    %v7096 = vunpack.c.h.b16 %v6717
    %v7097 = vunpack.c.l.b16 %v6718
    %v7098 = vunpack.c.h.b16 %v6718
    %v7099 = vunpack.c.l.b16 %v6719
    %v7100 = vunpack.c.h.b16 %v6719
    %v7101 = vunpack.c.l.b16 %v6720
    %v7102 = vunpack.c.h.b16 %v6720
    %v7103 = vunpack.c.l.b16 %v6721
    %v7104 = vunpack.c.h.b16 %v6721
    %v7105 = vunpack.c.l.b16 %v6722
    %v7106 = vunpack.c.h.b16 %v6722
    %v7107 = vunpack.c.l.b16 %v6723
    %v7108 = vunpack.c.h.b16 %v6723
    %v7109 = vunpack.c.l.b16 %v6724
    %v7110 = vunpack.c.h.b16 %v6724
    %v7111 = vunpack.c.l.b16 %v6725
    %v7112 = vunpack.c.h.b16 %v6725
    %v7113 = vunpack.c.l.b16 %v6726
    %v7114 = vunpack.c.h.b16 %v6726
    %v7115 = vunpack.c.l.b16 %v6727
    %v7116 = vunpack.c.h.b16 %v6727
    %v7117 = vunpack.c.l.b16 %v6728
    %v7118 = vunpack.c.h.b16 %v6728
    %v7119 = vunpack.c.l.b16 %v6729
    %v7120 = vunpack.c.h.b16 %v6729
    %v7121 = vunpack.c.l.b16 %v6730
    %v7122 = vunpack.c.h.b16 %v6730
    %v7123 = vunpack.c.l.b16 %v6731
    %v7124 = vunpack.c.h.b16 %v6731
    %v7125 = vunpack.c.l.b16 %v6732
    %v7126 = vunpack.c.h.b16 %v6732
    %v7127 = vpack.c.b16 %v6875, %v6871
    %v7128 = vpack.c.b16 %v6876, %v6872
    %v7129 = vpack.c.b16 %v6877, %v6873
    %v7130 = vpack.c.b16 %v6878, %v6874
    %v7131 = vpack.c.b16 %v6883, %v6879
    %v7132 = vpack.c.b16 %v6884, %v6880
    %v7133 = vpack.c.b16 %v6885, %v6881
    %v7134 = vpack.c.b16 %v6886, %v6882
    %v7135 = vpack.c.b16 %v6891, %v6887
    %v7136 = vpack.c.b16 %v6892, %v6888
    %v7137 = vpack.c.b16 %v6893, %v6889
    %v7138 = vpack.c.b16 %v6894, %v6890
    %v7139 = vpack.c.b16 %v6899, %v6895
    %v7140 = vpack.c.b16 %v6900, %v6896
    %v7141 = vpack.c.b16 %v6901, %v6897
    %v7142 = vpack.c.b16 %v6902, %v6898
    %v7143 = vpack.c.b16 %v6907, %v6903
    %v7144 = vpack.c.b16 %v6908, %v6904
    %v7145 = vpack.c.b16 %v6909, %v6905
    %v7146 = vpack.c.b16 %v6910, %v6906
    %v7147 = vpack.c.b16 %v6915, %v6911
    %v7148 = vpack.c.b16 %v6916, %v6912
    %v7149 = vpack.c.b16 %v6917, %v6913
    %v7150 = vpack.c.b16 %v6918, %v6914
    %v7151 = vpack.c.b16 %v6923, %v6919
    %v7152 = vpack.c.b16 %v6924, %v6920
    %v7153 = vpack.c.b16 %v6925, %v6921
    %v7154 = vpack.c.b16 %v6926, %v6922
    %v7155 = vpack.c.b16 %v6931, %v6927
    %v7156 = vpack.c.b16 %v6932, %v6928
    %v7157 = vpack.c.b16 %v6933, %v6929
    %v7158 = vpack.c.b16 %v6934, %v6930
    %v7159 = vpack.c.b16 %v6939, %v6935
    %v7160 = vpack.c.b16 %v6940, %v6936
    %v7161 = vpack.c.b16 %v6941, %v6937
    %v7162 = vpack.c.b16 %v6942, %v6938
    %v7163 = vpack.c.b16 %v6947, %v6943
    %v7164 = vpack.c.b16 %v6948, %v6944
    %v7165 = vpack.c.b16 %v6949, %v6945
    %v7166 = vpack.c.b16 %v6950, %v6946
    %v7167 = vpack.c.b16 %v6955, %v6951
    %v7168 = vpack.c.b16 %v6956, %v6952
    %v7169 = vpack.c.b16 %v6957, %v6953
    %v7170 = vpack.c.b16 %v6958, %v6954
    %v7171 = vpack.c.b16 %v6963, %v6959
    %v7172 = vpack.c.b16 %v6964, %v6960
    %v7173 = vpack.c.b16 %v6965, %v6961
    %v7174 = vpack.c.b16 %v6966, %v6962
    %v7175 = vpack.c.b16 %v6971, %v6967
    %v7176 = vpack.c.b16 %v6972, %v6968
    %v7177 = vpack.c.b16 %v6973, %v6969
    %v7178 = vpack.c.b16 %v6974, %v6970
    %v7179 = vpack.c.b16 %v6979, %v6975
    %v7180 = vpack.c.b16 %v6980, %v6976
    %v7181 = vpack.c.b16 %v6981, %v6977
    %v7182 = vpack.c.b16 %v6982, %v6978
    %v7183 = vpack.c.b16 %v6987, %v6983
    %v7184 = vpack.c.b16 %v6988, %v6984
    %v7185 = vpack.c.b16 %v6989, %v6985
    %v7186 = vpack.c.b16 %v6990, %v6986
    %v7187 = vpack.c.b16 %v6995, %v6991
    %v7188 = vpack.c.b16 %v6996, %v6992
    %v7189 = vpack.c.b16 %v6997, %v6993
    %v7190 = vpack.c.b16 %v6998, %v6994
    %v7191 = vpack.c.b16 %v7003, %v6999
    %v7192 = vpack.c.b16 %v7004, %v7000
    %v7193 = vpack.c.b16 %v7005, %v7001
    %v7194 = vpack.c.b16 %v7006, %v7002
    %v7195 = vpack.c.b16 %v7011, %v7007
    %v7196 = vpack.c.b16 %v7012, %v7008
    %v7197 = vpack.c.b16 %v7013, %v7009
    %v7198 = vpack.c.b16 %v7014, %v7010
    %v7199 = vpack.c.b16 %v7019, %v7015
    %v7200 = vpack.c.b16 %v7020, %v7016
    %v7201 = vpack.c.b16 %v7021, %v7017
    %v7202 = vpack.c.b16 %v7022, %v7018
    %v7203 = vpack.c.b16 %v7027, %v7023
    %v7204 = vpack.c.b16 %v7028, %v7024
    %v7205 = vpack.c.b16 %v7029, %v7025
    %v7206 = vpack.c.b16 %v7030, %v7026
    %v7207 = vpack.c.b16 %v7035, %v7031
    %v7208 = vpack.c.b16 %v7036, %v7032
    %v7209 = vpack.c.b16 %v7037, %v7033
    %v7210 = vpack.c.b16 %v7038, %v7034
    %v7211 = vpack.c.b16 %v7043, %v7039
    %v7212 = vpack.c.b16 %v7044, %v7040
    %v7213 = vpack.c.b16 %v7045, %v7041
    %v7214 = vpack.c.b16 %v7046, %v7042
    %v7215 = vpack.c.b16 %v7051, %v7047
    %v7216 = vpack.c.b16 %v7052, %v7048
    %v7217 = vpack.c.b16 %v7053, %v7049
    %v7218 = vpack.c.b16 %v7054, %v7050
    %v7219 = vpack.c.b16 %v7059, %v7055
    %v7220 = vpack.c.b16 %v7060, %v7056
    %v7221 = vpack.c.b16 %v7061, %v7057
    %v7222 = vpack.c.b16 %v7062, %v7058
    %v7223 = vpack.c.b16 %v7067, %v7063
    %v7224 = vpack.c.b16 %v7068, %v7064
    %v7225 = vpack.c.b16 %v7069, %v7065
    %v7226 = vpack.c.b16 %v7070, %v7066
    %v7227 = vpack.c.b16 %v7075, %v7071
    %v7228 = vpack.c.b16 %v7076, %v7072
    %v7229 = vpack.c.b16 %v7077, %v7073
    %v7230 = vpack.c.b16 %v7078, %v7074
    %v7231 = vpack.c.b16 %v7083, %v7079
    %v7232 = vpack.c.b16 %v7084, %v7080
    %v7233 = vpack.c.b16 %v7085, %v7081
    %v7234 = vpack.c.b16 %v7086, %v7082
    %v7235 = vpack.c.b16 %v7091, %v7087
    %v7236 = vpack.c.b16 %v7092, %v7088
    %v7237 = vpack.c.b16 %v7093, %v7089
    %v7238 = vpack.c.b16 %v7094, %v7090
    %v7239 = vpack.c.b16 %v7099, %v7095
    %v7240 = vpack.c.b16 %v7100, %v7096
    %v7241 = vpack.c.b16 %v7101, %v7097
    %v7242 = vpack.c.b16 %v7102, %v7098
    %v7243 = vpack.c.b16 %v7107, %v7103
    %v7244 = vpack.c.b16 %v7108, %v7104
    %v7245 = vpack.c.b16 %v7109, %v7105
    %v7246 = vpack.c.b16 %v7110, %v7106
    %v7247 = vpack.c.b16 %v7115, %v7111
    %v7248 = vpack.c.b16 %v7116, %v7112
    %v7249 = vpack.c.b16 %v7117, %v7113
    %v7250 = vpack.c.b16 %v7118, %v7114
    %v7251 = vpack.c.b16 %v7123, %v7119
    %v7252 = vpack.c.b16 %v7124, %v7120
    %v7253 = vpack.c.b16 %v7125, %v7121
    %v7254 = vpack.c.b16 %v7126, %v7122
    %7383 = vmatpush.bf16.msra.mxu0 %v7155
    %7384 = vmatpush.bf16.msra.mxu0 %v7151
    %7385 = vmatpush.bf16.msra.mxu0 %v7147
    %7386 = vmatpush.bf16.msra.mxu0 %v7143
    %7387 = vmatpush.bf16.msra.mxu0 %v7139
    %7388 = vmatpush.bf16.msra.mxu0 %v7135
    %7389 = vmatpush.bf16.msra.mxu0 %v7131
    %7390 = vmatpush.bf16.msra.mxu0 %v7127
    %7391 = vmatmul.bf16.gmra.mxu0 %v6600
    %v7392 = vpop.f32.mrf.mxu0
    %v7393 = vadd.f32 %v6735, %v7392
    %v7394 = vpop.f32.mrf.mxu0
    %v7395 = vadd.f32 %v6735, %v7394
    %7396 = vdwg.mxu0
    %7397 = vmatpush.bf16.msra.mxu0 %v7187
    %7398 = vmatpush.bf16.msra.mxu0 %v7183
    %7399 = vmatpush.bf16.msra.mxu0 %v7179
    %7400 = vmatpush.bf16.msra.mxu0 %v7175
    %7401 = vmatpush.bf16.msra.mxu0 %v7171
    %7402 = vmatpush.bf16.msra.mxu0 %v7167
    %7403 = vmatpush.bf16.msra.mxu0 %v7163
    %7404 = vmatpush.bf16.msra.mxu0 %v7159
    %7405 = vmatmul.bf16.gmra.mxu0 %v6601
    %v7406 = vpop.f32.mrf.mxu0
    %v7407 = vadd.f32 %v7393, %v7406
    %v7408 = vpop.f32.mrf.mxu0
    %v7409 = vadd.f32 %v7395, %v7408
    %7410 = vdwg.mxu0
    %7411 = vmatpush.bf16.msra.mxu0 %v7219
    %7412 = vmatpush.bf16.msra.mxu0 %v7215
    %7413 = vmatpush.bf16.msra.mxu0 %v7211
    %7414 = vmatpush.bf16.msra.mxu0 %v7207
    %7415 = vmatpush.bf16.msra.mxu0 %v7203
    %7416 = vmatpush.bf16.msra.mxu0 %v7199
    %7417 = vmatpush.bf16.msra.mxu0 %v7195
    %7418 = vmatpush.bf16.msra.mxu0 %v7191
    %7419 = vmatmul.bf16.gmra.mxu0 %v6602
    %v7420 = vpop.f32.mrf.mxu0
    %v7421 = vadd.f32 %v7407, %v7420
    %v7422 = vpop.f32.mrf.mxu0
    %v7423 = vadd.f32 %v7409, %v7422
    %7424 = vdwg.mxu0
    %7425 = vmatpush.bf16.msra.mxu0 %v7251
    %7426 = vmatpush.bf16.msra.mxu0 %v7247
    %7427 = vmatpush.bf16.msra.mxu0 %v7243
    %7428 = vmatpush.bf16.msra.mxu0 %v7239
    %7429 = vmatpush.bf16.msra.mxu0 %v7235
    %7430 = vmatpush.bf16.msra.mxu0 %v7231
    %7431 = vmatpush.bf16.msra.mxu0 %v7227
    %7432 = vmatpush.bf16.msra.mxu0 %v7223
    %7433 = vmatmul.bf16.gmra.mxu0 %v6603
    %v7434 = vpop.f32.mrf.mxu0
    %v7435 = vadd.f32 %v7421, %v7434
    %v7436 = vpop.f32.mrf.mxu0
    %v7437 = vadd.f32 %v7423, %v7436
    %7438 = vdwg.mxu0
    %7439 = vmatpush.bf16.msra.mxu0 %v7156
    %7440 = vmatpush.bf16.msra.mxu0 %v7152
    %7441 = vmatpush.bf16.msra.mxu0 %v7148
    %7442 = vmatpush.bf16.msra.mxu0 %v7144
    %7443 = vmatpush.bf16.msra.mxu0 %v7140
    %7444 = vmatpush.bf16.msra.mxu0 %v7136
    %7445 = vmatpush.bf16.msra.mxu0 %v7132
    %7446 = vmatpush.bf16.msra.mxu0 %v7128
    %7447 = vmatmul.bf16.gmra.mxu0 %v6600
    %v7448 = vpop.f32.mrf.mxu0
    %v7449 = vadd.f32 %v6736, %v7448
    %v7450 = vpop.f32.mrf.mxu0
    %v7451 = vadd.f32 %v6736, %v7450
    %7452 = vdwg.mxu0
    %7453 = vmatpush.bf16.msra.mxu0 %v7188
    %7454 = vmatpush.bf16.msra.mxu0 %v7184
    %7455 = vmatpush.bf16.msra.mxu0 %v7180
    %7456 = vmatpush.bf16.msra.mxu0 %v7176
    %7457 = vmatpush.bf16.msra.mxu0 %v7172
    %7458 = vmatpush.bf16.msra.mxu0 %v7168
    %7459 = vmatpush.bf16.msra.mxu0 %v7164
    %7460 = vmatpush.bf16.msra.mxu0 %v7160
    %7461 = vmatmul.bf16.gmra.mxu0 %v6601
    %v7462 = vpop.f32.mrf.mxu0
    %v7463 = vadd.f32 %v7449, %v7462
    %v7464 = vpop.f32.mrf.mxu0
    %v7465 = vadd.f32 %v7451, %v7464
    %7466 = vdwg.mxu0
    %7467 = vmatpush.bf16.msra.mxu0 %v7220
    %7468 = vmatpush.bf16.msra.mxu0 %v7216
    %7469 = vmatpush.bf16.msra.mxu0 %v7212
    %7470 = vmatpush.bf16.msra.mxu0 %v7208
    %7471 = vmatpush.bf16.msra.mxu0 %v7204
    %7472 = vmatpush.bf16.msra.mxu0 %v7200
    %7473 = vmatpush.bf16.msra.mxu0 %v7196
    %7474 = vmatpush.bf16.msra.mxu0 %v7192
    %7475 = vmatmul.bf16.gmra.mxu0 %v6602
    %v7476 = vpop.f32.mrf.mxu0
    %v7477 = vadd.f32 %v7463, %v7476
    %v7478 = vpop.f32.mrf.mxu0
    %v7479 = vadd.f32 %v7465, %v7478
    %7480 = vdwg.mxu0
    %7481 = vmatpush.bf16.msra.mxu0 %v7252
    %7482 = vmatpush.bf16.msra.mxu0 %v7248
    %7483 = vmatpush.bf16.msra.mxu0 %v7244
    %7484 = vmatpush.bf16.msra.mxu0 %v7240
    %7485 = vmatpush.bf16.msra.mxu0 %v7236
    %7486 = vmatpush.bf16.msra.mxu0 %v7232
    %7487 = vmatpush.bf16.msra.mxu0 %v7228
    %7488 = vmatpush.bf16.msra.mxu0 %v7224
    %7489 = vmatmul.bf16.gmra.mxu0 %v6603
    %v7490 = vpop.f32.mrf.mxu0
    %v7491 = vadd.f32 %v7477, %v7490
    %v7492 = vpop.f32.mrf.mxu0
    %v7493 = vadd.f32 %v7479, %v7492
    %7494 = vdwg.mxu0
    %7495 = vmatpush.bf16.msra.mxu0 %v7157
    %7496 = vmatpush.bf16.msra.mxu0 %v7153
    %7497 = vmatpush.bf16.msra.mxu0 %v7149
    %7498 = vmatpush.bf16.msra.mxu0 %v7145
    %7499 = vmatpush.bf16.msra.mxu0 %v7141
    %7500 = vmatpush.bf16.msra.mxu0 %v7137
    %7501 = vmatpush.bf16.msra.mxu0 %v7133
    %7502 = vmatpush.bf16.msra.mxu0 %v7129
    %7503 = vmatmul.bf16.gmra.mxu0 %v6600
    %v7504 = vpop.f32.mrf.mxu0
    %v7505 = vadd.f32 %v6737, %v7504
    %v7506 = vpop.f32.mrf.mxu0
    %v7507 = vadd.f32 %v6737, %v7506
    %7508 = vdwg.mxu0
    %7509 = vmatpush.bf16.msra.mxu0 %v7189
    %7510 = vmatpush.bf16.msra.mxu0 %v7185
    %7511 = vmatpush.bf16.msra.mxu0 %v7181
    %7512 = vmatpush.bf16.msra.mxu0 %v7177
    %7513 = vmatpush.bf16.msra.mxu0 %v7173
    %7514 = vmatpush.bf16.msra.mxu0 %v7169
    %7515 = vmatpush.bf16.msra.mxu0 %v7165
    %7516 = vmatpush.bf16.msra.mxu0 %v7161
    %7517 = vmatmul.bf16.gmra.mxu0 %v6601
    %v7518 = vpop.f32.mrf.mxu0
    %v7519 = vadd.f32 %v7505, %v7518
    %v7520 = vpop.f32.mrf.mxu0
    %v7521 = vadd.f32 %v7507, %v7520
    %7522 = vdwg.mxu0
    %7523 = vmatpush.bf16.msra.mxu0 %v7221
    %7524 = vmatpush.bf16.msra.mxu0 %v7217
    %7525 = vmatpush.bf16.msra.mxu0 %v7213
    %7526 = vmatpush.bf16.msra.mxu0 %v7209
    %7527 = vmatpush.bf16.msra.mxu0 %v7205
    %7528 = vmatpush.bf16.msra.mxu0 %v7201
    %7529 = vmatpush.bf16.msra.mxu0 %v7197
    %7530 = vmatpush.bf16.msra.mxu0 %v7193
    %7531 = vmatmul.bf16.gmra.mxu0 %v6602
    %v7532 = vpop.f32.mrf.mxu0
    %v7533 = vadd.f32 %v7519, %v7532
    %v7534 = vpop.f32.mrf.mxu0
    %v7535 = vadd.f32 %v7521, %v7534
    %7536 = vdwg.mxu0
    %7537 = vmatpush.bf16.msra.mxu0 %v7253
    %7538 = vmatpush.bf16.msra.mxu0 %v7249
    %7539 = vmatpush.bf16.msra.mxu0 %v7245
    %7540 = vmatpush.bf16.msra.mxu0 %v7241
    %7541 = vmatpush.bf16.msra.mxu0 %v7237
    %7542 = vmatpush.bf16.msra.mxu0 %v7233
    %7543 = vmatpush.bf16.msra.mxu0 %v7229
    %7544 = vmatpush.bf16.msra.mxu0 %v7225
    %7545 = vmatmul.bf16.gmra.mxu0 %v6603
    %v7546 = vpop.f32.mrf.mxu0
    %v7547 = vadd.f32 %v7533, %v7546
    %v7548 = vpop.f32.mrf.mxu0
    %v7549 = vadd.f32 %v7535, %v7548
    %7550 = vdwg.mxu0
    %7551 = vmatpush.bf16.msra.mxu0 %v7158
    %7552 = vmatpush.bf16.msra.mxu0 %v7154
    %7553 = vmatpush.bf16.msra.mxu0 %v7150
    %7554 = vmatpush.bf16.msra.mxu0 %v7146
    %7555 = vmatpush.bf16.msra.mxu0 %v7142
    %7556 = vmatpush.bf16.msra.mxu0 %v7138
    %7557 = vmatpush.bf16.msra.mxu0 %v7134
    %7558 = vmatpush.bf16.msra.mxu0 %v7130
    %7559 = vmatmul.bf16.gmra.mxu0 %v6600
    %v7560 = vpop.f32.mrf.mxu0
    %v7561 = vadd.f32 %v6738, %v7560
    %v7562 = vpop.f32.mrf.mxu0
    %v7563 = vadd.f32 %v6738, %v7562
    %7564 = vdwg.mxu0
    %7565 = vmatpush.bf16.msra.mxu0 %v7190
    %7566 = vmatpush.bf16.msra.mxu0 %v7186
    %7567 = vmatpush.bf16.msra.mxu0 %v7182
    %7568 = vmatpush.bf16.msra.mxu0 %v7178
    %7569 = vmatpush.bf16.msra.mxu0 %v7174
    %7570 = vmatpush.bf16.msra.mxu0 %v7170
    %7571 = vmatpush.bf16.msra.mxu0 %v7166
    %7572 = vmatpush.bf16.msra.mxu0 %v7162
    %7573 = vmatmul.bf16.gmra.mxu0 %v6601
    %v7574 = vpop.f32.mrf.mxu0
    %v7575 = vadd.f32 %v7561, %v7574
    %v7576 = vpop.f32.mrf.mxu0
    %v7577 = vadd.f32 %v7563, %v7576
    %7578 = vdwg.mxu0
    %7579 = vmatpush.bf16.msra.mxu0 %v7222
    %7580 = vmatpush.bf16.msra.mxu0 %v7218
    %7581 = vmatpush.bf16.msra.mxu0 %v7214
    %7582 = vmatpush.bf16.msra.mxu0 %v7210
    %7583 = vmatpush.bf16.msra.mxu0 %v7206
    %7584 = vmatpush.bf16.msra.mxu0 %v7202
    %7585 = vmatpush.bf16.msra.mxu0 %v7198
    %7586 = vmatpush.bf16.msra.mxu0 %v7194
    %7587 = vmatmul.bf16.gmra.mxu0 %v6602
    %v7588 = vpop.f32.mrf.mxu0
    %v7589 = vadd.f32 %v7575, %v7588
    %v7590 = vpop.f32.mrf.mxu0
    %v7591 = vadd.f32 %v7577, %v7590
    %7592 = vdwg.mxu0
    %7593 = vmatpush.bf16.msra.mxu0 %v7254
    %7594 = vmatpush.bf16.msra.mxu0 %v7250
    %7595 = vmatpush.bf16.msra.mxu0 %v7246
    %7596 = vmatpush.bf16.msra.mxu0 %v7242
    %7597 = vmatpush.bf16.msra.mxu0 %v7238
    %7598 = vmatpush.bf16.msra.mxu0 %v7234
    %7599 = vmatpush.bf16.msra.mxu0 %v7230
    %7600 = vmatpush.bf16.msra.mxu0 %v7226
    %7601 = vmatmul.bf16.gmra.mxu0 %v6603
    %v7602 = vpop.f32.mrf.mxu0
    %v7603 = vadd.f32 %v7589, %v7602
    %v7604 = vpop.f32.mrf.mxu0
    %v7605 = vadd.f32 %v7591, %v7604
    %7606 = vdwg.mxu0
    %v7607 = vmax.f32 %v7435, 0.0
    %v7608 = vmax.f32 %v7491, 0.0
    %v7609 = vmax.f32 %v7547, 0.0
    %v7610 = vmax.f32 %v7603, 0.0
    %v7611 = vmax.f32 %v7437, 0.0
    %v7612 = vmax.f32 %v7493, 0.0
    %v7613 = vmax.f32 %v7549, 0.0
    %v7614 = vmax.f32 %v7605, 0.0
    %v7615 = vld [vmem:[#allocation20] sm:$0xf]
    %v7617 = vperm.slane %v7615, 0
    %v7618 = vperm.slane %v7615, 1
    %v7619 = vperm.slane %v7615, 2
    %v7620 = vperm.slane %v7615, 3
    %v7625 = vmul.f32 %v7607, %v7617
    %v7626 = vmul.f32 %v7608, %v7618
    %v7627 = vmul.f32 %v7609, %v7619
    %v7628 = vmul.f32 %v7610, %v7620
    %v7629 = vmul.f32 %v7611, %v7617
    %v7630 = vmul.f32 %v7612, %v7618
    %v7631 = vmul.f32 %v7613, %v7619
    %v7632 = vmul.f32 %v7614, %v7620
    %v7633 = vadd.f32 %v7625, %v7626
    %v7634 = vadd.f32 %v7633, %v7627
    %v7635 = vadd.f32 %v7634, %v7628
    %7636 = vadd.xlane.f32.xlu0 %v7635
    %v7637 = vpop.xlane.xlu0 %7636
    %v7638 = vadd.f32 %v7629, %v7630
    %v7639 = vadd.f32 %v7638, %v7631
    %v7640 = vadd.f32 %v7639, %v7632
    %7641 = vadd.xlane.f32.xlu0 %v7640
    %v7642 = vpop.xlane.xlu0 %7641
    %v7643 = vld [vmem:[#allocation6] sm:$0x1]
    %v7645 = vperm.slane %v7643, 0
    %v7647 = vadd.f32 %v7637, %v7645
    %v7648 = vadd.f32 %v7642, %v7645
    %v7649 = vxor.u32 %v7647, 2147483648
    %v7650 = vxor.u32 %v7648, 2147483648
    %v7651 = vmul.f32 %v7649, 1.442695
    %v7652 = vpow.pop %v7651
    %v7653 = vmul.f32 %v7650, 1.442695
    %v7654 = vpow.pop %v7653
    %v7655 = vadd.f32 %v7652, 1.0
    %v7656 = vadd.f32 %v7654, 1.0
    %v7657 = vrcp.pop %v7655
    %v7658 = vmul.f32 %v7655, %v7657
    %v7659 = vsub.f32 1.0, %v7658
    %v7660 = vmul.f32 %v7657, %v7659
    %v7661 = vadd.f32 %v7657, %v7660
    %vm7662 = vweird.f32 %v7655
    %vm7663 = vweird.f32 %v7657
    %vm7664 = vmor %vm7662, %vm7663
    %v7665 = vsel %vm7664, %v7657, %v7661
    %v7666 = vand.u32 2147483647, %v7655
    %vm7667 = vcmp.eq.f32.partialorder %v7666, 8.507059e+37
    %v7668 = vand.u32 %v7655, 2147483648
    %v7669 = vor.u32 1.1754944e-38, %v7668
    %v7670 = vsel %vm7667, %v7669, %v7665
    %v7671 = vmul.f32 1.0, %v7670
    %v7672 = vrcp.pop %v7656
    %v7673 = vmul.f32 %v7656, %v7672
    %v7674 = vsub.f32 1.0, %v7673
    %v7675 = vmul.f32 %v7672, %v7674
    %v7676 = vadd.f32 %v7672, %v7675
    %vm7677 = vweird.f32 %v7656
    %vm7678 = vweird.f32 %v7672
    %vm7679 = vmor %vm7677, %vm7678
    %v7680 = vsel %vm7679, %v7672, %v7676
    %v7681 = vand.u32 2147483647, %v7656
    %vm7682 = vcmp.eq.f32.partialorder %v7681, 8.507059e+37
    %v7683 = vand.u32 %v7656, 2147483648
    %v7684 = vor.u32 1.1754944e-38, %v7683
    %v7685 = vsel %vm7682, %v7684, %v7680
    %v7686 = vmul.f32 1.0, %v7685
    %vm7687 = vcmask 7168
    %7688 = vst.msk [vmem:[%s14] sm:$0xff] %vm7687, %v7671
    %7689 = vst.msk [vmem:[%s14 + $0x8] sm:$0xff] %vm7687, %v7686
    // Predicated region
    $region94: #{farmer_lstm_model_npc.1} parent=1 // pred_check
      _
    $region95: #{farmer_lstm_model_npc.1} parent=1 // pred_check_branch
      %7691 = sbr.rel (0) target = $region97
    $region96: #{farmer_lstm_model_npc.1} parent=1 // pred_region
      _
    $region97: #{farmer_lstm_model_npc.1} parent=1 // pred_fallthru
      _
    // Predicated region
    $region98: #{farmer_lstm_model_npc.1} parent=1 // pred_check
      _
    $region99: #{farmer_lstm_model_npc.1} parent=1 // pred_check_branch
      %7693 = sbr.rel (0) target = $region101
    $region100: #{farmer_lstm_model_npc.1} parent=1 // pred_region
      _
    $region101: #{farmer_lstm_model_npc.1} parent=1 // pred_fallthru
      _
    %7694 = vsyncpa [#allocation8], 1
    %7695 = vsyncpa [#allocation10], 1
    %7696 = vsyncpa [#allocation13], 1
    %7697 = vsyncpa [#allocation16], 1
    %7698 = vsyncpa [#allocation19], 1
  %7699 = vsyncmov [#allocation5]
  %s7700 = vpop.sfrf %7699
  %p7701 = scmp.eq.s32.totalorder %s7700, 0
  %p7702 = pneg %p7701
  %7704 = shalt.err (%p7702)
  %s7705 = scalar_lea.sflag [#allocation5], 1
  %7706 = vsyncmov %s7705
  %s7707 = vpop.sfrf %7706
  %p7708 = scmp.eq.s32.totalorder %s7707, 0
  %p7709 = pneg %p7708
  %7711 = shalt.err (%p7709)

</llo_original>
